<compile_context>
chip_gen: v7x
topology: tpu7x:2x2x1
jax: 0.10.0
libtpu: 0.0.40
codegen_flags: <defaults>
</compile_context>

<pallas_src>
import functools
import math

import jax
import jax.numpy as jnp
from jax import lax
from jax.experimental import pallas as pl
from jax.experimental.pallas import tpu as pltpu

_DEFAULT_SCALE_CLAMP = math.log(100000.0 / 16)
LN_EPS = 1e-5  # torch nn.LayerNorm default


def _ln(x, g, b):
    mean = jnp.mean(x, axis=-1, keepdims=True)
    var = jnp.mean(jnp.square(x - mean), axis=-1, keepdims=True)
    return (x - mean) * lax.rsqrt(var + LN_EPS) * g + b


def _relu(x):
    return jnp.maximum(x, 0.0)


# =====================================================================================
# Call A: self-attention (+ residual + norm1) and the DynamicConv parameter projection,
# one grid step per image in the batch.
# =====================================================================================
def _attn_dyn_kernel(pro_ref, wq_ref, wk_ref, wv_ref, bq_ref, bk_ref, bv_ref,
                     wp_ref, bp_ref, n1g_ref, n1b_ref, dynw_ref, dynb_ref,
                     pro1_ref, params_ref, *, nhead, scale):
    x = pro_ref[0]                                   # (nr, d) f32
    d = x.shape[-1]
    hd = d // nhead

    # full-width q/k/v projections (MXU-friendly), heads sliced from the results
    q = jnp.dot(x, wq_ref[...], preferred_element_type=jnp.float32) + bq_ref[...]
    k = jnp.dot(x, wk_ref[...], preferred_element_type=jnp.float32) + bk_ref[...]
    v = jnp.dot(x, wv_ref[...], preferred_element_type=jnp.float32) + bv_ref[...]
    wp = wp_ref[...]

    # all heads processed inside this single kernel invocation; the output projection is
    # accumulated per head (out = concat_h(o_h) @ Wp  ==  sum_h o_h @ Wp[h*hd:(h+1)*hd, :]),
    # which avoids any in-kernel lane concatenation.
    acc = jnp.zeros_like(x)
    for h in range(nhead):
        lo, hi = h * hd, (h + 1) * hd
        qh = q[:, lo:hi]
        kh = k[:, lo:hi]
        vh = v[:, lo:hi]
        s = lax.dot_general(qh, kh, (((1,), (1,)), ((), ())),
                            preferred_element_type=jnp.float32) * scale
        s = s - jnp.max(s, axis=-1, keepdims=True)
        p = jnp.exp(s)
        p = p * pl.reciprocal(jnp.sum(p, axis=-1, keepdims=True), approx=True)
        oh = jnp.dot(p, vh, preferred_element_type=jnp.float32)          # (nr, hd)
        acc = acc + jnp.dot(oh, wp[lo:hi, :], preferred_element_type=jnp.float32)

    x = x + acc + bp_ref[...]                        # residual + proj bias (dropout1 = id)
    x = _ln(x, n1g_ref[...], n1b_ref[...])           # norm1
    pro1_ref[0] = x.astype(pro1_ref.dtype)

    # DynamicConv dynamic_layer: (nr, d) @ (d, 2*num_params) -> lane-dense output
    params = jnp.dot(x, dynw_ref[...], preferred_element_type=jnp.float32) + dynb_ref[...]
    params_ref[0] = params.astype(params_ref.dtype)


# =====================================================================================
# Call B: DynamicConv + FFN + towers + heads + box decode + policy blends,
# one grid step per image in the batch, packed lane-dense output slab.
# =====================================================================================
def _head_kernel(pro1_ref, pro_last_ref, feats_ref, p1_ref, p2_ref,
                 logits_ref, bboxes_ref, policy_ref, policy_st_ref,
                 dln1g_ref, dln1b_ref, dln2g_ref, dln2b_ref,
                 doutw_ref, doutb_ref, dln3g_ref, dln3b_ref,
                 n2g_ref, n2b_ref,
                 l1w_ref, l1b_ref, l2w_ref, l2b_ref,
                 n3g_ref, n3b_ref,
                 ctw_ref, ctg_ref, ctb_ref,
                 rtw_ref, rtg_ref, rtb_ref,
                 clsw_ref, clsb_ref, regw_ref, regb_ref,
                 out_ref, x2s_ref, *, bbox_weights, scale_clamp):
    nr = pro1_ref.shape[1]
    d = pro1_ref.shape[2]
    r2 = feats_ref.shape[2]
    nc = clsw_ref.shape[1]

    pro1 = pro1_ref[0]                               # (nr, d) post-norm1 features
    policy = policy_ref[0]                           # (nr, 1)

    # ---- DynamicConv: batched per-box bmm (all nr boxes of this image at once) ----
    x1 = jnp.einsum("brd,bde->bre", feats_ref[0], p1_ref[0],
                    preferred_element_type=jnp.float32)                   # (nr, R2, dd)
    x1 = _relu(_ln(x1, dln1g_ref[...], dln1b_ref[...]))
    x2 = jnp.einsum("bre,bed->brd", x1, p2_ref[0],
                    preferred_element_type=jnp.float32)                   # (nr, R2, d)
    x2 = _relu(_ln(x2, dln2g_ref[...], dln2b_ref[...]))

    # flatten(1) + out_layer expressed as  sum_r x2[:, r, :] @ Wout[r*d:(r+1)*d, :]
    # (via a small VMEM scratch -> no in-kernel reshape of the lane dimension needed)
    x2s_ref[...] = x2
    y = jnp.zeros((nr, d), jnp.float32)
    for r in range(r2):
        y = y + jnp.dot(x2s_ref[:, r, :], doutw_ref[r * d:(r + 1) * d, :],
                        preferred_element_type=jnp.float32)
    feats_o = _relu(_ln(y + doutb_ref[...], dln3g_ref[...], dln3b_ref[...]))  # (nr, d)

    # policy gating + residual (dropout2 = id) + norm2
    x = pro1 + feats_o * policy
    obj = _ln(x, n2g_ref[...], n2b_ref[...])

    # ---- FFN (activation='relu', dropouts = id) ----
    h = _relu(jnp.dot(obj, l1w_ref[...], preferred_element_type=jnp.float32) + l1b_ref[...])
    h = jnp.dot(h, l2w_ref[...], preferred_element_type=jnp.float32) + l2b_ref[...]
    obj = _ln(obj + h, n3g_ref[...], n3b_ref[...])                        # (nr, d)

    # ---- cls / reg towers: Linear(no bias) -> LN -> ReLU, fused ----
    cls_f = obj
    for t in range(ctw_ref.shape[0]):
        cls_f = jnp.dot(cls_f, ctw_ref[t], preferred_element_type=jnp.float32)
        cls_f = _relu(_ln(cls_f, ctg_ref[t:t + 1, :], ctb_ref[t:t + 1, :]))
    reg_f = obj
    for t in range(rtw_ref.shape[0]):
        reg_f = jnp.dot(reg_f, rtw_ref[t], preferred_element_type=jnp.float32)
        reg_f = _relu(_ln(reg_f, rtg_ref[t:t + 1, :], rtb_ref[t:t + 1, :]))

    class_logits = (jnp.dot(cls_f, clsw_ref[...], preferred_element_type=jnp.float32)
                    + clsb_ref[...])                                      # (nr, nc)
    deltas = (jnp.dot(reg_f, regw_ref[...], preferred_element_type=jnp.float32)
              + regb_ref[...])                                            # (nr, 4)

    # ---- apply_deltas (box decode), fused (class-agnostic k == 1) ----
    boxes = bboxes_ref[0]                                                 # (nr, 4)
    wx, wy, ww, wh = bbox_weights
    x1b, y1b = boxes[:, 0:1], boxes[:, 1:2]
    x2b, y2b = boxes[:, 2:3], boxes[:, 3:4]
    widths = x2b - x1b
    heights = y2b - y1b
    ctr_x = x1b + 0.5 * widths
    ctr_y = y1b + 0.5 * heights
    dx = deltas[:, 0:1] * (1.0 / wx)
    dy = deltas[:, 1:2] * (1.0 / wy)
    dw = jnp.minimum(deltas[:, 2:3] * (1.0 / ww), scale_clamp)
    dh = jnp.minimum(deltas[:, 3:4] * (1.0 / wh), scale_clamp)
    pcx = dx * widths + ctr_x
    pcy = dy * heights + ctr_y
    pw = jnp.exp(dw) * widths
    ph = jnp.exp(dh) * heights
    pred_cols = (pcx - 0.5 * pw, pcy - 0.5 * ph, pcx + 0.5 * pw, pcy + 0.5 * ph)

    # ---- policy blends, packed into one lane-dense output slab ----
    ap = policy + policy_st_ref[0]                   # attn_policy (detach -> no-op), (nr, 1)
    om = 1.0 - ap
    out_ref[0, :, 0:nc] = (logits_ref[0] * om + class_logits * ap).astype(out_ref.dtype)
    for col, pred in enumerate(pred_cols):
        out_ref[0, :, nc + col:nc + col + 1] = (
            boxes[:, col:col + 1] * om + pred * ap).astype(out_ref.dtype)
    out_ref[0, :, nc + 4:nc + 4 + d] = (
        pro_last_ref[0] * om + obj * ap).astype(out_ref.dtype)
    pad = out_ref.shape[2] - (nc + 4 + d)
    if pad > 0:
        out_ref[0, :, nc + 4 + d:] = jnp.zeros((nr, pad), out_ref.dtype)


# ------------------------------------------------------------------ parameters
def init_params(key, cfg):
    d = cfg["d_model"]
    dff = cfg["dim_feedforward"]
    dd = cfg["dim_dynamic"]
    r2 = cfg["pooler_resolution"] ** 2
    nc = cfg["num_classes"]                  # use_focal=True -> num_classes logits
    num_params = d * dd
    ks = iter(jax.random.split(key, 64))

    def w(shape, scale=0.02):
        return jax.random.normal(next(ks), shape, jnp.float32) * scale

    def zeros(*s):
        return jnp.zeros(s, jnp.float32)

    def ones(*s):
        return jnp.ones(s, jnp.float32)

    return {
        # Attention (qkv_bias=True)
        "attn_qkv_w": w((d, 3 * d)), "attn_qkv_b": w((3 * d,), 0.01),
        "attn_proj_w": w((d, d)), "attn_proj_b": zeros(d),
        # DynamicConv (num_dynamic=2)
        "dyn_w": w((d, 2 * num_params)), "dyn_b": zeros(2 * num_params),
        "dc_ln1_g": ones(dd), "dc_ln1_b": zeros(dd),
        "dc_ln2_g": ones(d), "dc_ln2_b": zeros(d),
        "dc_out_w": w((r2 * d, d)), "dc_out_b": zeros(d),
        "dc_ln3_g": ones(d), "dc_ln3_b": zeros(d),
        # FFN + norms
        "lin1_w": w((d, dff)), "lin1_b": zeros(dff),
        "lin2_w": w((dff, d)), "lin2_b": zeros(d),
        "norm1_g": ones(d), "norm1_b": zeros(d),
        "norm2_g": ones(d), "norm2_b": zeros(d),
        "norm3_g": ones(d), "norm3_b": zeros(d),
        # cls / reg towers (Linear(no bias) + LN + ReLU), stacked
        "cls_tower_w": w((cfg["num_cls"], d, d)),
        "cls_tower_g": ones(cfg["num_cls"], d), "cls_tower_b": zeros(cfg["num_cls"], d),
        "reg_tower_w": w((cfg["num_reg"], d, d)),
        "reg_tower_g": ones(cfg["num_reg"], d), "reg_tower_b": zeros(cfg["num_reg"], d),
        # heads
        "cls_w": w((d, nc)), "cls_b": zeros(nc),
        "reg_w": w((d, 4)), "reg_b": zeros(4),
    }


# ------------------------------------------------------------------ RCNNHead forward (eval)
def rcnn_head_forward(params, roi_features, logits, bboxes, pro_features,
                      policy, policy_st, cfg):
    d = cfg["d_model"]
    H = cfg["nhead"]
    hd = d // H
    R = cfg["pooler_resolution"]
    R2 = R * R
    dd = cfg["dim_dynamic"]
    dff = cfg["dim_feedforward"]
    num_params = d * dd
    num_cls = cfg["num_cls"]
    num_reg = cfg["num_reg"]
    nc = logits.shape[-1]
    N, nr = bboxes.shape[:2]
    NB = N * nr
    f32 = jnp.float32

    def row(v):
        return v.reshape(1, -1)

    def rep(shape):                      # whole-array block, constant index map (weights)
        nd = len(shape)
        return pl.BlockSpec(shape, lambda n, nd=nd: (0,) * nd)

    def bat(shape):                      # blocked along the leading (batch) grid axis
        nd = len(shape)
        return pl.BlockSpec((1,) + tuple(shape[1:]),
                            lambda n, nd=nd: (n,) + (0,) * (nd - 1))

    pro = pro_features.reshape(N, nr, d)
    pro_last = pro_features.reshape(N, nr, d)

    # split fused qkv weight/bias (tiny, wrapper-side)
    wqkv, bqkv = params["attn_qkv_w"], params["attn_qkv_b"]
    wq, wk, wv = wqkv[:, :d], wqkv[:, d:2 * d], wqkv[:, 2 * d:]
    bq, bk, bv = row(bqkv[:d]), row(bqkv[d:2 * d]), row(bqkv[2 * d:])

    # ---- call A: attention + norm1 + dynamic parameter projection ----
    pro1, parameters = pl.pallas_call(
        functools.partial(_attn_dyn_kernel, nhead=H, scale=hd ** -0.5),
        out_shape=(jax.ShapeDtypeStruct((N, nr, d), f32),
                   jax.ShapeDtypeStruct((N, nr, 2 * num_params), f32)),
        grid=(N,),
        in_specs=[bat((N, nr, d)),
                  rep((d, d)), rep((d, d)), rep((d, d)),
                  rep((1, d)), rep((1, d)), rep((1, d)),
                  rep((d, d)), rep((1, d)),
                  rep((1, d)), rep((1, d)),
                  rep((d, 2 * num_params)), rep((1, 2 * num_params))],
        out_specs=(bat((N, nr, d)), bat((N, nr, 2 * num_params))),
        compiler_params=pltpu.CompilerParams(dimension_semantics=("parallel",)),
    )(pro, wq, wk, wv, bq, bk, bv,
      params["attn_proj_w"], row(params["attn_proj_b"]),
      row(params["norm1_g"]), row(params["norm1_b"]),
      params["dyn_w"], row(params["dyn_b"]))

    # per-box dynamic kernels (lane-splitting views done by XLA on tiny tensors)
    param1 = parameters[..., :num_params].reshape(N, nr, d, dd)
    param2 = parameters[..., num_params:].reshape(N, nr, dd, d)
    # ROI features (NB, d, R, R) -> (N, nr, R2, d): single transpose (old double transpose gone)
    feats = roi_features.reshape(N, nr, d, R2).transpose(0, 1, 3, 2)

    # ---- call B: DynamicConv + FFN + towers + heads + box decode + blends ----
    PAD = ((nc + 4 + d + 127) // 128) * 128      # lane-dense packed output slab
    slab = pl.pallas_call(
        functools.partial(_head_kernel, bbox_weights=cfg["bbox_weights"],
                          scale_clamp=cfg["scale_clamp"]),
        out_shape=jax.ShapeDtypeStruct((N, nr, PAD), f32),
        grid=(N,),
        in_specs=[bat((N, nr, d)), bat((N, nr, d)),
                  bat((N, nr, R2, d)), bat((N, nr, d, dd)), bat((N, nr, dd, d)),
                  bat((N, nr, nc)), bat((N, nr, 4)), bat((N, nr, 1)), bat((N, nr, 1)),
                  rep((1, dd)), rep((1, dd)), rep((1, d)), rep((1, d)),
                  rep((R2 * d, d)), rep((1, d)), rep((1, d)), rep((1, d)),
                  rep((1, d)), rep((1, d)),
                  rep((d, dff)), rep((1, dff)), rep((dff, d)), rep((1, d)),
                  rep((1, d)), rep((1, d)),
                  rep((num_cls, d, d)), rep((num_cls, d)), rep((num_cls, d)),
                  rep((num_reg, d, d)), rep((num_reg, d)), rep((num_reg, d)),
                  rep((d, nc)), rep((1, nc)), rep((d, 4)), rep((1, 4))],
        out_specs=bat((N, nr, PAD)),
        scratch_shapes=[pltpu.VMEM((nr, R2, d), f32)],
        compiler_params=pltpu.CompilerParams(dimension_semantics=("parallel",)),
    )(pro1, pro_last, feats, param1, param2,
      logits, bboxes, policy, policy_st,
      row(params["dc_ln1_g"]), row(params["dc_ln1_b"]),
      row(params["dc_ln2_g"]), row(params["dc_ln2_b"]),
      params["dc_out_w"], row(params["dc_out_b"]),
      row(params["dc_ln3_g"]), row(params["dc_ln3_b"]),
      row(params["norm2_g"]), row(params["norm2_b"]),
      params["lin1_w"], row(params["lin1_b"]),
      params["lin2_w"], row(params["lin2_b"]),
      row(params["norm3_g"]), row(params["norm3_b"]),
      params["cls_tower_w"], params["cls_tower_g"], params["cls_tower_b"],
      params["reg_tower_w"], params["reg_tower_g"], params["reg_tower_b"],
      params["cls_w"], row(params["cls_b"]),
      params["reg_w"], row(params["reg_b"]))

    class_logits_out = slab[..., :nc]                               # (N, nr, nc)
    pred_bboxes_out = slab[..., nc:nc + 4]                          # (N, nr, 4)
    obj_features_out = slab[..., nc + 4:nc + 4 + d].reshape(1, NB, d)

    pred_score = None                                               # prune=False
    return class_logits_out, pred_bboxes_out, obj_features_out, policy, pred_score, policy_st


# ------------------------------------------------------------------ main
if __name__ == "__main__":
    cfg = dict(d_model=64, nhead=8, dim_feedforward=128, num_classes=10,
               dim_dynamic=16, pooler_resolution=2, num_cls=1, num_reg=1,
               bbox_weights=(2.0, 2.0, 1.0, 1.0), scale_clamp=_DEFAULT_SCALE_CLAMP)
    N, nr = 2, 8
    d, R = cfg["d_model"], cfg["pooler_resolution"]
    NB = N * nr

    key = jax.random.PRNGKey(0)
    kp, k1, k2, k3, k4, k5, k6 = jax.random.split(key, 7)
    params = init_params(kp, cfg)

    pro_features = jax.random.normal(k1, (1, NB, d), jnp.float32)
    roi_features = jax.random.normal(k2, (NB, d, R, R), jnp.float32)     # synthetic pooler out
    logits = jax.random.normal(k3, (N, nr, cfg["num_classes"]), jnp.float32)
    xy = jax.random.uniform(k4, (N, nr, 2), jnp.float32, 0.0, 50.0)
    wh = jax.random.uniform(k5, (N, nr, 2), jnp.float32, 4.0, 60.0)
    bboxes = jnp.concatenate([xy, xy + wh], axis=-1)                     # valid (x1,y1,x2,y2)
    policy = (jax.random.uniform(k6, (N, nr, 1)) > 0.5).astype(jnp.float32)
    policy_st = (1.0 - policy) * 0.5

    fwd = jax.jit(functools.partial(rcnn_head_forward, cfg=cfg))
    outs = fwd(params, roi_features, logits, bboxes, pro_features, policy, policy_st)
    jax.block_until_ready(outs)

    cls_out, box_out, obj_out, pol, ps, pol_st = outs
    assert cls_out.shape == (N, nr, cfg["num_classes"])
    assert box_out.shape == (N, nr, 4)
    assert obj_out.shape == (1, NB, d)
    assert bool(jnp.all(jnp.isfinite(cls_out))) and bool(jnp.all(jnp.isfinite(box_out)))
    print("KERNEL_OK")
</pallas_src>

<mosaic_0001>
module attributes {stable_mosaic.version = 11 : i64} {
  func.func @_attn_dyn_kernel(%arg0: i32, %arg1: memref<1x8x64xf32, #tpu.memory_space<vmem>>, %arg2: memref<64x64xf32, #tpu.memory_space<vmem>>, %arg3: memref<64x64xf32, #tpu.memory_space<vmem>>, %arg4: memref<64x64xf32, #tpu.memory_space<vmem>>, %arg5: memref<1x64xf32, #tpu.memory_space<vmem>>, %arg6: memref<1x64xf32, #tpu.memory_space<vmem>>, %arg7: memref<1x64xf32, #tpu.memory_space<vmem>>, %arg8: memref<64x64xf32, #tpu.memory_space<vmem>>, %arg9: memref<1x64xf32, #tpu.memory_space<vmem>>, %arg10: memref<1x64xf32, #tpu.memory_space<vmem>>, %arg11: memref<1x64xf32, #tpu.memory_space<vmem>>, %arg12: memref<64x2048xf32, #tpu.memory_space<vmem>>, %arg13: memref<1x2048xf32, #tpu.memory_space<vmem>>, %arg14: memref<1x8x64xf32, #tpu.memory_space<vmem>>, %arg15: memref<1x8x2048xf32, #tpu.memory_space<vmem>>) attributes {dimension_semantics = [#tpu.dimension_semantics<parallel>], iteration_bounds = array<i64: 2>, scalar_prefetch = 0 : i64, scratch_operands = 0 : i64, tpu.core_type = #tpu.core_type<tc>, window_params = [{transform_indices = @transform_0, window_bounds = array<i64: 1, 8, 64>}, {pipeline_mode = #tpu.pipeline_mode<synchronous>, transform_indices = @transform_1, window_bounds = array<i64: 64, 64>}, {pipeline_mode = #tpu.pipeline_mode<synchronous>, transform_indices = @transform_2, window_bounds = array<i64: 64, 64>}, {pipeline_mode = #tpu.pipeline_mode<synchronous>, transform_indices = @transform_3, window_bounds = array<i64: 64, 64>}, {pipeline_mode = #tpu.pipeline_mode<synchronous>, transform_indices = @transform_4, window_bounds = array<i64: 1, 64>}, {pipeline_mode = #tpu.pipeline_mode<synchronous>, transform_indices = @transform_5, window_bounds = array<i64: 1, 64>}, {pipeline_mode = #tpu.pipeline_mode<synchronous>, transform_indices = @transform_6, window_bounds = array<i64: 1, 64>}, {pipeline_mode = #tpu.pipeline_mode<synchronous>, transform_indices = @transform_7, window_bounds = array<i64: 64, 64>}, {pipeline_mode = #tpu.pipeline_mode<synchronous>, transform_indices = @transform_8, window_bounds = array<i64: 1, 64>}, {pipeline_mode = #tpu.pipeline_mode<synchronous>, transform_indices = @transform_9, window_bounds = array<i64: 1, 64>}, {pipeline_mode = #tpu.pipeline_mode<synchronous>, transform_indices = @transform_10, window_bounds = array<i64: 1, 64>}, {pipeline_mode = #tpu.pipeline_mode<synchronous>, transform_indices = @transform_11, window_bounds = array<i64: 64, 2048>}, {pipeline_mode = #tpu.pipeline_mode<synchronous>, transform_indices = @transform_12, window_bounds = array<i64: 1, 2048>}, {transform_indices = @transform_13, window_bounds = array<i64: 1, 8, 64>}, {transform_indices = @transform_14, window_bounds = array<i64: 1, 8, 2048>}]} {
    %c0 = arith.constant 0 : index
    %c0_0 = arith.constant 0 : index
    %c0_1 = arith.constant 0 : index
    %0 = vector.load %arg1[%c0, %c0_0, %c0_1] : memref<1x8x64xf32, #tpu.memory_space<vmem>>, vector<1x8x64xf32>
    %1 = vector.shape_cast %0 : vector<1x8x64xf32> to vector<8x64xf32>
    %c0_2 = arith.constant 0 : index
    %c0_3 = arith.constant 0 : index
    %2 = vector.load %arg2[%c0_2, %c0_3] : memref<64x64xf32, #tpu.memory_space<vmem>>, vector<64x64xf32>
    %cst = arith.constant dense<0.000000e+00> : vector<8x64xf32>
    %3 = tpu.matmul %1, %2, %cst {dimension_numbers = #tpu.dot_dimension_numbers<[1], [0], [0], [1], [0, 0, 1, 1], [], []>} : vector<8x64xf32>, vector<64x64xf32>, vector<8x64xf32> -> vector<8x64xf32>
    %c0_4 = arith.constant 0 : index
    %c0_5 = arith.constant 0 : index
    %4 = vector.load %arg5[%c0_4, %c0_5] : memref<1x64xf32, #tpu.memory_space<vmem>>, vector<1x64xf32>
    %5 = vector.broadcast %4 : vector<1x64xf32> to vector<8x64xf32>
    %6 = arith.addf %3, %5 : vector<8x64xf32>
    %c0_6 = arith.constant 0 : index
    %c0_7 = arith.constant 0 : index
    %7 = vector.load %arg3[%c0_6, %c0_7] : memref<64x64xf32, #tpu.memory_space<vmem>>, vector<64x64xf32>
    %cst_8 = arith.constant dense<0.000000e+00> : vector<8x64xf32>
    %8 = tpu.matmul %1, %7, %cst_8 {dimension_numbers = #tpu.dot_dimension_numbers<[1], [0], [0], [1], [0, 0, 1, 1], [], []>} : vector<8x64xf32>, vector<64x64xf32>, vector<8x64xf32> -> vector<8x64xf32>
    %c0_9 = arith.constant 0 : index
    %c0_10 = arith.constant 0 : index
    %9 = vector.load %arg6[%c0_9, %c0_10] : memref<1x64xf32, #tpu.memory_space<vmem>>, vector<1x64xf32>
    %10 = vector.broadcast %9 : vector<1x64xf32> to vector<8x64xf32>
    %11 = arith.addf %8, %10 : vector<8x64xf32>
    %c0_11 = arith.constant 0 : index
    %c0_12 = arith.constant 0 : index
    %12 = vector.load %arg4[%c0_11, %c0_12] : memref<64x64xf32, #tpu.memory_space<vmem>>, vector<64x64xf32>
    %cst_13 = arith.constant dense<0.000000e+00> : vector<8x64xf32>
    %13 = tpu.matmul %1, %12, %cst_13 {dimension_numbers = #tpu.dot_dimension_numbers<[1], [0], [0], [1], [0, 0, 1, 1], [], []>} : vector<8x64xf32>, vector<64x64xf32>, vector<8x64xf32> -> vector<8x64xf32>
    %c0_14 = arith.constant 0 : index
    %c0_15 = arith.constant 0 : index
    %14 = vector.load %arg7[%c0_14, %c0_15] : memref<1x64xf32, #tpu.memory_space<vmem>>, vector<1x64xf32>
    %15 = vector.broadcast %14 : vector<1x64xf32> to vector<8x64xf32>
    %16 = arith.addf %13, %15 : vector<8x64xf32>
    %c0_16 = arith.constant 0 : index
    %c0_17 = arith.constant 0 : index
    %17 = vector.load %arg8[%c0_16, %c0_17] : memref<64x64xf32, #tpu.memory_space<vmem>>, vector<64x64xf32>
    %cst_18 = arith.constant 0.000000e+00 : f32
    %18 = vector.broadcast %cst_18 : f32 to vector<8x64xf32>
    %19 = vector.extract_strided_slice %6 {offsets = [0, 0], sizes = [8, 8], strides = [1, 1]} : vector<8x64xf32> to vector<8x8xf32>
    %20 = vector.extract_strided_slice %11 {offsets = [0, 0], sizes = [8, 8], strides = [1, 1]} : vector<8x64xf32> to vector<8x8xf32>
    %21 = vector.extract_strided_slice %16 {offsets = [0, 0], sizes = [8, 8], strides = [1, 1]} : vector<8x64xf32> to vector<8x8xf32>
    %cst_19 = arith.constant dense<0.000000e+00> : vector<8x8xf32>
    %22 = tpu.matmul %19, %20, %cst_19 {dimension_numbers = #tpu.dot_dimension_numbers<[1], [1], [0], [0], [0, 0, 1, 0], [], []>} : vector<8x8xf32>, vector<8x8xf32>, vector<8x8xf32> -> vector<8x8xf32>
    %cst_20 = arith.constant 0.353553385 : f32
    %23 = vector.broadcast %cst_20 : f32 to vector<8x8xf32>
    %24 = arith.mulf %22, %23 : vector<8x8xf32>
    %cst_21 = arith.constant dense<0xFF800000> : vector<8xf32>
    %25 = vector.multi_reduction <maximumf>, %24, %cst_21 [1] : vector<8x8xf32> to vector<8xf32>
    %26 = vector.shape_cast %25 : vector<8xf32> to vector<8x1xf32>
    %27 = vector.broadcast %26 : vector<8x1xf32> to vector<8x8xf32>
    %28 = arith.subf %24, %27 : vector<8x8xf32>
    %29 = math.exp %28 : vector<8x8xf32>
    %cst_22 = arith.constant dense<0.000000e+00> : vector<8xf32>
    %30 = vector.multi_reduction <add>, %29, %cst_22 [1] : vector<8x8xf32> to vector<8xf32>
    %31 = vector.shape_cast %30 : vector<8xf32> to vector<8x1xf32>
    %32 = tpu.reciprocal %31 {approx = true} : vector<8x1xf32> -> vector<8x1xf32>
    %33 = vector.broadcast %32 : vector<8x1xf32> to vector<8x8xf32>
    %34 = arith.mulf %29, %33 : vector<8x8xf32>
    %cst_23 = arith.constant dense<0.000000e+00> : vector<8x8xf32>
    %35 = tpu.matmul %34, %21, %cst_23 {dimension_numbers = #tpu.dot_dimension_numbers<[1], [0], [0], [1], [0, 0, 1, 1], [], []>} : vector<8x8xf32>, vector<8x8xf32>, vector<8x8xf32> -> vector<8x8xf32>
    %36 = vector.extract_strided_slice %17 {offsets = [0, 0], sizes = [8, 64], strides = [1, 1]} : vector<64x64xf32> to vector<8x64xf32>
    %cst_24 = arith.constant dense<0.000000e+00> : vector<8x64xf32>
    %37 = tpu.matmul %35, %36, %cst_24 {dimension_numbers = #tpu.dot_dimension_numbers<[1], [0], [0], [1], [0, 0, 1, 1], [], []>} : vector<8x8xf32>, vector<8x64xf32>, vector<8x64xf32> -> vector<8x64xf32>
    %38 = arith.addf %18, %37 : vector<8x64xf32>
    %39 = vector.extract_strided_slice %6 {offsets = [0, 8], sizes = [8, 8], strides = [1, 1]} : vector<8x64xf32> to vector<8x8xf32>
    %40 = vector.extract_strided_slice %11 {offsets = [0, 8], sizes = [8, 8], strides = [1, 1]} : vector<8x64xf32> to vector<8x8xf32>
    %41 = vector.extract_strided_slice %16 {offsets = [0, 8], sizes = [8, 8], strides = [1, 1]} : vector<8x64xf32> to vector<8x8xf32>
    %cst_25 = arith.constant dense<0.000000e+00> : vector<8x8xf32>
    %42 = tpu.matmul %39, %40, %cst_25 {dimension_numbers = #tpu.dot_dimension_numbers<[1], [1], [0], [0], [0, 0, 1, 0], [], []>} : vector<8x8xf32>, vector<8x8xf32>, vector<8x8xf32> -> vector<8x8xf32>
    %cst_26 = arith.constant 0.353553385 : f32
    %43 = vector.broadcast %cst_26 : f32 to vector<8x8xf32>
    %44 = arith.mulf %42, %43 : vector<8x8xf32>
    %cst_27 = arith.constant dense<0xFF800000> : vector<8xf32>
    %45 = vector.multi_reduction <maximumf>, %44, %cst_27 [1] : vector<8x8xf32> to vector<8xf32>
    %46 = vector.shape_cast %45 : vector<8xf32> to vector<8x1xf32>
    %47 = vector.broadcast %46 : vector<8x1xf32> to vector<8x8xf32>
    %48 = arith.subf %44, %47 : vector<8x8xf32>
    %49 = math.exp %48 : vector<8x8xf32>
    %cst_28 = arith.constant dense<0.000000e+00> : vector<8xf32>
    %50 = vector.multi_reduction <add>, %49, %cst_28 [1] : vector<8x8xf32> to vector<8xf32>
    %51 = vector.shape_cast %50 : vector<8xf32> to vector<8x1xf32>
    %52 = tpu.reciprocal %51 {approx = true} : vector<8x1xf32> -> vector<8x1xf32>
    %53 = vector.broadcast %52 : vector<8x1xf32> to vector<8x8xf32>
    %54 = arith.mulf %49, %53 : vector<8x8xf32>
    %cst_29 = arith.constant dense<0.000000e+00> : vector<8x8xf32>
    %55 = tpu.matmul %54, %41, %cst_29 {dimension_numbers = #tpu.dot_dimension_numbers<[1], [0], [0], [1], [0, 0, 1, 1], [], []>} : vector<8x8xf32>, vector<8x8xf32>, vector<8x8xf32> -> vector<8x8xf32>
    %56 = vector.extract_strided_slice %17 {offsets = [8, 0], sizes = [8, 64], strides = [1, 1]} : vector<64x64xf32> to vector<8x64xf32>
    %cst_30 = arith.constant dense<0.000000e+00> : vector<8x64xf32>
    %57 = tpu.matmul %55, %56, %cst_30 {dimension_numbers = #tpu.dot_dimension_numbers<[1], [0], [0], [1], [0, 0, 1, 1], [], []>} : vector<8x8xf32>, vector<8x64xf32>, vector<8x64xf32> -> vector<8x64xf32>
    %58 = arith.addf %38, %57 : vector<8x64xf32>
    %59 = vector.extract_strided_slice %6 {offsets = [0, 16], sizes = [8, 8], strides = [1, 1]} : vector<8x64xf32> to vector<8x8xf32>
    %60 = vector.extract_strided_slice %11 {offsets = [0, 16], sizes = [8, 8], strides = [1, 1]} : vector<8x64xf32> to vector<8x8xf32>
    %61 = vector.extract_strided_slice %16 {offsets = [0, 16], sizes = [8, 8], strides = [1, 1]} : vector<8x64xf32> to vector<8x8xf32>
    %cst_31 = arith.constant dense<0.000000e+00> : vector<8x8xf32>
    %62 = tpu.matmul %59, %60, %cst_31 {dimension_numbers = #tpu.dot_dimension_numbers<[1], [1], [0], [0], [0, 0, 1, 0], [], []>} : vector<8x8xf32>, vector<8x8xf32>, vector<8x8xf32> -> vector<8x8xf32>
    %cst_32 = arith.constant 0.353553385 : f32
    %63 = vector.broadcast %cst_32 : f32 to vector<8x8xf32>
    %64 = arith.mulf %62, %63 : vector<8x8xf32>
    %cst_33 = arith.constant dense<0xFF800000> : vector<8xf32>
    %65 = vector.multi_reduction <maximumf>, %64, %cst_33 [1] : vector<8x8xf32> to vector<8xf32>
    %66 = vector.shape_cast %65 : vector<8xf32> to vector<8x1xf32>
    %67 = vector.broadcast %66 : vector<8x1xf32> to vector<8x8xf32>
    %68 = arith.subf %64, %67 : vector<8x8xf32>
    %69 = math.exp %68 : vector<8x8xf32>
    %cst_34 = arith.constant dense<0.000000e+00> : vector<8xf32>
    %70 = vector.multi_reduction <add>, %69, %cst_34 [1] : vector<8x8xf32> to vector<8xf32>
    %71 = vector.shape_cast %70 : vector<8xf32> to vector<8x1xf32>
    %72 = tpu.reciprocal %71 {approx = true} : vector<8x1xf32> -> vector<8x1xf32>
    %73 = vector.broadcast %72 : vector<8x1xf32> to vector<8x8xf32>
    %74 = arith.mulf %69, %73 : vector<8x8xf32>
    %cst_35 = arith.constant dense<0.000000e+00> : vector<8x8xf32>
    %75 = tpu.matmul %74, %61, %cst_35 {dimension_numbers = #tpu.dot_dimension_numbers<[1], [0], [0], [1], [0, 0, 1, 1], [], []>} : vector<8x8xf32>, vector<8x8xf32>, vector<8x8xf32> -> vector<8x8xf32>
    %76 = vector.extract_strided_slice %17 {offsets = [16, 0], sizes = [8, 64], strides = [1, 1]} : vector<64x64xf32> to vector<8x64xf32>
    %cst_36 = arith.constant dense<0.000000e+00> : vector<8x64xf32>
    %77 = tpu.matmul %75, %76, %cst_36 {dimension_numbers = #tpu.dot_dimension_numbers<[1], [0], [0], [1], [0, 0, 1, 1], [], []>} : vector<8x8xf32>, vector<8x64xf32>, vector<8x64xf32> -> vector<8x64xf32>
    %78 = arith.addf %58, %77 : vector<8x64xf32>
    %79 = vector.extract_strided_slice %6 {offsets = [0, 24], sizes = [8, 8], strides = [1, 1]} : vector<8x64xf32> to vector<8x8xf32>
    %80 = vector.extract_strided_slice %11 {offsets = [0, 24], sizes = [8, 8], strides = [1, 1]} : vector<8x64xf32> to vector<8x8xf32>
    %81 = vector.extract_strided_slice %16 {offsets = [0, 24], sizes = [8, 8], strides = [1, 1]} : vector<8x64xf32> to vector<8x8xf32>
    %cst_37 = arith.constant dense<0.000000e+00> : vector<8x8xf32>
    %82 = tpu.matmul %79, %80, %cst_37 {dimension_numbers = #tpu.dot_dimension_numbers<[1], [1], [0], [0], [0, 0, 1, 0], [], []>} : vector<8x8xf32>, vector<8x8xf32>, vector<8x8xf32> -> vector<8x8xf32>
    %cst_38 = arith.constant 0.353553385 : f32
    %83 = vector.broadcast %cst_38 : f32 to vector<8x8xf32>
    %84 = arith.mulf %82, %83 : vector<8x8xf32>
    %cst_39 = arith.constant dense<0xFF800000> : vector<8xf32>
    %85 = vector.multi_reduction <maximumf>, %84, %cst_39 [1] : vector<8x8xf32> to vector<8xf32>
    %86 = vector.shape_cast %85 : vector<8xf32> to vector<8x1xf32>
    %87 = vector.broadcast %86 : vector<8x1xf32> to vector<8x8xf32>
    %88 = arith.subf %84, %87 : vector<8x8xf32>
    %89 = math.exp %88 : vector<8x8xf32>
    %cst_40 = arith.constant dense<0.000000e+00> : vector<8xf32>
    %90 = vector.multi_reduction <add>, %89, %cst_40 [1] : vector<8x8xf32> to vector<8xf32>
    %91 = vector.shape_cast %90 : vector<8xf32> to vector<8x1xf32>
    %92 = tpu.reciprocal %91 {approx = true} : vector<8x1xf32> -> vector<8x1xf32>
    %93 = vector.broadcast %92 : vector<8x1xf32> to vector<8x8xf32>
    %94 = arith.mulf %89, %93 : vector<8x8xf32>
    %cst_41 = arith.constant dense<0.000000e+00> : vector<8x8xf32>
    %95 = tpu.matmul %94, %81, %cst_41 {dimension_numbers = #tpu.dot_dimension_numbers<[1], [0], [0], [1], [0, 0, 1, 1], [], []>} : vector<8x8xf32>, vector<8x8xf32>, vector<8x8xf32> -> vector<8x8xf32>
    %96 = vector.extract_strided_slice %17 {offsets = [24, 0], sizes = [8, 64], strides = [1, 1]} : vector<64x64xf32> to vector<8x64xf32>
    %cst_42 = arith.constant dense<0.000000e+00> : vector<8x64xf32>
    %97 = tpu.matmul %95, %96, %cst_42 {dimension_numbers = #tpu.dot_dimension_numbers<[1], [0], [0], [1], [0, 0, 1, 1], [], []>} : vector<8x8xf32>, vector<8x64xf32>, vector<8x64xf32> -> vector<8x64xf32>
    %98 = arith.addf %78, %97 : vector<8x64xf32>
    %99 = vector.extract_strided_slice %6 {offsets = [0, 32], sizes = [8, 8], strides = [1, 1]} : vector<8x64xf32> to vector<8x8xf32>
    %100 = vector.extract_strided_slice %11 {offsets = [0, 32], sizes = [8, 8], strides = [1, 1]} : vector<8x64xf32> to vector<8x8xf32>
    %101 = vector.extract_strided_slice %16 {offsets = [0, 32], sizes = [8, 8], strides = [1, 1]} : vector<8x64xf32> to vector<8x8xf32>
    %cst_43 = arith.constant dense<0.000000e+00> : vector<8x8xf32>
    %102 = tpu.matmul %99, %100, %cst_43 {dimension_numbers = #tpu.dot_dimension_numbers<[1], [1], [0], [0], [0, 0, 1, 0], [], []>} : vector<8x8xf32>, vector<8x8xf32>, vector<8x8xf32> -> vector<8x8xf32>
    %cst_44 = arith.constant 0.353553385 : f32
    %103 = vector.broadcast %cst_44 : f32 to vector<8x8xf32>
    %104 = arith.mulf %102, %103 : vector<8x8xf32>
    %cst_45 = arith.constant dense<0xFF800000> : vector<8xf32>
    %105 = vector.multi_reduction <maximumf>, %104, %cst_45 [1] : vector<8x8xf32> to vector<8xf32>
    %106 = vector.shape_cast %105 : vector<8xf32> to vector<8x1xf32>
    %107 = vector.broadcast %106 : vector<8x1xf32> to vector<8x8xf32>
    %108 = arith.subf %104, %107 : vector<8x8xf32>
    %109 = math.exp %108 : vector<8x8xf32>
    %cst_46 = arith.constant dense<0.000000e+00> : vector<8xf32>
    %110 = vector.multi_reduction <add>, %109, %cst_46 [1] : vector<8x8xf32> to vector<8xf32>
    %111 = vector.shape_cast %110 : vector<8xf32> to vector<8x1xf32>
    %112 = tpu.reciprocal %111 {approx = true} : vector<8x1xf32> -> vector<8x1xf32>
    %113 = vector.broadcast %112 : vector<8x1xf32> to vector<8x8xf32>
    %114 = arith.mulf %109, %113 : vector<8x8xf32>
    %cst_47 = arith.constant dense<0.000000e+00> : vector<8x8xf32>
    %115 = tpu.matmul %114, %101, %cst_47 {dimension_numbers = #tpu.dot_dimension_numbers<[1], [0], [0], [1], [0, 0, 1, 1], [], []>} : vector<8x8xf32>, vector<8x8xf32>, vector<8x8xf32> -> vector<8x8xf32>
    %116 = vector.extract_strided_slice %17 {offsets = [32, 0], sizes = [8, 64], strides = [1, 1]} : vector<64x64xf32> to vector<8x64xf32>
    %cst_48 = arith.constant dense<0.000000e+00> : vector<8x64xf32>
    %117 = tpu.matmul %115, %116, %cst_48 {dimension_numbers = #tpu.dot_dimension_numbers<[1], [0], [0], [1], [0, 0, 1, 1], [], []>} : vector<8x8xf32>, vector<8x64xf32>, vector<8x64xf32> -> vector<8x64xf32>
    %118 = arith.addf %98, %117 : vector<8x64xf32>
    %119 = vector.extract_strided_slice %6 {offsets = [0, 40], sizes = [8, 8], strides = [1, 1]} : vector<8x64xf32> to vector<8x8xf32>
    %120 = vector.extract_strided_slice %11 {offsets = [0, 40], sizes = [8, 8], strides = [1, 1]} : vector<8x64xf32> to vector<8x8xf32>
    %121 = vector.extract_strided_slice %16 {offsets = [0, 40], sizes = [8, 8], strides = [1, 1]} : vector<8x64xf32> to vector<8x8xf32>
    %cst_49 = arith.constant dense<0.000000e+00> : vector<8x8xf32>
    %122 = tpu.matmul %119, %120, %cst_49 {dimension_numbers = #tpu.dot_dimension_numbers<[1], [1], [0], [0], [0, 0, 1, 0], [], []>} : vector<8x8xf32>, vector<8x8xf32>, vector<8x8xf32> -> vector<8x8xf32>
    %cst_50 = arith.constant 0.353553385 : f32
    %123 = vector.broadcast %cst_50 : f32 to vector<8x8xf32>
    %124 = arith.mulf %122, %123 : vector<8x8xf32>
    %cst_51 = arith.constant dense<0xFF800000> : vector<8xf32>
    %125 = vector.multi_reduction <maximumf>, %124, %cst_51 [1] : vector<8x8xf32> to vector<8xf32>
    %126 = vector.shape_cast %125 : vector<8xf32> to vector<8x1xf32>
    %127 = vector.broadcast %126 : vector<8x1xf32> to vector<8x8xf32>
    %128 = arith.subf %124, %127 : vector<8x8xf32>
    %129 = math.exp %128 : vector<8x8xf32>
    %cst_52 = arith.constant dense<0.000000e+00> : vector<8xf32>
    %130 = vector.multi_reduction <add>, %129, %cst_52 [1] : vector<8x8xf32> to vector<8xf32>
    %131 = vector.shape_cast %130 : vector<8xf32> to vector<8x1xf32>
    %132 = tpu.reciprocal %131 {approx = true} : vector<8x1xf32> -> vector<8x1xf32>
    %133 = vector.broadcast %132 : vector<8x1xf32> to vector<8x8xf32>
    %134 = arith.mulf %129, %133 : vector<8x8xf32>
    %cst_53 = arith.constant dense<0.000000e+00> : vector<8x8xf32>
    %135 = tpu.matmul %134, %121, %cst_53 {dimension_numbers = #tpu.dot_dimension_numbers<[1], [0], [0], [1], [0, 0, 1, 1], [], []>} : vector<8x8xf32>, vector<8x8xf32>, vector<8x8xf32> -> vector<8x8xf32>
    %136 = vector.extract_strided_slice %17 {offsets = [40, 0], sizes = [8, 64], strides = [1, 1]} : vector<64x64xf32> to vector<8x64xf32>
    %cst_54 = arith.constant dense<0.000000e+00> : vector<8x64xf32>
    %137 = tpu.matmul %135, %136, %cst_54 {dimension_numbers = #tpu.dot_dimension_numbers<[1], [0], [0], [1], [0, 0, 1, 1], [], []>} : vector<8x8xf32>, vector<8x64xf32>, vector<8x64xf32> -> vector<8x64xf32>
    %138 = arith.addf %118, %137 : vector<8x64xf32>
    %139 = vector.extract_strided_slice %6 {offsets = [0, 48], sizes = [8, 8], strides = [1, 1]} : vector<8x64xf32> to vector<8x8xf32>
    %140 = vector.extract_strided_slice %11 {offsets = [0, 48], sizes = [8, 8], strides = [1, 1]} : vector<8x64xf32> to vector<8x8xf32>
    %141 = vector.extract_strided_slice %16 {offsets = [0, 48], sizes = [8, 8], strides = [1, 1]} : vector<8x64xf32> to vector<8x8xf32>
    %cst_55 = arith.constant dense<0.000000e+00> : vector<8x8xf32>
    %142 = tpu.matmul %139, %140, %cst_55 {dimension_numbers = #tpu.dot_dimension_numbers<[1], [1], [0], [0], [0, 0, 1, 0], [], []>} : vector<8x8xf32>, vector<8x8xf32>, vector<8x8xf32> -> vector<8x8xf32>
    %cst_56 = arith.constant 0.353553385 : f32
    %143 = vector.broadcast %cst_56 : f32 to vector<8x8xf32>
    %144 = arith.mulf %142, %143 : vector<8x8xf32>
    %cst_57 = arith.constant dense<0xFF800000> : vector<8xf32>
    %145 = vector.multi_reduction <maximumf>, %144, %cst_57 [1] : vector<8x8xf32> to vector<8xf32>
    %146 = vector.shape_cast %145 : vector<8xf32> to vector<8x1xf32>
    %147 = vector.broadcast %146 : vector<8x1xf32> to vector<8x8xf32>
    %148 = arith.subf %144, %147 : vector<8x8xf32>
    %149 = math.exp %148 : vector<8x8xf32>
    %cst_58 = arith.constant dense<0.000000e+00> : vector<8xf32>
    %150 = vector.multi_reduction <add>, %149, %cst_58 [1] : vector<8x8xf32> to vector<8xf32>
    %151 = vector.shape_cast %150 : vector<8xf32> to vector<8x1xf32>
    %152 = tpu.reciprocal %151 {approx = true} : vector<8x1xf32> -> vector<8x1xf32>
    %153 = vector.broadcast %152 : vector<8x1xf32> to vector<8x8xf32>
    %154 = arith.mulf %149, %153 : vector<8x8xf32>
    %cst_59 = arith.constant dense<0.000000e+00> : vector<8x8xf32>
    %155 = tpu.matmul %154, %141, %cst_59 {dimension_numbers = #tpu.dot_dimension_numbers<[1], [0], [0], [1], [0, 0, 1, 1], [], []>} : vector<8x8xf32>, vector<8x8xf32>, vector<8x8xf32> -> vector<8x8xf32>
    %156 = vector.extract_strided_slice %17 {offsets = [48, 0], sizes = [8, 64], strides = [1, 1]} : vector<64x64xf32> to vector<8x64xf32>
    %cst_60 = arith.constant dense<0.000000e+00> : vector<8x64xf32>
    %157 = tpu.matmul %155, %156, %cst_60 {dimension_numbers = #tpu.dot_dimension_numbers<[1], [0], [0], [1], [0, 0, 1, 1], [], []>} : vector<8x8xf32>, vector<8x64xf32>, vector<8x64xf32> -> vector<8x64xf32>
    %158 = arith.addf %138, %157 : vector<8x64xf32>
    %159 = vector.extract_strided_slice %6 {offsets = [0, 56], sizes = [8, 8], strides = [1, 1]} : vector<8x64xf32> to vector<8x8xf32>
    %160 = vector.extract_strided_slice %11 {offsets = [0, 56], sizes = [8, 8], strides = [1, 1]} : vector<8x64xf32> to vector<8x8xf32>
    %161 = vector.extract_strided_slice %16 {offsets = [0, 56], sizes = [8, 8], strides = [1, 1]} : vector<8x64xf32> to vector<8x8xf32>
    %cst_61 = arith.constant dense<0.000000e+00> : vector<8x8xf32>
    %162 = tpu.matmul %159, %160, %cst_61 {dimension_numbers = #tpu.dot_dimension_numbers<[1], [1], [0], [0], [0, 0, 1, 0], [], []>} : vector<8x8xf32>, vector<8x8xf32>, vector<8x8xf32> -> vector<8x8xf32>
    %cst_62 = arith.constant 0.353553385 : f32
    %163 = vector.broadcast %cst_62 : f32 to vector<8x8xf32>
    %164 = arith.mulf %162, %163 : vector<8x8xf32>
    %cst_63 = arith.constant dense<0xFF800000> : vector<8xf32>
    %165 = vector.multi_reduction <maximumf>, %164, %cst_63 [1] : vector<8x8xf32> to vector<8xf32>
    %166 = vector.shape_cast %165 : vector<8xf32> to vector<8x1xf32>
    %167 = vector.broadcast %166 : vector<8x1xf32> to vector<8x8xf32>
    %168 = arith.subf %164, %167 : vector<8x8xf32>
    %169 = math.exp %168 : vector<8x8xf32>
    %cst_64 = arith.constant dense<0.000000e+00> : vector<8xf32>
    %170 = vector.multi_reduction <add>, %169, %cst_64 [1] : vector<8x8xf32> to vector<8xf32>
    %171 = vector.shape_cast %170 : vector<8xf32> to vector<8x1xf32>
    %172 = tpu.reciprocal %171 {approx = true} : vector<8x1xf32> -> vector<8x1xf32>
    %173 = vector.broadcast %172 : vector<8x1xf32> to vector<8x8xf32>
    %174 = arith.mulf %169, %173 : vector<8x8xf32>
    %cst_65 = arith.constant dense<0.000000e+00> : vector<8x8xf32>
    %175 = tpu.matmul %174, %161, %cst_65 {dimension_numbers = #tpu.dot_dimension_numbers<[1], [0], [0], [1], [0, 0, 1, 1], [], []>} : vector<8x8xf32>, vector<8x8xf32>, vector<8x8xf32> -> vector<8x8xf32>
    %176 = vector.extract_strided_slice %17 {offsets = [56, 0], sizes = [8, 64], strides = [1, 1]} : vector<64x64xf32> to vector<8x64xf32>
    %cst_66 = arith.constant dense<0.000000e+00> : vector<8x64xf32>
    %177 = tpu.matmul %175, %176, %cst_66 {dimension_numbers = #tpu.dot_dimension_numbers<[1], [0], [0], [1], [0, 0, 1, 1], [], []>} : vector<8x8xf32>, vector<8x64xf32>, vector<8x64xf32> -> vector<8x64xf32>
    %178 = arith.addf %158, %177 : vector<8x64xf32>
    %179 = arith.addf %1, %178 : vector<8x64xf32>
    %c0_67 = arith.constant 0 : index
    %c0_68 = arith.constant 0 : index
    %180 = vector.load %arg9[%c0_67, %c0_68] : memref<1x64xf32, #tpu.memory_space<vmem>>, vector<1x64xf32>
    %181 = vector.broadcast %180 : vector<1x64xf32> to vector<8x64xf32>
    %182 = arith.addf %179, %181 : vector<8x64xf32>
    %c0_69 = arith.constant 0 : index
    %c0_70 = arith.constant 0 : index
    %183 = vector.load %arg10[%c0_69, %c0_70] : memref<1x64xf32, #tpu.memory_space<vmem>>, vector<1x64xf32>
    %c0_71 = arith.constant 0 : index
    %c0_72 = arith.constant 0 : index
    %184 = vector.load %arg11[%c0_71, %c0_72] : memref<1x64xf32, #tpu.memory_space<vmem>>, vector<1x64xf32>
    %cst_73 = arith.constant dense<0.000000e+00> : vector<8xf32>
    %185 = vector.multi_reduction <add>, %182, %cst_73 [1] : vector<8x64xf32> to vector<8xf32>
    %186 = vector.shape_cast %185 : vector<8xf32> to vector<8x1xf32>
    %cst_74 = arith.constant 6.400000e+01 : f32
    %187 = vector.broadcast %cst_74 : f32 to vector<8x1xf32>
    %188 = arith.divf %186, %187 : vector<8x1xf32>
    %189 = vector.broadcast %188 : vector<8x1xf32> to vector<8x64xf32>
    %190 = arith.subf %182, %189 : vector<8x64xf32>
    %191 = arith.mulf %190, %190 : vector<8x64xf32>
    %cst_75 = arith.constant dense<0.000000e+00> : vector<8xf32>
    %192 = vector.multi_reduction <add>, %191, %cst_75 [1] : vector<8x64xf32> to vector<8xf32>
    %193 = vector.shape_cast %192 : vector<8xf32> to vector<8x1xf32>
    %cst_76 = arith.constant 6.400000e+01 : f32
    %194 = vector.broadcast %cst_76 : f32 to vector<8x1xf32>
    %195 = arith.divf %193, %194 : vector<8x1xf32>
    %196 = vector.broadcast %188 : vector<8x1xf32> to vector<8x64xf32>
    %197 = arith.subf %182, %196 : vector<8x64xf32>
    %cst_77 = arith.constant 9.99999974E-6 : f32
    %198 = vector.broadcast %cst_77 : f32 to vector<8x1xf32>
    %199 = arith.addf %195, %198 : vector<8x1xf32>
    %200 = math.rsqrt %199 : vector<8x1xf32>
    %201 = vector.broadcast %200 : vector<8x1xf32> to vector<8x64xf32>
    %202 = arith.mulf %197, %201 : vector<8x64xf32>
    %203 = vector.broadcast %183 : vector<1x64xf32> to vector<8x64xf32>
    %204 = arith.mulf %202, %203 : vector<8x64xf32>
    %205 = vector.broadcast %184 : vector<1x64xf32> to vector<8x64xf32>
    %206 = arith.addf %204, %205 : vector<8x64xf32>
    %c0_78 = arith.constant 0 : index
    %c0_79 = arith.constant 0 : index
    %c0_80 = arith.constant 0 : index
    %207 = vector.load %arg14[%c0_78, %c0_79, %c0_80] : memref<1x8x64xf32, #tpu.memory_space<vmem>>, vector<1x8x64xf32>
    %208 = vector.shape_cast %207 : vector<1x8x64xf32> to vector<8x64xf32>
    %209 = vector.shape_cast %206 : vector<8x64xf32> to vector<1x8x64xf32>
    tpu.vector_store %arg14[%c0_78, %c0_79, %c0_80], %209 {strides = array<i32>} : memref<1x8x64xf32, #tpu.memory_space<vmem>>, vector<1x8x64xf32>,
    %c0_81 = arith.constant 0 : index
    %c0_82 = arith.constant 0 : index
    %210 = vector.load %arg12[%c0_81, %c0_82] : memref<64x2048xf32, #tpu.memory_space<vmem>>, vector<64x2048xf32>
    %cst_83 = arith.constant dense<0.000000e+00> : vector<8x2048xf32>
    %211 = tpu.matmul %206, %210, %cst_83 {dimension_numbers = #tpu.dot_dimension_numbers<[1], [0], [0], [1], [0, 0, 1, 1], [], []>} : vector<8x64xf32>, vector<64x2048xf32>, vector<8x2048xf32> -> vector<8x2048xf32>
    %c0_84 = arith.constant 0 : index
    %c0_85 = arith.constant 0 : index
    %212 = vector.load %arg13[%c0_84, %c0_85] : memref<1x2048xf32, #tpu.memory_space<vmem>>, vector<1x2048xf32>
    %213 = vector.broadcast %212 : vector<1x2048xf32> to vector<8x2048xf32>
    %214 = arith.addf %211, %213 : vector<8x2048xf32>
    %c0_86 = arith.constant 0 : index
    %c0_87 = arith.constant 0 : index
    %c0_88 = arith.constant 0 : index
    %215 = vector.load %arg15[%c0_86, %c0_87, %c0_88] : memref<1x8x2048xf32, #tpu.memory_space<vmem>>, vector<1x8x2048xf32>
    %216 = vector.shape_cast %215 : vector<1x8x2048xf32> to vector<8x2048xf32>
    %217 = vector.shape_cast %214 : vector<8x2048xf32> to vector<1x8x2048xf32>
    tpu.vector_store %arg15[%c0_86, %c0_87, %c0_88], %217 {strides = array<i32>} : memref<1x8x2048xf32, #tpu.memory_space<vmem>>, vector<1x8x2048xf32>,
    return
  }
  func.func @transform_0(%arg0: i32) -> (i32, i32, i32) {
    %c0_i32 = arith.constant 0 : i32
    %c0_i32_0 = arith.constant 0 : i32
    %c0_i32_1 = arith.constant 0 : i32
    return %arg0, %c0_i32, %c0_i32_0 : i32, i32, i32
  }
  func.func @transform_1(%arg0: i32) -> (i32, i32) {
    %c0_i32 = arith.constant 0 : i32
    %c0_i32_0 = arith.constant 0 : i32
    %c0_i32_1 = arith.constant 0 : i32
    return %c0_i32, %c0_i32_0 : i32, i32
  }
  func.func @transform_2(%arg0: i32) -> (i32, i32) {
    %c0_i32 = arith.constant 0 : i32
    %c0_i32_0 = arith.constant 0 : i32
    %c0_i32_1 = arith.constant 0 : i32
    return %c0_i32, %c0_i32_0 : i32, i32
  }
  func.func @transform_3(%arg0: i32) -> (i32, i32) {
    %c0_i32 = arith.constant 0 : i32
    %c0_i32_0 = arith.constant 0 : i32
    %c0_i32_1 = arith.constant 0 : i32
    return %c0_i32, %c0_i32_0 : i32, i32
  }
  func.func @transform_4(%arg0: i32) -> (i32, i32) {
    %c0_i32 = arith.constant 0 : i32
    %c0_i32_0 = arith.constant 0 : i32
    %c0_i32_1 = arith.constant 0 : i32
    return %c0_i32, %c0_i32_0 : i32, i32
  }
  func.func @transform_5(%arg0: i32) -> (i32, i32) {
    %c0_i32 = arith.constant 0 : i32
    %c0_i32_0 = arith.constant 0 : i32
    %c0_i32_1 = arith.constant 0 : i32
    return %c0_i32, %c0_i32_0 : i32, i32
  }
  func.func @transform_6(%arg0: i32) -> (i32, i32) {
    %c0_i32 = arith.constant 0 : i32
    %c0_i32_0 = arith.constant 0 : i32
    %c0_i32_1 = arith.constant 0 : i32
    return %c0_i32, %c0_i32_0 : i32, i32
  }
  func.func @transform_7(%arg0: i32) -> (i32, i32) {
    %c0_i32 = arith.constant 0 : i32
    %c0_i32_0 = arith.constant 0 : i32
    %c0_i32_1 = arith.constant 0 : i32
    return %c0_i32, %c0_i32_0 : i32, i32
  }
  func.func @transform_8(%arg0: i32) -> (i32, i32) {
    %c0_i32 = arith.constant 0 : i32
    %c0_i32_0 = arith.constant 0 : i32
    %c0_i32_1 = arith.constant 0 : i32
    return %c0_i32, %c0_i32_0 : i32, i32
  }
  func.func @transform_9(%arg0: i32) -> (i32, i32) {
    %c0_i32 = arith.constant 0 : i32
    %c0_i32_0 = arith.constant 0 : i32
    %c0_i32_1 = arith.constant 0 : i32
    return %c0_i32, %c0_i32_0 : i32, i32
  }
  func.func @transform_10(%arg0: i32) -> (i32, i32) {
    %c0_i32 = arith.constant 0 : i32
    %c0_i32_0 = arith.constant 0 : i32
    %c0_i32_1 = arith.constant 0 : i32
    return %c0_i32, %c0_i32_0 : i32, i32
  }
  func.func @transform_11(%arg0: i32) -> (i32, i32) {
    %c0_i32 = arith.constant 0 : i32
    %c0_i32_0 = arith.constant 0 : i32
    %c0_i32_1 = arith.constant 0 : i32
    return %c0_i32, %c0_i32_0 : i32, i32
  }
  func.func @transform_12(%arg0: i32) -> (i32, i32) {
    %c0_i32 = arith.constant 0 : i32
    %c0_i32_0 = arith.constant 0 : i32
    %c0_i32_1 = arith.constant 0 : i32
    return %c0_i32, %c0_i32_0 : i32, i32
  }
  func.func @transform_13(%arg0: i32) -> (i32, i32, i32) {
    %c0_i32 = arith.constant 0 : i32
    %c0_i32_0 = arith.constant 0 : i32
    %c0_i32_1 = arith.constant 0 : i32
    return %arg0, %c0_i32, %c0_i32_0 : i32, i32, i32
  }
  func.func @transform_14(%arg0: i32) -> (i32, i32, i32) {
    %c0_i32 = arith.constant 0 : i32
    %c0_i32_0 = arith.constant 0 : i32
    %c0_i32_1 = arith.constant 0 : i32
    return %arg0, %c0_i32, %c0_i32_0 : i32, i32, i32
  }
}

module attributes {stable_mosaic.version = 11 : i64} {
  func.func @_head_kernel(%arg0: i32, %arg1: memref<1x8x64xf32, #tpu.memory_space<vmem>>, %arg2: memref<1x8x64xf32, #tpu.memory_space<vmem>>, %arg3: memref<1x8x4x64xf32, #tpu.memory_space<vmem>>, %arg4: memref<1x8x64x16xf32, #tpu.memory_space<vmem>>, %arg5: memref<1x8x16x64xf32, #tpu.memory_space<vmem>>, %arg6: memref<1x8x10xf32, #tpu.memory_space<vmem>>, %arg7: memref<1x8x4xf32, #tpu.memory_space<vmem>>, %arg8: memref<1x8x1xf32, #tpu.memory_space<vmem>>, %arg9: memref<1x8x1xf32, #tpu.memory_space<vmem>>, %arg10: memref<1x16xf32, #tpu.memory_space<vmem>>, %arg11: memref<1x16xf32, #tpu.memory_space<vmem>>, %arg12: memref<1x64xf32, #tpu.memory_space<vmem>>, %arg13: memref<1x64xf32, #tpu.memory_space<vmem>>, %arg14: memref<256x64xf32, #tpu.memory_space<vmem>>, %arg15: memref<1x64xf32, #tpu.memory_space<vmem>>, %arg16: memref<1x64xf32, #tpu.memory_space<vmem>>, %arg17: memref<1x64xf32, #tpu.memory_space<vmem>>, %arg18: memref<1x64xf32, #tpu.memory_space<vmem>>, %arg19: memref<1x64xf32, #tpu.memory_space<vmem>>, %arg20: memref<64x128xf32, #tpu.memory_space<vmem>>, %arg21: memref<1x128xf32, #tpu.memory_space<vmem>>, %arg22: memref<128x64xf32, #tpu.memory_space<vmem>>, %arg23: memref<1x64xf32, #tpu.memory_space<vmem>>, %arg24: memref<1x64xf32, #tpu.memory_space<vmem>>, %arg25: memref<1x64xf32, #tpu.memory_space<vmem>>, %arg26: memref<1x64x64xf32, #tpu.memory_space<vmem>>, %arg27: memref<1x64xf32, #tpu.memory_space<vmem>>, %arg28: memref<1x64xf32, #tpu.memory_space<vmem>>, %arg29: memref<1x64x64xf32, #tpu.memory_space<vmem>>, %arg30: memref<1x64xf32, #tpu.memory_space<vmem>>, %arg31: memref<1x64xf32, #tpu.memory_space<vmem>>, %arg32: memref<64x10xf32, #tpu.memory_space<vmem>>, %arg33: memref<1x10xf32, #tpu.memory_space<vmem>>, %arg34: memref<64x4xf32, #tpu.memory_space<vmem>>, %arg35: memref<1x4xf32, #tpu.memory_space<vmem>>, %arg36: memref<1x8x128xf32, #tpu.memory_space<vmem>>, %arg37: memref<8x4x64xf32, #tpu.memory_space<vmem>>) attributes {dimension_semantics = [#tpu.dimension_semantics<parallel>], iteration_bounds = array<i64: 2>, scalar_prefetch = 0 : i64, scratch_operands = 1 : i64, tpu.core_type = #tpu.core_type<tc>, window_params = [{transform_indices = @transform_0, window_bounds = array<i64: 1, 8, 64>}, {transform_indices = @transform_1, window_bounds = array<i64: 1, 8, 64>}, {transform_indices = @transform_2, window_bounds = array<i64: 1, 8, 4, 64>}, {transform_indices = @transform_3, window_bounds = array<i64: 1, 8, 64, 16>}, {transform_indices = @transform_4, window_bounds = array<i64: 1, 8, 16, 64>}, {transform_indices = @transform_5, window_bounds = array<i64: 1, 8, 10>}, {transform_indices = @transform_6, window_bounds = array<i64: 1, 8, 4>}, {transform_indices = @transform_7, window_bounds = array<i64: 1, 8, 1>}, {transform_indices = @transform_8, window_bounds = array<i64: 1, 8, 1>}, {pipeline_mode = #tpu.pipeline_mode<synchronous>, transform_indices = @transform_9, window_bounds = array<i64: 1, 16>}, {pipeline_mode = #tpu.pipeline_mode<synchronous>, transform_indices = @transform_10, window_bounds = array<i64: 1, 16>}, {pipeline_mode = #tpu.pipeline_mode<synchronous>, transform_indices = @transform_11, window_bounds = array<i64: 1, 64>}, {pipeline_mode = #tpu.pipeline_mode<synchronous>, transform_indices = @transform_12, window_bounds = array<i64: 1, 64>}, {pipeline_mode = #tpu.pipeline_mode<synchronous>, transform_indices = @transform_13, window_bounds = array<i64: 256, 64>}, {pipeline_mode = #tpu.pipeline_mode<synchronous>, transform_indices = @transform_14, window_bounds = array<i64: 1, 64>}, {pipeline_mode = #tpu.pipeline_mode<synchronous>, transform_indices = @transform_15, window_bounds = array<i64: 1, 64>}, {pipeline_mode = #tpu.pipeline_mode<synchronous>, transform_indices = @transform_16, window_bounds = array<i64: 1, 64>}, {pipeline_mode = #tpu.pipeline_mode<synchronous>, transform_indices = @transform_17, window_bounds = array<i64: 1, 64>}, {pipeline_mode = #tpu.pipeline_mode<synchronous>, transform_indices = @transform_18, window_bounds = array<i64: 1, 64>}, {pipeline_mode = #tpu.pipeline_mode<synchronous>, transform_indices = @transform_19, window_bounds = array<i64: 64, 128>}, {pipeline_mode = #tpu.pipeline_mode<synchronous>, transform_indices = @transform_20, window_bounds = array<i64: 1, 128>}, {pipeline_mode = #tpu.pipeline_mode<synchronous>, transform_indices = @transform_21, window_bounds = array<i64: 128, 64>}, {pipeline_mode = #tpu.pipeline_mode<synchronous>, transform_indices = @transform_22, window_bounds = array<i64: 1, 64>}, {pipeline_mode = #tpu.pipeline_mode<synchronous>, transform_indices = @transform_23, window_bounds = array<i64: 1, 64>}, {pipeline_mode = #tpu.pipeline_mode<synchronous>, transform_indices = @transform_24, window_bounds = array<i64: 1, 64>}, {pipeline_mode = #tpu.pipeline_mode<synchronous>, transform_indices = @transform_25, window_bounds = array<i64: 1, 64, 64>}, {pipeline_mode = #tpu.pipeline_mode<synchronous>, transform_indices = @transform_26, window_bounds = array<i64: 1, 64>}, {pipeline_mode = #tpu.pipeline_mode<synchronous>, transform_indices = @transform_27, window_bounds = array<i64: 1, 64>}, {pipeline_mode = #tpu.pipeline_mode<synchronous>, transform_indices = @transform_28, window_bounds = array<i64: 1, 64, 64>}, {pipeline_mode = #tpu.pipeline_mode<synchronous>, transform_indices = @transform_29, window_bounds = array<i64: 1, 64>}, {pipeline_mode = #tpu.pipeline_mode<synchronous>, transform_indices = @transform_30, window_bounds = array<i64: 1, 64>}, {pipeline_mode = #tpu.pipeline_mode<synchronous>, transform_indices = @transform_31, window_bounds = array<i64: 64, 10>}, {pipeline_mode = #tpu.pipeline_mode<synchronous>, transform_indices = @transform_32, window_bounds = array<i64: 1, 10>}, {pipeline_mode = #tpu.pipeline_mode<synchronous>, transform_indices = @transform_33, window_bounds = array<i64: 64, 4>}, {pipeline_mode = #tpu.pipeline_mode<synchronous>, transform_indices = @transform_34, window_bounds = array<i64: 1, 4>}, {transform_indices = @transform_35, window_bounds = array<i64: 1, 8, 128>}]} {
    %c0 = arith.constant 0 : index
    %c0_0 = arith.constant 0 : index
    %c0_1 = arith.constant 0 : index
    %0 = vector.load %arg1[%c0, %c0_0, %c0_1] : memref<1x8x64xf32, #tpu.memory_space<vmem>>, vector<1x8x64xf32>
    %1 = vector.shape_cast %0 : vector<1x8x64xf32> to vector<8x64xf32>
    %c0_2 = arith.constant 0 : index
    %c0_3 = arith.constant 0 : index
    %c0_4 = arith.constant 0 : index
    %2 = vector.load %arg8[%c0_2, %c0_3, %c0_4] : memref<1x8x1xf32, #tpu.memory_space<vmem>>, vector<1x8x1xf32>
    %3 = vector.shape_cast %2 : vector<1x8x1xf32> to vector<8x1xf32>
    %c0_5 = arith.constant 0 : index
    %c0_6 = arith.constant 0 : index
    %c0_7 = arith.constant 0 : index
    %c0_8 = arith.constant 0 : index
    %4 = vector.load %arg3[%c0_5, %c0_6, %c0_7, %c0_8] : memref<1x8x4x64xf32, #tpu.memory_space<vmem>>, vector<1x8x4x64xf32>
    %5 = vector.shape_cast %4 : vector<1x8x4x64xf32> to vector<8x4x64xf32>
    %c0_9 = arith.constant 0 : index
    %c0_10 = arith.constant 0 : index
    %c0_11 = arith.constant 0 : index
    %c0_12 = arith.constant 0 : index
    %6 = vector.load %arg4[%c0_9, %c0_10, %c0_11, %c0_12] : memref<1x8x64x16xf32, #tpu.memory_space<vmem>>, vector<1x8x64x16xf32>
    %7 = vector.shape_cast %6 : vector<1x8x64x16xf32> to vector<8x64x16xf32>
    "tpu.trace_start"() <{level = 10 : i32, message = "brd,bde->bre"}> : () -> ()
    %cst = arith.constant dense<0.000000e+00> : vector<8x4x16xf32>
    %8 = tpu.matmul %5, %7, %cst {dimension_numbers = #tpu.dot_dimension_numbers<[2], [1], [1], [2], [0, 0, 0, 1, 1, 2], [0], [0]>} : vector<8x4x64xf32>, vector<8x64x16xf32>, vector<8x4x16xf32> -> vector<8x4x16xf32>
    "tpu.trace_stop"() : () -> ()
    %c0_13 = arith.constant 0 : index
    %c0_14 = arith.constant 0 : index
    %9 = vector.load %arg10[%c0_13, %c0_14] : memref<1x16xf32, #tpu.memory_space<vmem>>, vector<1x16xf32>
    %c0_15 = arith.constant 0 : index
    %c0_16 = arith.constant 0 : index
    %10 = vector.load %arg11[%c0_15, %c0_16] : memref<1x16xf32, #tpu.memory_space<vmem>>, vector<1x16xf32>
    %cst_17 = arith.constant dense<0.000000e+00> : vector<8x4xf32>
    %11 = vector.multi_reduction <add>, %8, %cst_17 [2] : vector<8x4x16xf32> to vector<8x4xf32>
    %12 = vector.shape_cast %11 : vector<8x4xf32> to vector<8x4x1xf32>
    %cst_18 = arith.constant 1.600000e+01 : f32
    %13 = vector.broadcast %cst_18 : f32 to vector<8x4x1xf32>
    %14 = arith.divf %12, %13 : vector<8x4x1xf32>
    %15 = vector.broadcast %14 : vector<8x4x1xf32> to vector<8x4x16xf32>
    %16 = arith.subf %8, %15 : vector<8x4x16xf32>
    %17 = arith.mulf %16, %16 : vector<8x4x16xf32>
    %cst_19 = arith.constant dense<0.000000e+00> : vector<8x4xf32>
    %18 = vector.multi_reduction <add>, %17, %cst_19 [2] : vector<8x4x16xf32> to vector<8x4xf32>
    %19 = vector.shape_cast %18 : vector<8x4xf32> to vector<8x4x1xf32>
    %cst_20 = arith.constant 1.600000e+01 : f32
    %20 = vector.broadcast %cst_20 : f32 to vector<8x4x1xf32>
    %21 = arith.divf %19, %20 : vector<8x4x1xf32>
    %22 = vector.broadcast %14 : vector<8x4x1xf32> to vector<8x4x16xf32>
    %23 = arith.subf %8, %22 : vector<8x4x16xf32>
    %cst_21 = arith.constant 9.99999974E-6 : f32
    %24 = vector.broadcast %cst_21 : f32 to vector<8x4x1xf32>
    %25 = arith.addf %21, %24 : vector<8x4x1xf32>
    %26 = math.rsqrt %25 : vector<8x4x1xf32>
    %27 = vector.broadcast %26 : vector<8x4x1xf32> to vector<8x4x16xf32>
    %28 = arith.mulf %23, %27 : vector<8x4x16xf32>
    %29 = vector.shape_cast %9 : vector<1x16xf32> to vector<1x1x16xf32>
    %30 = vector.broadcast %29 : vector<1x1x16xf32> to vector<8x4x16xf32>
    %31 = arith.mulf %28, %30 : vector<8x4x16xf32>
    %32 = vector.shape_cast %10 : vector<1x16xf32> to vector<1x1x16xf32>
    %33 = vector.broadcast %32 : vector<1x1x16xf32> to vector<8x4x16xf32>
    %34 = arith.addf %31, %33 : vector<8x4x16xf32>
    %cst_22 = arith.constant 0.000000e+00 : f32
    %35 = vector.broadcast %cst_22 : f32 to vector<8x4x16xf32>
    %36 = arith.maximumf %34, %35 : vector<8x4x16xf32>
    %c0_23 = arith.constant 0 : index
    %c0_24 = arith.constant 0 : index
    %c0_25 = arith.constant 0 : index
    %c0_26 = arith.constant 0 : index
    %37 = vector.load %arg5[%c0_23, %c0_24, %c0_25, %c0_26] : memref<1x8x16x64xf32, #tpu.memory_space<vmem>>, vector<1x8x16x64xf32>
    %38 = vector.shape_cast %37 : vector<1x8x16x64xf32> to vector<8x16x64xf32>
    "tpu.trace_start"() <{level = 10 : i32, message = "bre,bed->brd"}> : () -> ()
    %cst_27 = arith.constant dense<0.000000e+00> : vector<8x4x64xf32>
    %39 = tpu.matmul %36, %38, %cst_27 {dimension_numbers = #tpu.dot_dimension_numbers<[2], [1], [1], [2], [0, 0, 0, 1, 1, 2], [0], [0]>} : vector<8x4x16xf32>, vector<8x16x64xf32>, vector<8x4x64xf32> -> vector<8x4x64xf32>
    "tpu.trace_stop"() : () -> ()
    %c0_28 = arith.constant 0 : index
    %c0_29 = arith.constant 0 : index
    %40 = vector.load %arg12[%c0_28, %c0_29] : memref<1x64xf32, #tpu.memory_space<vmem>>, vector<1x64xf32>
    %c0_30 = arith.constant 0 : index
    %c0_31 = arith.constant 0 : index
    %41 = vector.load %arg13[%c0_30, %c0_31] : memref<1x64xf32, #tpu.memory_space<vmem>>, vector<1x64xf32>
    %cst_32 = arith.constant dense<0.000000e+00> : vector<8x4xf32>
    %42 = vector.multi_reduction <add>, %39, %cst_32 [2] : vector<8x4x64xf32> to vector<8x4xf32>
    %43 = vector.shape_cast %42 : vector<8x4xf32> to vector<8x4x1xf32>
    %cst_33 = arith.constant 6.400000e+01 : f32
    %44 = vector.broadcast %cst_33 : f32 to vector<8x4x1xf32>
    %45 = arith.divf %43, %44 : vector<8x4x1xf32>
    %46 = vector.broadcast %45 : vector<8x4x1xf32> to vector<8x4x64xf32>
    %47 = arith.subf %39, %46 : vector<8x4x64xf32>
    %48 = arith.mulf %47, %47 : vector<8x4x64xf32>
    %cst_34 = arith.constant dense<0.000000e+00> : vector<8x4xf32>
    %49 = vector.multi_reduction <add>, %48, %cst_34 [2] : vector<8x4x64xf32> to vector<8x4xf32>
    %50 = vector.shape_cast %49 : vector<8x4xf32> to vector<8x4x1xf32>
    %cst_35 = arith.constant 6.400000e+01 : f32
    %51 = vector.broadcast %cst_35 : f32 to vector<8x4x1xf32>
    %52 = arith.divf %50, %51 : vector<8x4x1xf32>
    %53 = vector.broadcast %45 : vector<8x4x1xf32> to vector<8x4x64xf32>
    %54 = arith.subf %39, %53 : vector<8x4x64xf32>
    %cst_36 = arith.constant 9.99999974E-6 : f32
    %55 = vector.broadcast %cst_36 : f32 to vector<8x4x1xf32>
    %56 = arith.addf %52, %55 : vector<8x4x1xf32>
    %57 = math.rsqrt %56 : vector<8x4x1xf32>
    %58 = vector.broadcast %57 : vector<8x4x1xf32> to vector<8x4x64xf32>
    %59 = arith.mulf %54, %58 : vector<8x4x64xf32>
    %60 = vector.shape_cast %40 : vector<1x64xf32> to vector<1x1x64xf32>
    %61 = vector.broadcast %60 : vector<1x1x64xf32> to vector<8x4x64xf32>
    %62 = arith.mulf %59, %61 : vector<8x4x64xf32>
    %63 = vector.shape_cast %41 : vector<1x64xf32> to vector<1x1x64xf32>
    %64 = vector.broadcast %63 : vector<1x1x64xf32> to vector<8x4x64xf32>
    %65 = arith.addf %62, %64 : vector<8x4x64xf32>
    %cst_37 = arith.constant 0.000000e+00 : f32
    %66 = vector.broadcast %cst_37 : f32 to vector<8x4x64xf32>
    %67 = arith.maximumf %65, %66 : vector<8x4x64xf32>
    %c0_38 = arith.constant 0 : index
    %c0_39 = arith.constant 0 : index
    %c0_40 = arith.constant 0 : index
    %68 = vector.load %arg37[%c0_38, %c0_39, %c0_40] : memref<8x4x64xf32, #tpu.memory_space<vmem>>, vector<8x4x64xf32>
    tpu.vector_store %arg37[%c0_38, %c0_39, %c0_40], %67 {strides = array<i32>} : memref<8x4x64xf32, #tpu.memory_space<vmem>>, vector<8x4x64xf32>,
    %cst_41 = arith.constant 0.000000e+00 : f32
    %69 = vector.broadcast %cst_41 : f32 to vector<8x64xf32>
    %c0_42 = arith.constant 0 : index
    %c0_43 = arith.constant 0 : index
    %c0_44 = arith.constant 0 : index
    %70 = vector.load %arg37[%c0_42, %c0_43, %c0_44] : memref<8x4x64xf32, #tpu.memory_space<vmem>>, vector<8x1x64xf32>
    %71 = vector.shape_cast %70 : vector<8x1x64xf32> to vector<8x64xf32>
    %c0_45 = arith.constant 0 : index
    %c0_46 = arith.constant 0 : index
    %72 = vector.load %arg14[%c0_45, %c0_46] : memref<256x64xf32, #tpu.memory_space<vmem>>, vector<64x64xf32>
    %cst_47 = arith.constant dense<0.000000e+00> : vector<8x64xf32>
    %73 = tpu.matmul %71, %72, %cst_47 {dimension_numbers = #tpu.dot_dimension_numbers<[1], [0], [0], [1], [0, 0, 1, 1], [], []>} : vector<8x64xf32>, vector<64x64xf32>, vector<8x64xf32> -> vector<8x64xf32>
    %74 = arith.addf %69, %73 : vector<8x64xf32>
    %c0_48 = arith.constant 0 : index
    %c1 = arith.constant 1 : index
    %c0_49 = arith.constant 0 : index
    %75 = vector.load %arg37[%c0_48, %c1, %c0_49] : memref<8x4x64xf32, #tpu.memory_space<vmem>>, vector<8x1x64xf32>
    %76 = vector.shape_cast %75 : vector<8x1x64xf32> to vector<8x64xf32>
    %c64 = arith.constant 64 : index
    %c0_50 = arith.constant 0 : index
    %77 = vector.load %arg14[%c64, %c0_50] : memref<256x64xf32, #tpu.memory_space<vmem>>, vector<64x64xf32>
    %cst_51 = arith.constant dense<0.000000e+00> : vector<8x64xf32>
    %78 = tpu.matmul %76, %77, %cst_51 {dimension_numbers = #tpu.dot_dimension_numbers<[1], [0], [0], [1], [0, 0, 1, 1], [], []>} : vector<8x64xf32>, vector<64x64xf32>, vector<8x64xf32> -> vector<8x64xf32>
    %79 = arith.addf %74, %78 : vector<8x64xf32>
    %c0_52 = arith.constant 0 : index
    %c2 = arith.constant 2 : index
    %c0_53 = arith.constant 0 : index
    %80 = vector.load %arg37[%c0_52, %c2, %c0_53] : memref<8x4x64xf32, #tpu.memory_space<vmem>>, vector<8x1x64xf32>
    %81 = vector.shape_cast %80 : vector<8x1x64xf32> to vector<8x64xf32>
    %c128 = arith.constant 128 : index
    %c0_54 = arith.constant 0 : index
    %82 = vector.load %arg14[%c128, %c0_54] : memref<256x64xf32, #tpu.memory_space<vmem>>, vector<64x64xf32>
    %cst_55 = arith.constant dense<0.000000e+00> : vector<8x64xf32>
    %83 = tpu.matmul %81, %82, %cst_55 {dimension_numbers = #tpu.dot_dimension_numbers<[1], [0], [0], [1], [0, 0, 1, 1], [], []>} : vector<8x64xf32>, vector<64x64xf32>, vector<8x64xf32> -> vector<8x64xf32>
    %84 = arith.addf %79, %83 : vector<8x64xf32>
    %c0_56 = arith.constant 0 : index
    %c3 = arith.constant 3 : index
    %c0_57 = arith.constant 0 : index
    %85 = vector.load %arg37[%c0_56, %c3, %c0_57] : memref<8x4x64xf32, #tpu.memory_space<vmem>>, vector<8x1x64xf32>
    %86 = vector.shape_cast %85 : vector<8x1x64xf32> to vector<8x64xf32>
    %c192 = arith.constant 192 : index
    %c0_58 = arith.constant 0 : index
    %87 = vector.load %arg14[%c192, %c0_58] : memref<256x64xf32, #tpu.memory_space<vmem>>, vector<64x64xf32>
    %cst_59 = arith.constant dense<0.000000e+00> : vector<8x64xf32>
    %88 = tpu.matmul %86, %87, %cst_59 {dimension_numbers = #tpu.dot_dimension_numbers<[1], [0], [0], [1], [0, 0, 1, 1], [], []>} : vector<8x64xf32>, vector<64x64xf32>, vector<8x64xf32> -> vector<8x64xf32>
    %89 = arith.addf %84, %88 : vector<8x64xf32>
    %c0_60 = arith.constant 0 : index
    %c0_61 = arith.constant 0 : index
    %90 = vector.load %arg15[%c0_60, %c0_61] : memref<1x64xf32, #tpu.memory_space<vmem>>, vector<1x64xf32>
    %91 = vector.broadcast %90 : vector<1x64xf32> to vector<8x64xf32>
    %92 = arith.addf %89, %91 : vector<8x64xf32>
    %c0_62 = arith.constant 0 : index
    %c0_63 = arith.constant 0 : index
    %93 = vector.load %arg16[%c0_62, %c0_63] : memref<1x64xf32, #tpu.memory_space<vmem>>, vector<1x64xf32>
    %c0_64 = arith.constant 0 : index
    %c0_65 = arith.constant 0 : index
    %94 = vector.load %arg17[%c0_64, %c0_65] : memref<1x64xf32, #tpu.memory_space<vmem>>, vector<1x64xf32>
    %cst_66 = arith.constant dense<0.000000e+00> : vector<8xf32>
    %95 = vector.multi_reduction <add>, %92, %cst_66 [1] : vector<8x64xf32> to vector<8xf32>
    %96 = vector.shape_cast %95 : vector<8xf32> to vector<8x1xf32>
    %cst_67 = arith.constant 6.400000e+01 : f32
    %97 = vector.broadcast %cst_67 : f32 to vector<8x1xf32>
    %98 = arith.divf %96, %97 : vector<8x1xf32>
    %99 = vector.broadcast %98 : vector<8x1xf32> to vector<8x64xf32>
    %100 = arith.subf %92, %99 : vector<8x64xf32>
    %101 = arith.mulf %100, %100 : vector<8x64xf32>
    %cst_68 = arith.constant dense<0.000000e+00> : vector<8xf32>
    %102 = vector.multi_reduction <add>, %101, %cst_68 [1] : vector<8x64xf32> to vector<8xf32>
    %103 = vector.shape_cast %102 : vector<8xf32> to vector<8x1xf32>
    %cst_69 = arith.constant 6.400000e+01 : f32
    %104 = vector.broadcast %cst_69 : f32 to vector<8x1xf32>
    %105 = arith.divf %103, %104 : vector<8x1xf32>
    %106 = vector.broadcast %98 : vector<8x1xf32> to vector<8x64xf32>
    %107 = arith.subf %92, %106 : vector<8x64xf32>
    %cst_70 = arith.constant 9.99999974E-6 : f32
    %108 = vector.broadcast %cst_70 : f32 to vector<8x1xf32>
    %109 = arith.addf %105, %108 : vector<8x1xf32>
    %110 = math.rsqrt %109 : vector<8x1xf32>
    %111 = vector.broadcast %110 : vector<8x1xf32> to vector<8x64xf32>
    %112 = arith.mulf %107, %111 : vector<8x64xf32>
    %113 = vector.broadcast %93 : vector<1x64xf32> to vector<8x64xf32>
    %114 = arith.mulf %112, %113 : vector<8x64xf32>
    %115 = vector.broadcast %94 : vector<1x64xf32> to vector<8x64xf32>
    %116 = arith.addf %114, %115 : vector<8x64xf32>
    %cst_71 = arith.constant 0.000000e+00 : f32
    %117 = vector.broadcast %cst_71 : f32 to vector<8x64xf32>
    %118 = arith.maximumf %116, %117 : vector<8x64xf32>
    %119 = vector.broadcast %3 : vector<8x1xf32> to vector<8x64xf32>
    %120 = arith.mulf %118, %119 : vector<8x64xf32>
    %121 = arith.addf %1, %120 : vector<8x64xf32>
    %c0_72 = arith.constant 0 : index
    %c0_73 = arith.constant 0 : index
    %122 = vector.load %arg18[%c0_72, %c0_73] : memref<1x64xf32, #tpu.memory_space<vmem>>, vector<1x64xf32>
    %c0_74 = arith.constant 0 : index
    %c0_75 = arith.constant 0 : index
    %123 = vector.load %arg19[%c0_74, %c0_75] : memref<1x64xf32, #tpu.memory_space<vmem>>, vector<1x64xf32>
    %cst_76 = arith.constant dense<0.000000e+00> : vector<8xf32>
    %124 = vector.multi_reduction <add>, %121, %cst_76 [1] : vector<8x64xf32> to vector<8xf32>
    %125 = vector.shape_cast %124 : vector<8xf32> to vector<8x1xf32>
    %cst_77 = arith.constant 6.400000e+01 : f32
    %126 = vector.broadcast %cst_77 : f32 to vector<8x1xf32>
    %127 = arith.divf %125, %126 : vector<8x1xf32>
    %128 = vector.broadcast %127 : vector<8x1xf32> to vector<8x64xf32>
    %129 = arith.subf %121, %128 : vector<8x64xf32>
    %130 = arith.mulf %129, %129 : vector<8x64xf32>
    %cst_78 = arith.constant dense<0.000000e+00> : vector<8xf32>
    %131 = vector.multi_reduction <add>, %130, %cst_78 [1] : vector<8x64xf32> to vector<8xf32>
    %132 = vector.shape_cast %131 : vector<8xf32> to vector<8x1xf32>
    %cst_79 = arith.constant 6.400000e+01 : f32
    %133 = vector.broadcast %cst_79 : f32 to vector<8x1xf32>
    %134 = arith.divf %132, %133 : vector<8x1xf32>
    %135 = vector.broadcast %127 : vector<8x1xf32> to vector<8x64xf32>
    %136 = arith.subf %121, %135 : vector<8x64xf32>
    %cst_80 = arith.constant 9.99999974E-6 : f32
    %137 = vector.broadcast %cst_80 : f32 to vector<8x1xf32>
    %138 = arith.addf %134, %137 : vector<8x1xf32>
    %139 = math.rsqrt %138 : vector<8x1xf32>
    %140 = vector.broadcast %139 : vector<8x1xf32> to vector<8x64xf32>
    %141 = arith.mulf %136, %140 : vector<8x64xf32>
    %142 = vector.broadcast %122 : vector<1x64xf32> to vector<8x64xf32>
    %143 = arith.mulf %141, %142 : vector<8x64xf32>
    %144 = vector.broadcast %123 : vector<1x64xf32> to vector<8x64xf32>
    %145 = arith.addf %143, %144 : vector<8x64xf32>
    %c0_81 = arith.constant 0 : index
    %c0_82 = arith.constant 0 : index
    %146 = vector.load %arg20[%c0_81, %c0_82] : memref<64x128xf32, #tpu.memory_space<vmem>>, vector<64x128xf32>
    %cst_83 = arith.constant dense<0.000000e+00> : vector<8x128xf32>
    %147 = tpu.matmul %145, %146, %cst_83 {dimension_numbers = #tpu.dot_dimension_numbers<[1], [0], [0], [1], [0, 0, 1, 1], [], []>} : vector<8x64xf32>, vector<64x128xf32>, vector<8x128xf32> -> vector<8x128xf32>
    %c0_84 = arith.constant 0 : index
    %c0_85 = arith.constant 0 : index
    %148 = vector.load %arg21[%c0_84, %c0_85] : memref<1x128xf32, #tpu.memory_space<vmem>>, vector<1x128xf32>
    %149 = vector.broadcast %148 : vector<1x128xf32> to vector<8x128xf32>
    %150 = arith.addf %147, %149 : vector<8x128xf32>
    %cst_86 = arith.constant 0.000000e+00 : f32
    %151 = vector.broadcast %cst_86 : f32 to vector<8x128xf32>
    %152 = arith.maximumf %150, %151 : vector<8x128xf32>
    %c0_87 = arith.constant 0 : index
    %c0_88 = arith.constant 0 : index
    %153 = vector.load %arg22[%c0_87, %c0_88] : memref<128x64xf32, #tpu.memory_space<vmem>>, vector<128x64xf32>
    %cst_89 = arith.constant dense<0.000000e+00> : vector<8x64xf32>
    %154 = tpu.matmul %152, %153, %cst_89 {dimension_numbers = #tpu.dot_dimension_numbers<[1], [0], [0], [1], [0, 0, 1, 1], [], []>} : vector<8x128xf32>, vector<128x64xf32>, vector<8x64xf32> -> vector<8x64xf32>
    %c0_90 = arith.constant 0 : index
    %c0_91 = arith.constant 0 : index
    %155 = vector.load %arg23[%c0_90, %c0_91] : memref<1x64xf32, #tpu.memory_space<vmem>>, vector<1x64xf32>
    %156 = vector.broadcast %155 : vector<1x64xf32> to vector<8x64xf32>
    %157 = arith.addf %154, %156 : vector<8x64xf32>
    %158 = arith.addf %145, %157 : vector<8x64xf32>
    %c0_92 = arith.constant 0 : index
    %c0_93 = arith.constant 0 : index
    %159 = vector.load %arg24[%c0_92, %c0_93] : memref<1x64xf32, #tpu.memory_space<vmem>>, vector<1x64xf32>
    %c0_94 = arith.constant 0 : index
    %c0_95 = arith.constant 0 : index
    %160 = vector.load %arg25[%c0_94, %c0_95] : memref<1x64xf32, #tpu.memory_space<vmem>>, vector<1x64xf32>
    %cst_96 = arith.constant dense<0.000000e+00> : vector<8xf32>
    %161 = vector.multi_reduction <add>, %158, %cst_96 [1] : vector<8x64xf32> to vector<8xf32>
    %162 = vector.shape_cast %161 : vector<8xf32> to vector<8x1xf32>
    %cst_97 = arith.constant 6.400000e+01 : f32
    %163 = vector.broadcast %cst_97 : f32 to vector<8x1xf32>
    %164 = arith.divf %162, %163 : vector<8x1xf32>
    %165 = vector.broadcast %164 : vector<8x1xf32> to vector<8x64xf32>
    %166 = arith.subf %158, %165 : vector<8x64xf32>
    %167 = arith.mulf %166, %166 : vector<8x64xf32>
    %cst_98 = arith.constant dense<0.000000e+00> : vector<8xf32>
    %168 = vector.multi_reduction <add>, %167, %cst_98 [1] : vector<8x64xf32> to vector<8xf32>
    %169 = vector.shape_cast %168 : vector<8xf32> to vector<8x1xf32>
    %cst_99 = arith.constant 6.400000e+01 : f32
    %170 = vector.broadcast %cst_99 : f32 to vector<8x1xf32>
    %171 = arith.divf %169, %170 : vector<8x1xf32>
    %172 = vector.broadcast %164 : vector<8x1xf32> to vector<8x64xf32>
    %173 = arith.subf %158, %172 : vector<8x64xf32>
    %cst_100 = arith.constant 9.99999974E-6 : f32
    %174 = vector.broadcast %cst_100 : f32 to vector<8x1xf32>
    %175 = arith.addf %171, %174 : vector<8x1xf32>
    %176 = math.rsqrt %175 : vector<8x1xf32>
    %177 = vector.broadcast %176 : vector<8x1xf32> to vector<8x64xf32>
    %178 = arith.mulf %173, %177 : vector<8x64xf32>
    %179 = vector.broadcast %159 : vector<1x64xf32> to vector<8x64xf32>
    %180 = arith.mulf %178, %179 : vector<8x64xf32>
    %181 = vector.broadcast %160 : vector<1x64xf32> to vector<8x64xf32>
    %182 = arith.addf %180, %181 : vector<8x64xf32>
    %c0_101 = arith.constant 0 : index
    %c0_102 = arith.constant 0 : index
    %c0_103 = arith.constant 0 : index
    %183 = vector.load %arg26[%c0_101, %c0_102, %c0_103] : memref<1x64x64xf32, #tpu.memory_space<vmem>>, vector<1x64x64xf32>
    %184 = vector.shape_cast %183 : vector<1x64x64xf32> to vector<64x64xf32>
    %cst_104 = arith.constant dense<0.000000e+00> : vector<8x64xf32>
    %185 = tpu.matmul %182, %184, %cst_104 {dimension_numbers = #tpu.dot_dimension_numbers<[1], [0], [0], [1], [0, 0, 1, 1], [], []>} : vector<8x64xf32>, vector<64x64xf32>, vector<8x64xf32> -> vector<8x64xf32>
    %c0_105 = arith.constant 0 : index
    %c0_106 = arith.constant 0 : index
    %186 = vector.load %arg27[%c0_105, %c0_106] : memref<1x64xf32, #tpu.memory_space<vmem>>, vector<1x64xf32>
    %c0_107 = arith.constant 0 : index
    %c0_108 = arith.constant 0 : index
    %187 = vector.load %arg28[%c0_107, %c0_108] : memref<1x64xf32, #tpu.memory_space<vmem>>, vector<1x64xf32>
    %cst_109 = arith.constant dense<0.000000e+00> : vector<8xf32>
    %188 = vector.multi_reduction <add>, %185, %cst_109 [1] : vector<8x64xf32> to vector<8xf32>
    %189 = vector.shape_cast %188 : vector<8xf32> to vector<8x1xf32>
    %cst_110 = arith.constant 6.400000e+01 : f32
    %190 = vector.broadcast %cst_110 : f32 to vector<8x1xf32>
    %191 = arith.divf %189, %190 : vector<8x1xf32>
    %192 = vector.broadcast %191 : vector<8x1xf32> to vector<8x64xf32>
    %193 = arith.subf %185, %192 : vector<8x64xf32>
    %194 = arith.mulf %193, %193 : vector<8x64xf32>
    %cst_111 = arith.constant dense<0.000000e+00> : vector<8xf32>
    %195 = vector.multi_reduction <add>, %194, %cst_111 [1] : vector<8x64xf32> to vector<8xf32>
    %196 = vector.shape_cast %195 : vector<8xf32> to vector<8x1xf32>
    %cst_112 = arith.constant 6.400000e+01 : f32
    %197 = vector.broadcast %cst_112 : f32 to vector<8x1xf32>
    %198 = arith.divf %196, %197 : vector<8x1xf32>
    %199 = vector.broadcast %191 : vector<8x1xf32> to vector<8x64xf32>
    %200 = arith.subf %185, %199 : vector<8x64xf32>
    %cst_113 = arith.constant 9.99999974E-6 : f32
    %201 = vector.broadcast %cst_113 : f32 to vector<8x1xf32>
    %202 = arith.addf %198, %201 : vector<8x1xf32>
    %203 = math.rsqrt %202 : vector<8x1xf32>
    %204 = vector.broadcast %203 : vector<8x1xf32> to vector<8x64xf32>
    %205 = arith.mulf %200, %204 : vector<8x64xf32>
    %206 = vector.broadcast %186 : vector<1x64xf32> to vector<8x64xf32>
    %207 = arith.mulf %205, %206 : vector<8x64xf32>
    %208 = vector.broadcast %187 : vector<1x64xf32> to vector<8x64xf32>
    %209 = arith.addf %207, %208 : vector<8x64xf32>
    %cst_114 = arith.constant 0.000000e+00 : f32
    %210 = vector.broadcast %cst_114 : f32 to vector<8x64xf32>
    %211 = arith.maximumf %209, %210 : vector<8x64xf32>
    %c0_115 = arith.constant 0 : index
    %c0_116 = arith.constant 0 : index
    %c0_117 = arith.constant 0 : index
    %212 = vector.load %arg29[%c0_115, %c0_116, %c0_117] : memref<1x64x64xf32, #tpu.memory_space<vmem>>, vector<1x64x64xf32>
    %213 = vector.shape_cast %212 : vector<1x64x64xf32> to vector<64x64xf32>
    %cst_118 = arith.constant dense<0.000000e+00> : vector<8x64xf32>
    %214 = tpu.matmul %182, %213, %cst_118 {dimension_numbers = #tpu.dot_dimension_numbers<[1], [0], [0], [1], [0, 0, 1, 1], [], []>} : vector<8x64xf32>, vector<64x64xf32>, vector<8x64xf32> -> vector<8x64xf32>
    %c0_119 = arith.constant 0 : index
    %c0_120 = arith.constant 0 : index
    %215 = vector.load %arg30[%c0_119, %c0_120] : memref<1x64xf32, #tpu.memory_space<vmem>>, vector<1x64xf32>
    %c0_121 = arith.constant 0 : index
    %c0_122 = arith.constant 0 : index
    %216 = vector.load %arg31[%c0_121, %c0_122] : memref<1x64xf32, #tpu.memory_space<vmem>>, vector<1x64xf32>
    %cst_123 = arith.constant dense<0.000000e+00> : vector<8xf32>
    %217 = vector.multi_reduction <add>, %214, %cst_123 [1] : vector<8x64xf32> to vector<8xf32>
    %218 = vector.shape_cast %217 : vector<8xf32> to vector<8x1xf32>
    %cst_124 = arith.constant 6.400000e+01 : f32
    %219 = vector.broadcast %cst_124 : f32 to vector<8x1xf32>
    %220 = arith.divf %218, %219 : vector<8x1xf32>
    %221 = vector.broadcast %220 : vector<8x1xf32> to vector<8x64xf32>
    %222 = arith.subf %214, %221 : vector<8x64xf32>
    %223 = arith.mulf %222, %222 : vector<8x64xf32>
    %cst_125 = arith.constant dense<0.000000e+00> : vector<8xf32>
    %224 = vector.multi_reduction <add>, %223, %cst_125 [1] : vector<8x64xf32> to vector<8xf32>
    %225 = vector.shape_cast %224 : vector<8xf32> to vector<8x1xf32>
    %cst_126 = arith.constant 6.400000e+01 : f32
    %226 = vector.broadcast %cst_126 : f32 to vector<8x1xf32>
    %227 = arith.divf %225, %226 : vector<8x1xf32>
    %228 = vector.broadcast %220 : vector<8x1xf32> to vector<8x64xf32>
    %229 = arith.subf %214, %228 : vector<8x64xf32>
    %cst_127 = arith.constant 9.99999974E-6 : f32
    %230 = vector.broadcast %cst_127 : f32 to vector<8x1xf32>
    %231 = arith.addf %227, %230 : vector<8x1xf32>
    %232 = math.rsqrt %231 : vector<8x1xf32>
    %233 = vector.broadcast %232 : vector<8x1xf32> to vector<8x64xf32>
    %234 = arith.mulf %229, %233 : vector<8x64xf32>
    %235 = vector.broadcast %215 : vector<1x64xf32> to vector<8x64xf32>
    %236 = arith.mulf %234, %235 : vector<8x64xf32>
    %237 = vector.broadcast %216 : vector<1x64xf32> to vector<8x64xf32>
    %238 = arith.addf %236, %237 : vector<8x64xf32>
    %cst_128 = arith.constant 0.000000e+00 : f32
    %239 = vector.broadcast %cst_128 : f32 to vector<8x64xf32>
    %240 = arith.maximumf %238, %239 : vector<8x64xf32>
    %c0_129 = arith.constant 0 : index
    %c0_130 = arith.constant 0 : index
    %241 = vector.load %arg32[%c0_129, %c0_130] : memref<64x10xf32, #tpu.memory_space<vmem>>, vector<64x10xf32>
    %cst_131 = arith.constant dense<0.000000e+00> : vector<8x10xf32>
    %242 = tpu.matmul %211, %241, %cst_131 {dimension_numbers = #tpu.dot_dimension_numbers<[1], [0], [0], [1], [0, 0, 1, 1], [], []>} : vector<8x64xf32>, vector<64x10xf32>, vector<8x10xf32> -> vector<8x10xf32>
    %c0_132 = arith.constant 0 : index
    %c0_133 = arith.constant 0 : index
    %243 = vector.load %arg33[%c0_132, %c0_133] : memref<1x10xf32, #tpu.memory_space<vmem>>, vector<1x10xf32>
    %244 = vector.broadcast %243 : vector<1x10xf32> to vector<8x10xf32>
    %245 = arith.addf %242, %244 : vector<8x10xf32>
    %c0_134 = arith.constant 0 : index
    %c0_135 = arith.constant 0 : index
    %246 = vector.load %arg34[%c0_134, %c0_135] : memref<64x4xf32, #tpu.memory_space<vmem>>, vector<64x4xf32>
    %cst_136 = arith.constant dense<0.000000e+00> : vector<8x4xf32>
    %247 = tpu.matmul %240, %246, %cst_136 {dimension_numbers = #tpu.dot_dimension_numbers<[1], [0], [0], [1], [0, 0, 1, 1], [], []>} : vector<8x64xf32>, vector<64x4xf32>, vector<8x4xf32> -> vector<8x4xf32>
    %c0_137 = arith.constant 0 : index
    %c0_138 = arith.constant 0 : index
    %248 = vector.load %arg35[%c0_137, %c0_138] : memref<1x4xf32, #tpu.memory_space<vmem>>, vector<1x4xf32>
    %249 = vector.broadcast %248 : vector<1x4xf32> to vector<8x4xf32>
    %250 = arith.addf %247, %249 : vector<8x4xf32>
    %c0_139 = arith.constant 0 : index
    %c0_140 = arith.constant 0 : index
    %c0_141 = arith.constant 0 : index
    %251 = vector.load %arg7[%c0_139, %c0_140, %c0_141] : memref<1x8x4xf32, #tpu.memory_space<vmem>>, vector<1x8x4xf32>
    %252 = vector.shape_cast %251 : vector<1x8x4xf32> to vector<8x4xf32>
    %253 = vector.extract_strided_slice %252 {offsets = [0, 0], sizes = [8, 1], strides = [1, 1]} : vector<8x4xf32> to vector<8x1xf32>
    %254 = vector.extract_strided_slice %252 {offsets = [0, 1], sizes = [8, 1], strides = [1, 1]} : vector<8x4xf32> to vector<8x1xf32>
    %255 = vector.extract_strided_slice %252 {offsets = [0, 2], sizes = [8, 1], strides = [1, 1]} : vector<8x4xf32> to vector<8x1xf32>
    %256 = vector.extract_strided_slice %252 {offsets = [0, 3], sizes = [8, 1], strides = [1, 1]} : vector<8x4xf32> to vector<8x1xf32>
    %257 = arith.subf %255, %253 : vector<8x1xf32>
    %258 = arith.subf %256, %254 : vector<8x1xf32>
    %cst_142 = arith.constant 5.000000e-01 : f32
    %259 = vector.broadcast %cst_142 : f32 to vector<8x1xf32>
    %260 = arith.mulf %259, %257 : vector<8x1xf32>
    %261 = arith.addf %253, %260 : vector<8x1xf32>
    %cst_143 = arith.constant 5.000000e-01 : f32
    %262 = vector.broadcast %cst_143 : f32 to vector<8x1xf32>
    %263 = arith.mulf %262, %258 : vector<8x1xf32>
    %264 = arith.addf %254, %263 : vector<8x1xf32>
    %265 = vector.extract_strided_slice %250 {offsets = [0, 0], sizes = [8, 1], strides = [1, 1]} : vector<8x4xf32> to vector<8x1xf32>
    %cst_144 = arith.constant 5.000000e-01 : f32
    %266 = vector.broadcast %cst_144 : f32 to vector<8x1xf32>
    %267 = arith.mulf %265, %266 : vector<8x1xf32>
    %268 = vector.extract_strided_slice %250 {offsets = [0, 1], sizes = [8, 1], strides = [1, 1]} : vector<8x4xf32> to vector<8x1xf32>
    %cst_145 = arith.constant 5.000000e-01 : f32
    %269 = vector.broadcast %cst_145 : f32 to vector<8x1xf32>
    %270 = arith.mulf %268, %269 : vector<8x1xf32>
    %271 = vector.extract_strided_slice %250 {offsets = [0, 2], sizes = [8, 1], strides = [1, 1]} : vector<8x4xf32> to vector<8x1xf32>
    %cst_146 = arith.constant 1.000000e+00 : f32
    %272 = vector.broadcast %cst_146 : f32 to vector<8x1xf32>
    %273 = arith.mulf %271, %272 : vector<8x1xf32>
    %cst_147 = arith.constant 8.74033641 : f32
    %274 = vector.broadcast %cst_147 : f32 to vector<8x1xf32>
    %275 = arith.minimumf %273, %274 : vector<8x1xf32>
    %276 = vector.extract_strided_slice %250 {offsets = [0, 3], sizes = [8, 1], strides = [1, 1]} : vector<8x4xf32> to vector<8x1xf32>
    %cst_148 = arith.constant 1.000000e+00 : f32
    %277 = vector.broadcast %cst_148 : f32 to vector<8x1xf32>
    %278 = arith.mulf %276, %277 : vector<8x1xf32>
    %cst_149 = arith.constant 8.74033641 : f32
    %279 = vector.broadcast %cst_149 : f32 to vector<8x1xf32>
    %280 = arith.minimumf %278, %279 : vector<8x1xf32>
    %281 = arith.mulf %267, %257 : vector<8x1xf32>
    %282 = arith.addf %281, %261 : vector<8x1xf32>
    %283 = arith.mulf %270, %258 : vector<8x1xf32>
    %284 = arith.addf %283, %264 : vector<8x1xf32>
    %285 = math.exp %275 : vector<8x1xf32>
    %286 = arith.mulf %285, %257 : vector<8x1xf32>
    %287 = math.exp %280 : vector<8x1xf32>
    %288 = arith.mulf %287, %258 : vector<8x1xf32>
    %cst_150 = arith.constant 5.000000e-01 : f32
    %289 = vector.broadcast %cst_150 : f32 to vector<8x1xf32>
    %290 = arith.mulf %289, %286 : vector<8x1xf32>
    %291 = arith.subf %282, %290 : vector<8x1xf32>
    %cst_151 = arith.constant 5.000000e-01 : f32
    %292 = vector.broadcast %cst_151 : f32 to vector<8x1xf32>
    %293 = arith.mulf %292, %288 : vector<8x1xf32>
    %294 = arith.subf %284, %293 : vector<8x1xf32>
    %cst_152 = arith.constant 5.000000e-01 : f32
    %295 = vector.broadcast %cst_152 : f32 to vector<8x1xf32>
    %296 = arith.mulf %295, %286 : vector<8x1xf32>
    %297 = arith.addf %282, %296 : vector<8x1xf32>
    %cst_153 = arith.constant 5.000000e-01 : f32
    %298 = vector.broadcast %cst_153 : f32 to vector<8x1xf32>
    %299 = arith.mulf %298, %288 : vector<8x1xf32>
    %300 = arith.addf %284, %299 : vector<8x1xf32>
    %c0_154 = arith.constant 0 : index
    %c0_155 = arith.constant 0 : index
    %c0_156 = arith.constant 0 : index
    %301 = vector.load %arg9[%c0_154, %c0_155, %c0_156] : memref<1x8x1xf32, #tpu.memory_space<vmem>>, vector<1x8x1xf32>
    %302 = vector.shape_cast %301 : vector<1x8x1xf32> to vector<8x1xf32>
    %303 = arith.addf %3, %302 : vector<8x1xf32>
    %cst_157 = arith.constant 1.000000e+00 : f32
    %304 = vector.broadcast %cst_157 : f32 to vector<8x1xf32>
    %305 = arith.subf %304, %303 : vector<8x1xf32>
    %c0_158 = arith.constant 0 : index
    %c0_159 = arith.constant 0 : index
    %c0_160 = arith.constant 0 : index
    %306 = vector.load %arg6[%c0_158, %c0_159, %c0_160] : memref<1x8x10xf32, #tpu.memory_space<vmem>>, vector<1x8x10xf32>
    %307 = vector.shape_cast %306 : vector<1x8x10xf32> to vector<8x10xf32>
    %308 = vector.broadcast %305 : vector<8x1xf32> to vector<8x10xf32>
    %309 = arith.mulf %307, %308 : vector<8x10xf32>
    %310 = vector.broadcast %303 : vector<8x1xf32> to vector<8x10xf32>
    %311 = arith.mulf %245, %310 : vector<8x10xf32>
    %312 = arith.addf %309, %311 : vector<8x10xf32>
    %c0_161 = arith.constant 0 : index
    %c0_162 = arith.constant 0 : index
    %c0_163 = arith.constant 0 : index
    %313 = vector.load %arg36[%c0_161, %c0_162, %c0_163] : memref<1x8x128xf32, #tpu.memory_space<vmem>>, vector<1x8x10xf32>
    %314 = vector.shape_cast %313 : vector<1x8x10xf32> to vector<8x10xf32>
    %315 = vector.shape_cast %312 : vector<8x10xf32> to vector<1x8x10xf32>
    tpu.vector_store %arg36[%c0_161, %c0_162, %c0_163], %315 {strides = array<i32>} : memref<1x8x128xf32, #tpu.memory_space<vmem>>, vector<1x8x10xf32>,
    %316 = vector.extract_strided_slice %252 {offsets = [0, 0], sizes = [8, 1], strides = [1, 1]} : vector<8x4xf32> to vector<8x1xf32>
    %317 = arith.mulf %316, %305 : vector<8x1xf32>
    %318 = arith.mulf %291, %303 : vector<8x1xf32>
    %319 = arith.addf %317, %318 : vector<8x1xf32>
    %c0_164 = arith.constant 0 : index
    %c0_165 = arith.constant 0 : index
    %c10 = arith.constant 10 : index
    %320 = vector.load %arg36[%c0_164, %c0_165, %c10] : memref<1x8x128xf32, #tpu.memory_space<vmem>>, vector<1x8x1xf32>
    %321 = vector.shape_cast %320 : vector<1x8x1xf32> to vector<8x1xf32>
    %322 = vector.shape_cast %319 : vector<8x1xf32> to vector<1x8x1xf32>
    tpu.vector_store %arg36[%c0_164, %c0_165, %c10], %322 {strides = array<i32>} : memref<1x8x128xf32, #tpu.memory_space<vmem>>, vector<1x8x1xf32>,
    %323 = vector.extract_strided_slice %252 {offsets = [0, 1], sizes = [8, 1], strides = [1, 1]} : vector<8x4xf32> to vector<8x1xf32>
    %324 = arith.mulf %323, %305 : vector<8x1xf32>
    %325 = arith.mulf %294, %303 : vector<8x1xf32>
    %326 = arith.addf %324, %325 : vector<8x1xf32>
    %c0_166 = arith.constant 0 : index
    %c0_167 = arith.constant 0 : index
    %c11 = arith.constant 11 : index
    %327 = vector.load %arg36[%c0_166, %c0_167, %c11] : memref<1x8x128xf32, #tpu.memory_space<vmem>>, vector<1x8x1xf32>
    %328 = vector.shape_cast %327 : vector<1x8x1xf32> to vector<8x1xf32>
    %329 = vector.shape_cast %326 : vector<8x1xf32> to vector<1x8x1xf32>
    tpu.vector_store %arg36[%c0_166, %c0_167, %c11], %329 {strides = array<i32>} : memref<1x8x128xf32, #tpu.memory_space<vmem>>, vector<1x8x1xf32>,
    %330 = vector.extract_strided_slice %252 {offsets = [0, 2], sizes = [8, 1], strides = [1, 1]} : vector<8x4xf32> to vector<8x1xf32>
    %331 = arith.mulf %330, %305 : vector<8x1xf32>
    %332 = arith.mulf %297, %303 : vector<8x1xf32>
    %333 = arith.addf %331, %332 : vector<8x1xf32>
    %c0_168 = arith.constant 0 : index
    %c0_169 = arith.constant 0 : index
    %c12 = arith.constant 12 : index
    %334 = vector.load %arg36[%c0_168, %c0_169, %c12] : memref<1x8x128xf32, #tpu.memory_space<vmem>>, vector<1x8x1xf32>
    %335 = vector.shape_cast %334 : vector<1x8x1xf32> to vector<8x1xf32>
    %336 = vector.shape_cast %333 : vector<8x1xf32> to vector<1x8x1xf32>
    tpu.vector_store %arg36[%c0_168, %c0_169, %c12], %336 {strides = array<i32>} : memref<1x8x128xf32, #tpu.memory_space<vmem>>, vector<1x8x1xf32>,
    %337 = vector.extract_strided_slice %252 {offsets = [0, 3], sizes = [8, 1], strides = [1, 1]} : vector<8x4xf32> to vector<8x1xf32>
    %338 = arith.mulf %337, %305 : vector<8x1xf32>
    %339 = arith.mulf %300, %303 : vector<8x1xf32>
    %340 = arith.addf %338, %339 : vector<8x1xf32>
    %c0_170 = arith.constant 0 : index
    %c0_171 = arith.constant 0 : index
    %c13 = arith.constant 13 : index
    %341 = vector.load %arg36[%c0_170, %c0_171, %c13] : memref<1x8x128xf32, #tpu.memory_space<vmem>>, vector<1x8x1xf32>
    %342 = vector.shape_cast %341 : vector<1x8x1xf32> to vector<8x1xf32>
    %343 = vector.shape_cast %340 : vector<8x1xf32> to vector<1x8x1xf32>
    tpu.vector_store %arg36[%c0_170, %c0_171, %c13], %343 {strides = array<i32>} : memref<1x8x128xf32, #tpu.memory_space<vmem>>, vector<1x8x1xf32>,
    %c0_172 = arith.constant 0 : index
    %c0_173 = arith.constant 0 : index
    %c0_174 = arith.constant 0 : index
    %344 = vector.load %arg2[%c0_172, %c0_173, %c0_174] : memref<1x8x64xf32, #tpu.memory_space<vmem>>, vector<1x8x64xf32>
    %345 = vector.shape_cast %344 : vector<1x8x64xf32> to vector<8x64xf32>
    %346 = vector.broadcast %305 : vector<8x1xf32> to vector<8x64xf32>
    %347 = arith.mulf %345, %346 : vector<8x64xf32>
    %348 = vector.broadcast %303 : vector<8x1xf32> to vector<8x64xf32>
    %349 = arith.mulf %182, %348 : vector<8x64xf32>
    %350 = arith.addf %347, %349 : vector<8x64xf32>
    %c0_175 = arith.constant 0 : index
    %c0_176 = arith.constant 0 : index
    %c14 = arith.constant 14 : index
    %351 = vector.load %arg36[%c0_175, %c0_176, %c14] : memref<1x8x128xf32, #tpu.memory_space<vmem>>, vector<1x8x64xf32>
    %352 = vector.shape_cast %351 : vector<1x8x64xf32> to vector<8x64xf32>
    %353 = vector.shape_cast %350 : vector<8x64xf32> to vector<1x8x64xf32>
    tpu.vector_store %arg36[%c0_175, %c0_176, %c14], %353 {strides = array<i32>} : memref<1x8x128xf32, #tpu.memory_space<vmem>>, vector<1x8x64xf32>,
    %cst_177 = arith.constant 0.000000e+00 : f32
    %354 = vector.broadcast %cst_177 : f32 to vector<8x50xf32>
    %c0_178 = arith.constant 0 : index
    %c0_179 = arith.constant 0 : index
    %c78 = arith.constant 78 : index
    %355 = vector.load %arg36[%c0_178, %c0_179, %c78] : memref<1x8x128xf32, #tpu.memory_space<vmem>>, vector<1x8x50xf32>
    %356 = vector.shape_cast %355 : vector<1x8x50xf32> to vector<8x50xf32>
    %357 = vector.shape_cast %354 : vector<8x50xf32> to vector<1x8x50xf32>
    tpu.vector_store %arg36[%c0_178, %c0_179, %c78], %357 {strides = array<i32>} : memref<1x8x128xf32, #tpu.memory_space<vmem>>, vector<1x8x50xf32>,
    return
  }
  func.func @transform_0(%arg0: i32) -> (i32, i32, i32) {
    %c0_i32 = arith.constant 0 : i32
    %c0_i32_0 = arith.constant 0 : i32
    %c0_i32_1 = arith.constant 0 : i32
    return %arg0, %c0_i32, %c0_i32_0 : i32, i32, i32
  }
  func.func @transform_1(%arg0: i32) -> (i32, i32, i32) {
    %c0_i32 = arith.constant 0 : i32
    %c0_i32_0 = arith.constant 0 : i32
    %c0_i32_1 = arith.constant 0 : i32
    return %arg0, %c0_i32, %c0_i32_0 : i32, i32, i32
  }
  func.func @transform_2(%arg0: i32) -> (i32, i32, i32, i32) {
    %c0_i32 = arith.constant 0 : i32
    %c0_i32_0 = arith.constant 0 : i32
    %c0_i32_1 = arith.constant 0 : i32
    %c0_i32_2 = arith.constant 0 : i32
    return %arg0, %c0_i32, %c0_i32_0, %c0_i32_1 : i32, i32, i32, i32
  }
  func.func @transform_3(%arg0: i32) -> (i32, i32, i32, i32) {
    %c0_i32 = arith.constant 0 : i32
    %c0_i32_0 = arith.constant 0 : i32
    %c0_i32_1 = arith.constant 0 : i32
    %c0_i32_2 = arith.constant 0 : i32
    return %arg0, %c0_i32, %c0_i32_0, %c0_i32_1 : i32, i32, i32, i32
  }
  func.func @transform_4(%arg0: i32) -> (i32, i32, i32, i32) {
    %c0_i32 = arith.constant 0 : i32
    %c0_i32_0 = arith.constant 0 : i32
    %c0_i32_1 = arith.constant 0 : i32
    %c0_i32_2 = arith.constant 0 : i32
    return %arg0, %c0_i32, %c0_i32_0, %c0_i32_1 : i32, i32, i32, i32
  }
  func.func @transform_5(%arg0: i32) -> (i32, i32, i32) {
    %c0_i32 = arith.constant 0 : i32
    %c0_i32_0 = arith.constant 0 : i32
    %c0_i32_1 = arith.constant 0 : i32
    return %arg0, %c0_i32, %c0_i32_0 : i32, i32, i32
  }
  func.func @transform_6(%arg0: i32) -> (i32, i32, i32) {
    %c0_i32 = arith.constant 0 : i32
    %c0_i32_0 = arith.constant 0 : i32
    %c0_i32_1 = arith.constant 0 : i32
    return %arg0, %c0_i32, %c0_i32_0 : i32, i32, i32
  }
  func.func @transform_7(%arg0: i32) -> (i32, i32, i32) {
    %c0_i32 = arith.constant 0 : i32
    %c0_i32_0 = arith.constant 0 : i32
    %c0_i32_1 = arith.constant 0 : i32
    return %arg0, %c0_i32, %c0_i32_0 : i32, i32, i32
  }
  func.func @transform_8(%arg0: i32) -> (i32, i32, i32) {
    %c0_i32 = arith.constant 0 : i32
    %c0_i32_0 = arith.constant 0 : i32
    %c0_i32_1 = arith.constant 0 : i32
    return %arg0, %c0_i32, %c0_i32_0 : i32, i32, i32
  }
  func.func @transform_9(%arg0: i32) -> (i32, i32) {
    %c0_i32 = arith.constant 0 : i32
    %c0_i32_0 = arith.constant 0 : i32
    %c0_i32_1 = arith.constant 0 : i32
    return %c0_i32, %c0_i32_0 : i32, i32
  }
  func.func @transform_10(%arg0: i32) -> (i32, i32) {
    %c0_i32 = arith.constant 0 : i32
    %c0_i32_0 = arith.constant 0 : i32
    %c0_i32_1 = arith.constant 0 : i32
    return %c0_i32, %c0_i32_0 : i32, i32
  }
  func.func @transform_11(%arg0: i32) -> (i32, i32) {
    %c0_i32 = arith.constant 0 : i32
    %c0_i32_0 = arith.constant 0 : i32
    %c0_i32_1 = arith.constant 0 : i32
    return %c0_i32, %c0_i32_0 : i32, i32
  }
  func.func @transform_12(%arg0: i32) -> (i32, i32) {
    %c0_i32 = arith.constant 0 : i32
    %c0_i32_0 = arith.constant 0 : i32
    %c0_i32_1 = arith.constant 0 : i32
    return %c0_i32, %c0_i32_0 : i32, i32
  }
  func.func @transform_13(%arg0: i32) -> (i32, i32) {
    %c0_i32 = arith.constant 0 : i32
    %c0_i32_0 = arith.constant 0 : i32
    %c0_i32_1 = arith.constant 0 : i32
    return %c0_i32, %c0_i32_0 : i32, i32
  }
  func.func @transform_14(%arg0: i32) -> (i32, i32) {
    %c0_i32 = arith.constant 0 : i32
    %c0_i32_0 = arith.constant 0 : i32
    %c0_i32_1 = arith.constant 0 : i32
    return %c0_i32, %c0_i32_0 : i32, i32
  }
  func.func @transform_15(%arg0: i32) -> (i32, i32) {
    %c0_i32 = arith.constant 0 : i32
    %c0_i32_0 = arith.constant 0 : i32
    %c0_i32_1 = arith.constant 0 : i32
    return %c0_i32, %c0_i32_0 : i32, i32
  }
  func.func @transform_16(%arg0: i32) -> (i32, i32) {
    %c0_i32 = arith.constant 0 : i32
    %c0_i32_0 = arith.constant 0 : i32
    %c0_i32_1 = arith.constant 0 : i32
    return %c0_i32, %c0_i32_0 : i32, i32
  }
  func.func @transform_17(%arg0: i32) -> (i32, i32) {
    %c0_i32 = arith.constant 0 : i32
    %c0_i32_0 = arith.constant 0 : i32
    %c0_i32_1 = arith.constant 0 : i32
    return %c0_i32, %c0_i32_0 : i32, i32
  }
  func.func @transform_18(%arg0: i32) -> (i32, i32) {
    %c0_i32 = arith.constant 0 : i32
    %c0_i32_0 = arith.constant 0 : i32
    %c0_i32_1 = arith.constant 0 : i32
    return %c0_i32, %c0_i32_0 : i32, i32
  }
  func.func @transform_19(%arg0: i32) -> (i32, i32) {
    %c0_i32 = arith.constant 0 : i32
    %c0_i32_0 = arith.constant 0 : i32
    %c0_i32_1 = arith.constant 0 : i32
    return %c0_i32, %c0_i32_0 : i32, i32
  }
  func.func @transform_20(%arg0: i32) -> (i32, i32) {
    %c0_i32 = arith.constant 0 : i32
    %c0_i32_0 = arith.constant 0 : i32
    %c0_i32_1 = arith.constant 0 : i32
    return %c0_i32, %c0_i32_0 : i32, i32
  }
  func.func @transform_21(%arg0: i32) -> (i32, i32) {
    %c0_i32 = arith.constant 0 : i32
    %c0_i32_0 = arith.constant 0 : i32
    %c0_i32_1 = arith.constant 0 : i32
    return %c0_i32, %c0_i32_0 : i32, i32
  }
  func.func @transform_22(%arg0: i32) -> (i32, i32) {
    %c0_i32 = arith.constant 0 : i32
    %c0_i32_0 = arith.constant 0 : i32
    %c0_i32_1 = arith.constant 0 : i32
    return %c0_i32, %c0_i32_0 : i32, i32
  }
  func.func @transform_23(%arg0: i32) -> (i32, i32) {
    %c0_i32 = arith.constant 0 : i32
    %c0_i32_0 = arith.constant 0 : i32
    %c0_i32_1 = arith.constant 0 : i32
    return %c0_i32, %c0_i32_0 : i32, i32
  }
  func.func @transform_24(%arg0: i32) -> (i32, i32) {
    %c0_i32 = arith.constant 0 : i32
    %c0_i32_0 = arith.constant 0 : i32
    %c0_i32_1 = arith.constant 0 : i32
    return %c0_i32, %c0_i32_0 : i32, i32
  }
  func.func @transform_25(%arg0: i32) -> (i32, i32, i32) {
    %c0_i32 = arith.constant 0 : i32
    %c0_i32_0 = arith.constant 0 : i32
    %c0_i32_1 = arith.constant 0 : i32
    %c0_i32_2 = arith.constant 0 : i32
    return %c0_i32, %c0_i32_0, %c0_i32_1 : i32, i32, i32
  }
  func.func @transform_26(%arg0: i32) -> (i32, i32) {
    %c0_i32 = arith.constant 0 : i32
    %c0_i32_0 = arith.constant 0 : i32
    %c0_i32_1 = arith.constant 0 : i32
    return %c0_i32, %c0_i32_0 : i32, i32
  }
  func.func @transform_27(%arg0: i32) -> (i32, i32) {
    %c0_i32 = arith.constant 0 : i32
    %c0_i32_0 = arith.constant 0 : i32
    %c0_i32_1 = arith.constant 0 : i32
    return %c0_i32, %c0_i32_0 : i32, i32
  }
  func.func @transform_28(%arg0: i32) -> (i32, i32, i32) {
    %c0_i32 = arith.constant 0 : i32
    %c0_i32_0 = arith.constant 0 : i32
    %c0_i32_1 = arith.constant 0 : i32
    %c0_i32_2 = arith.constant 0 : i32
    return %c0_i32, %c0_i32_0, %c0_i32_1 : i32, i32, i32
  }
  func.func @transform_29(%arg0: i32) -> (i32, i32) {
    %c0_i32 = arith.constant 0 : i32
    %c0_i32_0 = arith.constant 0 : i32
    %c0_i32_1 = arith.constant 0 : i32
    return %c0_i32, %c0_i32_0 : i32, i32
  }
  func.func @transform_30(%arg0: i32) -> (i32, i32) {
    %c0_i32 = arith.constant 0 : i32
    %c0_i32_0 = arith.constant 0 : i32
    %c0_i32_1 = arith.constant 0 : i32
    return %c0_i32, %c0_i32_0 : i32, i32
  }
  func.func @transform_31(%arg0: i32) -> (i32, i32) {
    %c0_i32 = arith.constant 0 : i32
    %c0_i32_0 = arith.constant 0 : i32
    %c0_i32_1 = arith.constant 0 : i32
    return %c0_i32, %c0_i32_0 : i32, i32
  }
  func.func @transform_32(%arg0: i32) -> (i32, i32) {
    %c0_i32 = arith.constant 0 : i32
    %c0_i32_0 = arith.constant 0 : i32
    %c0_i32_1 = arith.constant 0 : i32
    return %c0_i32, %c0_i32_0 : i32, i32
  }
  func.func @transform_33(%arg0: i32) -> (i32, i32) {
    %c0_i32 = arith.constant 0 : i32
    %c0_i32_0 = arith.constant 0 : i32
    %c0_i32_1 = arith.constant 0 : i32
    return %c0_i32, %c0_i32_0 : i32, i32
  }
  func.func @transform_34(%arg0: i32) -> (i32, i32) {
    %c0_i32 = arith.constant 0 : i32
    %c0_i32_0 = arith.constant 0 : i32
    %c0_i32_1 = arith.constant 0 : i32
    return %c0_i32, %c0_i32_0 : i32, i32
  }
  func.func @transform_35(%arg0: i32) -> (i32, i32, i32) {
    %c0_i32 = arith.constant 0 : i32
    %c0_i32_0 = arith.constant 0 : i32
    %c0_i32_1 = arith.constant 0 : i32
    return %arg0, %c0_i32, %c0_i32_0 : i32, i32, i32
  }
}

</mosaic_0001>

<llo_original>
// kernel: rcnn_head_forward.2
$region0: #{rcnn_head_forward.2}
  #allocation0 [shape = 'u32[]', space=smem, size = 0x4, offset = 0x4, fixed_abs, tag = 'smem constant byte address 0x4 - core index']
  #allocation1 [shape = 'u32[144,128]{1,0:T(1,128)}', space=vmem, size = 0x12000, scoped, tag = 'internal scratch']
  %s0 = inlined_call_operand.vmem [shape: f32[2,8,64], index: 0, kind: input, shape index: {}]
  %s1 = inlined_call_operand.vmem [shape: f32[64,64], index: 1, kind: input, shape index: {}]
  %s2 = inlined_call_operand.vmem [shape: f32[64,64], index: 2, kind: input, shape index: {}]
  %s3 = inlined_call_operand.vmem [shape: f32[64,64], index: 3, kind: input, shape index: {}]
  %s4 = inlined_call_operand.vmem [shape: f32[1,64], index: 4, kind: input, shape index: {}]
  %s5 = inlined_call_operand.vmem [shape: f32[1,64], index: 5, kind: input, shape index: {}]
  %s6 = inlined_call_operand.vmem [shape: f32[1,64], index: 6, kind: input, shape index: {}]
  %s7 = inlined_call_operand.vmem [shape: f32[64,64], index: 7, kind: input, shape index: {}]
  %s8 = inlined_call_operand.vmem [shape: f32[1,64], index: 8, kind: input, shape index: {}]
  %s9 = inlined_call_operand.vmem [shape: f32[1,64], index: 9, kind: input, shape index: {}]
  %s10 = inlined_call_operand.vmem [shape: f32[1,64], index: 10, kind: input, shape index: {}]
  %s11 = inlined_call_operand.hbm [shape: f32[64,2048], index: 11, kind: input, shape index: {}]
  %s12 = inlined_call_operand.vmem [shape: f32[1,2048], index: 12, kind: input, shape index: {}]
  %s13 = inlined_call_operand.vmem [shape: f32[2,8,64], index: 13, kind: output, shape index: {0}]
  %s14 = inlined_call_operand.vmem [shape: f32[2,8,2048], index: 14, kind: output, shape index: {1}]
  %15 = xla_tuple %s13, %s14
  %s16 = sld [smem:[#allocation0]]
  $region97: #{rcnn_head_forward.2} parent=0
    _
  %s18 = ssub.s32 1, %s16
  %s19 = scalar_select 0, %s18, %s16
  $region1: #{rcnn_head_forward.2} parent=0
    #allocation2 [shape = 'u8[524288]{0}', space=vmem, size = 0x80000, scoped, tag = 'input window, operand 11, single buffered']
    #allocation3 [shape = 's32[2]{0}', space=sflag, size = 0x8, scoped, tag = 'scoped memory for rcnn_head_forward.2']
    %20 = vsyncpa [#allocation3], 0
    loop: start=0, step=1, limit=4
    $region2: #{rcnn_head_forward.2} parent=1 // loop_pre_header
      _
    $region3: #{rcnn_head_forward.2} parent=1 // loop_header
      %s22 = sphi 0, %s26
      %p23 = scmp.ge.s32.totalorder %s22, 4
      %s32 = sphi 0, %s34
      %s35 = sphi 0, %s32
      %s36 = sphi 0, %s35
      %s52 = sphi 0, %s36
      %s56 = sphi 0, %s56
      %s58 = sphi 0, %s56
      %s59 = sphi 0, %s58
      %s73 = sphi 0, %s59
      %s77 = sphi 0, %s77
      %s79 = sphi 0, %s77
      %s80 = sphi 0, %s79
      %s94 = sphi 0, %s80
      %s98 = sphi 0, %s98
      %s100 = sphi 0, %s98
      %s101 = sphi 0, %s100
      %s115 = sphi 0, %s101
      %s119 = sphi 0, %s119
      %s121 = sphi 0, %s119
      %s122 = sphi 0, %s121
      %s136 = sphi 0, %s122
      %s140 = sphi 0, %s140
      %s142 = sphi 0, %s140
      %s143 = sphi 0, %s142
      %s157 = sphi 0, %s143
      %s161 = sphi 0, %s161
      %s163 = sphi 0, %s161
      %s164 = sphi 0, %s163
      %s178 = sphi 0, %s164
      %s182 = sphi 0, %s182
      %s184 = sphi 0, %s182
      %s185 = sphi 0, %s184
      %s199 = sphi 0, %s185
      %s203 = sphi 0, %s203
      %s205 = sphi 0, %s203
      %s206 = sphi 0, %s205
      %s220 = sphi 0, %s206
      %s224 = sphi 0, %s224
      %s226 = sphi 0, %s224
      %s227 = sphi 0, %s226
      %s241 = sphi 0, %s227
      %s245 = sphi 0, %s245
      %s247 = sphi 0, %s245
      %s248 = sphi 0, %s247
      %s262 = sphi 0, %s248
      %s266 = sphi 0, %s266
      %s268 = sphi 0, %s266
      %s269 = sphi 0, %s268
      %s283 = sphi 0, %s269
      %s287 = sphi 0, %s287
      %s289 = sphi 0, %s287
      %s290 = sphi 0, %s289
      %s304 = sphi 0, %s290
      %s310 = sphi 0, %s312
      %s313 = sphi 0, %s310
      %s314 = sphi 0, %s313
      %s330 = sphi 0, %s314
      %s336 = sphi 0, %s338
      %s339 = sphi 0, %s336
      %s340 = sphi 0, %s339
      %s356 = sphi 0, %s340
    $region4: #{rcnn_head_forward.2} parent=1 // loop_header_branch
      %25 = sbr.rel (%p23) target = $region8
    $region5: #{rcnn_head_forward.2} parent=1 // loop_body
      %s27 = ssub.s32 %s22, 1
      %s28 = ssub.s32 %s22, 2
      %s29 = sadd.s32 %s22, 1
      %s30 = ssub.s32 %s22, %s29
      %p31 = scmp.eq.s32.totalorder %s30, 0
      %s33 = sadd.s32 %s32, 1
      %s34 = scalar_select %p31, %s32, %s33
      %p37 = pneg %p31
      %p38 = scmp.eq.s32.totalorder %s22, 1
      %p39 = por %p37, %p38
      %p40 = scmp.ne.s32.totalorder %s32, %s35
      %p41 = scmp.eq.s32.totalorder %s22, 0
      %p42 = por %p40, %p41
      %p43 = scmp.ne.s32.totalorder %s32, %s35
      %p44 = scmp.eq.s32.totalorder %s27, 1
      %p45 = por %p43, %p44
      %p46 = scmp.ne.s32.totalorder %s35, %s36
      %p47 = scmp.eq.s32.totalorder %s27, 0
      %p48 = por %p46, %p47
      %p49 = scmp.ne.s32.totalorder %s35, %s36
      %p50 = scmp.eq.s32.totalorder %s28, 1
      %p51 = por %p49, %p50
      %p53 = scmp.ne.s32.totalorder %s36, %s52
      %p54 = scmp.eq.s32.totalorder %s28, 0
      %p55 = por %p53, %p54
      %s57 = sadd.s32 %s56, 1
      %p60 = scmp.eq.s32.totalorder %s22, 1
      %p61 = scmp.ne.s32.totalorder %s56, %s58
      %p62 = scmp.eq.s32.totalorder %s22, 0
      %p63 = por %p61, %p62
      %p64 = scmp.ne.s32.totalorder %s56, %s58
      %p65 = scmp.eq.s32.totalorder %s27, 1
      %p66 = por %p64, %p65
      %p67 = scmp.ne.s32.totalorder %s58, %s59
      %p68 = scmp.eq.s32.totalorder %s27, 0
      %p69 = por %p67, %p68
      %p70 = scmp.ne.s32.totalorder %s58, %s59
      %p71 = scmp.eq.s32.totalorder %s28, 1
      %p72 = por %p70, %p71
      %p74 = scmp.ne.s32.totalorder %s59, %s73
      %p75 = scmp.eq.s32.totalorder %s28, 0
      %p76 = por %p74, %p75
      %s78 = sadd.s32 %s77, 1
      %p81 = scmp.eq.s32.totalorder %s22, 1
      %p82 = scmp.ne.s32.totalorder %s77, %s79
      %p83 = scmp.eq.s32.totalorder %s22, 0
      %p84 = por %p82, %p83
      %p85 = scmp.ne.s32.totalorder %s77, %s79
      %p86 = scmp.eq.s32.totalorder %s27, 1
      %p87 = por %p85, %p86
      %p88 = scmp.ne.s32.totalorder %s79, %s80
      %p89 = scmp.eq.s32.totalorder %s27, 0
      %p90 = por %p88, %p89
      %p91 = scmp.ne.s32.totalorder %s79, %s80
      %p92 = scmp.eq.s32.totalorder %s28, 1
      %p93 = por %p91, %p92
      %p95 = scmp.ne.s32.totalorder %s80, %s94
      %p96 = scmp.eq.s32.totalorder %s28, 0
      %p97 = por %p95, %p96
      %s99 = sadd.s32 %s98, 1
      %p102 = scmp.eq.s32.totalorder %s22, 1
      %p103 = scmp.ne.s32.totalorder %s98, %s100
      %p104 = scmp.eq.s32.totalorder %s22, 0
      %p105 = por %p103, %p104
      %p106 = scmp.ne.s32.totalorder %s98, %s100
      %p107 = scmp.eq.s32.totalorder %s27, 1
      %p108 = por %p106, %p107
      %p109 = scmp.ne.s32.totalorder %s100, %s101
      %p110 = scmp.eq.s32.totalorder %s27, 0
      %p111 = por %p109, %p110
      %p112 = scmp.ne.s32.totalorder %s100, %s101
      %p113 = scmp.eq.s32.totalorder %s28, 1
      %p114 = por %p112, %p113
      %p116 = scmp.ne.s32.totalorder %s101, %s115
      %p117 = scmp.eq.s32.totalorder %s28, 0
      %p118 = por %p116, %p117
      %s120 = sadd.s32 %s119, 1
      %p123 = scmp.eq.s32.totalorder %s22, 1
      %p124 = scmp.ne.s32.totalorder %s119, %s121
      %p125 = scmp.eq.s32.totalorder %s22, 0
      %p126 = por %p124, %p125
      %p127 = scmp.ne.s32.totalorder %s119, %s121
      %p128 = scmp.eq.s32.totalorder %s27, 1
      %p129 = por %p127, %p128
      %p130 = scmp.ne.s32.totalorder %s121, %s122
      %p131 = scmp.eq.s32.totalorder %s27, 0
      %p132 = por %p130, %p131
      %p133 = scmp.ne.s32.totalorder %s121, %s122
      %p134 = scmp.eq.s32.totalorder %s28, 1
      %p135 = por %p133, %p134
      %p137 = scmp.ne.s32.totalorder %s122, %s136
      %p138 = scmp.eq.s32.totalorder %s28, 0
      %p139 = por %p137, %p138
      %s141 = sadd.s32 %s140, 1
      %p144 = scmp.eq.s32.totalorder %s22, 1
      %p145 = scmp.ne.s32.totalorder %s140, %s142
      %p146 = scmp.eq.s32.totalorder %s22, 0
      %p147 = por %p145, %p146
      %p148 = scmp.ne.s32.totalorder %s140, %s142
      %p149 = scmp.eq.s32.totalorder %s27, 1
      %p150 = por %p148, %p149
      %p151 = scmp.ne.s32.totalorder %s142, %s143
      %p152 = scmp.eq.s32.totalorder %s27, 0
      %p153 = por %p151, %p152
      %p154 = scmp.ne.s32.totalorder %s142, %s143
      %p155 = scmp.eq.s32.totalorder %s28, 1
      %p156 = por %p154, %p155
      %p158 = scmp.ne.s32.totalorder %s143, %s157
      %p159 = scmp.eq.s32.totalorder %s28, 0
      %p160 = por %p158, %p159
      %s162 = sadd.s32 %s161, 1
      %p165 = scmp.eq.s32.totalorder %s22, 1
      %p166 = scmp.ne.s32.totalorder %s161, %s163
      %p167 = scmp.eq.s32.totalorder %s22, 0
      %p168 = por %p166, %p167
      %p169 = scmp.ne.s32.totalorder %s161, %s163
      %p170 = scmp.eq.s32.totalorder %s27, 1
      %p171 = por %p169, %p170
      %p172 = scmp.ne.s32.totalorder %s163, %s164
      %p173 = scmp.eq.s32.totalorder %s27, 0
      %p174 = por %p172, %p173
      %p175 = scmp.ne.s32.totalorder %s163, %s164
      %p176 = scmp.eq.s32.totalorder %s28, 1
      %p177 = por %p175, %p176
      %p179 = scmp.ne.s32.totalorder %s164, %s178
      %p180 = scmp.eq.s32.totalorder %s28, 0
      %p181 = por %p179, %p180
      %s183 = sadd.s32 %s182, 1
      %p186 = scmp.eq.s32.totalorder %s22, 1
      %p187 = scmp.ne.s32.totalorder %s182, %s184
      %p188 = scmp.eq.s32.totalorder %s22, 0
      %p189 = por %p187, %p188
      %p190 = scmp.ne.s32.totalorder %s182, %s184
      %p191 = scmp.eq.s32.totalorder %s27, 1
      %p192 = por %p190, %p191
      %p193 = scmp.ne.s32.totalorder %s184, %s185
      %p194 = scmp.eq.s32.totalorder %s27, 0
      %p195 = por %p193, %p194
      %p196 = scmp.ne.s32.totalorder %s184, %s185
      %p197 = scmp.eq.s32.totalorder %s28, 1
      %p198 = por %p196, %p197
      %p200 = scmp.ne.s32.totalorder %s185, %s199
      %p201 = scmp.eq.s32.totalorder %s28, 0
      %p202 = por %p200, %p201
      %s204 = sadd.s32 %s203, 1
      %p207 = scmp.eq.s32.totalorder %s22, 1
      %p208 = scmp.ne.s32.totalorder %s203, %s205
      %p209 = scmp.eq.s32.totalorder %s22, 0
      %p210 = por %p208, %p209
      %p211 = scmp.ne.s32.totalorder %s203, %s205
      %p212 = scmp.eq.s32.totalorder %s27, 1
      %p213 = por %p211, %p212
      %p214 = scmp.ne.s32.totalorder %s205, %s206
      %p215 = scmp.eq.s32.totalorder %s27, 0
      %p216 = por %p214, %p215
      %p217 = scmp.ne.s32.totalorder %s205, %s206
      %p218 = scmp.eq.s32.totalorder %s28, 1
      %p219 = por %p217, %p218
      %p221 = scmp.ne.s32.totalorder %s206, %s220
      %p222 = scmp.eq.s32.totalorder %s28, 0
      %p223 = por %p221, %p222
      %s225 = sadd.s32 %s224, 1
      %p228 = scmp.eq.s32.totalorder %s22, 1
      %p229 = scmp.ne.s32.totalorder %s224, %s226
      %p230 = scmp.eq.s32.totalorder %s22, 0
      %p231 = por %p229, %p230
      %p232 = scmp.ne.s32.totalorder %s224, %s226
      %p233 = scmp.eq.s32.totalorder %s27, 1
      %p234 = por %p232, %p233
      %p235 = scmp.ne.s32.totalorder %s226, %s227
      %p236 = scmp.eq.s32.totalorder %s27, 0
      %p237 = por %p235, %p236
      %p238 = scmp.ne.s32.totalorder %s226, %s227
      %p239 = scmp.eq.s32.totalorder %s28, 1
      %p240 = por %p238, %p239
      %p242 = scmp.ne.s32.totalorder %s227, %s241
      %p243 = scmp.eq.s32.totalorder %s28, 0
      %p244 = por %p242, %p243
      %s246 = sadd.s32 %s245, 1
      %p249 = scmp.eq.s32.totalorder %s22, 1
      %p250 = scmp.ne.s32.totalorder %s245, %s247
      %p251 = scmp.eq.s32.totalorder %s22, 0
      %p252 = por %p250, %p251
      %p253 = scmp.ne.s32.totalorder %s245, %s247
      %p254 = scmp.eq.s32.totalorder %s27, 1
      %p255 = por %p253, %p254
      %p256 = scmp.ne.s32.totalorder %s247, %s248
      %p257 = scmp.eq.s32.totalorder %s27, 0
      %p258 = por %p256, %p257
      %p259 = scmp.ne.s32.totalorder %s247, %s248
      %p260 = scmp.eq.s32.totalorder %s28, 1
      %p261 = por %p259, %p260
      %p263 = scmp.ne.s32.totalorder %s248, %s262
      %p264 = scmp.eq.s32.totalorder %s28, 0
      %p265 = por %p263, %p264
      %s267 = sadd.s32 %s266, 1
      %p270 = scmp.eq.s32.totalorder %s22, 1
      %p271 = scmp.ne.s32.totalorder %s266, %s268
      %p272 = scmp.eq.s32.totalorder %s22, 0
      %p273 = por %p271, %p272
      %p274 = scmp.ne.s32.totalorder %s266, %s268
      %p275 = scmp.eq.s32.totalorder %s27, 1
      %p276 = por %p274, %p275
      %p277 = scmp.ne.s32.totalorder %s268, %s269
      %p278 = scmp.eq.s32.totalorder %s27, 0
      %p279 = por %p277, %p278
      %p280 = scmp.ne.s32.totalorder %s268, %s269
      %p281 = scmp.eq.s32.totalorder %s28, 1
      %p282 = por %p280, %p281
      %p284 = scmp.ne.s32.totalorder %s269, %s283
      %p285 = scmp.eq.s32.totalorder %s28, 0
      %p286 = por %p284, %p285
      %s288 = sadd.s32 %s287, 1
      %p291 = scmp.eq.s32.totalorder %s22, 1
      %p292 = scmp.ne.s32.totalorder %s287, %s289
      %p293 = scmp.eq.s32.totalorder %s22, 0
      %p294 = por %p292, %p293
      %p295 = scmp.ne.s32.totalorder %s287, %s289
      %p296 = scmp.eq.s32.totalorder %s27, 1
      %p297 = por %p295, %p296
      %p298 = scmp.ne.s32.totalorder %s289, %s290
      %p299 = scmp.eq.s32.totalorder %s27, 0
      %p300 = por %p298, %p299
      %p301 = scmp.ne.s32.totalorder %s289, %s290
      %p302 = scmp.eq.s32.totalorder %s28, 1
      %p303 = por %p301, %p302
      %p305 = scmp.ne.s32.totalorder %s290, %s304
      %p306 = scmp.eq.s32.totalorder %s28, 0
      %p307 = por %p305, %p306
      %s308 = ssub.s32 %s22, %s29
      %p309 = scmp.eq.s32.totalorder %s308, 0
      %s311 = sadd.s32 %s310, 1
      %s312 = scalar_select %p309, %s310, %s311
      %p315 = pneg %p309
      %p316 = scmp.eq.s32.totalorder %s22, 1
      %p317 = por %p315, %p316
      %p318 = scmp.ne.s32.totalorder %s310, %s313
      %p319 = scmp.eq.s32.totalorder %s22, 0
      %p320 = por %p318, %p319
      %p321 = scmp.ne.s32.totalorder %s310, %s313
      %p322 = scmp.eq.s32.totalorder %s27, 1
      %p323 = por %p321, %p322
      %p324 = scmp.ne.s32.totalorder %s313, %s314
      %p325 = scmp.eq.s32.totalorder %s27, 0
      %p326 = por %p324, %p325
      %p327 = scmp.ne.s32.totalorder %s313, %s314
      %p328 = scmp.eq.s32.totalorder %s28, 1
      %p329 = por %p327, %p328
      %p331 = scmp.ne.s32.totalorder %s314, %s330
      %p332 = scmp.eq.s32.totalorder %s28, 0
      %p333 = por %p331, %p332
      %s334 = ssub.s32 %s22, %s29
      %p335 = scmp.eq.s32.totalorder %s334, 0
      %s337 = sadd.s32 %s336, 1
      %s338 = scalar_select %p335, %s336, %s337
      %p341 = pneg %p335
      %p342 = scmp.eq.s32.totalorder %s22, 1
      %p343 = por %p341, %p342
      %p344 = scmp.ne.s32.totalorder %s336, %s339
      %p345 = scmp.eq.s32.totalorder %s22, 0
      %p346 = por %p344, %p345
      %p347 = scmp.ne.s32.totalorder %s336, %s339
      %p348 = scmp.eq.s32.totalorder %s27, 1
      %p349 = por %p347, %p348
      %p350 = scmp.ne.s32.totalorder %s339, %s340
      %p351 = scmp.eq.s32.totalorder %s27, 0
      %p352 = por %p350, %p351
      %p353 = scmp.ne.s32.totalorder %s339, %s340
      %p354 = scmp.eq.s32.totalorder %s28, 1
      %p355 = por %p353, %p354
      %p357 = scmp.ne.s32.totalorder %s340, %s356
      %p358 = scmp.eq.s32.totalorder %s28, 0
      %p359 = por %p357, %p358
      %p360 = scmp.le.s32.totalorder 1, %s22
      %p361 = scmp.lt.s32.totalorder %s22, 3
      %p362 = pnand %p360, %p361
      %p363 = pneg %p362
      // Predicated region
      $region9: #{rcnn_head_forward.2} parent=5 // pred_check
        _
      $region10: #{rcnn_head_forward.2} parent=5 // pred_check_branch
        %365 = sbr.rel (%p362) target = $region12
      $region11: #{rcnn_head_forward.2} parent=5 // pred_region
        %s366 = ssub.s32 %s22, 1
        // Predicated region
        $region13: #{rcnn_head_forward.2} parent=11 // pred_check
          %p367 = pneg %p69
        $region14: #{rcnn_head_forward.2} parent=11 // pred_check_branch
          %369 = sbr.rel (%p367) target = $region16
        $region15: #{rcnn_head_forward.2} parent=11 // pred_region
          _
        $region16: #{rcnn_head_forward.2} parent=11 // pred_fallthru
          _
        // Predicated region
        $region17: #{rcnn_head_forward.2} parent=11 // pred_check
          %p370 = pneg %p90
        $region18: #{rcnn_head_forward.2} parent=11 // pred_check_branch
          %372 = sbr.rel (%p370) target = $region20
        $region19: #{rcnn_head_forward.2} parent=11 // pred_region
          _
        $region20: #{rcnn_head_forward.2} parent=11 // pred_fallthru
          _
        // Predicated region
        $region21: #{rcnn_head_forward.2} parent=11 // pred_check
          %p373 = pneg %p111
        $region22: #{rcnn_head_forward.2} parent=11 // pred_check_branch
          %375 = sbr.rel (%p373) target = $region24
        $region23: #{rcnn_head_forward.2} parent=11 // pred_region
          _
        $region24: #{rcnn_head_forward.2} parent=11 // pred_fallthru
          _
        // Predicated region
        $region25: #{rcnn_head_forward.2} parent=11 // pred_check
          %p376 = pneg %p132
        $region26: #{rcnn_head_forward.2} parent=11 // pred_check_branch
          %378 = sbr.rel (%p376) target = $region28
        $region27: #{rcnn_head_forward.2} parent=11 // pred_region
          _
        $region28: #{rcnn_head_forward.2} parent=11 // pred_fallthru
          _
        // Predicated region
        $region29: #{rcnn_head_forward.2} parent=11 // pred_check
          %p379 = pneg %p153
        $region30: #{rcnn_head_forward.2} parent=11 // pred_check_branch
          %381 = sbr.rel (%p379) target = $region32
        $region31: #{rcnn_head_forward.2} parent=11 // pred_region
          _
        $region32: #{rcnn_head_forward.2} parent=11 // pred_fallthru
          _
        // Predicated region
        $region33: #{rcnn_head_forward.2} parent=11 // pred_check
          %p382 = pneg %p174
        $region34: #{rcnn_head_forward.2} parent=11 // pred_check_branch
          %384 = sbr.rel (%p382) target = $region36
        $region35: #{rcnn_head_forward.2} parent=11 // pred_region
          _
        $region36: #{rcnn_head_forward.2} parent=11 // pred_fallthru
          _
        // Predicated region
        $region37: #{rcnn_head_forward.2} parent=11 // pred_check
          %p385 = pneg %p195
        $region38: #{rcnn_head_forward.2} parent=11 // pred_check_branch
          %387 = sbr.rel (%p385) target = $region40
        $region39: #{rcnn_head_forward.2} parent=11 // pred_region
          _
        $region40: #{rcnn_head_forward.2} parent=11 // pred_fallthru
          _
        // Predicated region
        $region41: #{rcnn_head_forward.2} parent=11 // pred_check
          %p388 = pneg %p216
        $region42: #{rcnn_head_forward.2} parent=11 // pred_check_branch
          %390 = sbr.rel (%p388) target = $region44
        $region43: #{rcnn_head_forward.2} parent=11 // pred_region
          _
        $region44: #{rcnn_head_forward.2} parent=11 // pred_fallthru
          _
        // Predicated region
        $region45: #{rcnn_head_forward.2} parent=11 // pred_check
          %p391 = pneg %p237
        $region46: #{rcnn_head_forward.2} parent=11 // pred_check_branch
          %393 = sbr.rel (%p391) target = $region48
        $region47: #{rcnn_head_forward.2} parent=11 // pred_region
          _
        $region48: #{rcnn_head_forward.2} parent=11 // pred_fallthru
          _
        // Predicated region
        $region49: #{rcnn_head_forward.2} parent=11 // pred_check
          %p394 = pneg %p258
        $region50: #{rcnn_head_forward.2} parent=11 // pred_check_branch
          %396 = sbr.rel (%p394) target = $region52
        $region51: #{rcnn_head_forward.2} parent=11 // pred_region
          _
        $region52: #{rcnn_head_forward.2} parent=11 // pred_fallthru
          _
        // Predicated region
        $region53: #{rcnn_head_forward.2} parent=11 // pred_check
          %p397 = pneg %p279
        $region54: #{rcnn_head_forward.2} parent=11 // pred_check_branch
          %399 = sbr.rel (%p397) target = $region56
        $region55: #{rcnn_head_forward.2} parent=11 // pred_region
          %s401 = ssub.s32 16384, 16384
          %402 = vsyncadd [#allocation3], %s401
          %s403 = sshll.u32 [#allocation2], 4
          %s404 = int_to_ptr.vmem [resolvable:$true] %s403
          %409 = dma.hbm_to_vmem [thread:$0]  %s11, 16384, %s404, [#allocation3], 2048, 2048, 128
        $region56: #{rcnn_head_forward.2} parent=11 // pred_fallthru
          _
        // Predicated region
        $region57: #{rcnn_head_forward.2} parent=11 // pred_check
          %p410 = pneg %p300
        $region58: #{rcnn_head_forward.2} parent=11 // pred_check_branch
          %412 = sbr.rel (%p410) target = $region60
        $region59: #{rcnn_head_forward.2} parent=11 // pred_region
          _
        $region60: #{rcnn_head_forward.2} parent=11 // pred_fallthru
          _
      $region12: #{rcnn_head_forward.2} parent=5 // pred_fallthru
        _
      %p413 = scmp.lt.s32.totalorder %s22, 2
      // Predicated region
      $region61: #{rcnn_head_forward.2} parent=5 // pred_check
        %p414 = pneg %p413
      $region62: #{rcnn_head_forward.2} parent=5 // pred_check_branch
        %416 = sbr.rel (%p414) target = $region64
      $region63: #{rcnn_head_forward.2} parent=5 // pred_region
        // Predicated region
        $region65: #{rcnn_head_forward.2} parent=63 // pred_check
          %p417 = pneg %p42
        $region66: #{rcnn_head_forward.2} parent=63 // pred_check_branch
          %419 = sbr.rel (%p417) target = $region68
        $region67: #{rcnn_head_forward.2} parent=63 // pred_region
          %p420 = scmp.lt.s32.totalorder %s22, 1
          %s421 = scalar_select %p420, %s22, 1
          %s422 = smul.addr %s421, 8
          %s423 = scalar_lea.vmem %s0, %s422
        $region68: #{rcnn_head_forward.2} parent=63 // pred_fallthru
          _
      $region64: #{rcnn_head_forward.2} parent=5 // pred_fallthru
        _
      %p424 = scmp.le.s32.totalorder 1, %s22
      %p425 = scmp.lt.s32.totalorder %s22, 3
      %p426 = pnand %p424, %p425
      %p427 = pneg %p426
      // Predicated region
      $region69: #{rcnn_head_forward.2} parent=5 // pred_check
        _
      $region70: #{rcnn_head_forward.2} parent=5 // pred_check_branch
        %429 = sbr.rel (%p426) target = $region72
      $region71: #{rcnn_head_forward.2} parent=5 // pred_region
        %s430 = ssub.s32 %s22, 1
        // Predicated region
        $region73: #{rcnn_head_forward.2} parent=71 // pred_check
          %p431 = pneg %p279
        $region74: #{rcnn_head_forward.2} parent=71 // pred_check_branch
          %433 = sbr.rel (%p431) target = $region76
        $region75: #{rcnn_head_forward.2} parent=71 // pred_region
          %434 = dma.done [#allocation3], 16384
        $region76: #{rcnn_head_forward.2} parent=71 // pred_fallthru
          _
        %p435 = scmp.lt.s32.totalorder %s27, 1
        %s436 = scalar_select %p435, %s27, 1
        %s437 = smul.addr %s436, 8
        %s438 = scalar_lea.vmem %s0, %s437
        %p439 = pneg %p48
        %p440 = pneg %p45
        %p441 = pneg %p69
        %p442 = pneg %p66
        %p443 = pneg %p90
        %p444 = pneg %p87
        %p445 = pneg %p111
        %p446 = pneg %p108
        %p447 = pneg %p132
        %p448 = pneg %p129
        %p449 = pneg %p153
        %p450 = pneg %p150
        %p451 = pneg %p174
        %p452 = pneg %p171
        %p453 = pneg %p195
        %p454 = pneg %p192
        %p455 = pneg %p216
        %p456 = pneg %p213
        %p457 = pneg %p237
        %p458 = pneg %p234
        %p459 = pneg %p258
        %p460 = pneg %p255
        %p461 = pneg %p279
        %p462 = pneg %p276
        %p463 = pneg %p300
        %p464 = pneg %p297
        %p465 = pneg %p326
        %p466 = pneg %p323
        %p467 = scmp.lt.s32.totalorder %s27, 1
        %s468 = scalar_select %p467, %s27, 1
        %s469 = smul.addr %s468, 8
        %s470 = scalar_lea.vmem %s13, %s469
        %p471 = pneg %p352
        %p472 = pneg %p349
        %p473 = scmp.lt.s32.totalorder %s27, 1
        %s474 = scalar_select %p473, %s27, 1
        %s475 = smul.addr %s474, 16
        %s476 = smul.addr %s475, 8
        %s477 = scalar_lea.vmem %s14, %s476
        %p478 = scmp.lt.s32.totalorder %s27, 1
        %s479 = scalar_select %p478, %s27, 1
        %s480 = smul.addr %s479, 8
        %s481 = scalar_lea.vmem %s0, %s480
        %p482 = scmp.lt.s32.totalorder %s27, 1
        %s483 = scalar_select %p482, %s27, 1
        %s484 = smul.addr %s483, 8
        %s485 = scalar_lea.vmem %s13, %s484
        %p486 = scmp.lt.s32.totalorder %s27, 1
        %s487 = scalar_select %p486, %s27, 1
        %s488 = smul.addr %s487, 16
        %s489 = smul.addr %s488, 8
        %s490 = scalar_lea.vmem %s14, %s489
        %v491 = vld [vmem:[%s481] sm:$0xff]
        %v492 = vld [vmem:[%s1] sm:$0xff]
        %v493 = vld [vmem:[%s1 + $0x8] sm:$0xff]
        %v494 = vld [vmem:[%s1 + $0x10] sm:$0xff]
        %v495 = vld [vmem:[%s1 + $0x18] sm:$0xff]
        %v496 = vld [vmem:[%s1 + $0x20] sm:$0xff]
        %v497 = vld [vmem:[%s1 + $0x28] sm:$0xff]
        %v498 = vld [vmem:[%s1 + $0x30] sm:$0xff]
        %v499 = vld [vmem:[%s1 + $0x38] sm:$0xff]
        %v500 = vld [vmem:[%s4] sm:$0x1]
        %v502 = vlaneseq
        %v503 = vshrl.u32 %v502, 7
        %v504 = vsub.s32 0, %v503
        %v505 = vrot.slane %v500, %v504
        %vm507 = vcmask 523264
        %v509 = vsel %vm507, %v491, 0
        %511 = vmatprep.subr.mxu0 0.0
        %512 = vmatpush1.msra.mxu0 %v492
        %513 = vmatprep.subr.mxu0 0.0
        %514 = vmatpush1.msra.mxu0 %v493
        %515 = vmatprep.subr.mxu0 0.0
        %516 = vmatpush1.msra.mxu0 %v494
        %517 = vmatprep.subr.mxu0 0.0
        %518 = vmatpush1.msra.mxu0 %v495
        %519 = vmatprep.subr.mxu0 0.0
        %520 = vmatpush1.msra.mxu0 %v496
        %521 = vmatprep.subr.mxu0 0.0
        %522 = vmatpush1.msra.mxu0 %v497
        %523 = vmatprep.subr.mxu0 0.0
        %524 = vmatpush1.msra.mxu0 %v498
        %525 = vmatprep.subr.mxu0 0.0
        %526 = vmatpush1.msra.mxu0 %v499
        %527 = vmatprep.subr.mxu0 0.0
        %528 = vmatpush1.msra.mxu0 0.0
        %529 = vmatprep.subr.mxu0 0.0
        %530 = vmatpush1.msra.mxu0 0.0
        %531 = vmatprep.subr.mxu0 0.0
        %532 = vmatpush1.msra.mxu0 0.0
        %533 = vmatprep.subr.mxu0 0.0
        %534 = vmatpush1.msra.mxu0 0.0
        %535 = vmatprep.subr.mxu0 0.0
        %536 = vmatpush1.msra.mxu0 0.0
        %537 = vmatprep.subr.mxu0 0.0
        %538 = vmatpush1.msra.mxu0 0.0
        %539 = vmatprep.subr.mxu0 0.0
        %540 = vmatpush1.msra.mxu0 0.0
        %541 = vmatprep.subr.mxu0 0.0
        %542 = vmatpush1.msra.mxu0 0.0
        %543 = vmatprep.subr.mxu0 0.0
        %544 = vmatpush1.msra.mxu0 0.0
        %545 = vmatprep.subr.mxu0 0.0
        %546 = vmatpush1.msra.mxu0 0.0
        %547 = vmatprep.subr.mxu0 0.0
        %548 = vmatpush1.msra.mxu0 0.0
        %549 = vmatprep.subr.mxu0 0.0
        %550 = vmatpush1.msra.mxu0 0.0
        %551 = vmatprep.subr.mxu0 0.0
        %552 = vmatpush1.msra.mxu0 0.0
        %553 = vmatprep.subr.mxu0 0.0
        %554 = vmatpush1.msra.mxu0 0.0
        %555 = vmatprep.subr.mxu0 0.0
        %556 = vmatpush1.msra.mxu0 0.0
        %557 = vmatprep.subr.mxu0 0.0
        %558 = vmatpush1.msra.mxu0 0.0
        %559 = vmatprep.subr.mxu0 0.0
        %560 = vmatpush1.msra.mxu0 0.0
        %561 = vmatprep.subr.mxu0 0.0
        %562 = vmatpush1.msra.mxu0 0.0
        %563 = vmatprep.subr.mxu0 0.0
        %564 = vmatpush1.msra.mxu0 0.0
        %565 = vmatprep.subr.mxu0 0.0
        %566 = vmatpush1.msra.mxu0 0.0
        %567 = vmatprep.subr.mxu0 0.0
        %568 = vmatpush1.msra.mxu0 0.0
        %569 = vmatprep.subr.mxu0 0.0
        %570 = vmatpush1.msra.mxu0 0.0
        %571 = vmatprep.subr.mxu0 0.0
        %572 = vmatpush1.msra.mxu0 0.0
        %573 = vmatprep.subr.mxu0 0.0
        %574 = vmatpush1.msra.mxu0 0.0
        %575 = vmatprep.mubr.f32.mxu0 0.0
        %576 = vmatmul.mubr.f32.gmra.mrb[0].mxu0 %v509
        %v577 = vpop.f32.mrb[0].mxu0
        %v578 = vadd.f32 %v505, %v577
        %v579 = vpop.f32.mrb[0].mxu0
        %580 = vdwg.mxu0
        %v581 = vld [vmem:[%s2] sm:$0xff]
        %v582 = vld [vmem:[%s2 + $0x8] sm:$0xff]
        %v583 = vld [vmem:[%s2 + $0x10] sm:$0xff]
        %v584 = vld [vmem:[%s2 + $0x18] sm:$0xff]
        %v585 = vld [vmem:[%s2 + $0x20] sm:$0xff]
        %v586 = vld [vmem:[%s2 + $0x28] sm:$0xff]
        %v587 = vld [vmem:[%s2 + $0x30] sm:$0xff]
        %v588 = vld [vmem:[%s2 + $0x38] sm:$0xff]
        %v589 = vld [vmem:[%s5] sm:$0x1]
        %v591 = vlaneseq
        %v592 = vshrl.u32 %v591, 7
        %v593 = vsub.s32 0, %v592
        %v594 = vrot.slane %v589, %v593
        %596 = vmatprep.subr.mxu0 0.0
        %597 = vmatpush1.msra.mxu0 %v581
        %598 = vmatprep.subr.mxu0 0.0
        %599 = vmatpush1.msra.mxu0 %v582
        %600 = vmatprep.subr.mxu0 0.0
        %601 = vmatpush1.msra.mxu0 %v583
        %602 = vmatprep.subr.mxu0 0.0
        %603 = vmatpush1.msra.mxu0 %v584
        %604 = vmatprep.subr.mxu0 0.0
        %605 = vmatpush1.msra.mxu0 %v585
        %606 = vmatprep.subr.mxu0 0.0
        %607 = vmatpush1.msra.mxu0 %v586
        %608 = vmatprep.subr.mxu0 0.0
        %609 = vmatpush1.msra.mxu0 %v587
        %610 = vmatprep.subr.mxu0 0.0
        %611 = vmatpush1.msra.mxu0 %v588
        %612 = vmatprep.subr.mxu0 0.0
        %613 = vmatpush1.msra.mxu0 0.0
        %614 = vmatprep.subr.mxu0 0.0
        %615 = vmatpush1.msra.mxu0 0.0
        %616 = vmatprep.subr.mxu0 0.0
        %617 = vmatpush1.msra.mxu0 0.0
        %618 = vmatprep.subr.mxu0 0.0
        %619 = vmatpush1.msra.mxu0 0.0
        %620 = vmatprep.subr.mxu0 0.0
        %621 = vmatpush1.msra.mxu0 0.0
        %622 = vmatprep.subr.mxu0 0.0
        %623 = vmatpush1.msra.mxu0 0.0
        %624 = vmatprep.subr.mxu0 0.0
        %625 = vmatpush1.msra.mxu0 0.0
        %626 = vmatprep.subr.mxu0 0.0
        %627 = vmatpush1.msra.mxu0 0.0
        %628 = vmatprep.subr.mxu0 0.0
        %629 = vmatpush1.msra.mxu0 0.0
        %630 = vmatprep.subr.mxu0 0.0
        %631 = vmatpush1.msra.mxu0 0.0
        %632 = vmatprep.subr.mxu0 0.0
        %633 = vmatpush1.msra.mxu0 0.0
        %634 = vmatprep.subr.mxu0 0.0
        %635 = vmatpush1.msra.mxu0 0.0
        %636 = vmatprep.subr.mxu0 0.0
        %637 = vmatpush1.msra.mxu0 0.0
        %638 = vmatprep.subr.mxu0 0.0
        %639 = vmatpush1.msra.mxu0 0.0
        %640 = vmatprep.subr.mxu0 0.0
        %641 = vmatpush1.msra.mxu0 0.0
        %642 = vmatprep.subr.mxu0 0.0
        %643 = vmatpush1.msra.mxu0 0.0
        %644 = vmatprep.subr.mxu0 0.0
        %645 = vmatpush1.msra.mxu0 0.0
        %646 = vmatprep.subr.mxu0 0.0
        %647 = vmatpush1.msra.mxu0 0.0
        %648 = vmatprep.subr.mxu0 0.0
        %649 = vmatpush1.msra.mxu0 0.0
        %650 = vmatprep.subr.mxu0 0.0
        %651 = vmatpush1.msra.mxu0 0.0
        %652 = vmatprep.subr.mxu0 0.0
        %653 = vmatpush1.msra.mxu0 0.0
        %654 = vmatprep.subr.mxu0 0.0
        %655 = vmatpush1.msra.mxu0 0.0
        %656 = vmatprep.subr.mxu0 0.0
        %657 = vmatpush1.msra.mxu0 0.0
        %658 = vmatprep.subr.mxu0 0.0
        %659 = vmatpush1.msra.mxu0 0.0
        %660 = vmatprep.mubr.f32.mxu0 0.0
        %661 = vmatmul.mubr.f32.gmra.mrb[0].mxu0 %v509
        %v662 = vpop.f32.mrb[0].mxu0
        %v663 = vadd.f32 %v594, %v662
        %v664 = vpop.f32.mrb[0].mxu0
        %665 = vdwg.mxu0
        %v666 = vld [vmem:[%s3] sm:$0xff]
        %v667 = vld [vmem:[%s3 + $0x8] sm:$0xff]
        %v668 = vld [vmem:[%s3 + $0x10] sm:$0xff]
        %v669 = vld [vmem:[%s3 + $0x18] sm:$0xff]
        %v670 = vld [vmem:[%s3 + $0x20] sm:$0xff]
        %v671 = vld [vmem:[%s3 + $0x28] sm:$0xff]
        %v672 = vld [vmem:[%s3 + $0x30] sm:$0xff]
        %v673 = vld [vmem:[%s3 + $0x38] sm:$0xff]
        %v674 = vld [vmem:[%s6] sm:$0x1]
        %v676 = vlaneseq
        %v677 = vshrl.u32 %v676, 7
        %v678 = vsub.s32 0, %v677
        %v679 = vrot.slane %v674, %v678
        %681 = vmatprep.subr.mxu0 0.0
        %682 = vmatpush1.msra.mxu0 %v666
        %683 = vmatprep.subr.mxu0 0.0
        %684 = vmatpush1.msra.mxu0 %v667
        %685 = vmatprep.subr.mxu0 0.0
        %686 = vmatpush1.msra.mxu0 %v668
        %687 = vmatprep.subr.mxu0 0.0
        %688 = vmatpush1.msra.mxu0 %v669
        %689 = vmatprep.subr.mxu0 0.0
        %690 = vmatpush1.msra.mxu0 %v670
        %691 = vmatprep.subr.mxu0 0.0
        %692 = vmatpush1.msra.mxu0 %v671
        %693 = vmatprep.subr.mxu0 0.0
        %694 = vmatpush1.msra.mxu0 %v672
        %695 = vmatprep.subr.mxu0 0.0
        %696 = vmatpush1.msra.mxu0 %v673
        %697 = vmatprep.subr.mxu0 0.0
        %698 = vmatpush1.msra.mxu0 0.0
        %699 = vmatprep.subr.mxu0 0.0
        %700 = vmatpush1.msra.mxu0 0.0
        %701 = vmatprep.subr.mxu0 0.0
        %702 = vmatpush1.msra.mxu0 0.0
        %703 = vmatprep.subr.mxu0 0.0
        %704 = vmatpush1.msra.mxu0 0.0
        %705 = vmatprep.subr.mxu0 0.0
        %706 = vmatpush1.msra.mxu0 0.0
        %707 = vmatprep.subr.mxu0 0.0
        %708 = vmatpush1.msra.mxu0 0.0
        %709 = vmatprep.subr.mxu0 0.0
        %710 = vmatpush1.msra.mxu0 0.0
        %711 = vmatprep.subr.mxu0 0.0
        %712 = vmatpush1.msra.mxu0 0.0
        %713 = vmatprep.subr.mxu0 0.0
        %714 = vmatpush1.msra.mxu0 0.0
        %715 = vmatprep.subr.mxu0 0.0
        %716 = vmatpush1.msra.mxu0 0.0
        %717 = vmatprep.subr.mxu0 0.0
        %718 = vmatpush1.msra.mxu0 0.0
        %719 = vmatprep.subr.mxu0 0.0
        %720 = vmatpush1.msra.mxu0 0.0
        %721 = vmatprep.subr.mxu0 0.0
        %722 = vmatpush1.msra.mxu0 0.0
        %723 = vmatprep.subr.mxu0 0.0
        %724 = vmatpush1.msra.mxu0 0.0
        %725 = vmatprep.subr.mxu0 0.0
        %726 = vmatpush1.msra.mxu0 0.0
        %727 = vmatprep.subr.mxu0 0.0
        %728 = vmatpush1.msra.mxu0 0.0
        %729 = vmatprep.subr.mxu0 0.0
        %730 = vmatpush1.msra.mxu0 0.0
        %731 = vmatprep.subr.mxu0 0.0
        %732 = vmatpush1.msra.mxu0 0.0
        %733 = vmatprep.subr.mxu0 0.0
        %734 = vmatpush1.msra.mxu0 0.0
        %735 = vmatprep.subr.mxu0 0.0
        %736 = vmatpush1.msra.mxu0 0.0
        %737 = vmatprep.subr.mxu0 0.0
        %738 = vmatpush1.msra.mxu0 0.0
        %739 = vmatprep.subr.mxu0 0.0
        %740 = vmatpush1.msra.mxu0 0.0
        %741 = vmatprep.subr.mxu0 0.0
        %742 = vmatpush1.msra.mxu0 0.0
        %743 = vmatprep.subr.mxu0 0.0
        %744 = vmatpush1.msra.mxu0 0.0
        %745 = vmatprep.mubr.f32.mxu0 0.0
        %746 = vmatmul.mubr.f32.gmra.mrb[0].mxu0 %v509
        %v747 = vpop.f32.mrb[0].mxu0
        %v748 = vadd.f32 %v679, %v747
        %v749 = vpop.f32.mrb[0].mxu0
        %750 = vdwg.mxu0
        %v751 = vld [vmem:[%s7] sm:$0xff]
        %v752 = vld [vmem:[%s7 + $0x8] sm:$0xff]
        %v753 = vld [vmem:[%s7 + $0x10] sm:$0xff]
        %v754 = vld [vmem:[%s7 + $0x18] sm:$0xff]
        %v755 = vld [vmem:[%s7 + $0x20] sm:$0xff]
        %v756 = vld [vmem:[%s7 + $0x28] sm:$0xff]
        %v757 = vld [vmem:[%s7 + $0x30] sm:$0xff]
        %v758 = vld [vmem:[%s7 + $0x38] sm:$0xff]
        %vm759 = vcmask 64512
        %v761 = vsel %vm759, %v578, 0
        %v764 = vsel %vm759, %v663, 0
        %766 = vmatprep.subr.mxu0 0.0
        %767 = vmatpush1.xpose.msra.mxu0 %v764
        %768 = vmatprep.subr.mxu0 0.0
        %769 = vmatpush1.xpose.msra.mxu0 0.0
        %770 = vmatprep.subr.mxu0 0.0
        %771 = vmatpush1.xpose.msra.mxu0 0.0
        %772 = vmatprep.subr.mxu0 0.0
        %773 = vmatpush1.xpose.msra.mxu0 0.0
        %774 = vmatprep.subr.mxu0 0.0
        %775 = vmatpush1.xpose.msra.mxu0 0.0
        %776 = vmatprep.subr.mxu0 0.0
        %777 = vmatpush1.xpose.msra.mxu0 0.0
        %778 = vmatprep.subr.mxu0 0.0
        %779 = vmatpush1.xpose.msra.mxu0 0.0
        %780 = vmatprep.subr.mxu0 0.0
        %781 = vmatpush1.xpose.msra.mxu0 0.0
        %782 = vmatprep.subr.mxu0 0.0
        %783 = vmatpush1.xpose.msra.mxu0 0.0
        %784 = vmatprep.subr.mxu0 0.0
        %785 = vmatpush1.xpose.msra.mxu0 0.0
        %786 = vmatprep.subr.mxu0 0.0
        %787 = vmatpush1.xpose.msra.mxu0 0.0
        %788 = vmatprep.subr.mxu0 0.0
        %789 = vmatpush1.xpose.msra.mxu0 0.0
        %790 = vmatprep.subr.mxu0 0.0
        %791 = vmatpush1.xpose.msra.mxu0 0.0
        %792 = vmatprep.subr.mxu0 0.0
        %793 = vmatpush1.xpose.msra.mxu0 0.0
        %794 = vmatprep.subr.mxu0 0.0
        %795 = vmatpush1.xpose.msra.mxu0 0.0
        %796 = vmatprep.subr.mxu0 0.0
        %797 = vmatpush1.xpose.msra.mxu0 0.0
        %798 = vmatprep.subr.mxu0 0.0
        %799 = vmatpush1.xpose.msra.mxu0 0.0
        %800 = vmatprep.subr.mxu0 0.0
        %801 = vmatpush1.xpose.msra.mxu0 0.0
        %802 = vmatprep.subr.mxu0 0.0
        %803 = vmatpush1.xpose.msra.mxu0 0.0
        %804 = vmatprep.subr.mxu0 0.0
        %805 = vmatpush1.xpose.msra.mxu0 0.0
        %806 = vmatprep.subr.mxu0 0.0
        %807 = vmatpush1.xpose.msra.mxu0 0.0
        %808 = vmatprep.subr.mxu0 0.0
        %809 = vmatpush1.xpose.msra.mxu0 0.0
        %810 = vmatprep.subr.mxu0 0.0
        %811 = vmatpush1.xpose.msra.mxu0 0.0
        %812 = vmatprep.subr.mxu0 0.0
        %813 = vmatpush1.xpose.msra.mxu0 0.0
        %814 = vmatprep.subr.mxu0 0.0
        %815 = vmatpush1.xpose.msra.mxu0 0.0
        %816 = vmatprep.subr.mxu0 0.0
        %817 = vmatpush1.xpose.msra.mxu0 0.0
        %818 = vmatprep.subr.mxu0 0.0
        %819 = vmatpush1.xpose.msra.mxu0 0.0
        %820 = vmatprep.subr.mxu0 0.0
        %821 = vmatpush1.xpose.msra.mxu0 0.0
        %822 = vmatprep.subr.mxu0 0.0
        %823 = vmatpush1.xpose.msra.mxu0 0.0
        %824 = vmatprep.subr.mxu0 0.0
        %825 = vmatpush1.xpose.msra.mxu0 0.0
        %826 = vmatprep.subr.mxu0 0.0
        %827 = vmatpush1.xpose.msra.mxu0 0.0
        %828 = vmatprep.subr.mxu0 0.0
        %829 = vmatpush1.xpose.msra.mxu0 0.0
        %830 = vmatprep.mubr.f32.mxu0 0.0
        %831 = vmatmul.mubr.f32.gmra.mrb[0].mxu0 %v761
        %v832 = vpop.f32.mrb[0].mxu0
        %v833 = vadd.f32 0.0, %v832
        %v834 = vpop.f32.mrb[0].mxu0
        %835 = vdwg.mxu0
        %v836 = vmul.f32 %v833, 0.35355338
        %v837 = vsel %vm759, %v836, -inf
        %838 = vmax.xlane.f32.xlu0 %v837
        %v839 = vpop.xlane.xlu0 %838
        %v840 = vsub.f32 %v836, %v839
        %v841 = vmul.f32 %v840, 1.442695
        %v842 = vpow.pop %v841
        %v843 = vsel %vm759, %v842, 0.0
        %844 = vadd.xlane.f32.xlu0 %v843
        %v845 = vpop.xlane.xlu0 %844
        %v846 = vrcp.pop %v845
        %v847 = vmul.f32 %v842, %v846
        %v849 = vsel %vm759, %v847, 0
        %851 = vmatprep.subr.mxu0 0.0
        %852 = vmatpush1.msra.mxu0 %v748
        %853 = vmatprep.subr.mxu0 0.0
        %854 = vmatpush1.msra.mxu0 0.0
        %855 = vmatprep.subr.mxu0 0.0
        %856 = vmatpush1.msra.mxu0 0.0
        %857 = vmatprep.subr.mxu0 0.0
        %858 = vmatpush1.msra.mxu0 0.0
        %859 = vmatprep.subr.mxu0 0.0
        %860 = vmatpush1.msra.mxu0 0.0
        %861 = vmatprep.subr.mxu0 0.0
        %862 = vmatpush1.msra.mxu0 0.0
        %863 = vmatprep.subr.mxu0 0.0
        %864 = vmatpush1.msra.mxu0 0.0
        %865 = vmatprep.subr.mxu0 0.0
        %866 = vmatpush1.msra.mxu0 0.0
        %867 = vmatprep.subr.mxu0 0.0
        %868 = vmatpush1.msra.mxu0 0.0
        %869 = vmatprep.subr.mxu0 0.0
        %870 = vmatpush1.msra.mxu0 0.0
        %871 = vmatprep.subr.mxu0 0.0
        %872 = vmatpush1.msra.mxu0 0.0
        %873 = vmatprep.subr.mxu0 0.0
        %874 = vmatpush1.msra.mxu0 0.0
        %875 = vmatprep.subr.mxu0 0.0
        %876 = vmatpush1.msra.mxu0 0.0
        %877 = vmatprep.subr.mxu0 0.0
        %878 = vmatpush1.msra.mxu0 0.0
        %879 = vmatprep.subr.mxu0 0.0
        %880 = vmatpush1.msra.mxu0 0.0
        %881 = vmatprep.subr.mxu0 0.0
        %882 = vmatpush1.msra.mxu0 0.0
        %883 = vmatprep.subr.mxu0 0.0
        %884 = vmatpush1.msra.mxu0 0.0
        %885 = vmatprep.subr.mxu0 0.0
        %886 = vmatpush1.msra.mxu0 0.0
        %887 = vmatprep.subr.mxu0 0.0
        %888 = vmatpush1.msra.mxu0 0.0
        %889 = vmatprep.subr.mxu0 0.0
        %890 = vmatpush1.msra.mxu0 0.0
        %891 = vmatprep.subr.mxu0 0.0
        %892 = vmatpush1.msra.mxu0 0.0
        %893 = vmatprep.subr.mxu0 0.0
        %894 = vmatpush1.msra.mxu0 0.0
        %895 = vmatprep.subr.mxu0 0.0
        %896 = vmatpush1.msra.mxu0 0.0
        %897 = vmatprep.subr.mxu0 0.0
        %898 = vmatpush1.msra.mxu0 0.0
        %899 = vmatprep.subr.mxu0 0.0
        %900 = vmatpush1.msra.mxu0 0.0
        %901 = vmatprep.subr.mxu0 0.0
        %902 = vmatpush1.msra.mxu0 0.0
        %903 = vmatprep.subr.mxu0 0.0
        %904 = vmatpush1.msra.mxu0 0.0
        %905 = vmatprep.subr.mxu0 0.0
        %906 = vmatpush1.msra.mxu0 0.0
        %907 = vmatprep.subr.mxu0 0.0
        %908 = vmatpush1.msra.mxu0 0.0
        %909 = vmatprep.subr.mxu0 0.0
        %910 = vmatpush1.msra.mxu0 0.0
        %911 = vmatprep.subr.mxu0 0.0
        %912 = vmatpush1.msra.mxu0 0.0
        %913 = vmatprep.subr.mxu0 0.0
        %914 = vmatpush1.msra.mxu0 0.0
        %915 = vmatprep.mubr.f32.mxu0 0.0
        %916 = vmatmul.mubr.f32.gmra.mrb[0].mxu0 %v849
        %v917 = vpop.f32.mrb[0].mxu0
        %v918 = vadd.f32 0.0, %v917
        %v919 = vpop.f32.mrb[0].mxu0
        %920 = vdwg.mxu0
        %921 = vrot.lane.b32.xlu0 %v578, 120
        %v922 = vpop.permute.xlu0 %921
        %923 = vrot.lane.b32.xlu0 %v663, 120
        %v924 = vpop.permute.xlu0 %923
        %v925 = vsel %vm759, %v922, 0
        %v927 = vsel %vm759, %v924, 0
        %929 = vmatprep.subr.mxu0 0.0
        %930 = vmatpush1.xpose.msra.mxu0 %v927
        %931 = vmatprep.subr.mxu0 0.0
        %932 = vmatpush1.xpose.msra.mxu0 0.0
        %933 = vmatprep.subr.mxu0 0.0
        %934 = vmatpush1.xpose.msra.mxu0 0.0
        %935 = vmatprep.subr.mxu0 0.0
        %936 = vmatpush1.xpose.msra.mxu0 0.0
        %937 = vmatprep.subr.mxu0 0.0
        %938 = vmatpush1.xpose.msra.mxu0 0.0
        %939 = vmatprep.subr.mxu0 0.0
        %940 = vmatpush1.xpose.msra.mxu0 0.0
        %941 = vmatprep.subr.mxu0 0.0
        %942 = vmatpush1.xpose.msra.mxu0 0.0
        %943 = vmatprep.subr.mxu0 0.0
        %944 = vmatpush1.xpose.msra.mxu0 0.0
        %945 = vmatprep.subr.mxu0 0.0
        %946 = vmatpush1.xpose.msra.mxu0 0.0
        %947 = vmatprep.subr.mxu0 0.0
        %948 = vmatpush1.xpose.msra.mxu0 0.0
        %949 = vmatprep.subr.mxu0 0.0
        %950 = vmatpush1.xpose.msra.mxu0 0.0
        %951 = vmatprep.subr.mxu0 0.0
        %952 = vmatpush1.xpose.msra.mxu0 0.0
        %953 = vmatprep.subr.mxu0 0.0
        %954 = vmatpush1.xpose.msra.mxu0 0.0
        %955 = vmatprep.subr.mxu0 0.0
        %956 = vmatpush1.xpose.msra.mxu0 0.0
        %957 = vmatprep.subr.mxu0 0.0
        %958 = vmatpush1.xpose.msra.mxu0 0.0
        %959 = vmatprep.subr.mxu0 0.0
        %960 = vmatpush1.xpose.msra.mxu0 0.0
        %961 = vmatprep.subr.mxu0 0.0
        %962 = vmatpush1.xpose.msra.mxu0 0.0
        %963 = vmatprep.subr.mxu0 0.0
        %964 = vmatpush1.xpose.msra.mxu0 0.0
        %965 = vmatprep.subr.mxu0 0.0
        %966 = vmatpush1.xpose.msra.mxu0 0.0
        %967 = vmatprep.subr.mxu0 0.0
        %968 = vmatpush1.xpose.msra.mxu0 0.0
        %969 = vmatprep.subr.mxu0 0.0
        %970 = vmatpush1.xpose.msra.mxu0 0.0
        %971 = vmatprep.subr.mxu0 0.0
        %972 = vmatpush1.xpose.msra.mxu0 0.0
        %973 = vmatprep.subr.mxu0 0.0
        %974 = vmatpush1.xpose.msra.mxu0 0.0
        %975 = vmatprep.subr.mxu0 0.0
        %976 = vmatpush1.xpose.msra.mxu0 0.0
        %977 = vmatprep.subr.mxu0 0.0
        %978 = vmatpush1.xpose.msra.mxu0 0.0
        %979 = vmatprep.subr.mxu0 0.0
        %980 = vmatpush1.xpose.msra.mxu0 0.0
        %981 = vmatprep.subr.mxu0 0.0
        %982 = vmatpush1.xpose.msra.mxu0 0.0
        %983 = vmatprep.subr.mxu0 0.0
        %984 = vmatpush1.xpose.msra.mxu0 0.0
        %985 = vmatprep.subr.mxu0 0.0
        %986 = vmatpush1.xpose.msra.mxu0 0.0
        %987 = vmatprep.subr.mxu0 0.0
        %988 = vmatpush1.xpose.msra.mxu0 0.0
        %989 = vmatprep.subr.mxu0 0.0
        %990 = vmatpush1.xpose.msra.mxu0 0.0
        %991 = vmatprep.subr.mxu0 0.0
        %992 = vmatpush1.xpose.msra.mxu0 0.0
        %993 = vmatprep.mubr.f32.mxu0 0.0
        %994 = vmatmul.mubr.f32.gmra.mrb[0].mxu0 %v925
        %v995 = vpop.f32.mrb[0].mxu0
        %v996 = vadd.f32 0.0, %v995
        %v997 = vpop.f32.mrb[0].mxu0
        %998 = vdwg.mxu0
        %v999 = vmul.f32 %v996, 0.35355338
        %v1000 = vsel %vm759, %v999, -inf
        %1001 = vmax.xlane.f32.xlu0 %v1000
        %v1002 = vpop.xlane.xlu0 %1001
        %v1003 = vsub.f32 %v999, %v1002
        %v1004 = vmul.f32 %v1003, 1.442695
        %v1005 = vpow.pop %v1004
        %v1006 = vsel %vm759, %v1005, 0.0
        %1007 = vadd.xlane.f32.xlu0 %v1006
        %v1008 = vpop.xlane.xlu0 %1007
        %v1009 = vrcp.pop %v1008
        %v1010 = vmul.f32 %v1005, %v1009
        %1012 = vrot.lane.b32.xlu0 %v748, 120
        %v1013 = vpop.permute.xlu0 %1012
        %v1016 = vsel %vm759, %v1010, 0
        %1018 = vmatprep.subr.mxu0 0.0
        %1019 = vmatpush1.msra.mxu0 %v1013
        %1020 = vmatprep.subr.mxu0 0.0
        %1021 = vmatpush1.msra.mxu0 0.0
        %1022 = vmatprep.subr.mxu0 0.0
        %1023 = vmatpush1.msra.mxu0 0.0
        %1024 = vmatprep.subr.mxu0 0.0
        %1025 = vmatpush1.msra.mxu0 0.0
        %1026 = vmatprep.subr.mxu0 0.0
        %1027 = vmatpush1.msra.mxu0 0.0
        %1028 = vmatprep.subr.mxu0 0.0
        %1029 = vmatpush1.msra.mxu0 0.0
        %1030 = vmatprep.subr.mxu0 0.0
        %1031 = vmatpush1.msra.mxu0 0.0
        %1032 = vmatprep.subr.mxu0 0.0
        %1033 = vmatpush1.msra.mxu0 0.0
        %1034 = vmatprep.subr.mxu0 0.0
        %1035 = vmatpush1.msra.mxu0 0.0
        %1036 = vmatprep.subr.mxu0 0.0
        %1037 = vmatpush1.msra.mxu0 0.0
        %1038 = vmatprep.subr.mxu0 0.0
        %1039 = vmatpush1.msra.mxu0 0.0
        %1040 = vmatprep.subr.mxu0 0.0
        %1041 = vmatpush1.msra.mxu0 0.0
        %1042 = vmatprep.subr.mxu0 0.0
        %1043 = vmatpush1.msra.mxu0 0.0
        %1044 = vmatprep.subr.mxu0 0.0
        %1045 = vmatpush1.msra.mxu0 0.0
        %1046 = vmatprep.subr.mxu0 0.0
        %1047 = vmatpush1.msra.mxu0 0.0
        %1048 = vmatprep.subr.mxu0 0.0
        %1049 = vmatpush1.msra.mxu0 0.0
        %1050 = vmatprep.subr.mxu0 0.0
        %1051 = vmatpush1.msra.mxu0 0.0
        %1052 = vmatprep.subr.mxu0 0.0
        %1053 = vmatpush1.msra.mxu0 0.0
        %1054 = vmatprep.subr.mxu0 0.0
        %1055 = vmatpush1.msra.mxu0 0.0
        %1056 = vmatprep.subr.mxu0 0.0
        %1057 = vmatpush1.msra.mxu0 0.0
        %1058 = vmatprep.subr.mxu0 0.0
        %1059 = vmatpush1.msra.mxu0 0.0
        %1060 = vmatprep.subr.mxu0 0.0
        %1061 = vmatpush1.msra.mxu0 0.0
        %1062 = vmatprep.subr.mxu0 0.0
        %1063 = vmatpush1.msra.mxu0 0.0
        %1064 = vmatprep.subr.mxu0 0.0
        %1065 = vmatpush1.msra.mxu0 0.0
        %1066 = vmatprep.subr.mxu0 0.0
        %1067 = vmatpush1.msra.mxu0 0.0
        %1068 = vmatprep.subr.mxu0 0.0
        %1069 = vmatpush1.msra.mxu0 0.0
        %1070 = vmatprep.subr.mxu0 0.0
        %1071 = vmatpush1.msra.mxu0 0.0
        %1072 = vmatprep.subr.mxu0 0.0
        %1073 = vmatpush1.msra.mxu0 0.0
        %1074 = vmatprep.subr.mxu0 0.0
        %1075 = vmatpush1.msra.mxu0 0.0
        %1076 = vmatprep.subr.mxu0 0.0
        %1077 = vmatpush1.msra.mxu0 0.0
        %1078 = vmatprep.subr.mxu0 0.0
        %1079 = vmatpush1.msra.mxu0 0.0
        %1080 = vmatprep.subr.mxu0 0.0
        %1081 = vmatpush1.msra.mxu0 0.0
        %1082 = vmatprep.mubr.f32.mxu0 0.0
        %1083 = vmatmul.mubr.f32.gmra.mrb[0].mxu0 %v1016
        %v1084 = vpop.f32.mrb[0].mxu0
        %v1085 = vadd.f32 0.0, %v1084
        %v1086 = vpop.f32.mrb[0].mxu0
        %1087 = vdwg.mxu0
        %v1089 = vsel %vm759, %v1085, 0
        %1091 = vmatprep.subr.mxu0 0.0
        %1092 = vmatpush1.msra.mxu0 %v752
        %1093 = vmatprep.subr.mxu0 0.0
        %1094 = vmatpush1.msra.mxu0 0.0
        %1095 = vmatprep.subr.mxu0 0.0
        %1096 = vmatpush1.msra.mxu0 0.0
        %1097 = vmatprep.subr.mxu0 0.0
        %1098 = vmatpush1.msra.mxu0 0.0
        %1099 = vmatprep.subr.mxu0 0.0
        %1100 = vmatpush1.msra.mxu0 0.0
        %1101 = vmatprep.subr.mxu0 0.0
        %1102 = vmatpush1.msra.mxu0 0.0
        %1103 = vmatprep.subr.mxu0 0.0
        %1104 = vmatpush1.msra.mxu0 0.0
        %1105 = vmatprep.subr.mxu0 0.0
        %1106 = vmatpush1.msra.mxu0 0.0
        %1107 = vmatprep.subr.mxu0 0.0
        %1108 = vmatpush1.msra.mxu0 0.0
        %1109 = vmatprep.subr.mxu0 0.0
        %1110 = vmatpush1.msra.mxu0 0.0
        %1111 = vmatprep.subr.mxu0 0.0
        %1112 = vmatpush1.msra.mxu0 0.0
        %1113 = vmatprep.subr.mxu0 0.0
        %1114 = vmatpush1.msra.mxu0 0.0
        %1115 = vmatprep.subr.mxu0 0.0
        %1116 = vmatpush1.msra.mxu0 0.0
        %1117 = vmatprep.subr.mxu0 0.0
        %1118 = vmatpush1.msra.mxu0 0.0
        %1119 = vmatprep.subr.mxu0 0.0
        %1120 = vmatpush1.msra.mxu0 0.0
        %1121 = vmatprep.subr.mxu0 0.0
        %1122 = vmatpush1.msra.mxu0 0.0
        %1123 = vmatprep.subr.mxu0 0.0
        %1124 = vmatpush1.msra.mxu0 0.0
        %1125 = vmatprep.subr.mxu0 0.0
        %1126 = vmatpush1.msra.mxu0 0.0
        %1127 = vmatprep.subr.mxu0 0.0
        %1128 = vmatpush1.msra.mxu0 0.0
        %1129 = vmatprep.subr.mxu0 0.0
        %1130 = vmatpush1.msra.mxu0 0.0
        %1131 = vmatprep.subr.mxu0 0.0
        %1132 = vmatpush1.msra.mxu0 0.0
        %1133 = vmatprep.subr.mxu0 0.0
        %1134 = vmatpush1.msra.mxu0 0.0
        %1135 = vmatprep.subr.mxu0 0.0
        %1136 = vmatpush1.msra.mxu0 0.0
        %1137 = vmatprep.subr.mxu0 0.0
        %1138 = vmatpush1.msra.mxu0 0.0
        %1139 = vmatprep.subr.mxu0 0.0
        %1140 = vmatpush1.msra.mxu0 0.0
        %1141 = vmatprep.subr.mxu0 0.0
        %1142 = vmatpush1.msra.mxu0 0.0
        %1143 = vmatprep.subr.mxu0 0.0
        %1144 = vmatpush1.msra.mxu0 0.0
        %1145 = vmatprep.subr.mxu0 0.0
        %1146 = vmatpush1.msra.mxu0 0.0
        %1147 = vmatprep.subr.mxu0 0.0
        %1148 = vmatpush1.msra.mxu0 0.0
        %1149 = vmatprep.subr.mxu0 0.0
        %1150 = vmatpush1.msra.mxu0 0.0
        %1151 = vmatprep.subr.mxu0 0.0
        %1152 = vmatpush1.msra.mxu0 0.0
        %1153 = vmatprep.subr.mxu0 0.0
        %1154 = vmatpush1.msra.mxu0 0.0
        %1155 = vmatprep.mubr.f32.mxu0 0.0
        %1156 = vmatmul.mubr.f32.gmra.mrb[0].mxu0 %v1089
        %v1157 = vpop.f32.mrb[0].mxu0
        %v1158 = vadd.f32 0.0, %v1157
        %v1159 = vpop.f32.mrb[0].mxu0
        %1160 = vdwg.mxu0
        %v1162 = vsel %vm759, %v918, 0
        %1164 = vmatprep.subr.mxu0 0.0
        %1165 = vmatpush1.msra.mxu0 %v751
        %1166 = vmatprep.subr.mxu0 0.0
        %1167 = vmatpush1.msra.mxu0 0.0
        %1168 = vmatprep.subr.mxu0 0.0
        %1169 = vmatpush1.msra.mxu0 0.0
        %1170 = vmatprep.subr.mxu0 0.0
        %1171 = vmatpush1.msra.mxu0 0.0
        %1172 = vmatprep.subr.mxu0 0.0
        %1173 = vmatpush1.msra.mxu0 0.0
        %1174 = vmatprep.subr.mxu0 0.0
        %1175 = vmatpush1.msra.mxu0 0.0
        %1176 = vmatprep.subr.mxu0 0.0
        %1177 = vmatpush1.msra.mxu0 0.0
        %1178 = vmatprep.subr.mxu0 0.0
        %1179 = vmatpush1.msra.mxu0 0.0
        %1180 = vmatprep.subr.mxu0 0.0
        %1181 = vmatpush1.msra.mxu0 0.0
        %1182 = vmatprep.subr.mxu0 0.0
        %1183 = vmatpush1.msra.mxu0 0.0
        %1184 = vmatprep.subr.mxu0 0.0
        %1185 = vmatpush1.msra.mxu0 0.0
        %1186 = vmatprep.subr.mxu0 0.0
        %1187 = vmatpush1.msra.mxu0 0.0
        %1188 = vmatprep.subr.mxu0 0.0
        %1189 = vmatpush1.msra.mxu0 0.0
        %1190 = vmatprep.subr.mxu0 0.0
        %1191 = vmatpush1.msra.mxu0 0.0
        %1192 = vmatprep.subr.mxu0 0.0
        %1193 = vmatpush1.msra.mxu0 0.0
        %1194 = vmatprep.subr.mxu0 0.0
        %1195 = vmatpush1.msra.mxu0 0.0
        %1196 = vmatprep.subr.mxu0 0.0
        %1197 = vmatpush1.msra.mxu0 0.0
        %1198 = vmatprep.subr.mxu0 0.0
        %1199 = vmatpush1.msra.mxu0 0.0
        %1200 = vmatprep.subr.mxu0 0.0
        %1201 = vmatpush1.msra.mxu0 0.0
        %1202 = vmatprep.subr.mxu0 0.0
        %1203 = vmatpush1.msra.mxu0 0.0
        %1204 = vmatprep.subr.mxu0 0.0
        %1205 = vmatpush1.msra.mxu0 0.0
        %1206 = vmatprep.subr.mxu0 0.0
        %1207 = vmatpush1.msra.mxu0 0.0
        %1208 = vmatprep.subr.mxu0 0.0
        %1209 = vmatpush1.msra.mxu0 0.0
        %1210 = vmatprep.subr.mxu0 0.0
        %1211 = vmatpush1.msra.mxu0 0.0
        %1212 = vmatprep.subr.mxu0 0.0
        %1213 = vmatpush1.msra.mxu0 0.0
        %1214 = vmatprep.subr.mxu0 0.0
        %1215 = vmatpush1.msra.mxu0 0.0
        %1216 = vmatprep.subr.mxu0 0.0
        %1217 = vmatpush1.msra.mxu0 0.0
        %1218 = vmatprep.subr.mxu0 0.0
        %1219 = vmatpush1.msra.mxu0 0.0
        %1220 = vmatprep.subr.mxu0 0.0
        %1221 = vmatpush1.msra.mxu0 0.0
        %1222 = vmatprep.subr.mxu0 0.0
        %1223 = vmatpush1.msra.mxu0 0.0
        %1224 = vmatprep.subr.mxu0 0.0
        %1225 = vmatpush1.msra.mxu0 0.0
        %1226 = vmatprep.subr.mxu0 0.0
        %1227 = vmatpush1.msra.mxu0 0.0
        %1228 = vmatprep.mubr.f32.mxu0 0.0
        %1229 = vmatmul.mubr.f32.gmra.mrb[0].mxu0 %v1162
        %v1230 = vpop.f32.mrb[0].mxu0
        %v1231 = vadd.f32 %v1158, %v1230
        %v1232 = vpop.f32.mrb[0].mxu0
        %1233 = vdwg.mxu0
        %1234 = vrot.lane.b32.xlu0 %v578, 112
        %v1235 = vpop.permute.xlu0 %1234
        %1236 = vrot.lane.b32.xlu0 %v663, 112
        %v1237 = vpop.permute.xlu0 %1236
        %v1238 = vsel %vm759, %v1235, 0
        %v1240 = vsel %vm759, %v1237, 0
        %1242 = vmatprep.subr.mxu0 0.0
        %1243 = vmatpush1.xpose.msra.mxu0 %v1240
        %1244 = vmatprep.subr.mxu0 0.0
        %1245 = vmatpush1.xpose.msra.mxu0 0.0
        %1246 = vmatprep.subr.mxu0 0.0
        %1247 = vmatpush1.xpose.msra.mxu0 0.0
        %1248 = vmatprep.subr.mxu0 0.0
        %1249 = vmatpush1.xpose.msra.mxu0 0.0
        %1250 = vmatprep.subr.mxu0 0.0
        %1251 = vmatpush1.xpose.msra.mxu0 0.0
        %1252 = vmatprep.subr.mxu0 0.0
        %1253 = vmatpush1.xpose.msra.mxu0 0.0
        %1254 = vmatprep.subr.mxu0 0.0
        %1255 = vmatpush1.xpose.msra.mxu0 0.0
        %1256 = vmatprep.subr.mxu0 0.0
        %1257 = vmatpush1.xpose.msra.mxu0 0.0
        %1258 = vmatprep.subr.mxu0 0.0
        %1259 = vmatpush1.xpose.msra.mxu0 0.0
        %1260 = vmatprep.subr.mxu0 0.0
        %1261 = vmatpush1.xpose.msra.mxu0 0.0
        %1262 = vmatprep.subr.mxu0 0.0
        %1263 = vmatpush1.xpose.msra.mxu0 0.0
        %1264 = vmatprep.subr.mxu0 0.0
        %1265 = vmatpush1.xpose.msra.mxu0 0.0
        %1266 = vmatprep.subr.mxu0 0.0
        %1267 = vmatpush1.xpose.msra.mxu0 0.0
        %1268 = vmatprep.subr.mxu0 0.0
        %1269 = vmatpush1.xpose.msra.mxu0 0.0
        %1270 = vmatprep.subr.mxu0 0.0
        %1271 = vmatpush1.xpose.msra.mxu0 0.0
        %1272 = vmatprep.subr.mxu0 0.0
        %1273 = vmatpush1.xpose.msra.mxu0 0.0
        %1274 = vmatprep.subr.mxu0 0.0
        %1275 = vmatpush1.xpose.msra.mxu0 0.0
        %1276 = vmatprep.subr.mxu0 0.0
        %1277 = vmatpush1.xpose.msra.mxu0 0.0
        %1278 = vmatprep.subr.mxu0 0.0
        %1279 = vmatpush1.xpose.msra.mxu0 0.0
        %1280 = vmatprep.subr.mxu0 0.0
        %1281 = vmatpush1.xpose.msra.mxu0 0.0
        %1282 = vmatprep.subr.mxu0 0.0
        %1283 = vmatpush1.xpose.msra.mxu0 0.0
        %1284 = vmatprep.subr.mxu0 0.0
        %1285 = vmatpush1.xpose.msra.mxu0 0.0
        %1286 = vmatprep.subr.mxu0 0.0
        %1287 = vmatpush1.xpose.msra.mxu0 0.0
        %1288 = vmatprep.subr.mxu0 0.0
        %1289 = vmatpush1.xpose.msra.mxu0 0.0
        %1290 = vmatprep.subr.mxu0 0.0
        %1291 = vmatpush1.xpose.msra.mxu0 0.0
        %1292 = vmatprep.subr.mxu0 0.0
        %1293 = vmatpush1.xpose.msra.mxu0 0.0
        %1294 = vmatprep.subr.mxu0 0.0
        %1295 = vmatpush1.xpose.msra.mxu0 0.0
        %1296 = vmatprep.subr.mxu0 0.0
        %1297 = vmatpush1.xpose.msra.mxu0 0.0
        %1298 = vmatprep.subr.mxu0 0.0
        %1299 = vmatpush1.xpose.msra.mxu0 0.0
        %1300 = vmatprep.subr.mxu0 0.0
        %1301 = vmatpush1.xpose.msra.mxu0 0.0
        %1302 = vmatprep.subr.mxu0 0.0
        %1303 = vmatpush1.xpose.msra.mxu0 0.0
        %1304 = vmatprep.subr.mxu0 0.0
        %1305 = vmatpush1.xpose.msra.mxu0 0.0
        %1306 = vmatprep.mubr.f32.mxu0 0.0
        %1307 = vmatmul.mubr.f32.gmra.mrb[0].mxu0 %v1238
        %v1308 = vpop.f32.mrb[0].mxu0
        %v1309 = vadd.f32 0.0, %v1308
        %v1310 = vpop.f32.mrb[0].mxu0
        %1311 = vdwg.mxu0
        %v1312 = vmul.f32 %v1309, 0.35355338
        %v1313 = vsel %vm759, %v1312, -inf
        %1314 = vmax.xlane.f32.xlu0 %v1313
        %v1315 = vpop.xlane.xlu0 %1314
        %v1316 = vsub.f32 %v1312, %v1315
        %v1317 = vmul.f32 %v1316, 1.442695
        %v1318 = vpow.pop %v1317
        %v1319 = vsel %vm759, %v1318, 0.0
        %1320 = vadd.xlane.f32.xlu0 %v1319
        %v1321 = vpop.xlane.xlu0 %1320
        %v1322 = vrcp.pop %v1321
        %v1323 = vmul.f32 %v1318, %v1322
        %1324 = vrot.lane.b32.xlu0 %v748, 112
        %v1325 = vpop.permute.xlu0 %1324
        %v1328 = vsel %vm759, %v1323, 0
        %1330 = vmatprep.subr.mxu0 0.0
        %1331 = vmatpush1.msra.mxu0 %v1325
        %1332 = vmatprep.subr.mxu0 0.0
        %1333 = vmatpush1.msra.mxu0 0.0
        %1334 = vmatprep.subr.mxu0 0.0
        %1335 = vmatpush1.msra.mxu0 0.0
        %1336 = vmatprep.subr.mxu0 0.0
        %1337 = vmatpush1.msra.mxu0 0.0
        %1338 = vmatprep.subr.mxu0 0.0
        %1339 = vmatpush1.msra.mxu0 0.0
        %1340 = vmatprep.subr.mxu0 0.0
        %1341 = vmatpush1.msra.mxu0 0.0
        %1342 = vmatprep.subr.mxu0 0.0
        %1343 = vmatpush1.msra.mxu0 0.0
        %1344 = vmatprep.subr.mxu0 0.0
        %1345 = vmatpush1.msra.mxu0 0.0
        %1346 = vmatprep.subr.mxu0 0.0
        %1347 = vmatpush1.msra.mxu0 0.0
        %1348 = vmatprep.subr.mxu0 0.0
        %1349 = vmatpush1.msra.mxu0 0.0
        %1350 = vmatprep.subr.mxu0 0.0
        %1351 = vmatpush1.msra.mxu0 0.0
        %1352 = vmatprep.subr.mxu0 0.0
        %1353 = vmatpush1.msra.mxu0 0.0
        %1354 = vmatprep.subr.mxu0 0.0
        %1355 = vmatpush1.msra.mxu0 0.0
        %1356 = vmatprep.subr.mxu0 0.0
        %1357 = vmatpush1.msra.mxu0 0.0
        %1358 = vmatprep.subr.mxu0 0.0
        %1359 = vmatpush1.msra.mxu0 0.0
        %1360 = vmatprep.subr.mxu0 0.0
        %1361 = vmatpush1.msra.mxu0 0.0
        %1362 = vmatprep.subr.mxu0 0.0
        %1363 = vmatpush1.msra.mxu0 0.0
        %1364 = vmatprep.subr.mxu0 0.0
        %1365 = vmatpush1.msra.mxu0 0.0
        %1366 = vmatprep.subr.mxu0 0.0
        %1367 = vmatpush1.msra.mxu0 0.0
        %1368 = vmatprep.subr.mxu0 0.0
        %1369 = vmatpush1.msra.mxu0 0.0
        %1370 = vmatprep.subr.mxu0 0.0
        %1371 = vmatpush1.msra.mxu0 0.0
        %1372 = vmatprep.subr.mxu0 0.0
        %1373 = vmatpush1.msra.mxu0 0.0
        %1374 = vmatprep.subr.mxu0 0.0
        %1375 = vmatpush1.msra.mxu0 0.0
        %1376 = vmatprep.subr.mxu0 0.0
        %1377 = vmatpush1.msra.mxu0 0.0
        %1378 = vmatprep.subr.mxu0 0.0
        %1379 = vmatpush1.msra.mxu0 0.0
        %1380 = vmatprep.subr.mxu0 0.0
        %1381 = vmatpush1.msra.mxu0 0.0
        %1382 = vmatprep.subr.mxu0 0.0
        %1383 = vmatpush1.msra.mxu0 0.0
        %1384 = vmatprep.subr.mxu0 0.0
        %1385 = vmatpush1.msra.mxu0 0.0
        %1386 = vmatprep.subr.mxu0 0.0
        %1387 = vmatpush1.msra.mxu0 0.0
        %1388 = vmatprep.subr.mxu0 0.0
        %1389 = vmatpush1.msra.mxu0 0.0
        %1390 = vmatprep.subr.mxu0 0.0
        %1391 = vmatpush1.msra.mxu0 0.0
        %1392 = vmatprep.subr.mxu0 0.0
        %1393 = vmatpush1.msra.mxu0 0.0
        %1394 = vmatprep.mubr.f32.mxu0 0.0
        %1395 = vmatmul.mubr.f32.gmra.mrb[0].mxu0 %v1328
        %v1396 = vpop.f32.mrb[0].mxu0
        %v1397 = vadd.f32 0.0, %v1396
        %v1398 = vpop.f32.mrb[0].mxu0
        %1399 = vdwg.mxu0
        %v1401 = vsel %vm759, %v1397, 0
        %1403 = vmatprep.subr.mxu0 0.0
        %1404 = vmatpush1.msra.mxu0 %v753
        %1405 = vmatprep.subr.mxu0 0.0
        %1406 = vmatpush1.msra.mxu0 0.0
        %1407 = vmatprep.subr.mxu0 0.0
        %1408 = vmatpush1.msra.mxu0 0.0
        %1409 = vmatprep.subr.mxu0 0.0
        %1410 = vmatpush1.msra.mxu0 0.0
        %1411 = vmatprep.subr.mxu0 0.0
        %1412 = vmatpush1.msra.mxu0 0.0
        %1413 = vmatprep.subr.mxu0 0.0
        %1414 = vmatpush1.msra.mxu0 0.0
        %1415 = vmatprep.subr.mxu0 0.0
        %1416 = vmatpush1.msra.mxu0 0.0
        %1417 = vmatprep.subr.mxu0 0.0
        %1418 = vmatpush1.msra.mxu0 0.0
        %1419 = vmatprep.subr.mxu0 0.0
        %1420 = vmatpush1.msra.mxu0 0.0
        %1421 = vmatprep.subr.mxu0 0.0
        %1422 = vmatpush1.msra.mxu0 0.0
        %1423 = vmatprep.subr.mxu0 0.0
        %1424 = vmatpush1.msra.mxu0 0.0
        %1425 = vmatprep.subr.mxu0 0.0
        %1426 = vmatpush1.msra.mxu0 0.0
        %1427 = vmatprep.subr.mxu0 0.0
        %1428 = vmatpush1.msra.mxu0 0.0
        %1429 = vmatprep.subr.mxu0 0.0
        %1430 = vmatpush1.msra.mxu0 0.0
        %1431 = vmatprep.subr.mxu0 0.0
        %1432 = vmatpush1.msra.mxu0 0.0
        %1433 = vmatprep.subr.mxu0 0.0
        %1434 = vmatpush1.msra.mxu0 0.0
        %1435 = vmatprep.subr.mxu0 0.0
        %1436 = vmatpush1.msra.mxu0 0.0
        %1437 = vmatprep.subr.mxu0 0.0
        %1438 = vmatpush1.msra.mxu0 0.0
        %1439 = vmatprep.subr.mxu0 0.0
        %1440 = vmatpush1.msra.mxu0 0.0
        %1441 = vmatprep.subr.mxu0 0.0
        %1442 = vmatpush1.msra.mxu0 0.0
        %1443 = vmatprep.subr.mxu0 0.0
        %1444 = vmatpush1.msra.mxu0 0.0
        %1445 = vmatprep.subr.mxu0 0.0
        %1446 = vmatpush1.msra.mxu0 0.0
        %1447 = vmatprep.subr.mxu0 0.0
        %1448 = vmatpush1.msra.mxu0 0.0
        %1449 = vmatprep.subr.mxu0 0.0
        %1450 = vmatpush1.msra.mxu0 0.0
        %1451 = vmatprep.subr.mxu0 0.0
        %1452 = vmatpush1.msra.mxu0 0.0
        %1453 = vmatprep.subr.mxu0 0.0
        %1454 = vmatpush1.msra.mxu0 0.0
        %1455 = vmatprep.subr.mxu0 0.0
        %1456 = vmatpush1.msra.mxu0 0.0
        %1457 = vmatprep.subr.mxu0 0.0
        %1458 = vmatpush1.msra.mxu0 0.0
        %1459 = vmatprep.subr.mxu0 0.0
        %1460 = vmatpush1.msra.mxu0 0.0
        %1461 = vmatprep.subr.mxu0 0.0
        %1462 = vmatpush1.msra.mxu0 0.0
        %1463 = vmatprep.subr.mxu0 0.0
        %1464 = vmatpush1.msra.mxu0 0.0
        %1465 = vmatprep.subr.mxu0 0.0
        %1466 = vmatpush1.msra.mxu0 0.0
        %1467 = vmatprep.mubr.f32.mxu0 0.0
        %1468 = vmatmul.mubr.f32.gmra.mrb[0].mxu0 %v1401
        %v1469 = vpop.f32.mrb[0].mxu0
        %v1470 = vadd.f32 0.0, %v1469
        %v1471 = vpop.f32.mrb[0].mxu0
        %1472 = vdwg.mxu0
        %v1473 = vadd.f32 %v1231, %v1470
        %1474 = vrot.lane.b32.xlu0 %v578, 104
        %v1475 = vpop.permute.xlu0 %1474
        %1476 = vrot.lane.b32.xlu0 %v663, 104
        %v1477 = vpop.permute.xlu0 %1476
        %v1478 = vsel %vm759, %v1475, 0
        %v1480 = vsel %vm759, %v1477, 0
        %1482 = vmatprep.subr.mxu0 0.0
        %1483 = vmatpush1.xpose.msra.mxu0 %v1480
        %1484 = vmatprep.subr.mxu0 0.0
        %1485 = vmatpush1.xpose.msra.mxu0 0.0
        %1486 = vmatprep.subr.mxu0 0.0
        %1487 = vmatpush1.xpose.msra.mxu0 0.0
        %1488 = vmatprep.subr.mxu0 0.0
        %1489 = vmatpush1.xpose.msra.mxu0 0.0
        %1490 = vmatprep.subr.mxu0 0.0
        %1491 = vmatpush1.xpose.msra.mxu0 0.0
        %1492 = vmatprep.subr.mxu0 0.0
        %1493 = vmatpush1.xpose.msra.mxu0 0.0
        %1494 = vmatprep.subr.mxu0 0.0
        %1495 = vmatpush1.xpose.msra.mxu0 0.0
        %1496 = vmatprep.subr.mxu0 0.0
        %1497 = vmatpush1.xpose.msra.mxu0 0.0
        %1498 = vmatprep.subr.mxu0 0.0
        %1499 = vmatpush1.xpose.msra.mxu0 0.0
        %1500 = vmatprep.subr.mxu0 0.0
        %1501 = vmatpush1.xpose.msra.mxu0 0.0
        %1502 = vmatprep.subr.mxu0 0.0
        %1503 = vmatpush1.xpose.msra.mxu0 0.0
        %1504 = vmatprep.subr.mxu0 0.0
        %1505 = vmatpush1.xpose.msra.mxu0 0.0
        %1506 = vmatprep.subr.mxu0 0.0
        %1507 = vmatpush1.xpose.msra.mxu0 0.0
        %1508 = vmatprep.subr.mxu0 0.0
        %1509 = vmatpush1.xpose.msra.mxu0 0.0
        %1510 = vmatprep.subr.mxu0 0.0
        %1511 = vmatpush1.xpose.msra.mxu0 0.0
        %1512 = vmatprep.subr.mxu0 0.0
        %1513 = vmatpush1.xpose.msra.mxu0 0.0
        %1514 = vmatprep.subr.mxu0 0.0
        %1515 = vmatpush1.xpose.msra.mxu0 0.0
        %1516 = vmatprep.subr.mxu0 0.0
        %1517 = vmatpush1.xpose.msra.mxu0 0.0
        %1518 = vmatprep.subr.mxu0 0.0
        %1519 = vmatpush1.xpose.msra.mxu0 0.0
        %1520 = vmatprep.subr.mxu0 0.0
        %1521 = vmatpush1.xpose.msra.mxu0 0.0
        %1522 = vmatprep.subr.mxu0 0.0
        %1523 = vmatpush1.xpose.msra.mxu0 0.0
        %1524 = vmatprep.subr.mxu0 0.0
        %1525 = vmatpush1.xpose.msra.mxu0 0.0
        %1526 = vmatprep.subr.mxu0 0.0
        %1527 = vmatpush1.xpose.msra.mxu0 0.0
        %1528 = vmatprep.subr.mxu0 0.0
        %1529 = vmatpush1.xpose.msra.mxu0 0.0
        %1530 = vmatprep.subr.mxu0 0.0
        %1531 = vmatpush1.xpose.msra.mxu0 0.0
        %1532 = vmatprep.subr.mxu0 0.0
        %1533 = vmatpush1.xpose.msra.mxu0 0.0
        %1534 = vmatprep.subr.mxu0 0.0
        %1535 = vmatpush1.xpose.msra.mxu0 0.0
        %1536 = vmatprep.subr.mxu0 0.0
        %1537 = vmatpush1.xpose.msra.mxu0 0.0
        %1538 = vmatprep.subr.mxu0 0.0
        %1539 = vmatpush1.xpose.msra.mxu0 0.0
        %1540 = vmatprep.subr.mxu0 0.0
        %1541 = vmatpush1.xpose.msra.mxu0 0.0
        %1542 = vmatprep.subr.mxu0 0.0
        %1543 = vmatpush1.xpose.msra.mxu0 0.0
        %1544 = vmatprep.subr.mxu0 0.0
        %1545 = vmatpush1.xpose.msra.mxu0 0.0
        %1546 = vmatprep.mubr.f32.mxu0 0.0
        %1547 = vmatmul.mubr.f32.gmra.mrb[0].mxu0 %v1478
        %v1548 = vpop.f32.mrb[0].mxu0
        %v1549 = vadd.f32 0.0, %v1548
        %v1550 = vpop.f32.mrb[0].mxu0
        %1551 = vdwg.mxu0
        %v1552 = vmul.f32 %v1549, 0.35355338
        %v1553 = vsel %vm759, %v1552, -inf
        %1554 = vmax.xlane.f32.xlu0 %v1553
        %v1555 = vpop.xlane.xlu0 %1554
        %v1556 = vsub.f32 %v1552, %v1555
        %v1557 = vmul.f32 %v1556, 1.442695
        %v1558 = vpow.pop %v1557
        %v1559 = vsel %vm759, %v1558, 0.0
        %1560 = vadd.xlane.f32.xlu0 %v1559
        %v1561 = vpop.xlane.xlu0 %1560
        %v1562 = vrcp.pop %v1561
        %v1563 = vmul.f32 %v1558, %v1562
        %1564 = vrot.lane.b32.xlu0 %v748, 104
        %v1565 = vpop.permute.xlu0 %1564
        %v1568 = vsel %vm759, %v1563, 0
        %1570 = vmatprep.subr.mxu0 0.0
        %1571 = vmatpush1.msra.mxu0 %v1565
        %1572 = vmatprep.subr.mxu0 0.0
        %1573 = vmatpush1.msra.mxu0 0.0
        %1574 = vmatprep.subr.mxu0 0.0
        %1575 = vmatpush1.msra.mxu0 0.0
        %1576 = vmatprep.subr.mxu0 0.0
        %1577 = vmatpush1.msra.mxu0 0.0
        %1578 = vmatprep.subr.mxu0 0.0
        %1579 = vmatpush1.msra.mxu0 0.0
        %1580 = vmatprep.subr.mxu0 0.0
        %1581 = vmatpush1.msra.mxu0 0.0
        %1582 = vmatprep.subr.mxu0 0.0
        %1583 = vmatpush1.msra.mxu0 0.0
        %1584 = vmatprep.subr.mxu0 0.0
        %1585 = vmatpush1.msra.mxu0 0.0
        %1586 = vmatprep.subr.mxu0 0.0
        %1587 = vmatpush1.msra.mxu0 0.0
        %1588 = vmatprep.subr.mxu0 0.0
        %1589 = vmatpush1.msra.mxu0 0.0
        %1590 = vmatprep.subr.mxu0 0.0
        %1591 = vmatpush1.msra.mxu0 0.0
        %1592 = vmatprep.subr.mxu0 0.0
        %1593 = vmatpush1.msra.mxu0 0.0
        %1594 = vmatprep.subr.mxu0 0.0
        %1595 = vmatpush1.msra.mxu0 0.0
        %1596 = vmatprep.subr.mxu0 0.0
        %1597 = vmatpush1.msra.mxu0 0.0
        %1598 = vmatprep.subr.mxu0 0.0
        %1599 = vmatpush1.msra.mxu0 0.0
        %1600 = vmatprep.subr.mxu0 0.0
        %1601 = vmatpush1.msra.mxu0 0.0
        %1602 = vmatprep.subr.mxu0 0.0
        %1603 = vmatpush1.msra.mxu0 0.0
        %1604 = vmatprep.subr.mxu0 0.0
        %1605 = vmatpush1.msra.mxu0 0.0
        %1606 = vmatprep.subr.mxu0 0.0
        %1607 = vmatpush1.msra.mxu0 0.0
        %1608 = vmatprep.subr.mxu0 0.0
        %1609 = vmatpush1.msra.mxu0 0.0
        %1610 = vmatprep.subr.mxu0 0.0
        %1611 = vmatpush1.msra.mxu0 0.0
        %1612 = vmatprep.subr.mxu0 0.0
        %1613 = vmatpush1.msra.mxu0 0.0
        %1614 = vmatprep.subr.mxu0 0.0
        %1615 = vmatpush1.msra.mxu0 0.0
        %1616 = vmatprep.subr.mxu0 0.0
        %1617 = vmatpush1.msra.mxu0 0.0
        %1618 = vmatprep.subr.mxu0 0.0
        %1619 = vmatpush1.msra.mxu0 0.0
        %1620 = vmatprep.subr.mxu0 0.0
        %1621 = vmatpush1.msra.mxu0 0.0
        %1622 = vmatprep.subr.mxu0 0.0
        %1623 = vmatpush1.msra.mxu0 0.0
        %1624 = vmatprep.subr.mxu0 0.0
        %1625 = vmatpush1.msra.mxu0 0.0
        %1626 = vmatprep.subr.mxu0 0.0
        %1627 = vmatpush1.msra.mxu0 0.0
        %1628 = vmatprep.subr.mxu0 0.0
        %1629 = vmatpush1.msra.mxu0 0.0
        %1630 = vmatprep.subr.mxu0 0.0
        %1631 = vmatpush1.msra.mxu0 0.0
        %1632 = vmatprep.subr.mxu0 0.0
        %1633 = vmatpush1.msra.mxu0 0.0
        %1634 = vmatprep.mubr.f32.mxu0 0.0
        %1635 = vmatmul.mubr.f32.gmra.mrb[0].mxu0 %v1568
        %v1636 = vpop.f32.mrb[0].mxu0
        %v1637 = vadd.f32 0.0, %v1636
        %v1638 = vpop.f32.mrb[0].mxu0
        %1639 = vdwg.mxu0
        %v1641 = vsel %vm759, %v1637, 0
        %1643 = vmatprep.subr.mxu0 0.0
        %1644 = vmatpush1.msra.mxu0 %v754
        %1645 = vmatprep.subr.mxu0 0.0
        %1646 = vmatpush1.msra.mxu0 0.0
        %1647 = vmatprep.subr.mxu0 0.0
        %1648 = vmatpush1.msra.mxu0 0.0
        %1649 = vmatprep.subr.mxu0 0.0
        %1650 = vmatpush1.msra.mxu0 0.0
        %1651 = vmatprep.subr.mxu0 0.0
        %1652 = vmatpush1.msra.mxu0 0.0
        %1653 = vmatprep.subr.mxu0 0.0
        %1654 = vmatpush1.msra.mxu0 0.0
        %1655 = vmatprep.subr.mxu0 0.0
        %1656 = vmatpush1.msra.mxu0 0.0
        %1657 = vmatprep.subr.mxu0 0.0
        %1658 = vmatpush1.msra.mxu0 0.0
        %1659 = vmatprep.subr.mxu0 0.0
        %1660 = vmatpush1.msra.mxu0 0.0
        %1661 = vmatprep.subr.mxu0 0.0
        %1662 = vmatpush1.msra.mxu0 0.0
        %1663 = vmatprep.subr.mxu0 0.0
        %1664 = vmatpush1.msra.mxu0 0.0
        %1665 = vmatprep.subr.mxu0 0.0
        %1666 = vmatpush1.msra.mxu0 0.0
        %1667 = vmatprep.subr.mxu0 0.0
        %1668 = vmatpush1.msra.mxu0 0.0
        %1669 = vmatprep.subr.mxu0 0.0
        %1670 = vmatpush1.msra.mxu0 0.0
        %1671 = vmatprep.subr.mxu0 0.0
        %1672 = vmatpush1.msra.mxu0 0.0
        %1673 = vmatprep.subr.mxu0 0.0
        %1674 = vmatpush1.msra.mxu0 0.0
        %1675 = vmatprep.subr.mxu0 0.0
        %1676 = vmatpush1.msra.mxu0 0.0
        %1677 = vmatprep.subr.mxu0 0.0
        %1678 = vmatpush1.msra.mxu0 0.0
        %1679 = vmatprep.subr.mxu0 0.0
        %1680 = vmatpush1.msra.mxu0 0.0
        %1681 = vmatprep.subr.mxu0 0.0
        %1682 = vmatpush1.msra.mxu0 0.0
        %1683 = vmatprep.subr.mxu0 0.0
        %1684 = vmatpush1.msra.mxu0 0.0
        %1685 = vmatprep.subr.mxu0 0.0
        %1686 = vmatpush1.msra.mxu0 0.0
        %1687 = vmatprep.subr.mxu0 0.0
        %1688 = vmatpush1.msra.mxu0 0.0
        %1689 = vmatprep.subr.mxu0 0.0
        %1690 = vmatpush1.msra.mxu0 0.0
        %1691 = vmatprep.subr.mxu0 0.0
        %1692 = vmatpush1.msra.mxu0 0.0
        %1693 = vmatprep.subr.mxu0 0.0
        %1694 = vmatpush1.msra.mxu0 0.0
        %1695 = vmatprep.subr.mxu0 0.0
        %1696 = vmatpush1.msra.mxu0 0.0
        %1697 = vmatprep.subr.mxu0 0.0
        %1698 = vmatpush1.msra.mxu0 0.0
        %1699 = vmatprep.subr.mxu0 0.0
        %1700 = vmatpush1.msra.mxu0 0.0
        %1701 = vmatprep.subr.mxu0 0.0
        %1702 = vmatpush1.msra.mxu0 0.0
        %1703 = vmatprep.subr.mxu0 0.0
        %1704 = vmatpush1.msra.mxu0 0.0
        %1705 = vmatprep.subr.mxu0 0.0
        %1706 = vmatpush1.msra.mxu0 0.0
        %1707 = vmatprep.mubr.f32.mxu0 0.0
        %1708 = vmatmul.mubr.f32.gmra.mrb[0].mxu0 %v1641
        %v1709 = vpop.f32.mrb[0].mxu0
        %v1710 = vadd.f32 0.0, %v1709
        %v1711 = vpop.f32.mrb[0].mxu0
        %1712 = vdwg.mxu0
        %v1713 = vadd.f32 %v1473, %v1710
        %1714 = vrot.lane.b32.xlu0 %v578, 96
        %v1715 = vpop.permute.xlu0 %1714
        %1716 = vrot.lane.b32.xlu0 %v663, 96
        %v1717 = vpop.permute.xlu0 %1716
        %v1718 = vsel %vm759, %v1715, 0
        %v1720 = vsel %vm759, %v1717, 0
        %1722 = vmatprep.subr.mxu0 0.0
        %1723 = vmatpush1.xpose.msra.mxu0 %v1720
        %1724 = vmatprep.subr.mxu0 0.0
        %1725 = vmatpush1.xpose.msra.mxu0 0.0
        %1726 = vmatprep.subr.mxu0 0.0
        %1727 = vmatpush1.xpose.msra.mxu0 0.0
        %1728 = vmatprep.subr.mxu0 0.0
        %1729 = vmatpush1.xpose.msra.mxu0 0.0
        %1730 = vmatprep.subr.mxu0 0.0
        %1731 = vmatpush1.xpose.msra.mxu0 0.0
        %1732 = vmatprep.subr.mxu0 0.0
        %1733 = vmatpush1.xpose.msra.mxu0 0.0
        %1734 = vmatprep.subr.mxu0 0.0
        %1735 = vmatpush1.xpose.msra.mxu0 0.0
        %1736 = vmatprep.subr.mxu0 0.0
        %1737 = vmatpush1.xpose.msra.mxu0 0.0
        %1738 = vmatprep.subr.mxu0 0.0
        %1739 = vmatpush1.xpose.msra.mxu0 0.0
        %1740 = vmatprep.subr.mxu0 0.0
        %1741 = vmatpush1.xpose.msra.mxu0 0.0
        %1742 = vmatprep.subr.mxu0 0.0
        %1743 = vmatpush1.xpose.msra.mxu0 0.0
        %1744 = vmatprep.subr.mxu0 0.0
        %1745 = vmatpush1.xpose.msra.mxu0 0.0
        %1746 = vmatprep.subr.mxu0 0.0
        %1747 = vmatpush1.xpose.msra.mxu0 0.0
        %1748 = vmatprep.subr.mxu0 0.0
        %1749 = vmatpush1.xpose.msra.mxu0 0.0
        %1750 = vmatprep.subr.mxu0 0.0
        %1751 = vmatpush1.xpose.msra.mxu0 0.0
        %1752 = vmatprep.subr.mxu0 0.0
        %1753 = vmatpush1.xpose.msra.mxu0 0.0
        %1754 = vmatprep.subr.mxu0 0.0
        %1755 = vmatpush1.xpose.msra.mxu0 0.0
        %1756 = vmatprep.subr.mxu0 0.0
        %1757 = vmatpush1.xpose.msra.mxu0 0.0
        %1758 = vmatprep.subr.mxu0 0.0
        %1759 = vmatpush1.xpose.msra.mxu0 0.0
        %1760 = vmatprep.subr.mxu0 0.0
        %1761 = vmatpush1.xpose.msra.mxu0 0.0
        %1762 = vmatprep.subr.mxu0 0.0
        %1763 = vmatpush1.xpose.msra.mxu0 0.0
        %1764 = vmatprep.subr.mxu0 0.0
        %1765 = vmatpush1.xpose.msra.mxu0 0.0
        %1766 = vmatprep.subr.mxu0 0.0
        %1767 = vmatpush1.xpose.msra.mxu0 0.0
        %1768 = vmatprep.subr.mxu0 0.0
        %1769 = vmatpush1.xpose.msra.mxu0 0.0
        %1770 = vmatprep.subr.mxu0 0.0
        %1771 = vmatpush1.xpose.msra.mxu0 0.0
        %1772 = vmatprep.subr.mxu0 0.0
        %1773 = vmatpush1.xpose.msra.mxu0 0.0
        %1774 = vmatprep.subr.mxu0 0.0
        %1775 = vmatpush1.xpose.msra.mxu0 0.0
        %1776 = vmatprep.subr.mxu0 0.0
        %1777 = vmatpush1.xpose.msra.mxu0 0.0
        %1778 = vmatprep.subr.mxu0 0.0
        %1779 = vmatpush1.xpose.msra.mxu0 0.0
        %1780 = vmatprep.subr.mxu0 0.0
        %1781 = vmatpush1.xpose.msra.mxu0 0.0
        %1782 = vmatprep.subr.mxu0 0.0
        %1783 = vmatpush1.xpose.msra.mxu0 0.0
        %1784 = vmatprep.subr.mxu0 0.0
        %1785 = vmatpush1.xpose.msra.mxu0 0.0
        %1786 = vmatprep.mubr.f32.mxu0 0.0
        %1787 = vmatmul.mubr.f32.gmra.mrb[0].mxu0 %v1718
        %v1788 = vpop.f32.mrb[0].mxu0
        %v1789 = vadd.f32 0.0, %v1788
        %v1790 = vpop.f32.mrb[0].mxu0
        %1791 = vdwg.mxu0
        %v1792 = vmul.f32 %v1789, 0.35355338
        %v1793 = vsel %vm759, %v1792, -inf
        %1794 = vmax.xlane.f32.xlu0 %v1793
        %v1795 = vpop.xlane.xlu0 %1794
        %v1796 = vsub.f32 %v1792, %v1795
        %v1797 = vmul.f32 %v1796, 1.442695
        %v1798 = vpow.pop %v1797
        %v1799 = vsel %vm759, %v1798, 0.0
        %1800 = vadd.xlane.f32.xlu0 %v1799
        %v1801 = vpop.xlane.xlu0 %1800
        %v1802 = vrcp.pop %v1801
        %v1803 = vmul.f32 %v1798, %v1802
        %1804 = vrot.lane.b32.xlu0 %v748, 96
        %v1805 = vpop.permute.xlu0 %1804
        %v1808 = vsel %vm759, %v1803, 0
        %1810 = vmatprep.subr.mxu0 0.0
        %1811 = vmatpush1.msra.mxu0 %v1805
        %1812 = vmatprep.subr.mxu0 0.0
        %1813 = vmatpush1.msra.mxu0 0.0
        %1814 = vmatprep.subr.mxu0 0.0
        %1815 = vmatpush1.msra.mxu0 0.0
        %1816 = vmatprep.subr.mxu0 0.0
        %1817 = vmatpush1.msra.mxu0 0.0
        %1818 = vmatprep.subr.mxu0 0.0
        %1819 = vmatpush1.msra.mxu0 0.0
        %1820 = vmatprep.subr.mxu0 0.0
        %1821 = vmatpush1.msra.mxu0 0.0
        %1822 = vmatprep.subr.mxu0 0.0
        %1823 = vmatpush1.msra.mxu0 0.0
        %1824 = vmatprep.subr.mxu0 0.0
        %1825 = vmatpush1.msra.mxu0 0.0
        %1826 = vmatprep.subr.mxu0 0.0
        %1827 = vmatpush1.msra.mxu0 0.0
        %1828 = vmatprep.subr.mxu0 0.0
        %1829 = vmatpush1.msra.mxu0 0.0
        %1830 = vmatprep.subr.mxu0 0.0
        %1831 = vmatpush1.msra.mxu0 0.0
        %1832 = vmatprep.subr.mxu0 0.0
        %1833 = vmatpush1.msra.mxu0 0.0
        %1834 = vmatprep.subr.mxu0 0.0
        %1835 = vmatpush1.msra.mxu0 0.0
        %1836 = vmatprep.subr.mxu0 0.0
        %1837 = vmatpush1.msra.mxu0 0.0
        %1838 = vmatprep.subr.mxu0 0.0
        %1839 = vmatpush1.msra.mxu0 0.0
        %1840 = vmatprep.subr.mxu0 0.0
        %1841 = vmatpush1.msra.mxu0 0.0
        %1842 = vmatprep.subr.mxu0 0.0
        %1843 = vmatpush1.msra.mxu0 0.0
        %1844 = vmatprep.subr.mxu0 0.0
        %1845 = vmatpush1.msra.mxu0 0.0
        %1846 = vmatprep.subr.mxu0 0.0
        %1847 = vmatpush1.msra.mxu0 0.0
        %1848 = vmatprep.subr.mxu0 0.0
        %1849 = vmatpush1.msra.mxu0 0.0
        %1850 = vmatprep.subr.mxu0 0.0
        %1851 = vmatpush1.msra.mxu0 0.0
        %1852 = vmatprep.subr.mxu0 0.0
        %1853 = vmatpush1.msra.mxu0 0.0
        %1854 = vmatprep.subr.mxu0 0.0
        %1855 = vmatpush1.msra.mxu0 0.0
        %1856 = vmatprep.subr.mxu0 0.0
        %1857 = vmatpush1.msra.mxu0 0.0
        %1858 = vmatprep.subr.mxu0 0.0
        %1859 = vmatpush1.msra.mxu0 0.0
        %1860 = vmatprep.subr.mxu0 0.0
        %1861 = vmatpush1.msra.mxu0 0.0
        %1862 = vmatprep.subr.mxu0 0.0
        %1863 = vmatpush1.msra.mxu0 0.0
        %1864 = vmatprep.subr.mxu0 0.0
        %1865 = vmatpush1.msra.mxu0 0.0
        %1866 = vmatprep.subr.mxu0 0.0
        %1867 = vmatpush1.msra.mxu0 0.0
        %1868 = vmatprep.subr.mxu0 0.0
        %1869 = vmatpush1.msra.mxu0 0.0
        %1870 = vmatprep.subr.mxu0 0.0
        %1871 = vmatpush1.msra.mxu0 0.0
        %1872 = vmatprep.subr.mxu0 0.0
        %1873 = vmatpush1.msra.mxu0 0.0
        %1874 = vmatprep.mubr.f32.mxu0 0.0
        %1875 = vmatmul.mubr.f32.gmra.mrb[0].mxu0 %v1808
        %v1876 = vpop.f32.mrb[0].mxu0
        %v1877 = vadd.f32 0.0, %v1876
        %v1878 = vpop.f32.mrb[0].mxu0
        %1879 = vdwg.mxu0
        %v1881 = vsel %vm759, %v1877, 0
        %1883 = vmatprep.subr.mxu0 0.0
        %1884 = vmatpush1.msra.mxu0 %v755
        %1885 = vmatprep.subr.mxu0 0.0
        %1886 = vmatpush1.msra.mxu0 0.0
        %1887 = vmatprep.subr.mxu0 0.0
        %1888 = vmatpush1.msra.mxu0 0.0
        %1889 = vmatprep.subr.mxu0 0.0
        %1890 = vmatpush1.msra.mxu0 0.0
        %1891 = vmatprep.subr.mxu0 0.0
        %1892 = vmatpush1.msra.mxu0 0.0
        %1893 = vmatprep.subr.mxu0 0.0
        %1894 = vmatpush1.msra.mxu0 0.0
        %1895 = vmatprep.subr.mxu0 0.0
        %1896 = vmatpush1.msra.mxu0 0.0
        %1897 = vmatprep.subr.mxu0 0.0
        %1898 = vmatpush1.msra.mxu0 0.0
        %1899 = vmatprep.subr.mxu0 0.0
        %1900 = vmatpush1.msra.mxu0 0.0
        %1901 = vmatprep.subr.mxu0 0.0
        %1902 = vmatpush1.msra.mxu0 0.0
        %1903 = vmatprep.subr.mxu0 0.0
        %1904 = vmatpush1.msra.mxu0 0.0
        %1905 = vmatprep.subr.mxu0 0.0
        %1906 = vmatpush1.msra.mxu0 0.0
        %1907 = vmatprep.subr.mxu0 0.0
        %1908 = vmatpush1.msra.mxu0 0.0
        %1909 = vmatprep.subr.mxu0 0.0
        %1910 = vmatpush1.msra.mxu0 0.0
        %1911 = vmatprep.subr.mxu0 0.0
        %1912 = vmatpush1.msra.mxu0 0.0
        %1913 = vmatprep.subr.mxu0 0.0
        %1914 = vmatpush1.msra.mxu0 0.0
        %1915 = vmatprep.subr.mxu0 0.0
        %1916 = vmatpush1.msra.mxu0 0.0
        %1917 = vmatprep.subr.mxu0 0.0
        %1918 = vmatpush1.msra.mxu0 0.0
        %1919 = vmatprep.subr.mxu0 0.0
        %1920 = vmatpush1.msra.mxu0 0.0
        %1921 = vmatprep.subr.mxu0 0.0
        %1922 = vmatpush1.msra.mxu0 0.0
        %1923 = vmatprep.subr.mxu0 0.0
        %1924 = vmatpush1.msra.mxu0 0.0
        %1925 = vmatprep.subr.mxu0 0.0
        %1926 = vmatpush1.msra.mxu0 0.0
        %1927 = vmatprep.subr.mxu0 0.0
        %1928 = vmatpush1.msra.mxu0 0.0
        %1929 = vmatprep.subr.mxu0 0.0
        %1930 = vmatpush1.msra.mxu0 0.0
        %1931 = vmatprep.subr.mxu0 0.0
        %1932 = vmatpush1.msra.mxu0 0.0
        %1933 = vmatprep.subr.mxu0 0.0
        %1934 = vmatpush1.msra.mxu0 0.0
        %1935 = vmatprep.subr.mxu0 0.0
        %1936 = vmatpush1.msra.mxu0 0.0
        %1937 = vmatprep.subr.mxu0 0.0
        %1938 = vmatpush1.msra.mxu0 0.0
        %1939 = vmatprep.subr.mxu0 0.0
        %1940 = vmatpush1.msra.mxu0 0.0
        %1941 = vmatprep.subr.mxu0 0.0
        %1942 = vmatpush1.msra.mxu0 0.0
        %1943 = vmatprep.subr.mxu0 0.0
        %1944 = vmatpush1.msra.mxu0 0.0
        %1945 = vmatprep.subr.mxu0 0.0
        %1946 = vmatpush1.msra.mxu0 0.0
        %1947 = vmatprep.mubr.f32.mxu0 0.0
        %1948 = vmatmul.mubr.f32.gmra.mrb[0].mxu0 %v1881
        %v1949 = vpop.f32.mrb[0].mxu0
        %v1950 = vadd.f32 0.0, %v1949
        %v1951 = vpop.f32.mrb[0].mxu0
        %1952 = vdwg.mxu0
        %v1953 = vadd.f32 %v1713, %v1950
        %1954 = vrot.lane.b32.xlu0 %v578, 88
        %v1955 = vpop.permute.xlu0 %1954
        %1956 = vrot.lane.b32.xlu0 %v663, 88
        %v1957 = vpop.permute.xlu0 %1956
        %v1958 = vsel %vm759, %v1955, 0
        %v1960 = vsel %vm759, %v1957, 0
        %1962 = vmatprep.subr.mxu0 0.0
        %1963 = vmatpush1.xpose.msra.mxu0 %v1960
        %1964 = vmatprep.subr.mxu0 0.0
        %1965 = vmatpush1.xpose.msra.mxu0 0.0
        %1966 = vmatprep.subr.mxu0 0.0
        %1967 = vmatpush1.xpose.msra.mxu0 0.0
        %1968 = vmatprep.subr.mxu0 0.0
        %1969 = vmatpush1.xpose.msra.mxu0 0.0
        %1970 = vmatprep.subr.mxu0 0.0
        %1971 = vmatpush1.xpose.msra.mxu0 0.0
        %1972 = vmatprep.subr.mxu0 0.0
        %1973 = vmatpush1.xpose.msra.mxu0 0.0
        %1974 = vmatprep.subr.mxu0 0.0
        %1975 = vmatpush1.xpose.msra.mxu0 0.0
        %1976 = vmatprep.subr.mxu0 0.0
        %1977 = vmatpush1.xpose.msra.mxu0 0.0
        %1978 = vmatprep.subr.mxu0 0.0
        %1979 = vmatpush1.xpose.msra.mxu0 0.0
        %1980 = vmatprep.subr.mxu0 0.0
        %1981 = vmatpush1.xpose.msra.mxu0 0.0
        %1982 = vmatprep.subr.mxu0 0.0
        %1983 = vmatpush1.xpose.msra.mxu0 0.0
        %1984 = vmatprep.subr.mxu0 0.0
        %1985 = vmatpush1.xpose.msra.mxu0 0.0
        %1986 = vmatprep.subr.mxu0 0.0
        %1987 = vmatpush1.xpose.msra.mxu0 0.0
        %1988 = vmatprep.subr.mxu0 0.0
        %1989 = vmatpush1.xpose.msra.mxu0 0.0
        %1990 = vmatprep.subr.mxu0 0.0
        %1991 = vmatpush1.xpose.msra.mxu0 0.0
        %1992 = vmatprep.subr.mxu0 0.0
        %1993 = vmatpush1.xpose.msra.mxu0 0.0
        %1994 = vmatprep.subr.mxu0 0.0
        %1995 = vmatpush1.xpose.msra.mxu0 0.0
        %1996 = vmatprep.subr.mxu0 0.0
        %1997 = vmatpush1.xpose.msra.mxu0 0.0
        %1998 = vmatprep.subr.mxu0 0.0
        %1999 = vmatpush1.xpose.msra.mxu0 0.0
        %2000 = vmatprep.subr.mxu0 0.0
        %2001 = vmatpush1.xpose.msra.mxu0 0.0
        %2002 = vmatprep.subr.mxu0 0.0
        %2003 = vmatpush1.xpose.msra.mxu0 0.0
        %2004 = vmatprep.subr.mxu0 0.0
        %2005 = vmatpush1.xpose.msra.mxu0 0.0
        %2006 = vmatprep.subr.mxu0 0.0
        %2007 = vmatpush1.xpose.msra.mxu0 0.0
        %2008 = vmatprep.subr.mxu0 0.0
        %2009 = vmatpush1.xpose.msra.mxu0 0.0
        %2010 = vmatprep.subr.mxu0 0.0
        %2011 = vmatpush1.xpose.msra.mxu0 0.0
        %2012 = vmatprep.subr.mxu0 0.0
        %2013 = vmatpush1.xpose.msra.mxu0 0.0
        %2014 = vmatprep.subr.mxu0 0.0
        %2015 = vmatpush1.xpose.msra.mxu0 0.0
        %2016 = vmatprep.subr.mxu0 0.0
        %2017 = vmatpush1.xpose.msra.mxu0 0.0
        %2018 = vmatprep.subr.mxu0 0.0
        %2019 = vmatpush1.xpose.msra.mxu0 0.0
        %2020 = vmatprep.subr.mxu0 0.0
        %2021 = vmatpush1.xpose.msra.mxu0 0.0
        %2022 = vmatprep.subr.mxu0 0.0
        %2023 = vmatpush1.xpose.msra.mxu0 0.0
        %2024 = vmatprep.subr.mxu0 0.0
        %2025 = vmatpush1.xpose.msra.mxu0 0.0
        %2026 = vmatprep.mubr.f32.mxu0 0.0
        %2027 = vmatmul.mubr.f32.gmra.mrb[0].mxu0 %v1958
        %v2028 = vpop.f32.mrb[0].mxu0
        %v2029 = vadd.f32 0.0, %v2028
        %v2030 = vpop.f32.mrb[0].mxu0
        %2031 = vdwg.mxu0
        %v2032 = vmul.f32 %v2029, 0.35355338
        %v2033 = vsel %vm759, %v2032, -inf
        %2034 = vmax.xlane.f32.xlu0 %v2033
        %v2035 = vpop.xlane.xlu0 %2034
        %v2036 = vsub.f32 %v2032, %v2035
        %v2037 = vmul.f32 %v2036, 1.442695
        %v2038 = vpow.pop %v2037
        %v2039 = vsel %vm759, %v2038, 0.0
        %2040 = vadd.xlane.f32.xlu0 %v2039
        %v2041 = vpop.xlane.xlu0 %2040
        %v2042 = vrcp.pop %v2041
        %v2043 = vmul.f32 %v2038, %v2042
        %2044 = vrot.lane.b32.xlu0 %v748, 88
        %v2045 = vpop.permute.xlu0 %2044
        %v2048 = vsel %vm759, %v2043, 0
        %2050 = vmatprep.subr.mxu0 0.0
        %2051 = vmatpush1.msra.mxu0 %v2045
        %2052 = vmatprep.subr.mxu0 0.0
        %2053 = vmatpush1.msra.mxu0 0.0
        %2054 = vmatprep.subr.mxu0 0.0
        %2055 = vmatpush1.msra.mxu0 0.0
        %2056 = vmatprep.subr.mxu0 0.0
        %2057 = vmatpush1.msra.mxu0 0.0
        %2058 = vmatprep.subr.mxu0 0.0
        %2059 = vmatpush1.msra.mxu0 0.0
        %2060 = vmatprep.subr.mxu0 0.0
        %2061 = vmatpush1.msra.mxu0 0.0
        %2062 = vmatprep.subr.mxu0 0.0
        %2063 = vmatpush1.msra.mxu0 0.0
        %2064 = vmatprep.subr.mxu0 0.0
        %2065 = vmatpush1.msra.mxu0 0.0
        %2066 = vmatprep.subr.mxu0 0.0
        %2067 = vmatpush1.msra.mxu0 0.0
        %2068 = vmatprep.subr.mxu0 0.0
        %2069 = vmatpush1.msra.mxu0 0.0
        %2070 = vmatprep.subr.mxu0 0.0
        %2071 = vmatpush1.msra.mxu0 0.0
        %2072 = vmatprep.subr.mxu0 0.0
        %2073 = vmatpush1.msra.mxu0 0.0
        %2074 = vmatprep.subr.mxu0 0.0
        %2075 = vmatpush1.msra.mxu0 0.0
        %2076 = vmatprep.subr.mxu0 0.0
        %2077 = vmatpush1.msra.mxu0 0.0
        %2078 = vmatprep.subr.mxu0 0.0
        %2079 = vmatpush1.msra.mxu0 0.0
        %2080 = vmatprep.subr.mxu0 0.0
        %2081 = vmatpush1.msra.mxu0 0.0
        %2082 = vmatprep.subr.mxu0 0.0
        %2083 = vmatpush1.msra.mxu0 0.0
        %2084 = vmatprep.subr.mxu0 0.0
        %2085 = vmatpush1.msra.mxu0 0.0
        %2086 = vmatprep.subr.mxu0 0.0
        %2087 = vmatpush1.msra.mxu0 0.0
        %2088 = vmatprep.subr.mxu0 0.0
        %2089 = vmatpush1.msra.mxu0 0.0
        %2090 = vmatprep.subr.mxu0 0.0
        %2091 = vmatpush1.msra.mxu0 0.0
        %2092 = vmatprep.subr.mxu0 0.0
        %2093 = vmatpush1.msra.mxu0 0.0
        %2094 = vmatprep.subr.mxu0 0.0
        %2095 = vmatpush1.msra.mxu0 0.0
        %2096 = vmatprep.subr.mxu0 0.0
        %2097 = vmatpush1.msra.mxu0 0.0
        %2098 = vmatprep.subr.mxu0 0.0
        %2099 = vmatpush1.msra.mxu0 0.0
        %2100 = vmatprep.subr.mxu0 0.0
        %2101 = vmatpush1.msra.mxu0 0.0
        %2102 = vmatprep.subr.mxu0 0.0
        %2103 = vmatpush1.msra.mxu0 0.0
        %2104 = vmatprep.subr.mxu0 0.0
        %2105 = vmatpush1.msra.mxu0 0.0
        %2106 = vmatprep.subr.mxu0 0.0
        %2107 = vmatpush1.msra.mxu0 0.0
        %2108 = vmatprep.subr.mxu0 0.0
        %2109 = vmatpush1.msra.mxu0 0.0
        %2110 = vmatprep.subr.mxu0 0.0
        %2111 = vmatpush1.msra.mxu0 0.0
        %2112 = vmatprep.subr.mxu0 0.0
        %2113 = vmatpush1.msra.mxu0 0.0
        %2114 = vmatprep.mubr.f32.mxu0 0.0
        %2115 = vmatmul.mubr.f32.gmra.mrb[0].mxu0 %v2048
        %v2116 = vpop.f32.mrb[0].mxu0
        %v2117 = vadd.f32 0.0, %v2116
        %v2118 = vpop.f32.mrb[0].mxu0
        %2119 = vdwg.mxu0
        %v2121 = vsel %vm759, %v2117, 0
        %2123 = vmatprep.subr.mxu0 0.0
        %2124 = vmatpush1.msra.mxu0 %v756
        %2125 = vmatprep.subr.mxu0 0.0
        %2126 = vmatpush1.msra.mxu0 0.0
        %2127 = vmatprep.subr.mxu0 0.0
        %2128 = vmatpush1.msra.mxu0 0.0
        %2129 = vmatprep.subr.mxu0 0.0
        %2130 = vmatpush1.msra.mxu0 0.0
        %2131 = vmatprep.subr.mxu0 0.0
        %2132 = vmatpush1.msra.mxu0 0.0
        %2133 = vmatprep.subr.mxu0 0.0
        %2134 = vmatpush1.msra.mxu0 0.0
        %2135 = vmatprep.subr.mxu0 0.0
        %2136 = vmatpush1.msra.mxu0 0.0
        %2137 = vmatprep.subr.mxu0 0.0
        %2138 = vmatpush1.msra.mxu0 0.0
        %2139 = vmatprep.subr.mxu0 0.0
        %2140 = vmatpush1.msra.mxu0 0.0
        %2141 = vmatprep.subr.mxu0 0.0
        %2142 = vmatpush1.msra.mxu0 0.0
        %2143 = vmatprep.subr.mxu0 0.0
        %2144 = vmatpush1.msra.mxu0 0.0
        %2145 = vmatprep.subr.mxu0 0.0
        %2146 = vmatpush1.msra.mxu0 0.0
        %2147 = vmatprep.subr.mxu0 0.0
        %2148 = vmatpush1.msra.mxu0 0.0
        %2149 = vmatprep.subr.mxu0 0.0
        %2150 = vmatpush1.msra.mxu0 0.0
        %2151 = vmatprep.subr.mxu0 0.0
        %2152 = vmatpush1.msra.mxu0 0.0
        %2153 = vmatprep.subr.mxu0 0.0
        %2154 = vmatpush1.msra.mxu0 0.0
        %2155 = vmatprep.subr.mxu0 0.0
        %2156 = vmatpush1.msra.mxu0 0.0
        %2157 = vmatprep.subr.mxu0 0.0
        %2158 = vmatpush1.msra.mxu0 0.0
        %2159 = vmatprep.subr.mxu0 0.0
        %2160 = vmatpush1.msra.mxu0 0.0
        %2161 = vmatprep.subr.mxu0 0.0
        %2162 = vmatpush1.msra.mxu0 0.0
        %2163 = vmatprep.subr.mxu0 0.0
        %2164 = vmatpush1.msra.mxu0 0.0
        %2165 = vmatprep.subr.mxu0 0.0
        %2166 = vmatpush1.msra.mxu0 0.0
        %2167 = vmatprep.subr.mxu0 0.0
        %2168 = vmatpush1.msra.mxu0 0.0
        %2169 = vmatprep.subr.mxu0 0.0
        %2170 = vmatpush1.msra.mxu0 0.0
        %2171 = vmatprep.subr.mxu0 0.0
        %2172 = vmatpush1.msra.mxu0 0.0
        %2173 = vmatprep.subr.mxu0 0.0
        %2174 = vmatpush1.msra.mxu0 0.0
        %2175 = vmatprep.subr.mxu0 0.0
        %2176 = vmatpush1.msra.mxu0 0.0
        %2177 = vmatprep.subr.mxu0 0.0
        %2178 = vmatpush1.msra.mxu0 0.0
        %2179 = vmatprep.subr.mxu0 0.0
        %2180 = vmatpush1.msra.mxu0 0.0
        %2181 = vmatprep.subr.mxu0 0.0
        %2182 = vmatpush1.msra.mxu0 0.0
        %2183 = vmatprep.subr.mxu0 0.0
        %2184 = vmatpush1.msra.mxu0 0.0
        %2185 = vmatprep.subr.mxu0 0.0
        %2186 = vmatpush1.msra.mxu0 0.0
        %2187 = vmatprep.mubr.f32.mxu0 0.0
        %2188 = vmatmul.mubr.f32.gmra.mrb[0].mxu0 %v2121
        %v2189 = vpop.f32.mrb[0].mxu0
        %v2190 = vadd.f32 0.0, %v2189
        %v2191 = vpop.f32.mrb[0].mxu0
        %2192 = vdwg.mxu0
        %v2193 = vadd.f32 %v1953, %v2190
        %2194 = vrot.lane.b32.xlu0 %v578, 80
        %v2195 = vpop.permute.xlu0 %2194
        %2196 = vrot.lane.b32.xlu0 %v663, 80
        %v2197 = vpop.permute.xlu0 %2196
        %v2198 = vsel %vm759, %v2195, 0
        %v2200 = vsel %vm759, %v2197, 0
        %2202 = vmatprep.subr.mxu0 0.0
        %2203 = vmatpush1.xpose.msra.mxu0 %v2200
        %2204 = vmatprep.subr.mxu0 0.0
        %2205 = vmatpush1.xpose.msra.mxu0 0.0
        %2206 = vmatprep.subr.mxu0 0.0
        %2207 = vmatpush1.xpose.msra.mxu0 0.0
        %2208 = vmatprep.subr.mxu0 0.0
        %2209 = vmatpush1.xpose.msra.mxu0 0.0
        %2210 = vmatprep.subr.mxu0 0.0
        %2211 = vmatpush1.xpose.msra.mxu0 0.0
        %2212 = vmatprep.subr.mxu0 0.0
        %2213 = vmatpush1.xpose.msra.mxu0 0.0
        %2214 = vmatprep.subr.mxu0 0.0
        %2215 = vmatpush1.xpose.msra.mxu0 0.0
        %2216 = vmatprep.subr.mxu0 0.0
        %2217 = vmatpush1.xpose.msra.mxu0 0.0
        %2218 = vmatprep.subr.mxu0 0.0
        %2219 = vmatpush1.xpose.msra.mxu0 0.0
        %2220 = vmatprep.subr.mxu0 0.0
        %2221 = vmatpush1.xpose.msra.mxu0 0.0
        %2222 = vmatprep.subr.mxu0 0.0
        %2223 = vmatpush1.xpose.msra.mxu0 0.0
        %2224 = vmatprep.subr.mxu0 0.0
        %2225 = vmatpush1.xpose.msra.mxu0 0.0
        %2226 = vmatprep.subr.mxu0 0.0
        %2227 = vmatpush1.xpose.msra.mxu0 0.0
        %2228 = vmatprep.subr.mxu0 0.0
        %2229 = vmatpush1.xpose.msra.mxu0 0.0
        %2230 = vmatprep.subr.mxu0 0.0
        %2231 = vmatpush1.xpose.msra.mxu0 0.0
        %2232 = vmatprep.subr.mxu0 0.0
        %2233 = vmatpush1.xpose.msra.mxu0 0.0
        %2234 = vmatprep.subr.mxu0 0.0
        %2235 = vmatpush1.xpose.msra.mxu0 0.0
        %2236 = vmatprep.subr.mxu0 0.0
        %2237 = vmatpush1.xpose.msra.mxu0 0.0
        %2238 = vmatprep.subr.mxu0 0.0
        %2239 = vmatpush1.xpose.msra.mxu0 0.0
        %2240 = vmatprep.subr.mxu0 0.0
        %2241 = vmatpush1.xpose.msra.mxu0 0.0
        %2242 = vmatprep.subr.mxu0 0.0
        %2243 = vmatpush1.xpose.msra.mxu0 0.0
        %2244 = vmatprep.subr.mxu0 0.0
        %2245 = vmatpush1.xpose.msra.mxu0 0.0
        %2246 = vmatprep.subr.mxu0 0.0
        %2247 = vmatpush1.xpose.msra.mxu0 0.0
        %2248 = vmatprep.subr.mxu0 0.0
        %2249 = vmatpush1.xpose.msra.mxu0 0.0
        %2250 = vmatprep.subr.mxu0 0.0
        %2251 = vmatpush1.xpose.msra.mxu0 0.0
        %2252 = vmatprep.subr.mxu0 0.0
        %2253 = vmatpush1.xpose.msra.mxu0 0.0
        %2254 = vmatprep.subr.mxu0 0.0
        %2255 = vmatpush1.xpose.msra.mxu0 0.0
        %2256 = vmatprep.subr.mxu0 0.0
        %2257 = vmatpush1.xpose.msra.mxu0 0.0
        %2258 = vmatprep.subr.mxu0 0.0
        %2259 = vmatpush1.xpose.msra.mxu0 0.0
        %2260 = vmatprep.subr.mxu0 0.0
        %2261 = vmatpush1.xpose.msra.mxu0 0.0
        %2262 = vmatprep.subr.mxu0 0.0
        %2263 = vmatpush1.xpose.msra.mxu0 0.0
        %2264 = vmatprep.subr.mxu0 0.0
        %2265 = vmatpush1.xpose.msra.mxu0 0.0
        %2266 = vmatprep.mubr.f32.mxu0 0.0
        %2267 = vmatmul.mubr.f32.gmra.mrb[0].mxu0 %v2198
        %v2268 = vpop.f32.mrb[0].mxu0
        %v2269 = vadd.f32 0.0, %v2268
        %v2270 = vpop.f32.mrb[0].mxu0
        %2271 = vdwg.mxu0
        %v2272 = vmul.f32 %v2269, 0.35355338
        %v2273 = vsel %vm759, %v2272, -inf
        %2274 = vmax.xlane.f32.xlu0 %v2273
        %v2275 = vpop.xlane.xlu0 %2274
        %v2276 = vsub.f32 %v2272, %v2275
        %v2277 = vmul.f32 %v2276, 1.442695
        %v2278 = vpow.pop %v2277
        %v2279 = vsel %vm759, %v2278, 0.0
        %2280 = vadd.xlane.f32.xlu0 %v2279
        %v2281 = vpop.xlane.xlu0 %2280
        %v2282 = vrcp.pop %v2281
        %v2283 = vmul.f32 %v2278, %v2282
        %2284 = vrot.lane.b32.xlu0 %v748, 80
        %v2285 = vpop.permute.xlu0 %2284
        %v2288 = vsel %vm759, %v2283, 0
        %2290 = vmatprep.subr.mxu0 0.0
        %2291 = vmatpush1.msra.mxu0 %v2285
        %2292 = vmatprep.subr.mxu0 0.0
        %2293 = vmatpush1.msra.mxu0 0.0
        %2294 = vmatprep.subr.mxu0 0.0
        %2295 = vmatpush1.msra.mxu0 0.0
        %2296 = vmatprep.subr.mxu0 0.0
        %2297 = vmatpush1.msra.mxu0 0.0
        %2298 = vmatprep.subr.mxu0 0.0
        %2299 = vmatpush1.msra.mxu0 0.0
        %2300 = vmatprep.subr.mxu0 0.0
        %2301 = vmatpush1.msra.mxu0 0.0
        %2302 = vmatprep.subr.mxu0 0.0
        %2303 = vmatpush1.msra.mxu0 0.0
        %2304 = vmatprep.subr.mxu0 0.0
        %2305 = vmatpush1.msra.mxu0 0.0
        %2306 = vmatprep.subr.mxu0 0.0
        %2307 = vmatpush1.msra.mxu0 0.0
        %2308 = vmatprep.subr.mxu0 0.0
        %2309 = vmatpush1.msra.mxu0 0.0
        %2310 = vmatprep.subr.mxu0 0.0
        %2311 = vmatpush1.msra.mxu0 0.0
        %2312 = vmatprep.subr.mxu0 0.0
        %2313 = vmatpush1.msra.mxu0 0.0
        %2314 = vmatprep.subr.mxu0 0.0
        %2315 = vmatpush1.msra.mxu0 0.0
        %2316 = vmatprep.subr.mxu0 0.0
        %2317 = vmatpush1.msra.mxu0 0.0
        %2318 = vmatprep.subr.mxu0 0.0
        %2319 = vmatpush1.msra.mxu0 0.0
        %2320 = vmatprep.subr.mxu0 0.0
        %2321 = vmatpush1.msra.mxu0 0.0
        %2322 = vmatprep.subr.mxu0 0.0
        %2323 = vmatpush1.msra.mxu0 0.0
        %2324 = vmatprep.subr.mxu0 0.0
        %2325 = vmatpush1.msra.mxu0 0.0
        %2326 = vmatprep.subr.mxu0 0.0
        %2327 = vmatpush1.msra.mxu0 0.0
        %2328 = vmatprep.subr.mxu0 0.0
        %2329 = vmatpush1.msra.mxu0 0.0
        %2330 = vmatprep.subr.mxu0 0.0
        %2331 = vmatpush1.msra.mxu0 0.0
        %2332 = vmatprep.subr.mxu0 0.0
        %2333 = vmatpush1.msra.mxu0 0.0
        %2334 = vmatprep.subr.mxu0 0.0
        %2335 = vmatpush1.msra.mxu0 0.0
        %2336 = vmatprep.subr.mxu0 0.0
        %2337 = vmatpush1.msra.mxu0 0.0
        %2338 = vmatprep.subr.mxu0 0.0
        %2339 = vmatpush1.msra.mxu0 0.0
        %2340 = vmatprep.subr.mxu0 0.0
        %2341 = vmatpush1.msra.mxu0 0.0
        %2342 = vmatprep.subr.mxu0 0.0
        %2343 = vmatpush1.msra.mxu0 0.0
        %2344 = vmatprep.subr.mxu0 0.0
        %2345 = vmatpush1.msra.mxu0 0.0
        %2346 = vmatprep.subr.mxu0 0.0
        %2347 = vmatpush1.msra.mxu0 0.0
        %2348 = vmatprep.subr.mxu0 0.0
        %2349 = vmatpush1.msra.mxu0 0.0
        %2350 = vmatprep.subr.mxu0 0.0
        %2351 = vmatpush1.msra.mxu0 0.0
        %2352 = vmatprep.subr.mxu0 0.0
        %2353 = vmatpush1.msra.mxu0 0.0
        %2354 = vmatprep.mubr.f32.mxu0 0.0
        %2355 = vmatmul.mubr.f32.gmra.mrb[0].mxu0 %v2288
        %v2356 = vpop.f32.mrb[0].mxu0
        %v2357 = vadd.f32 0.0, %v2356
        %v2358 = vpop.f32.mrb[0].mxu0
        %2359 = vdwg.mxu0
        %v2361 = vsel %vm759, %v2357, 0
        %2363 = vmatprep.subr.mxu0 0.0
        %2364 = vmatpush1.msra.mxu0 %v757
        %2365 = vmatprep.subr.mxu0 0.0
        %2366 = vmatpush1.msra.mxu0 0.0
        %2367 = vmatprep.subr.mxu0 0.0
        %2368 = vmatpush1.msra.mxu0 0.0
        %2369 = vmatprep.subr.mxu0 0.0
        %2370 = vmatpush1.msra.mxu0 0.0
        %2371 = vmatprep.subr.mxu0 0.0
        %2372 = vmatpush1.msra.mxu0 0.0
        %2373 = vmatprep.subr.mxu0 0.0
        %2374 = vmatpush1.msra.mxu0 0.0
        %2375 = vmatprep.subr.mxu0 0.0
        %2376 = vmatpush1.msra.mxu0 0.0
        %2377 = vmatprep.subr.mxu0 0.0
        %2378 = vmatpush1.msra.mxu0 0.0
        %2379 = vmatprep.subr.mxu0 0.0
        %2380 = vmatpush1.msra.mxu0 0.0
        %2381 = vmatprep.subr.mxu0 0.0
        %2382 = vmatpush1.msra.mxu0 0.0
        %2383 = vmatprep.subr.mxu0 0.0
        %2384 = vmatpush1.msra.mxu0 0.0
        %2385 = vmatprep.subr.mxu0 0.0
        %2386 = vmatpush1.msra.mxu0 0.0
        %2387 = vmatprep.subr.mxu0 0.0
        %2388 = vmatpush1.msra.mxu0 0.0
        %2389 = vmatprep.subr.mxu0 0.0
        %2390 = vmatpush1.msra.mxu0 0.0
        %2391 = vmatprep.subr.mxu0 0.0
        %2392 = vmatpush1.msra.mxu0 0.0
        %2393 = vmatprep.subr.mxu0 0.0
        %2394 = vmatpush1.msra.mxu0 0.0
        %2395 = vmatprep.subr.mxu0 0.0
        %2396 = vmatpush1.msra.mxu0 0.0
        %2397 = vmatprep.subr.mxu0 0.0
        %2398 = vmatpush1.msra.mxu0 0.0
        %2399 = vmatprep.subr.mxu0 0.0
        %2400 = vmatpush1.msra.mxu0 0.0
        %2401 = vmatprep.subr.mxu0 0.0
        %2402 = vmatpush1.msra.mxu0 0.0
        %2403 = vmatprep.subr.mxu0 0.0
        %2404 = vmatpush1.msra.mxu0 0.0
        %2405 = vmatprep.subr.mxu0 0.0
        %2406 = vmatpush1.msra.mxu0 0.0
        %2407 = vmatprep.subr.mxu0 0.0
        %2408 = vmatpush1.msra.mxu0 0.0
        %2409 = vmatprep.subr.mxu0 0.0
        %2410 = vmatpush1.msra.mxu0 0.0
        %2411 = vmatprep.subr.mxu0 0.0
        %2412 = vmatpush1.msra.mxu0 0.0
        %2413 = vmatprep.subr.mxu0 0.0
        %2414 = vmatpush1.msra.mxu0 0.0
        %2415 = vmatprep.subr.mxu0 0.0
        %2416 = vmatpush1.msra.mxu0 0.0
        %2417 = vmatprep.subr.mxu0 0.0
        %2418 = vmatpush1.msra.mxu0 0.0
        %2419 = vmatprep.subr.mxu0 0.0
        %2420 = vmatpush1.msra.mxu0 0.0
        %2421 = vmatprep.subr.mxu0 0.0
        %2422 = vmatpush1.msra.mxu0 0.0
        %2423 = vmatprep.subr.mxu0 0.0
        %2424 = vmatpush1.msra.mxu0 0.0
        %2425 = vmatprep.subr.mxu0 0.0
        %2426 = vmatpush1.msra.mxu0 0.0
        %2427 = vmatprep.mubr.f32.mxu0 0.0
        %2428 = vmatmul.mubr.f32.gmra.mrb[0].mxu0 %v2361
        %v2429 = vpop.f32.mrb[0].mxu0
        %v2430 = vadd.f32 0.0, %v2429
        %v2431 = vpop.f32.mrb[0].mxu0
        %2432 = vdwg.mxu0
        %v2433 = vadd.f32 %v2193, %v2430
        %2434 = vrot.lane.b32.xlu0 %v578, 72
        %v2435 = vpop.permute.xlu0 %2434
        %2436 = vrot.lane.b32.xlu0 %v663, 72
        %v2437 = vpop.permute.xlu0 %2436
        %v2438 = vsel %vm759, %v2435, 0
        %v2440 = vsel %vm759, %v2437, 0
        %2442 = vmatprep.subr.mxu0 0.0
        %2443 = vmatpush1.xpose.msra.mxu0 %v2440
        %2444 = vmatprep.subr.mxu0 0.0
        %2445 = vmatpush1.xpose.msra.mxu0 0.0
        %2446 = vmatprep.subr.mxu0 0.0
        %2447 = vmatpush1.xpose.msra.mxu0 0.0
        %2448 = vmatprep.subr.mxu0 0.0
        %2449 = vmatpush1.xpose.msra.mxu0 0.0
        %2450 = vmatprep.subr.mxu0 0.0
        %2451 = vmatpush1.xpose.msra.mxu0 0.0
        %2452 = vmatprep.subr.mxu0 0.0
        %2453 = vmatpush1.xpose.msra.mxu0 0.0
        %2454 = vmatprep.subr.mxu0 0.0
        %2455 = vmatpush1.xpose.msra.mxu0 0.0
        %2456 = vmatprep.subr.mxu0 0.0
        %2457 = vmatpush1.xpose.msra.mxu0 0.0
        %2458 = vmatprep.subr.mxu0 0.0
        %2459 = vmatpush1.xpose.msra.mxu0 0.0
        %2460 = vmatprep.subr.mxu0 0.0
        %2461 = vmatpush1.xpose.msra.mxu0 0.0
        %2462 = vmatprep.subr.mxu0 0.0
        %2463 = vmatpush1.xpose.msra.mxu0 0.0
        %2464 = vmatprep.subr.mxu0 0.0
        %2465 = vmatpush1.xpose.msra.mxu0 0.0
        %2466 = vmatprep.subr.mxu0 0.0
        %2467 = vmatpush1.xpose.msra.mxu0 0.0
        %2468 = vmatprep.subr.mxu0 0.0
        %2469 = vmatpush1.xpose.msra.mxu0 0.0
        %2470 = vmatprep.subr.mxu0 0.0
        %2471 = vmatpush1.xpose.msra.mxu0 0.0
        %2472 = vmatprep.subr.mxu0 0.0
        %2473 = vmatpush1.xpose.msra.mxu0 0.0
        %2474 = vmatprep.subr.mxu0 0.0
        %2475 = vmatpush1.xpose.msra.mxu0 0.0
        %2476 = vmatprep.subr.mxu0 0.0
        %2477 = vmatpush1.xpose.msra.mxu0 0.0
        %2478 = vmatprep.subr.mxu0 0.0
        %2479 = vmatpush1.xpose.msra.mxu0 0.0
        %2480 = vmatprep.subr.mxu0 0.0
        %2481 = vmatpush1.xpose.msra.mxu0 0.0
        %2482 = vmatprep.subr.mxu0 0.0
        %2483 = vmatpush1.xpose.msra.mxu0 0.0
        %2484 = vmatprep.subr.mxu0 0.0
        %2485 = vmatpush1.xpose.msra.mxu0 0.0
        %2486 = vmatprep.subr.mxu0 0.0
        %2487 = vmatpush1.xpose.msra.mxu0 0.0
        %2488 = vmatprep.subr.mxu0 0.0
        %2489 = vmatpush1.xpose.msra.mxu0 0.0
        %2490 = vmatprep.subr.mxu0 0.0
        %2491 = vmatpush1.xpose.msra.mxu0 0.0
        %2492 = vmatprep.subr.mxu0 0.0
        %2493 = vmatpush1.xpose.msra.mxu0 0.0
        %2494 = vmatprep.subr.mxu0 0.0
        %2495 = vmatpush1.xpose.msra.mxu0 0.0
        %2496 = vmatprep.subr.mxu0 0.0
        %2497 = vmatpush1.xpose.msra.mxu0 0.0
        %2498 = vmatprep.subr.mxu0 0.0
        %2499 = vmatpush1.xpose.msra.mxu0 0.0
        %2500 = vmatprep.subr.mxu0 0.0
        %2501 = vmatpush1.xpose.msra.mxu0 0.0
        %2502 = vmatprep.subr.mxu0 0.0
        %2503 = vmatpush1.xpose.msra.mxu0 0.0
        %2504 = vmatprep.subr.mxu0 0.0
        %2505 = vmatpush1.xpose.msra.mxu0 0.0
        %2506 = vmatprep.mubr.f32.mxu0 0.0
        %2507 = vmatmul.mubr.f32.gmra.mrb[0].mxu0 %v2438
        %v2508 = vpop.f32.mrb[0].mxu0
        %v2509 = vadd.f32 0.0, %v2508
        %v2510 = vpop.f32.mrb[0].mxu0
        %2511 = vdwg.mxu0
        %v2512 = vmul.f32 %v2509, 0.35355338
        %v2513 = vsel %vm759, %v2512, -inf
        %2514 = vmax.xlane.f32.xlu0 %v2513
        %v2515 = vpop.xlane.xlu0 %2514
        %v2516 = vsub.f32 %v2512, %v2515
        %v2517 = vmul.f32 %v2516, 1.442695
        %v2518 = vpow.pop %v2517
        %v2519 = vsel %vm759, %v2518, 0.0
        %2520 = vadd.xlane.f32.xlu0 %v2519
        %v2521 = vpop.xlane.xlu0 %2520
        %v2522 = vrcp.pop %v2521
        %v2523 = vmul.f32 %v2518, %v2522
        %2524 = vrot.lane.b32.xlu0 %v748, 72
        %v2525 = vpop.permute.xlu0 %2524
        %v2528 = vsel %vm759, %v2523, 0
        %2530 = vmatprep.subr.mxu0 0.0
        %2531 = vmatpush1.msra.mxu0 %v2525
        %2532 = vmatprep.subr.mxu0 0.0
        %2533 = vmatpush1.msra.mxu0 0.0
        %2534 = vmatprep.subr.mxu0 0.0
        %2535 = vmatpush1.msra.mxu0 0.0
        %2536 = vmatprep.subr.mxu0 0.0
        %2537 = vmatpush1.msra.mxu0 0.0
        %2538 = vmatprep.subr.mxu0 0.0
        %2539 = vmatpush1.msra.mxu0 0.0
        %2540 = vmatprep.subr.mxu0 0.0
        %2541 = vmatpush1.msra.mxu0 0.0
        %2542 = vmatprep.subr.mxu0 0.0
        %2543 = vmatpush1.msra.mxu0 0.0
        %2544 = vmatprep.subr.mxu0 0.0
        %2545 = vmatpush1.msra.mxu0 0.0
        %2546 = vmatprep.subr.mxu0 0.0
        %2547 = vmatpush1.msra.mxu0 0.0
        %2548 = vmatprep.subr.mxu0 0.0
        %2549 = vmatpush1.msra.mxu0 0.0
        %2550 = vmatprep.subr.mxu0 0.0
        %2551 = vmatpush1.msra.mxu0 0.0
        %2552 = vmatprep.subr.mxu0 0.0
        %2553 = vmatpush1.msra.mxu0 0.0
        %2554 = vmatprep.subr.mxu0 0.0
        %2555 = vmatpush1.msra.mxu0 0.0
        %2556 = vmatprep.subr.mxu0 0.0
        %2557 = vmatpush1.msra.mxu0 0.0
        %2558 = vmatprep.subr.mxu0 0.0
        %2559 = vmatpush1.msra.mxu0 0.0
        %2560 = vmatprep.subr.mxu0 0.0
        %2561 = vmatpush1.msra.mxu0 0.0
        %2562 = vmatprep.subr.mxu0 0.0
        %2563 = vmatpush1.msra.mxu0 0.0
        %2564 = vmatprep.subr.mxu0 0.0
        %2565 = vmatpush1.msra.mxu0 0.0
        %2566 = vmatprep.subr.mxu0 0.0
        %2567 = vmatpush1.msra.mxu0 0.0
        %2568 = vmatprep.subr.mxu0 0.0
        %2569 = vmatpush1.msra.mxu0 0.0
        %2570 = vmatprep.subr.mxu0 0.0
        %2571 = vmatpush1.msra.mxu0 0.0
        %2572 = vmatprep.subr.mxu0 0.0
        %2573 = vmatpush1.msra.mxu0 0.0
        %2574 = vmatprep.subr.mxu0 0.0
        %2575 = vmatpush1.msra.mxu0 0.0
        %2576 = vmatprep.subr.mxu0 0.0
        %2577 = vmatpush1.msra.mxu0 0.0
        %2578 = vmatprep.subr.mxu0 0.0
        %2579 = vmatpush1.msra.mxu0 0.0
        %2580 = vmatprep.subr.mxu0 0.0
        %2581 = vmatpush1.msra.mxu0 0.0
        %2582 = vmatprep.subr.mxu0 0.0
        %2583 = vmatpush1.msra.mxu0 0.0
        %2584 = vmatprep.subr.mxu0 0.0
        %2585 = vmatpush1.msra.mxu0 0.0
        %2586 = vmatprep.subr.mxu0 0.0
        %2587 = vmatpush1.msra.mxu0 0.0
        %2588 = vmatprep.subr.mxu0 0.0
        %2589 = vmatpush1.msra.mxu0 0.0
        %2590 = vmatprep.subr.mxu0 0.0
        %2591 = vmatpush1.msra.mxu0 0.0
        %2592 = vmatprep.subr.mxu0 0.0
        %2593 = vmatpush1.msra.mxu0 0.0
        %2594 = vmatprep.mubr.f32.mxu0 0.0
        %2595 = vmatmul.mubr.f32.gmra.mrb[0].mxu0 %v2528
        %v2596 = vpop.f32.mrb[0].mxu0
        %v2597 = vadd.f32 0.0, %v2596
        %v2598 = vpop.f32.mrb[0].mxu0
        %2599 = vdwg.mxu0
        %v2601 = vsel %vm759, %v2597, 0
        %2603 = vmatprep.subr.mxu0 0.0
        %2604 = vmatpush1.msra.mxu0 %v758
        %2605 = vmatprep.subr.mxu0 0.0
        %2606 = vmatpush1.msra.mxu0 0.0
        %2607 = vmatprep.subr.mxu0 0.0
        %2608 = vmatpush1.msra.mxu0 0.0
        %2609 = vmatprep.subr.mxu0 0.0
        %2610 = vmatpush1.msra.mxu0 0.0
        %2611 = vmatprep.subr.mxu0 0.0
        %2612 = vmatpush1.msra.mxu0 0.0
        %2613 = vmatprep.subr.mxu0 0.0
        %2614 = vmatpush1.msra.mxu0 0.0
        %2615 = vmatprep.subr.mxu0 0.0
        %2616 = vmatpush1.msra.mxu0 0.0
        %2617 = vmatprep.subr.mxu0 0.0
        %2618 = vmatpush1.msra.mxu0 0.0
        %2619 = vmatprep.subr.mxu0 0.0
        %2620 = vmatpush1.msra.mxu0 0.0
        %2621 = vmatprep.subr.mxu0 0.0
        %2622 = vmatpush1.msra.mxu0 0.0
        %2623 = vmatprep.subr.mxu0 0.0
        %2624 = vmatpush1.msra.mxu0 0.0
        %2625 = vmatprep.subr.mxu0 0.0
        %2626 = vmatpush1.msra.mxu0 0.0
        %2627 = vmatprep.subr.mxu0 0.0
        %2628 = vmatpush1.msra.mxu0 0.0
        %2629 = vmatprep.subr.mxu0 0.0
        %2630 = vmatpush1.msra.mxu0 0.0
        %2631 = vmatprep.subr.mxu0 0.0
        %2632 = vmatpush1.msra.mxu0 0.0
        %2633 = vmatprep.subr.mxu0 0.0
        %2634 = vmatpush1.msra.mxu0 0.0
        %2635 = vmatprep.subr.mxu0 0.0
        %2636 = vmatpush1.msra.mxu0 0.0
        %2637 = vmatprep.subr.mxu0 0.0
        %2638 = vmatpush1.msra.mxu0 0.0
        %2639 = vmatprep.subr.mxu0 0.0
        %2640 = vmatpush1.msra.mxu0 0.0
        %2641 = vmatprep.subr.mxu0 0.0
        %2642 = vmatpush1.msra.mxu0 0.0
        %2643 = vmatprep.subr.mxu0 0.0
        %2644 = vmatpush1.msra.mxu0 0.0
        %2645 = vmatprep.subr.mxu0 0.0
        %2646 = vmatpush1.msra.mxu0 0.0
        %2647 = vmatprep.subr.mxu0 0.0
        %2648 = vmatpush1.msra.mxu0 0.0
        %2649 = vmatprep.subr.mxu0 0.0
        %2650 = vmatpush1.msra.mxu0 0.0
        %2651 = vmatprep.subr.mxu0 0.0
        %2652 = vmatpush1.msra.mxu0 0.0
        %2653 = vmatprep.subr.mxu0 0.0
        %2654 = vmatpush1.msra.mxu0 0.0
        %2655 = vmatprep.subr.mxu0 0.0
        %2656 = vmatpush1.msra.mxu0 0.0
        %2657 = vmatprep.subr.mxu0 0.0
        %2658 = vmatpush1.msra.mxu0 0.0
        %2659 = vmatprep.subr.mxu0 0.0
        %2660 = vmatpush1.msra.mxu0 0.0
        %2661 = vmatprep.subr.mxu0 0.0
        %2662 = vmatpush1.msra.mxu0 0.0
        %2663 = vmatprep.subr.mxu0 0.0
        %2664 = vmatpush1.msra.mxu0 0.0
        %2665 = vmatprep.subr.mxu0 0.0
        %2666 = vmatpush1.msra.mxu0 0.0
        %2667 = vmatprep.mubr.f32.mxu0 0.0
        %2668 = vmatmul.mubr.f32.gmra.mrb[0].mxu0 %v2601
        %v2669 = vpop.f32.mrb[0].mxu0
        %v2670 = vadd.f32 0.0, %v2669
        %v2671 = vpop.f32.mrb[0].mxu0
        %2672 = vdwg.mxu0
        %v2673 = vadd.f32 %v2433, %v2670
        %v2674 = vadd.f32 %v491, %v2673
        %v2675 = vld [vmem:[%s8] sm:$0x1]
        %v2677 = vlaneseq
        %v2678 = vshrl.u32 %v2677, 7
        %v2679 = vsub.s32 0, %v2678
        %v2680 = vrot.slane %v2675, %v2679
        %v2682 = vadd.f32 %v2674, %v2680
        %v2683 = vld [vmem:[%s9] sm:$0x1]
        %v2684 = vld [vmem:[%s10] sm:$0x1]
        %v2685 = vsel %vm507, %v2682, 0.0
        %2686 = vadd.xlane.f32.xlu0 %v2685
        %v2687 = vpop.xlane.xlu0 %2686
        %v2688 = vrcp.pop 64.0
        %v2689 = vmul.f32 %v2687, %v2688
        %v2690 = vsub.f32 %v2682, %v2689
        %v2691 = vmul.f32 %v2690, %v2690
        %v2692 = vsel %vm507, %v2691, 0.0
        %2693 = vadd.xlane.f32.xlu0 %v2692
        %v2694 = vpop.xlane.xlu0 %2693
        %v2695 = vmul.f32 %v2694, %v2688
        %v2696 = vadd.f32 %v2695, 1e-05
        %v2697 = vrsqrt.pop %v2696
        %v2698 = vmul.f32 %v2690, %v2697
        %v2700 = vlaneseq
        %v2701 = vshrl.u32 %v2700, 7
        %v2702 = vsub.s32 0, %v2701
        %v2703 = vrot.slane %v2683, %v2702
        %v2705 = vmul.f32 %v2698, %v2703
        %v2707 = vlaneseq
        %v2708 = vshrl.u32 %v2707, 7
        %v2709 = vsub.s32 0, %v2708
        %v2710 = vrot.slane %v2684, %v2709
        %v2712 = vadd.f32 %v2705, %v2710
        %2713 = vst.msk [vmem:[%s485] sm:$0xff] %vm507, %v2712
        %v2714 = vld [vmem:[#allocation2] sm:$0xff]
        %v2715 = vld [vmem:[#allocation2 + $0x8] sm:$0xff]
        %v2716 = vld [vmem:[#allocation2 + $0x10] sm:$0xff]
        %v2717 = vld [vmem:[#allocation2 + $0x18] sm:$0xff]
        %v2718 = vld [vmem:[#allocation2 + $0x20] sm:$0xff]
        %v2719 = vld [vmem:[#allocation2 + $0x28] sm:$0xff]
        %v2720 = vld [vmem:[#allocation2 + $0x30] sm:$0xff]
        %v2721 = vld [vmem:[#allocation2 + $0x38] sm:$0xff]
        %v2722 = vld [vmem:[#allocation2 + $0x40] sm:$0xff]
        %v2723 = vld [vmem:[#allocation2 + $0x48] sm:$0xff]
        %v2724 = vld [vmem:[#allocation2 + $0x50] sm:$0xff]
        %v2725 = vld [vmem:[#allocation2 + $0x58] sm:$0xff]
        %v2726 = vld [vmem:[#allocation2 + $0x60] sm:$0xff]
        %v2727 = vld [vmem:[#allocation2 + $0x68] sm:$0xff]
        %v2728 = vld [vmem:[#allocation2 + $0x70] sm:$0xff]
        %v2729 = vld [vmem:[#allocation2 + $0x78] sm:$0xff]
        %v2730 = vld [vmem:[#allocation2 + $0x80] sm:$0xff]
        %v2731 = vld [vmem:[#allocation2 + $0x88] sm:$0xff]
        %v2732 = vld [vmem:[#allocation2 + $0x90] sm:$0xff]
        %v2733 = vld [vmem:[#allocation2 + $0x98] sm:$0xff]
        %v2734 = vld [vmem:[#allocation2 + $0xa0] sm:$0xff]
        %v2735 = vld [vmem:[#allocation2 + $0xa8] sm:$0xff]
        %v2736 = vld [vmem:[#allocation2 + $0xb0] sm:$0xff]
        %v2737 = vld [vmem:[#allocation2 + $0xb8] sm:$0xff]
        %v2738 = vld [vmem:[#allocation2 + $0xc0] sm:$0xff]
        %v2739 = vld [vmem:[#allocation2 + $0xc8] sm:$0xff]
        %v2740 = vld [vmem:[#allocation2 + $0xd0] sm:$0xff]
        %v2741 = vld [vmem:[#allocation2 + $0xd8] sm:$0xff]
        %v2742 = vld [vmem:[#allocation2 + $0xe0] sm:$0xff]
        %v2743 = vld [vmem:[#allocation2 + $0xe8] sm:$0xff]
        %v2744 = vld [vmem:[#allocation2 + $0xf0] sm:$0xff]
        %v2745 = vld [vmem:[#allocation2 + $0xf8] sm:$0xff]
        %v2746 = vld [vmem:[#allocation2 + $0x100] sm:$0xff]
        %v2747 = vld [vmem:[#allocation2 + $0x108] sm:$0xff]
        %v2748 = vld [vmem:[#allocation2 + $0x110] sm:$0xff]
        %v2749 = vld [vmem:[#allocation2 + $0x118] sm:$0xff]
        %v2750 = vld [vmem:[#allocation2 + $0x120] sm:$0xff]
        %v2751 = vld [vmem:[#allocation2 + $0x128] sm:$0xff]
        %v2752 = vld [vmem:[#allocation2 + $0x130] sm:$0xff]
        %v2753 = vld [vmem:[#allocation2 + $0x138] sm:$0xff]
        %v2754 = vld [vmem:[#allocation2 + $0x140] sm:$0xff]
        %v2755 = vld [vmem:[#allocation2 + $0x148] sm:$0xff]
        %v2756 = vld [vmem:[#allocation2 + $0x150] sm:$0xff]
        %v2757 = vld [vmem:[#allocation2 + $0x158] sm:$0xff]
        %v2758 = vld [vmem:[#allocation2 + $0x160] sm:$0xff]
        %v2759 = vld [vmem:[#allocation2 + $0x168] sm:$0xff]
        %v2760 = vld [vmem:[#allocation2 + $0x170] sm:$0xff]
        %v2761 = vld [vmem:[#allocation2 + $0x178] sm:$0xff]
        %v2762 = vld [vmem:[#allocation2 + $0x180] sm:$0xff]
        %v2763 = vld [vmem:[#allocation2 + $0x188] sm:$0xff]
        %v2764 = vld [vmem:[#allocation2 + $0x190] sm:$0xff]
        %v2765 = vld [vmem:[#allocation2 + $0x198] sm:$0xff]
        %v2766 = vld [vmem:[#allocation2 + $0x1a0] sm:$0xff]
        %v2767 = vld [vmem:[#allocation2 + $0x1a8] sm:$0xff]
        %v2768 = vld [vmem:[#allocation2 + $0x1b0] sm:$0xff]
        %v2769 = vld [vmem:[#allocation2 + $0x1b8] sm:$0xff]
        %v2770 = vld [vmem:[#allocation2 + $0x1c0] sm:$0xff]
        %v2771 = vld [vmem:[#allocation2 + $0x1c8] sm:$0xff]
        %v2772 = vld [vmem:[#allocation2 + $0x1d0] sm:$0xff]
        %v2773 = vld [vmem:[#allocation2 + $0x1d8] sm:$0xff]
        %v2774 = vld [vmem:[#allocation2 + $0x1e0] sm:$0xff]
        %v2775 = vld [vmem:[#allocation2 + $0x1e8] sm:$0xff]
        %v2776 = vld [vmem:[#allocation2 + $0x1f0] sm:$0xff]
        %v2777 = vld [vmem:[#allocation2 + $0x1f8] sm:$0xff]
        %v2778 = vld [vmem:[#allocation2 + $0x200] sm:$0xff]
        %v2779 = vld [vmem:[#allocation2 + $0x208] sm:$0xff]
        %v2780 = vld [vmem:[#allocation2 + $0x210] sm:$0xff]
        %v2781 = vld [vmem:[#allocation2 + $0x218] sm:$0xff]
        %v2782 = vld [vmem:[#allocation2 + $0x220] sm:$0xff]
        %v2783 = vld [vmem:[#allocation2 + $0x228] sm:$0xff]
        %v2784 = vld [vmem:[#allocation2 + $0x230] sm:$0xff]
        %v2785 = vld [vmem:[#allocation2 + $0x238] sm:$0xff]
        %v2786 = vld [vmem:[#allocation2 + $0x240] sm:$0xff]
        %v2787 = vld [vmem:[#allocation2 + $0x248] sm:$0xff]
        %v2788 = vld [vmem:[#allocation2 + $0x250] sm:$0xff]
        %v2789 = vld [vmem:[#allocation2 + $0x258] sm:$0xff]
        %v2790 = vld [vmem:[#allocation2 + $0x260] sm:$0xff]
        %v2791 = vld [vmem:[#allocation2 + $0x268] sm:$0xff]
        %v2792 = vld [vmem:[#allocation2 + $0x270] sm:$0xff]
        %v2793 = vld [vmem:[#allocation2 + $0x278] sm:$0xff]
        %v2794 = vld [vmem:[#allocation2 + $0x280] sm:$0xff]
        %v2795 = vld [vmem:[#allocation2 + $0x288] sm:$0xff]
        %v2796 = vld [vmem:[#allocation2 + $0x290] sm:$0xff]
        %v2797 = vld [vmem:[#allocation2 + $0x298] sm:$0xff]
        %v2798 = vld [vmem:[#allocation2 + $0x2a0] sm:$0xff]
        %v2799 = vld [vmem:[#allocation2 + $0x2a8] sm:$0xff]
        %v2800 = vld [vmem:[#allocation2 + $0x2b0] sm:$0xff]
        %v2801 = vld [vmem:[#allocation2 + $0x2b8] sm:$0xff]
        %v2802 = vld [vmem:[#allocation2 + $0x2c0] sm:$0xff]
        %v2803 = vld [vmem:[#allocation2 + $0x2c8] sm:$0xff]
        %v2804 = vld [vmem:[#allocation2 + $0x2d0] sm:$0xff]
        %v2805 = vld [vmem:[#allocation2 + $0x2d8] sm:$0xff]
        %v2806 = vld [vmem:[#allocation2 + $0x2e0] sm:$0xff]
        %v2807 = vld [vmem:[#allocation2 + $0x2e8] sm:$0xff]
        %v2808 = vld [vmem:[#allocation2 + $0x2f0] sm:$0xff]
        %v2809 = vld [vmem:[#allocation2 + $0x2f8] sm:$0xff]
        %v2810 = vld [vmem:[#allocation2 + $0x300] sm:$0xff]
        %v2811 = vld [vmem:[#allocation2 + $0x308] sm:$0xff]
        %v2812 = vld [vmem:[#allocation2 + $0x310] sm:$0xff]
        %v2813 = vld [vmem:[#allocation2 + $0x318] sm:$0xff]
        %v2814 = vld [vmem:[#allocation2 + $0x320] sm:$0xff]
        %v2815 = vld [vmem:[#allocation2 + $0x328] sm:$0xff]
        %v2816 = vld [vmem:[#allocation2 + $0x330] sm:$0xff]
        %v2817 = vld [vmem:[#allocation2 + $0x338] sm:$0xff]
        %v2818 = vld [vmem:[#allocation2 + $0x340] sm:$0xff]
        %v2819 = vld [vmem:[#allocation2 + $0x348] sm:$0xff]
        %v2820 = vld [vmem:[#allocation2 + $0x350] sm:$0xff]
        %v2821 = vld [vmem:[#allocation2 + $0x358] sm:$0xff]
        %v2822 = vld [vmem:[#allocation2 + $0x360] sm:$0xff]
        %v2823 = vld [vmem:[#allocation2 + $0x368] sm:$0xff]
        %v2824 = vld [vmem:[#allocation2 + $0x370] sm:$0xff]
        %v2825 = vld [vmem:[#allocation2 + $0x378] sm:$0xff]
        %v2826 = vld [vmem:[#allocation2 + $0x380] sm:$0xff]
        %v2827 = vld [vmem:[#allocation2 + $0x388] sm:$0xff]
        %v2828 = vld [vmem:[#allocation2 + $0x390] sm:$0xff]
        %v2829 = vld [vmem:[#allocation2 + $0x398] sm:$0xff]
        %v2830 = vld [vmem:[#allocation2 + $0x3a0] sm:$0xff]
        %v2831 = vld [vmem:[#allocation2 + $0x3a8] sm:$0xff]
        %v2832 = vld [vmem:[#allocation2 + $0x3b0] sm:$0xff]
        %v2833 = vld [vmem:[#allocation2 + $0x3b8] sm:$0xff]
        %v2834 = vld [vmem:[#allocation2 + $0x3c0] sm:$0xff]
        %v2835 = vld [vmem:[#allocation2 + $0x3c8] sm:$0xff]
        %v2836 = vld [vmem:[#allocation2 + $0x3d0] sm:$0xff]
        %v2837 = vld [vmem:[#allocation2 + $0x3d8] sm:$0xff]
        %v2838 = vld [vmem:[#allocation2 + $0x3e0] sm:$0xff]
        %v2839 = vld [vmem:[#allocation2 + $0x3e8] sm:$0xff]
        %v2840 = vld [vmem:[#allocation2 + $0x3f0] sm:$0xff]
        %v2841 = vld [vmem:[#allocation2 + $0x3f8] sm:$0xff]
        %v2842 = vld [vmem:[%s12] sm:$0xff]
        %v2843 = vld [vmem:[%s12 + $0x8] sm:$0xff]
        %v2846 = vlaneseq
        %v2847 = vshrl.u32 %v2846, 7
        %v2848 = vsub.s32 0, %v2847
        %v2849 = vrot.slane %v2842, %v2848
        %v2850 = vlaneseq
        %v2851 = vshrl.u32 %v2850, 7
        %v2852 = vsub.s32 1, %v2851
        %v2853 = vrot.slane %v2842, %v2852
        %v2854 = vlaneseq
        %v2855 = vshrl.u32 %v2854, 7
        %v2856 = vsub.s32 2, %v2855
        %v2857 = vrot.slane %v2842, %v2856
        %v2858 = vlaneseq
        %v2859 = vshrl.u32 %v2858, 7
        %v2860 = vsub.s32 3, %v2859
        %v2861 = vrot.slane %v2842, %v2860
        %v2862 = vlaneseq
        %v2863 = vshrl.u32 %v2862, 7
        %v2864 = vsub.s32 4, %v2863
        %v2865 = vrot.slane %v2842, %v2864
        %v2866 = vlaneseq
        %v2867 = vshrl.u32 %v2866, 7
        %v2868 = vsub.s32 5, %v2867
        %v2869 = vrot.slane %v2842, %v2868
        %v2870 = vlaneseq
        %v2871 = vshrl.u32 %v2870, 7
        %v2872 = vsub.s32 6, %v2871
        %v2873 = vrot.slane %v2842, %v2872
        %v2874 = vlaneseq
        %v2875 = vshrl.u32 %v2874, 7
        %v2876 = vsub.s32 7, %v2875
        %v2877 = vrot.slane %v2842, %v2876
        %v2878 = vlaneseq
        %v2879 = vshrl.u32 %v2878, 7
        %v2880 = vsub.s32 0, %v2879
        %v2881 = vrot.slane %v2843, %v2880
        %v2882 = vlaneseq
        %v2883 = vshrl.u32 %v2882, 7
        %v2884 = vsub.s32 1, %v2883
        %v2885 = vrot.slane %v2843, %v2884
        %v2886 = vlaneseq
        %v2887 = vshrl.u32 %v2886, 7
        %v2888 = vsub.s32 2, %v2887
        %v2889 = vrot.slane %v2843, %v2888
        %v2890 = vlaneseq
        %v2891 = vshrl.u32 %v2890, 7
        %v2892 = vsub.s32 3, %v2891
        %v2893 = vrot.slane %v2843, %v2892
        %v2894 = vlaneseq
        %v2895 = vshrl.u32 %v2894, 7
        %v2896 = vsub.s32 4, %v2895
        %v2897 = vrot.slane %v2843, %v2896
        %v2898 = vlaneseq
        %v2899 = vshrl.u32 %v2898, 7
        %v2900 = vsub.s32 5, %v2899
        %v2901 = vrot.slane %v2843, %v2900
        %v2902 = vlaneseq
        %v2903 = vshrl.u32 %v2902, 7
        %v2904 = vsub.s32 6, %v2903
        %v2905 = vrot.slane %v2843, %v2904
        %v2906 = vlaneseq
        %v2907 = vshrl.u32 %v2906, 7
        %v2908 = vsub.s32 7, %v2907
        %v2909 = vrot.slane %v2843, %v2908
        %v2927 = vsel %vm507, %v2712, 0
        %2929 = vmatprep.subr.mxu0 %v2715
        %2930 = vmatpush1.msra.mxu0 %v2714
        %2931 = vmatprep.subr.mxu0 %v2731
        %2932 = vmatpush1.msra.mxu0 %v2730
        %2933 = vmatprep.subr.mxu0 %v2747
        %2934 = vmatpush1.msra.mxu0 %v2746
        %2935 = vmatprep.subr.mxu0 %v2763
        %2936 = vmatpush1.msra.mxu0 %v2762
        %2937 = vmatprep.subr.mxu0 %v2779
        %2938 = vmatpush1.msra.mxu0 %v2778
        %2939 = vmatprep.subr.mxu0 %v2795
        %2940 = vmatpush1.msra.mxu0 %v2794
        %2941 = vmatprep.subr.mxu0 %v2811
        %2942 = vmatpush1.msra.mxu0 %v2810
        %2943 = vmatprep.subr.mxu0 %v2827
        %2944 = vmatpush1.msra.mxu0 %v2826
        %2945 = vmatprep.subr.mxu0 0.0
        %2946 = vmatpush1.msra.mxu0 0.0
        %2947 = vmatprep.subr.mxu0 0.0
        %2948 = vmatpush1.msra.mxu0 0.0
        %2949 = vmatprep.subr.mxu0 0.0
        %2950 = vmatpush1.msra.mxu0 0.0
        %2951 = vmatprep.subr.mxu0 0.0
        %2952 = vmatpush1.msra.mxu0 0.0
        %2953 = vmatprep.subr.mxu0 0.0
        %2954 = vmatpush1.msra.mxu0 0.0
        %2955 = vmatprep.subr.mxu0 0.0
        %2956 = vmatpush1.msra.mxu0 0.0
        %2957 = vmatprep.subr.mxu0 0.0
        %2958 = vmatpush1.msra.mxu0 0.0
        %2959 = vmatprep.subr.mxu0 0.0
        %2960 = vmatpush1.msra.mxu0 0.0
        %2961 = vmatprep.subr.mxu0 0.0
        %2962 = vmatpush1.msra.mxu0 0.0
        %2963 = vmatprep.subr.mxu0 0.0
        %2964 = vmatpush1.msra.mxu0 0.0
        %2965 = vmatprep.subr.mxu0 0.0
        %2966 = vmatpush1.msra.mxu0 0.0
        %2967 = vmatprep.subr.mxu0 0.0
        %2968 = vmatpush1.msra.mxu0 0.0
        %2969 = vmatprep.subr.mxu0 0.0
        %2970 = vmatpush1.msra.mxu0 0.0
        %2971 = vmatprep.subr.mxu0 0.0
        %2972 = vmatpush1.msra.mxu0 0.0
        %2973 = vmatprep.subr.mxu0 0.0
        %2974 = vmatpush1.msra.mxu0 0.0
        %2975 = vmatprep.subr.mxu0 0.0
        %2976 = vmatpush1.msra.mxu0 0.0
        %2977 = vmatprep.subr.mxu0 0.0
        %2978 = vmatpush1.msra.mxu0 0.0
        %2979 = vmatprep.subr.mxu0 0.0
        %2980 = vmatpush1.msra.mxu0 0.0
        %2981 = vmatprep.subr.mxu0 0.0
        %2982 = vmatpush1.msra.mxu0 0.0
        %2983 = vmatprep.subr.mxu0 0.0
        %2984 = vmatpush1.msra.mxu0 0.0
        %2985 = vmatprep.subr.mxu0 0.0
        %2986 = vmatpush1.msra.mxu0 0.0
        %2987 = vmatprep.subr.mxu0 0.0
        %2988 = vmatpush1.msra.mxu0 0.0
        %2989 = vmatprep.subr.mxu0 0.0
        %2990 = vmatpush1.msra.mxu0 0.0
        %2991 = vmatprep.subr.mxu0 0.0
        %2992 = vmatpush1.msra.mxu0 0.0
        %2993 = vmatprep.mubr.f32.mxu0 0.0
        %2994 = vmatmul.mubr.f32.gmra.mrb[0].mxu0 %v2927
        %v2995 = vpop.f32.mrb[0].mxu0
        %v2996 = vadd.f32 %v2849, %v2995
        %v2997 = vpop.f32.mrb[0].mxu0
        %v2998 = vadd.f32 %v2853, %v2997
        %2999 = vdwg.mxu0
        %3000 = vmatprep.subr.mxu0 %v2717
        %3001 = vmatpush1.msra.mxu0 %v2716
        %3002 = vmatprep.subr.mxu0 %v2733
        %3003 = vmatpush1.msra.mxu0 %v2732
        %3004 = vmatprep.subr.mxu0 %v2749
        %3005 = vmatpush1.msra.mxu0 %v2748
        %3006 = vmatprep.subr.mxu0 %v2765
        %3007 = vmatpush1.msra.mxu0 %v2764
        %3008 = vmatprep.subr.mxu0 %v2781
        %3009 = vmatpush1.msra.mxu0 %v2780
        %3010 = vmatprep.subr.mxu0 %v2797
        %3011 = vmatpush1.msra.mxu0 %v2796
        %3012 = vmatprep.subr.mxu0 %v2813
        %3013 = vmatpush1.msra.mxu0 %v2812
        %3014 = vmatprep.subr.mxu0 %v2829
        %3015 = vmatpush1.msra.mxu0 %v2828
        %3016 = vmatprep.subr.mxu0 0.0
        %3017 = vmatpush1.msra.mxu0 0.0
        %3018 = vmatprep.subr.mxu0 0.0
        %3019 = vmatpush1.msra.mxu0 0.0
        %3020 = vmatprep.subr.mxu0 0.0
        %3021 = vmatpush1.msra.mxu0 0.0
        %3022 = vmatprep.subr.mxu0 0.0
        %3023 = vmatpush1.msra.mxu0 0.0
        %3024 = vmatprep.subr.mxu0 0.0
        %3025 = vmatpush1.msra.mxu0 0.0
        %3026 = vmatprep.subr.mxu0 0.0
        %3027 = vmatpush1.msra.mxu0 0.0
        %3028 = vmatprep.subr.mxu0 0.0
        %3029 = vmatpush1.msra.mxu0 0.0
        %3030 = vmatprep.subr.mxu0 0.0
        %3031 = vmatpush1.msra.mxu0 0.0
        %3032 = vmatprep.subr.mxu0 0.0
        %3033 = vmatpush1.msra.mxu0 0.0
        %3034 = vmatprep.subr.mxu0 0.0
        %3035 = vmatpush1.msra.mxu0 0.0
        %3036 = vmatprep.subr.mxu0 0.0
        %3037 = vmatpush1.msra.mxu0 0.0
        %3038 = vmatprep.subr.mxu0 0.0
        %3039 = vmatpush1.msra.mxu0 0.0
        %3040 = vmatprep.subr.mxu0 0.0
        %3041 = vmatpush1.msra.mxu0 0.0
        %3042 = vmatprep.subr.mxu0 0.0
        %3043 = vmatpush1.msra.mxu0 0.0
        %3044 = vmatprep.subr.mxu0 0.0
        %3045 = vmatpush1.msra.mxu0 0.0
        %3046 = vmatprep.subr.mxu0 0.0
        %3047 = vmatpush1.msra.mxu0 0.0
        %3048 = vmatprep.subr.mxu0 0.0
        %3049 = vmatpush1.msra.mxu0 0.0
        %3050 = vmatprep.subr.mxu0 0.0
        %3051 = vmatpush1.msra.mxu0 0.0
        %3052 = vmatprep.subr.mxu0 0.0
        %3053 = vmatpush1.msra.mxu0 0.0
        %3054 = vmatprep.subr.mxu0 0.0
        %3055 = vmatpush1.msra.mxu0 0.0
        %3056 = vmatprep.subr.mxu0 0.0
        %3057 = vmatpush1.msra.mxu0 0.0
        %3058 = vmatprep.subr.mxu0 0.0
        %3059 = vmatpush1.msra.mxu0 0.0
        %3060 = vmatprep.subr.mxu0 0.0
        %3061 = vmatpush1.msra.mxu0 0.0
        %3062 = vmatprep.subr.mxu0 0.0
        %3063 = vmatpush1.msra.mxu0 0.0
        %3064 = vmatprep.mubr.f32.mxu0 0.0
        %3065 = vmatmul.mubr.f32.gmra.mrb[0].mxu0 %v2927
        %v3066 = vpop.f32.mrb[0].mxu0
        %v3067 = vadd.f32 %v2857, %v3066
        %v3068 = vpop.f32.mrb[0].mxu0
        %v3069 = vadd.f32 %v2861, %v3068
        %3070 = vdwg.mxu0
        %3071 = vmatprep.subr.mxu0 %v2719
        %3072 = vmatpush1.msra.mxu0 %v2718
        %3073 = vmatprep.subr.mxu0 %v2735
        %3074 = vmatpush1.msra.mxu0 %v2734
        %3075 = vmatprep.subr.mxu0 %v2751
        %3076 = vmatpush1.msra.mxu0 %v2750
        %3077 = vmatprep.subr.mxu0 %v2767
        %3078 = vmatpush1.msra.mxu0 %v2766
        %3079 = vmatprep.subr.mxu0 %v2783
        %3080 = vmatpush1.msra.mxu0 %v2782
        %3081 = vmatprep.subr.mxu0 %v2799
        %3082 = vmatpush1.msra.mxu0 %v2798
        %3083 = vmatprep.subr.mxu0 %v2815
        %3084 = vmatpush1.msra.mxu0 %v2814
        %3085 = vmatprep.subr.mxu0 %v2831
        %3086 = vmatpush1.msra.mxu0 %v2830
        %3087 = vmatprep.subr.mxu0 0.0
        %3088 = vmatpush1.msra.mxu0 0.0
        %3089 = vmatprep.subr.mxu0 0.0
        %3090 = vmatpush1.msra.mxu0 0.0
        %3091 = vmatprep.subr.mxu0 0.0
        %3092 = vmatpush1.msra.mxu0 0.0
        %3093 = vmatprep.subr.mxu0 0.0
        %3094 = vmatpush1.msra.mxu0 0.0
        %3095 = vmatprep.subr.mxu0 0.0
        %3096 = vmatpush1.msra.mxu0 0.0
        %3097 = vmatprep.subr.mxu0 0.0
        %3098 = vmatpush1.msra.mxu0 0.0
        %3099 = vmatprep.subr.mxu0 0.0
        %3100 = vmatpush1.msra.mxu0 0.0
        %3101 = vmatprep.subr.mxu0 0.0
        %3102 = vmatpush1.msra.mxu0 0.0
        %3103 = vmatprep.subr.mxu0 0.0
        %3104 = vmatpush1.msra.mxu0 0.0
        %3105 = vmatprep.subr.mxu0 0.0
        %3106 = vmatpush1.msra.mxu0 0.0
        %3107 = vmatprep.subr.mxu0 0.0
        %3108 = vmatpush1.msra.mxu0 0.0
        %3109 = vmatprep.subr.mxu0 0.0
        %3110 = vmatpush1.msra.mxu0 0.0
        %3111 = vmatprep.subr.mxu0 0.0
        %3112 = vmatpush1.msra.mxu0 0.0
        %3113 = vmatprep.subr.mxu0 0.0
        %3114 = vmatpush1.msra.mxu0 0.0
        %3115 = vmatprep.subr.mxu0 0.0
        %3116 = vmatpush1.msra.mxu0 0.0
        %3117 = vmatprep.subr.mxu0 0.0
        %3118 = vmatpush1.msra.mxu0 0.0
        %3119 = vmatprep.subr.mxu0 0.0
        %3120 = vmatpush1.msra.mxu0 0.0
        %3121 = vmatprep.subr.mxu0 0.0
        %3122 = vmatpush1.msra.mxu0 0.0
        %3123 = vmatprep.subr.mxu0 0.0
        %3124 = vmatpush1.msra.mxu0 0.0
        %3125 = vmatprep.subr.mxu0 0.0
        %3126 = vmatpush1.msra.mxu0 0.0
        %3127 = vmatprep.subr.mxu0 0.0
        %3128 = vmatpush1.msra.mxu0 0.0
        %3129 = vmatprep.subr.mxu0 0.0
        %3130 = vmatpush1.msra.mxu0 0.0
        %3131 = vmatprep.subr.mxu0 0.0
        %3132 = vmatpush1.msra.mxu0 0.0
        %3133 = vmatprep.subr.mxu0 0.0
        %3134 = vmatpush1.msra.mxu0 0.0
        %3135 = vmatprep.mubr.f32.mxu0 0.0
        %3136 = vmatmul.mubr.f32.gmra.mrb[0].mxu0 %v2927
        %v3137 = vpop.f32.mrb[0].mxu0
        %v3138 = vadd.f32 %v2865, %v3137
        %v3139 = vpop.f32.mrb[0].mxu0
        %v3140 = vadd.f32 %v2869, %v3139
        %3141 = vdwg.mxu0
        %3142 = vmatprep.subr.mxu0 %v2721
        %3143 = vmatpush1.msra.mxu0 %v2720
        %3144 = vmatprep.subr.mxu0 %v2737
        %3145 = vmatpush1.msra.mxu0 %v2736
        %3146 = vmatprep.subr.mxu0 %v2753
        %3147 = vmatpush1.msra.mxu0 %v2752
        %3148 = vmatprep.subr.mxu0 %v2769
        %3149 = vmatpush1.msra.mxu0 %v2768
        %3150 = vmatprep.subr.mxu0 %v2785
        %3151 = vmatpush1.msra.mxu0 %v2784
        %3152 = vmatprep.subr.mxu0 %v2801
        %3153 = vmatpush1.msra.mxu0 %v2800
        %3154 = vmatprep.subr.mxu0 %v2817
        %3155 = vmatpush1.msra.mxu0 %v2816
        %3156 = vmatprep.subr.mxu0 %v2833
        %3157 = vmatpush1.msra.mxu0 %v2832
        %3158 = vmatprep.subr.mxu0 0.0
        %3159 = vmatpush1.msra.mxu0 0.0
        %3160 = vmatprep.subr.mxu0 0.0
        %3161 = vmatpush1.msra.mxu0 0.0
        %3162 = vmatprep.subr.mxu0 0.0
        %3163 = vmatpush1.msra.mxu0 0.0
        %3164 = vmatprep.subr.mxu0 0.0
        %3165 = vmatpush1.msra.mxu0 0.0
        %3166 = vmatprep.subr.mxu0 0.0
        %3167 = vmatpush1.msra.mxu0 0.0
        %3168 = vmatprep.subr.mxu0 0.0
        %3169 = vmatpush1.msra.mxu0 0.0
        %3170 = vmatprep.subr.mxu0 0.0
        %3171 = vmatpush1.msra.mxu0 0.0
        %3172 = vmatprep.subr.mxu0 0.0
        %3173 = vmatpush1.msra.mxu0 0.0
        %3174 = vmatprep.subr.mxu0 0.0
        %3175 = vmatpush1.msra.mxu0 0.0
        %3176 = vmatprep.subr.mxu0 0.0
        %3177 = vmatpush1.msra.mxu0 0.0
        %3178 = vmatprep.subr.mxu0 0.0
        %3179 = vmatpush1.msra.mxu0 0.0
        %3180 = vmatprep.subr.mxu0 0.0
        %3181 = vmatpush1.msra.mxu0 0.0
        %3182 = vmatprep.subr.mxu0 0.0
        %3183 = vmatpush1.msra.mxu0 0.0
        %3184 = vmatprep.subr.mxu0 0.0
        %3185 = vmatpush1.msra.mxu0 0.0
        %3186 = vmatprep.subr.mxu0 0.0
        %3187 = vmatpush1.msra.mxu0 0.0
        %3188 = vmatprep.subr.mxu0 0.0
        %3189 = vmatpush1.msra.mxu0 0.0
        %3190 = vmatprep.subr.mxu0 0.0
        %3191 = vmatpush1.msra.mxu0 0.0
        %3192 = vmatprep.subr.mxu0 0.0
        %3193 = vmatpush1.msra.mxu0 0.0
        %3194 = vmatprep.subr.mxu0 0.0
        %3195 = vmatpush1.msra.mxu0 0.0
        %3196 = vmatprep.subr.mxu0 0.0
        %3197 = vmatpush1.msra.mxu0 0.0
        %3198 = vmatprep.subr.mxu0 0.0
        %3199 = vmatpush1.msra.mxu0 0.0
        %3200 = vmatprep.subr.mxu0 0.0
        %3201 = vmatpush1.msra.mxu0 0.0
        %3202 = vmatprep.subr.mxu0 0.0
        %3203 = vmatpush1.msra.mxu0 0.0
        %3204 = vmatprep.subr.mxu0 0.0
        %3205 = vmatpush1.msra.mxu0 0.0
        %3206 = vmatprep.mubr.f32.mxu0 0.0
        %3207 = vmatmul.mubr.f32.gmra.mrb[0].mxu0 %v2927
        %v3208 = vpop.f32.mrb[0].mxu0
        %v3209 = vadd.f32 %v2873, %v3208
        %v3210 = vpop.f32.mrb[0].mxu0
        %v3211 = vadd.f32 %v2877, %v3210
        %3212 = vdwg.mxu0
        %3213 = vmatprep.subr.mxu0 %v2723
        %3214 = vmatpush1.msra.mxu0 %v2722
        %3215 = vmatprep.subr.mxu0 %v2739
        %3216 = vmatpush1.msra.mxu0 %v2738
        %3217 = vmatprep.subr.mxu0 %v2755
        %3218 = vmatpush1.msra.mxu0 %v2754
        %3219 = vmatprep.subr.mxu0 %v2771
        %3220 = vmatpush1.msra.mxu0 %v2770
        %3221 = vmatprep.subr.mxu0 %v2787
        %3222 = vmatpush1.msra.mxu0 %v2786
        %3223 = vmatprep.subr.mxu0 %v2803
        %3224 = vmatpush1.msra.mxu0 %v2802
        %3225 = vmatprep.subr.mxu0 %v2819
        %3226 = vmatpush1.msra.mxu0 %v2818
        %3227 = vmatprep.subr.mxu0 %v2835
        %3228 = vmatpush1.msra.mxu0 %v2834
        %3229 = vmatprep.subr.mxu0 0.0
        %3230 = vmatpush1.msra.mxu0 0.0
        %3231 = vmatprep.subr.mxu0 0.0
        %3232 = vmatpush1.msra.mxu0 0.0
        %3233 = vmatprep.subr.mxu0 0.0
        %3234 = vmatpush1.msra.mxu0 0.0
        %3235 = vmatprep.subr.mxu0 0.0
        %3236 = vmatpush1.msra.mxu0 0.0
        %3237 = vmatprep.subr.mxu0 0.0
        %3238 = vmatpush1.msra.mxu0 0.0
        %3239 = vmatprep.subr.mxu0 0.0
        %3240 = vmatpush1.msra.mxu0 0.0
        %3241 = vmatprep.subr.mxu0 0.0
        %3242 = vmatpush1.msra.mxu0 0.0
        %3243 = vmatprep.subr.mxu0 0.0
        %3244 = vmatpush1.msra.mxu0 0.0
        %3245 = vmatprep.subr.mxu0 0.0
        %3246 = vmatpush1.msra.mxu0 0.0
        %3247 = vmatprep.subr.mxu0 0.0
        %3248 = vmatpush1.msra.mxu0 0.0
        %3249 = vmatprep.subr.mxu0 0.0
        %3250 = vmatpush1.msra.mxu0 0.0
        %3251 = vmatprep.subr.mxu0 0.0
        %3252 = vmatpush1.msra.mxu0 0.0
        %3253 = vmatprep.subr.mxu0 0.0
        %3254 = vmatpush1.msra.mxu0 0.0
        %3255 = vmatprep.subr.mxu0 0.0
        %3256 = vmatpush1.msra.mxu0 0.0
        %3257 = vmatprep.subr.mxu0 0.0
        %3258 = vmatpush1.msra.mxu0 0.0
        %3259 = vmatprep.subr.mxu0 0.0
        %3260 = vmatpush1.msra.mxu0 0.0
        %3261 = vmatprep.subr.mxu0 0.0
        %3262 = vmatpush1.msra.mxu0 0.0
        %3263 = vmatprep.subr.mxu0 0.0
        %3264 = vmatpush1.msra.mxu0 0.0
        %3265 = vmatprep.subr.mxu0 0.0
        %3266 = vmatpush1.msra.mxu0 0.0
        %3267 = vmatprep.subr.mxu0 0.0
        %3268 = vmatpush1.msra.mxu0 0.0
        %3269 = vmatprep.subr.mxu0 0.0
        %3270 = vmatpush1.msra.mxu0 0.0
        %3271 = vmatprep.subr.mxu0 0.0
        %3272 = vmatpush1.msra.mxu0 0.0
        %3273 = vmatprep.subr.mxu0 0.0
        %3274 = vmatpush1.msra.mxu0 0.0
        %3275 = vmatprep.subr.mxu0 0.0
        %3276 = vmatpush1.msra.mxu0 0.0
        %3277 = vmatprep.mubr.f32.mxu0 0.0
        %3278 = vmatmul.mubr.f32.gmra.mrb[0].mxu0 %v2927
        %v3279 = vpop.f32.mrb[0].mxu0
        %v3280 = vadd.f32 %v2881, %v3279
        %v3281 = vpop.f32.mrb[0].mxu0
        %v3282 = vadd.f32 %v2885, %v3281
        %3283 = vdwg.mxu0
        %3284 = vmatprep.subr.mxu0 %v2725
        %3285 = vmatpush1.msra.mxu0 %v2724
        %3286 = vmatprep.subr.mxu0 %v2741
        %3287 = vmatpush1.msra.mxu0 %v2740
        %3288 = vmatprep.subr.mxu0 %v2757
        %3289 = vmatpush1.msra.mxu0 %v2756
        %3290 = vmatprep.subr.mxu0 %v2773
        %3291 = vmatpush1.msra.mxu0 %v2772
        %3292 = vmatprep.subr.mxu0 %v2789
        %3293 = vmatpush1.msra.mxu0 %v2788
        %3294 = vmatprep.subr.mxu0 %v2805
        %3295 = vmatpush1.msra.mxu0 %v2804
        %3296 = vmatprep.subr.mxu0 %v2821
        %3297 = vmatpush1.msra.mxu0 %v2820
        %3298 = vmatprep.subr.mxu0 %v2837
        %3299 = vmatpush1.msra.mxu0 %v2836
        %3300 = vmatprep.subr.mxu0 0.0
        %3301 = vmatpush1.msra.mxu0 0.0
        %3302 = vmatprep.subr.mxu0 0.0
        %3303 = vmatpush1.msra.mxu0 0.0
        %3304 = vmatprep.subr.mxu0 0.0
        %3305 = vmatpush1.msra.mxu0 0.0
        %3306 = vmatprep.subr.mxu0 0.0
        %3307 = vmatpush1.msra.mxu0 0.0
        %3308 = vmatprep.subr.mxu0 0.0
        %3309 = vmatpush1.msra.mxu0 0.0
        %3310 = vmatprep.subr.mxu0 0.0
        %3311 = vmatpush1.msra.mxu0 0.0
        %3312 = vmatprep.subr.mxu0 0.0
        %3313 = vmatpush1.msra.mxu0 0.0
        %3314 = vmatprep.subr.mxu0 0.0
        %3315 = vmatpush1.msra.mxu0 0.0
        %3316 = vmatprep.subr.mxu0 0.0
        %3317 = vmatpush1.msra.mxu0 0.0
        %3318 = vmatprep.subr.mxu0 0.0
        %3319 = vmatpush1.msra.mxu0 0.0
        %3320 = vmatprep.subr.mxu0 0.0
        %3321 = vmatpush1.msra.mxu0 0.0
        %3322 = vmatprep.subr.mxu0 0.0
        %3323 = vmatpush1.msra.mxu0 0.0
        %3324 = vmatprep.subr.mxu0 0.0
        %3325 = vmatpush1.msra.mxu0 0.0
        %3326 = vmatprep.subr.mxu0 0.0
        %3327 = vmatpush1.msra.mxu0 0.0
        %3328 = vmatprep.subr.mxu0 0.0
        %3329 = vmatpush1.msra.mxu0 0.0
        %3330 = vmatprep.subr.mxu0 0.0
        %3331 = vmatpush1.msra.mxu0 0.0
        %3332 = vmatprep.subr.mxu0 0.0
        %3333 = vmatpush1.msra.mxu0 0.0
        %3334 = vmatprep.subr.mxu0 0.0
        %3335 = vmatpush1.msra.mxu0 0.0
        %3336 = vmatprep.subr.mxu0 0.0
        %3337 = vmatpush1.msra.mxu0 0.0
        %3338 = vmatprep.subr.mxu0 0.0
        %3339 = vmatpush1.msra.mxu0 0.0
        %3340 = vmatprep.subr.mxu0 0.0
        %3341 = vmatpush1.msra.mxu0 0.0
        %3342 = vmatprep.subr.mxu0 0.0
        %3343 = vmatpush1.msra.mxu0 0.0
        %3344 = vmatprep.subr.mxu0 0.0
        %3345 = vmatpush1.msra.mxu0 0.0
        %3346 = vmatprep.subr.mxu0 0.0
        %3347 = vmatpush1.msra.mxu0 0.0
        %3348 = vmatprep.mubr.f32.mxu0 0.0
        %3349 = vmatmul.mubr.f32.gmra.mrb[0].mxu0 %v2927
        %v3350 = vpop.f32.mrb[0].mxu0
        %v3351 = vadd.f32 %v2889, %v3350
        %v3352 = vpop.f32.mrb[0].mxu0
        %v3353 = vadd.f32 %v2893, %v3352
        %3354 = vdwg.mxu0
        %3355 = vmatprep.subr.mxu0 %v2727
        %3356 = vmatpush1.msra.mxu0 %v2726
        %3357 = vmatprep.subr.mxu0 %v2743
        %3358 = vmatpush1.msra.mxu0 %v2742
        %3359 = vmatprep.subr.mxu0 %v2759
        %3360 = vmatpush1.msra.mxu0 %v2758
        %3361 = vmatprep.subr.mxu0 %v2775
        %3362 = vmatpush1.msra.mxu0 %v2774
        %3363 = vmatprep.subr.mxu0 %v2791
        %3364 = vmatpush1.msra.mxu0 %v2790
        %3365 = vmatprep.subr.mxu0 %v2807
        %3366 = vmatpush1.msra.mxu0 %v2806
        %3367 = vmatprep.subr.mxu0 %v2823
        %3368 = vmatpush1.msra.mxu0 %v2822
        %3369 = vmatprep.subr.mxu0 %v2839
        %3370 = vmatpush1.msra.mxu0 %v2838
        %3371 = vmatprep.subr.mxu0 0.0
        %3372 = vmatpush1.msra.mxu0 0.0
        %3373 = vmatprep.subr.mxu0 0.0
        %3374 = vmatpush1.msra.mxu0 0.0
        %3375 = vmatprep.subr.mxu0 0.0
        %3376 = vmatpush1.msra.mxu0 0.0
        %3377 = vmatprep.subr.mxu0 0.0
        %3378 = vmatpush1.msra.mxu0 0.0
        %3379 = vmatprep.subr.mxu0 0.0
        %3380 = vmatpush1.msra.mxu0 0.0
        %3381 = vmatprep.subr.mxu0 0.0
        %3382 = vmatpush1.msra.mxu0 0.0
        %3383 = vmatprep.subr.mxu0 0.0
        %3384 = vmatpush1.msra.mxu0 0.0
        %3385 = vmatprep.subr.mxu0 0.0
        %3386 = vmatpush1.msra.mxu0 0.0
        %3387 = vmatprep.subr.mxu0 0.0
        %3388 = vmatpush1.msra.mxu0 0.0
        %3389 = vmatprep.subr.mxu0 0.0
        %3390 = vmatpush1.msra.mxu0 0.0
        %3391 = vmatprep.subr.mxu0 0.0
        %3392 = vmatpush1.msra.mxu0 0.0
        %3393 = vmatprep.subr.mxu0 0.0
        %3394 = vmatpush1.msra.mxu0 0.0
        %3395 = vmatprep.subr.mxu0 0.0
        %3396 = vmatpush1.msra.mxu0 0.0
        %3397 = vmatprep.subr.mxu0 0.0
        %3398 = vmatpush1.msra.mxu0 0.0
        %3399 = vmatprep.subr.mxu0 0.0
        %3400 = vmatpush1.msra.mxu0 0.0
        %3401 = vmatprep.subr.mxu0 0.0
        %3402 = vmatpush1.msra.mxu0 0.0
        %3403 = vmatprep.subr.mxu0 0.0
        %3404 = vmatpush1.msra.mxu0 0.0
        %3405 = vmatprep.subr.mxu0 0.0
        %3406 = vmatpush1.msra.mxu0 0.0
        %3407 = vmatprep.subr.mxu0 0.0
        %3408 = vmatpush1.msra.mxu0 0.0
        %3409 = vmatprep.subr.mxu0 0.0
        %3410 = vmatpush1.msra.mxu0 0.0
        %3411 = vmatprep.subr.mxu0 0.0
        %3412 = vmatpush1.msra.mxu0 0.0
        %3413 = vmatprep.subr.mxu0 0.0
        %3414 = vmatpush1.msra.mxu0 0.0
        %3415 = vmatprep.subr.mxu0 0.0
        %3416 = vmatpush1.msra.mxu0 0.0
        %3417 = vmatprep.subr.mxu0 0.0
        %3418 = vmatpush1.msra.mxu0 0.0
        %3419 = vmatprep.mubr.f32.mxu0 0.0
        %3420 = vmatmul.mubr.f32.gmra.mrb[0].mxu0 %v2927
        %v3421 = vpop.f32.mrb[0].mxu0
        %v3422 = vadd.f32 %v2897, %v3421
        %v3423 = vpop.f32.mrb[0].mxu0
        %v3424 = vadd.f32 %v2901, %v3423
        %3425 = vdwg.mxu0
        %3426 = vmatprep.subr.mxu0 %v2729
        %3427 = vmatpush1.msra.mxu0 %v2728
        %3428 = vmatprep.subr.mxu0 %v2745
        %3429 = vmatpush1.msra.mxu0 %v2744
        %3430 = vmatprep.subr.mxu0 %v2761
        %3431 = vmatpush1.msra.mxu0 %v2760
        %3432 = vmatprep.subr.mxu0 %v2777
        %3433 = vmatpush1.msra.mxu0 %v2776
        %3434 = vmatprep.subr.mxu0 %v2793
        %3435 = vmatpush1.msra.mxu0 %v2792
        %3436 = vmatprep.subr.mxu0 %v2809
        %3437 = vmatpush1.msra.mxu0 %v2808
        %3438 = vmatprep.subr.mxu0 %v2825
        %3439 = vmatpush1.msra.mxu0 %v2824
        %3440 = vmatprep.subr.mxu0 %v2841
        %3441 = vmatpush1.msra.mxu0 %v2840
        %3442 = vmatprep.subr.mxu0 0.0
        %3443 = vmatpush1.msra.mxu0 0.0
        %3444 = vmatprep.subr.mxu0 0.0
        %3445 = vmatpush1.msra.mxu0 0.0
        %3446 = vmatprep.subr.mxu0 0.0
        %3447 = vmatpush1.msra.mxu0 0.0
        %3448 = vmatprep.subr.mxu0 0.0
        %3449 = vmatpush1.msra.mxu0 0.0
        %3450 = vmatprep.subr.mxu0 0.0
        %3451 = vmatpush1.msra.mxu0 0.0
        %3452 = vmatprep.subr.mxu0 0.0
        %3453 = vmatpush1.msra.mxu0 0.0
        %3454 = vmatprep.subr.mxu0 0.0
        %3455 = vmatpush1.msra.mxu0 0.0
        %3456 = vmatprep.subr.mxu0 0.0
        %3457 = vmatpush1.msra.mxu0 0.0
        %3458 = vmatprep.subr.mxu0 0.0
        %3459 = vmatpush1.msra.mxu0 0.0
        %3460 = vmatprep.subr.mxu0 0.0
        %3461 = vmatpush1.msra.mxu0 0.0
        %3462 = vmatprep.subr.mxu0 0.0
        %3463 = vmatpush1.msra.mxu0 0.0
        %3464 = vmatprep.subr.mxu0 0.0
        %3465 = vmatpush1.msra.mxu0 0.0
        %3466 = vmatprep.subr.mxu0 0.0
        %3467 = vmatpush1.msra.mxu0 0.0
        %3468 = vmatprep.subr.mxu0 0.0
        %3469 = vmatpush1.msra.mxu0 0.0
        %3470 = vmatprep.subr.mxu0 0.0
        %3471 = vmatpush1.msra.mxu0 0.0
        %3472 = vmatprep.subr.mxu0 0.0
        %3473 = vmatpush1.msra.mxu0 0.0
        %3474 = vmatprep.subr.mxu0 0.0
        %3475 = vmatpush1.msra.mxu0 0.0
        %3476 = vmatprep.subr.mxu0 0.0
        %3477 = vmatpush1.msra.mxu0 0.0
        %3478 = vmatprep.subr.mxu0 0.0
        %3479 = vmatpush1.msra.mxu0 0.0
        %3480 = vmatprep.subr.mxu0 0.0
        %3481 = vmatpush1.msra.mxu0 0.0
        %3482 = vmatprep.subr.mxu0 0.0
        %3483 = vmatpush1.msra.mxu0 0.0
        %3484 = vmatprep.subr.mxu0 0.0
        %3485 = vmatpush1.msra.mxu0 0.0
        %3486 = vmatprep.subr.mxu0 0.0
        %3487 = vmatpush1.msra.mxu0 0.0
        %3488 = vmatprep.subr.mxu0 0.0
        %3489 = vmatpush1.msra.mxu0 0.0
        %3490 = vmatprep.mubr.f32.mxu0 0.0
        %3491 = vmatmul.mubr.f32.gmra.mrb[0].mxu0 %v2927
        %v3492 = vpop.f32.mrb[0].mxu0
        %v3493 = vadd.f32 %v2905, %v3492
        %v3494 = vpop.f32.mrb[0].mxu0
        %v3495 = vadd.f32 %v2909, %v3494
        %3496 = vdwg.mxu0
        %3497 = vst [vmem:[%s490] sm:$0xff] %v2996
        %3498 = vst [vmem:[%s490 + $0x8] sm:$0xff] %v2998
        %3499 = vst [vmem:[%s490 + $0x10] sm:$0xff] %v3067
        %3500 = vst [vmem:[%s490 + $0x18] sm:$0xff] %v3069
        %3501 = vst [vmem:[%s490 + $0x20] sm:$0xff] %v3138
        %3502 = vst [vmem:[%s490 + $0x28] sm:$0xff] %v3140
        %3503 = vst [vmem:[%s490 + $0x30] sm:$0xff] %v3209
        %3504 = vst [vmem:[%s490 + $0x38] sm:$0xff] %v3211
        %3505 = vst [vmem:[%s490 + $0x40] sm:$0xff] %v3280
        %3506 = vst [vmem:[%s490 + $0x48] sm:$0xff] %v3282
        %3507 = vst [vmem:[%s490 + $0x50] sm:$0xff] %v3351
        %3508 = vst [vmem:[%s490 + $0x58] sm:$0xff] %v3353
        %3509 = vst [vmem:[%s490 + $0x60] sm:$0xff] %v3422
        %3510 = vst [vmem:[%s490 + $0x68] sm:$0xff] %v3424
        %3511 = vst [vmem:[%s490 + $0x70] sm:$0xff] %v3493
        %3512 = vst [vmem:[%s490 + $0x78] sm:$0xff] %v3495
        %p3513 = scmp.lt.s32.totalorder %s27, 1
        %s3514 = scalar_select %p3513, %s27, 1
        %s3515 = smul.addr %s3514, 8
        %s3516 = scalar_lea.vmem %s13, %s3515
        %p3517 = scmp.lt.s32.totalorder %s27, 1
        %s3518 = scalar_select %p3517, %s27, 1
        %s3519 = smul.addr %s3518, 16
        %s3520 = smul.addr %s3519, 8
        %s3521 = scalar_lea.vmem %s14, %s3520
        // Predicated region
        $region77: #{rcnn_head_forward.2} parent=71 // pred_check
          %p3522 = pneg %p323
        $region78: #{rcnn_head_forward.2} parent=71 // pred_check_branch
          %3524 = sbr.rel (%p3522) target = $region80
        $region79: #{rcnn_head_forward.2} parent=71 // pred_region
          _
        $region80: #{rcnn_head_forward.2} parent=71 // pred_fallthru
          _
        // Predicated region
        $region81: #{rcnn_head_forward.2} parent=71 // pred_check
          %p3525 = pneg %p349
        $region82: #{rcnn_head_forward.2} parent=71 // pred_check_branch
          %3527 = sbr.rel (%p3525) target = $region84
        $region83: #{rcnn_head_forward.2} parent=71 // pred_region
          _
        $region84: #{rcnn_head_forward.2} parent=71 // pred_fallthru
          _
      $region72: #{rcnn_head_forward.2} parent=5 // pred_fallthru
        _
      %p3528 = scmp.le.s32.totalorder 2, %s22
      // Predicated region
      $region85: #{rcnn_head_forward.2} parent=5 // pred_check
        %p3529 = pneg %p3528
      $region86: #{rcnn_head_forward.2} parent=5 // pred_check_branch
        %3531 = sbr.rel (%p3529) target = $region88
      $region87: #{rcnn_head_forward.2} parent=5 // pred_region
        %s3532 = ssub.s32 %s22, 2
        // Predicated region
        $region89: #{rcnn_head_forward.2} parent=87 // pred_check
          %p3533 = pneg %p329
        $region90: #{rcnn_head_forward.2} parent=87 // pred_check_branch
          %3535 = sbr.rel (%p3533) target = $region92
        $region91: #{rcnn_head_forward.2} parent=87 // pred_region
          %p3536 = scmp.lt.s32.totalorder %s28, 1
          %s3537 = scalar_select %p3536, %s28, 1
          %s3538 = smul.addr %s3537, 8
          %s3539 = scalar_lea.vmem %s13, %s3538
        $region92: #{rcnn_head_forward.2} parent=87 // pred_fallthru
          _
        // Predicated region
        $region93: #{rcnn_head_forward.2} parent=87 // pred_check
          %p3540 = pneg %p355
        $region94: #{rcnn_head_forward.2} parent=87 // pred_check_branch
          %3542 = sbr.rel (%p3540) target = $region96
        $region95: #{rcnn_head_forward.2} parent=87 // pred_region
          %p3543 = scmp.lt.s32.totalorder %s28, 1
          %s3544 = scalar_select %p3543, %s28, 1
          %s3545 = smul.addr %s3544, 16
          %s3546 = smul.addr %s3545, 8
          %s3547 = scalar_lea.vmem %s14, %s3546
        $region96: #{rcnn_head_forward.2} parent=87 // pred_fallthru
          _
      $region88: #{rcnn_head_forward.2} parent=5 // pred_fallthru
        _
    $region6: #{rcnn_head_forward.2} parent=1 // loop_footer
      %s26 = sadd.s32 1, %s22
    $region7: #{rcnn_head_forward.2} parent=1 // loop_footer_branch
      %21 = sbr.rel target = $region3
    $region8: #{rcnn_head_forward.2} parent=1 // loop_exit
      _
    %3548 = vsyncpa [#allocation3], 1
    %s3549 = scalar_lea.sflag [#allocation3], 1
    %3550 = vsyncpa %s3549, 1

// kernel: rcnn_head_forward.3
$region0: #{rcnn_head_forward.3}
  #allocation0 [shape = 'u32[]', space=smem, size = 0x4, offset = 0x4, fixed_abs, tag = 'smem constant byte address 0x4 - core index']
  #allocation1 [shape = 'u32[144,128]{1,0:T(1,128)}', space=vmem, size = 0x12000, scoped, tag = 'internal scratch']
  #allocation2 [shape = 'f32[8,4,64]{2,1,0:T(4,128)}', space=vmem, size = 0x4000, scoped, tag = 'scratch operand']
  %s0 = inlined_call_operand.smem [shape: u32[36], index: -1, kind: input, shape index: {}]
  %s1 = sld [smem:[%s0]]
  %s2 = scalar_lea.smem %s0, 1
  %s3 = sld [smem:[%s2]]
  %s4 = scalar_lea.smem %s0, 2
  %s5 = sld [smem:[%s4]]
  %s6 = scalar_lea.smem %s0, 3
  %s7 = sld [smem:[%s6]]
  %s8 = scalar_lea.smem %s0, 4
  %s9 = sld [smem:[%s8]]
  %s10 = scalar_lea.smem %s0, 5
  %s11 = sld [smem:[%s10]]
  %s12 = scalar_lea.smem %s0, 6
  %s13 = sld [smem:[%s12]]
  %s14 = scalar_lea.smem %s0, 7
  %s15 = sld [smem:[%s14]]
  %s16 = scalar_lea.smem %s0, 8
  %s17 = sld [smem:[%s16]]
  %s18 = scalar_lea.smem %s0, 9
  %s19 = sld [smem:[%s18]]
  %s20 = scalar_lea.smem %s0, 10
  %s21 = sld [smem:[%s20]]
  %s22 = scalar_lea.smem %s0, 11
  %s23 = sld [smem:[%s22]]
  %s24 = scalar_lea.smem %s0, 12
  %s25 = sld [smem:[%s24]]
  %s26 = scalar_lea.smem %s0, 13
  %s27 = sld [smem:[%s26]]
  %s28 = scalar_lea.smem %s0, 14
  %s29 = sld [smem:[%s28]]
  %s30 = scalar_lea.smem %s0, 15
  %s31 = sld [smem:[%s30]]
  %s32 = scalar_lea.smem %s0, 16
  %s33 = sld [smem:[%s32]]
  %s34 = scalar_lea.smem %s0, 17
  %s35 = sld [smem:[%s34]]
  %s36 = scalar_lea.smem %s0, 18
  %s37 = sld [smem:[%s36]]
  %s38 = scalar_lea.smem %s0, 19
  %s39 = sld [smem:[%s38]]
  %s40 = scalar_lea.smem %s0, 20
  %s41 = sld [smem:[%s40]]
  %s42 = scalar_lea.smem %s0, 21
  %s43 = sld [smem:[%s42]]
  %s44 = scalar_lea.smem %s0, 22
  %s45 = sld [smem:[%s44]]
  %s46 = scalar_lea.smem %s0, 23
  %s47 = sld [smem:[%s46]]
  %s48 = scalar_lea.smem %s0, 24
  %s49 = sld [smem:[%s48]]
  %s50 = scalar_lea.smem %s0, 25
  %s51 = sld [smem:[%s50]]
  %s52 = scalar_lea.smem %s0, 26
  %s53 = sld [smem:[%s52]]
  %s54 = scalar_lea.smem %s0, 27
  %s55 = sld [smem:[%s54]]
  %s56 = scalar_lea.smem %s0, 28
  %s57 = sld [smem:[%s56]]
  %s58 = scalar_lea.smem %s0, 29
  %s59 = sld [smem:[%s58]]
  %s60 = scalar_lea.smem %s0, 30
  %s61 = sld [smem:[%s60]]
  %s62 = scalar_lea.smem %s0, 31
  %s63 = sld [smem:[%s62]]
  %s64 = scalar_lea.smem %s0, 32
  %s65 = sld [smem:[%s64]]
  %s66 = scalar_lea.smem %s0, 33
  %s67 = sld [smem:[%s66]]
  %s68 = scalar_lea.smem %s0, 34
  %s69 = sld [smem:[%s68]]
  %s70 = scalar_lea.smem %s0, 35
  %s71 = sld [smem:[%s70]]
  %s72 = sld [smem:[#allocation0]]
  $region173: #{rcnn_head_forward.3} parent=0
    _
  %s74 = ssub.s32 1, %s72
  %s75 = scalar_select 0, %s74, %s72
  loop: start=0, step=1, limit=4
  $region2: #{rcnn_head_forward.3} parent=0 // loop_pre_header
    _
  $region3: #{rcnn_head_forward.3} parent=0 // loop_header
    %s77 = sphi 0, %s81
    %p78 = scmp.ge.s32.totalorder %s77, 4
    %s87 = sphi 0, %s89
    %s90 = sphi 0, %s87
    %s91 = sphi 0, %s90
    %s107 = sphi 0, %s91
    %s113 = sphi 0, %s115
    %s116 = sphi 0, %s113
    %s117 = sphi 0, %s116
    %s133 = sphi 0, %s117
    %s139 = sphi 0, %s141
    %s142 = sphi 0, %s139
    %s143 = sphi 0, %s142
    %s159 = sphi 0, %s143
    %s165 = sphi 0, %s167
    %s168 = sphi 0, %s165
    %s169 = sphi 0, %s168
    %s185 = sphi 0, %s169
    %s191 = sphi 0, %s193
    %s194 = sphi 0, %s191
    %s195 = sphi 0, %s194
    %s211 = sphi 0, %s195
    %s217 = sphi 0, %s219
    %s220 = sphi 0, %s217
    %s221 = sphi 0, %s220
    %s237 = sphi 0, %s221
    %s243 = sphi 0, %s245
    %s246 = sphi 0, %s243
    %s247 = sphi 0, %s246
    %s263 = sphi 0, %s247
    %s269 = sphi 0, %s271
    %s272 = sphi 0, %s269
    %s273 = sphi 0, %s272
    %s289 = sphi 0, %s273
    %s295 = sphi 0, %s297
    %s298 = sphi 0, %s295
    %s299 = sphi 0, %s298
    %s315 = sphi 0, %s299
    %s319 = sphi 0, %s319
    %s321 = sphi 0, %s319
    %s322 = sphi 0, %s321
    %s336 = sphi 0, %s322
    %s340 = sphi 0, %s340
    %s342 = sphi 0, %s340
    %s343 = sphi 0, %s342
    %s357 = sphi 0, %s343
    %s361 = sphi 0, %s361
    %s363 = sphi 0, %s361
    %s364 = sphi 0, %s363
    %s378 = sphi 0, %s364
    %s382 = sphi 0, %s382
    %s384 = sphi 0, %s382
    %s385 = sphi 0, %s384
    %s399 = sphi 0, %s385
    %s403 = sphi 0, %s403
    %s405 = sphi 0, %s403
    %s406 = sphi 0, %s405
    %s420 = sphi 0, %s406
    %s424 = sphi 0, %s424
    %s426 = sphi 0, %s424
    %s427 = sphi 0, %s426
    %s441 = sphi 0, %s427
    %s445 = sphi 0, %s445
    %s447 = sphi 0, %s445
    %s448 = sphi 0, %s447
    %s462 = sphi 0, %s448
    %s466 = sphi 0, %s466
    %s468 = sphi 0, %s466
    %s469 = sphi 0, %s468
    %s483 = sphi 0, %s469
    %s487 = sphi 0, %s487
    %s489 = sphi 0, %s487
    %s490 = sphi 0, %s489
    %s504 = sphi 0, %s490
    %s508 = sphi 0, %s508
    %s510 = sphi 0, %s508
    %s511 = sphi 0, %s510
    %s525 = sphi 0, %s511
    %s529 = sphi 0, %s529
    %s531 = sphi 0, %s529
    %s532 = sphi 0, %s531
    %s546 = sphi 0, %s532
    %s550 = sphi 0, %s550
    %s552 = sphi 0, %s550
    %s553 = sphi 0, %s552
    %s567 = sphi 0, %s553
    %s571 = sphi 0, %s571
    %s573 = sphi 0, %s571
    %s574 = sphi 0, %s573
    %s588 = sphi 0, %s574
    %s592 = sphi 0, %s592
    %s594 = sphi 0, %s592
    %s595 = sphi 0, %s594
    %s609 = sphi 0, %s595
    %s613 = sphi 0, %s613
    %s615 = sphi 0, %s613
    %s616 = sphi 0, %s615
    %s630 = sphi 0, %s616
    %s634 = sphi 0, %s634
    %s636 = sphi 0, %s634
    %s637 = sphi 0, %s636
    %s651 = sphi 0, %s637
    %s655 = sphi 0, %s655
    %s657 = sphi 0, %s655
    %s658 = sphi 0, %s657
    %s672 = sphi 0, %s658
    %s676 = sphi 0, %s676
    %s678 = sphi 0, %s676
    %s679 = sphi 0, %s678
    %s693 = sphi 0, %s679
    %s697 = sphi 0, %s697
    %s699 = sphi 0, %s697
    %s700 = sphi 0, %s699
    %s714 = sphi 0, %s700
    %s718 = sphi 0, %s718
    %s720 = sphi 0, %s718
    %s721 = sphi 0, %s720
    %s735 = sphi 0, %s721
    %s739 = sphi 0, %s739
    %s741 = sphi 0, %s739
    %s742 = sphi 0, %s741
    %s756 = sphi 0, %s742
    %s760 = sphi 0, %s760
    %s762 = sphi 0, %s760
    %s763 = sphi 0, %s762
    %s777 = sphi 0, %s763
    %s781 = sphi 0, %s781
    %s783 = sphi 0, %s781
    %s784 = sphi 0, %s783
    %s798 = sphi 0, %s784
    %s802 = sphi 0, %s802
    %s804 = sphi 0, %s802
    %s805 = sphi 0, %s804
    %s819 = sphi 0, %s805
    %s823 = sphi 0, %s823
    %s825 = sphi 0, %s823
    %s826 = sphi 0, %s825
    %s840 = sphi 0, %s826
    %s844 = sphi 0, %s844
    %s846 = sphi 0, %s844
    %s847 = sphi 0, %s846
    %s861 = sphi 0, %s847
    %s867 = sphi 0, %s869
    %s870 = sphi 0, %s867
    %s871 = sphi 0, %s870
    %s887 = sphi 0, %s871
  $region4: #{rcnn_head_forward.3} parent=0 // loop_header_branch
    %80 = sbr.rel (%p78) target = $region8
  $region5: #{rcnn_head_forward.3} parent=0 // loop_body
    %s82 = ssub.s32 %s77, 1
    %s83 = ssub.s32 %s77, 2
    %s84 = sadd.s32 %s77, 1
    %s85 = ssub.s32 %s77, %s84
    %p86 = scmp.eq.s32.totalorder %s85, 0
    %s88 = sadd.s32 %s87, 1
    %s89 = scalar_select %p86, %s87, %s88
    %p92 = pneg %p86
    %p93 = scmp.eq.s32.totalorder %s77, 1
    %p94 = por %p92, %p93
    %p95 = scmp.ne.s32.totalorder %s87, %s90
    %p96 = scmp.eq.s32.totalorder %s77, 0
    %p97 = por %p95, %p96
    %p98 = scmp.ne.s32.totalorder %s87, %s90
    %p99 = scmp.eq.s32.totalorder %s82, 1
    %p100 = por %p98, %p99
    %p101 = scmp.ne.s32.totalorder %s90, %s91
    %p102 = scmp.eq.s32.totalorder %s82, 0
    %p103 = por %p101, %p102
    %p104 = scmp.ne.s32.totalorder %s90, %s91
    %p105 = scmp.eq.s32.totalorder %s83, 1
    %p106 = por %p104, %p105
    %p108 = scmp.ne.s32.totalorder %s91, %s107
    %p109 = scmp.eq.s32.totalorder %s83, 0
    %p110 = por %p108, %p109
    %s111 = ssub.s32 %s77, %s84
    %p112 = scmp.eq.s32.totalorder %s111, 0
    %s114 = sadd.s32 %s113, 1
    %s115 = scalar_select %p112, %s113, %s114
    %p118 = pneg %p112
    %p119 = scmp.eq.s32.totalorder %s77, 1
    %p120 = por %p118, %p119
    %p121 = scmp.ne.s32.totalorder %s113, %s116
    %p122 = scmp.eq.s32.totalorder %s77, 0
    %p123 = por %p121, %p122
    %p124 = scmp.ne.s32.totalorder %s113, %s116
    %p125 = scmp.eq.s32.totalorder %s82, 1
    %p126 = por %p124, %p125
    %p127 = scmp.ne.s32.totalorder %s116, %s117
    %p128 = scmp.eq.s32.totalorder %s82, 0
    %p129 = por %p127, %p128
    %p130 = scmp.ne.s32.totalorder %s116, %s117
    %p131 = scmp.eq.s32.totalorder %s83, 1
    %p132 = por %p130, %p131
    %p134 = scmp.ne.s32.totalorder %s117, %s133
    %p135 = scmp.eq.s32.totalorder %s83, 0
    %p136 = por %p134, %p135
    %s137 = ssub.s32 %s77, %s84
    %p138 = scmp.eq.s32.totalorder %s137, 0
    %s140 = sadd.s32 %s139, 1
    %s141 = scalar_select %p138, %s139, %s140
    %p144 = pneg %p138
    %p145 = scmp.eq.s32.totalorder %s77, 1
    %p146 = por %p144, %p145
    %p147 = scmp.ne.s32.totalorder %s139, %s142
    %p148 = scmp.eq.s32.totalorder %s77, 0
    %p149 = por %p147, %p148
    %p150 = scmp.ne.s32.totalorder %s139, %s142
    %p151 = scmp.eq.s32.totalorder %s82, 1
    %p152 = por %p150, %p151
    %p153 = scmp.ne.s32.totalorder %s142, %s143
    %p154 = scmp.eq.s32.totalorder %s82, 0
    %p155 = por %p153, %p154
    %p156 = scmp.ne.s32.totalorder %s142, %s143
    %p157 = scmp.eq.s32.totalorder %s83, 1
    %p158 = por %p156, %p157
    %p160 = scmp.ne.s32.totalorder %s143, %s159
    %p161 = scmp.eq.s32.totalorder %s83, 0
    %p162 = por %p160, %p161
    %s163 = ssub.s32 %s77, %s84
    %p164 = scmp.eq.s32.totalorder %s163, 0
    %s166 = sadd.s32 %s165, 1
    %s167 = scalar_select %p164, %s165, %s166
    %p170 = pneg %p164
    %p171 = scmp.eq.s32.totalorder %s77, 1
    %p172 = por %p170, %p171
    %p173 = scmp.ne.s32.totalorder %s165, %s168
    %p174 = scmp.eq.s32.totalorder %s77, 0
    %p175 = por %p173, %p174
    %p176 = scmp.ne.s32.totalorder %s165, %s168
    %p177 = scmp.eq.s32.totalorder %s82, 1
    %p178 = por %p176, %p177
    %p179 = scmp.ne.s32.totalorder %s168, %s169
    %p180 = scmp.eq.s32.totalorder %s82, 0
    %p181 = por %p179, %p180
    %p182 = scmp.ne.s32.totalorder %s168, %s169
    %p183 = scmp.eq.s32.totalorder %s83, 1
    %p184 = por %p182, %p183
    %p186 = scmp.ne.s32.totalorder %s169, %s185
    %p187 = scmp.eq.s32.totalorder %s83, 0
    %p188 = por %p186, %p187
    %s189 = ssub.s32 %s77, %s84
    %p190 = scmp.eq.s32.totalorder %s189, 0
    %s192 = sadd.s32 %s191, 1
    %s193 = scalar_select %p190, %s191, %s192
    %p196 = pneg %p190
    %p197 = scmp.eq.s32.totalorder %s77, 1
    %p198 = por %p196, %p197
    %p199 = scmp.ne.s32.totalorder %s191, %s194
    %p200 = scmp.eq.s32.totalorder %s77, 0
    %p201 = por %p199, %p200
    %p202 = scmp.ne.s32.totalorder %s191, %s194
    %p203 = scmp.eq.s32.totalorder %s82, 1
    %p204 = por %p202, %p203
    %p205 = scmp.ne.s32.totalorder %s194, %s195
    %p206 = scmp.eq.s32.totalorder %s82, 0
    %p207 = por %p205, %p206
    %p208 = scmp.ne.s32.totalorder %s194, %s195
    %p209 = scmp.eq.s32.totalorder %s83, 1
    %p210 = por %p208, %p209
    %p212 = scmp.ne.s32.totalorder %s195, %s211
    %p213 = scmp.eq.s32.totalorder %s83, 0
    %p214 = por %p212, %p213
    %s215 = ssub.s32 %s77, %s84
    %p216 = scmp.eq.s32.totalorder %s215, 0
    %s218 = sadd.s32 %s217, 1
    %s219 = scalar_select %p216, %s217, %s218
    %p222 = pneg %p216
    %p223 = scmp.eq.s32.totalorder %s77, 1
    %p224 = por %p222, %p223
    %p225 = scmp.ne.s32.totalorder %s217, %s220
    %p226 = scmp.eq.s32.totalorder %s77, 0
    %p227 = por %p225, %p226
    %p228 = scmp.ne.s32.totalorder %s217, %s220
    %p229 = scmp.eq.s32.totalorder %s82, 1
    %p230 = por %p228, %p229
    %p231 = scmp.ne.s32.totalorder %s220, %s221
    %p232 = scmp.eq.s32.totalorder %s82, 0
    %p233 = por %p231, %p232
    %p234 = scmp.ne.s32.totalorder %s220, %s221
    %p235 = scmp.eq.s32.totalorder %s83, 1
    %p236 = por %p234, %p235
    %p238 = scmp.ne.s32.totalorder %s221, %s237
    %p239 = scmp.eq.s32.totalorder %s83, 0
    %p240 = por %p238, %p239
    %s241 = ssub.s32 %s77, %s84
    %p242 = scmp.eq.s32.totalorder %s241, 0
    %s244 = sadd.s32 %s243, 1
    %s245 = scalar_select %p242, %s243, %s244
    %p248 = pneg %p242
    %p249 = scmp.eq.s32.totalorder %s77, 1
    %p250 = por %p248, %p249
    %p251 = scmp.ne.s32.totalorder %s243, %s246
    %p252 = scmp.eq.s32.totalorder %s77, 0
    %p253 = por %p251, %p252
    %p254 = scmp.ne.s32.totalorder %s243, %s246
    %p255 = scmp.eq.s32.totalorder %s82, 1
    %p256 = por %p254, %p255
    %p257 = scmp.ne.s32.totalorder %s246, %s247
    %p258 = scmp.eq.s32.totalorder %s82, 0
    %p259 = por %p257, %p258
    %p260 = scmp.ne.s32.totalorder %s246, %s247
    %p261 = scmp.eq.s32.totalorder %s83, 1
    %p262 = por %p260, %p261
    %p264 = scmp.ne.s32.totalorder %s247, %s263
    %p265 = scmp.eq.s32.totalorder %s83, 0
    %p266 = por %p264, %p265
    %s267 = ssub.s32 %s77, %s84
    %p268 = scmp.eq.s32.totalorder %s267, 0
    %s270 = sadd.s32 %s269, 1
    %s271 = scalar_select %p268, %s269, %s270
    %p274 = pneg %p268
    %p275 = scmp.eq.s32.totalorder %s77, 1
    %p276 = por %p274, %p275
    %p277 = scmp.ne.s32.totalorder %s269, %s272
    %p278 = scmp.eq.s32.totalorder %s77, 0
    %p279 = por %p277, %p278
    %p280 = scmp.ne.s32.totalorder %s269, %s272
    %p281 = scmp.eq.s32.totalorder %s82, 1
    %p282 = por %p280, %p281
    %p283 = scmp.ne.s32.totalorder %s272, %s273
    %p284 = scmp.eq.s32.totalorder %s82, 0
    %p285 = por %p283, %p284
    %p286 = scmp.ne.s32.totalorder %s272, %s273
    %p287 = scmp.eq.s32.totalorder %s83, 1
    %p288 = por %p286, %p287
    %p290 = scmp.ne.s32.totalorder %s273, %s289
    %p291 = scmp.eq.s32.totalorder %s83, 0
    %p292 = por %p290, %p291
    %s293 = ssub.s32 %s77, %s84
    %p294 = scmp.eq.s32.totalorder %s293, 0
    %s296 = sadd.s32 %s295, 1
    %s297 = scalar_select %p294, %s295, %s296
    %p300 = pneg %p294
    %p301 = scmp.eq.s32.totalorder %s77, 1
    %p302 = por %p300, %p301
    %p303 = scmp.ne.s32.totalorder %s295, %s298
    %p304 = scmp.eq.s32.totalorder %s77, 0
    %p305 = por %p303, %p304
    %p306 = scmp.ne.s32.totalorder %s295, %s298
    %p307 = scmp.eq.s32.totalorder %s82, 1
    %p308 = por %p306, %p307
    %p309 = scmp.ne.s32.totalorder %s298, %s299
    %p310 = scmp.eq.s32.totalorder %s82, 0
    %p311 = por %p309, %p310
    %p312 = scmp.ne.s32.totalorder %s298, %s299
    %p313 = scmp.eq.s32.totalorder %s83, 1
    %p314 = por %p312, %p313
    %p316 = scmp.ne.s32.totalorder %s299, %s315
    %p317 = scmp.eq.s32.totalorder %s83, 0
    %p318 = por %p316, %p317
    %s320 = sadd.s32 %s319, 1
    %p323 = scmp.eq.s32.totalorder %s77, 1
    %p324 = scmp.ne.s32.totalorder %s319, %s321
    %p325 = scmp.eq.s32.totalorder %s77, 0
    %p326 = por %p324, %p325
    %p327 = scmp.ne.s32.totalorder %s319, %s321
    %p328 = scmp.eq.s32.totalorder %s82, 1
    %p329 = por %p327, %p328
    %p330 = scmp.ne.s32.totalorder %s321, %s322
    %p331 = scmp.eq.s32.totalorder %s82, 0
    %p332 = por %p330, %p331
    %p333 = scmp.ne.s32.totalorder %s321, %s322
    %p334 = scmp.eq.s32.totalorder %s83, 1
    %p335 = por %p333, %p334
    %p337 = scmp.ne.s32.totalorder %s322, %s336
    %p338 = scmp.eq.s32.totalorder %s83, 0
    %p339 = por %p337, %p338
    %s341 = sadd.s32 %s340, 1
    %p344 = scmp.eq.s32.totalorder %s77, 1
    %p345 = scmp.ne.s32.totalorder %s340, %s342
    %p346 = scmp.eq.s32.totalorder %s77, 0
    %p347 = por %p345, %p346
    %p348 = scmp.ne.s32.totalorder %s340, %s342
    %p349 = scmp.eq.s32.totalorder %s82, 1
    %p350 = por %p348, %p349
    %p351 = scmp.ne.s32.totalorder %s342, %s343
    %p352 = scmp.eq.s32.totalorder %s82, 0
    %p353 = por %p351, %p352
    %p354 = scmp.ne.s32.totalorder %s342, %s343
    %p355 = scmp.eq.s32.totalorder %s83, 1
    %p356 = por %p354, %p355
    %p358 = scmp.ne.s32.totalorder %s343, %s357
    %p359 = scmp.eq.s32.totalorder %s83, 0
    %p360 = por %p358, %p359
    %s362 = sadd.s32 %s361, 1
    %p365 = scmp.eq.s32.totalorder %s77, 1
    %p366 = scmp.ne.s32.totalorder %s361, %s363
    %p367 = scmp.eq.s32.totalorder %s77, 0
    %p368 = por %p366, %p367
    %p369 = scmp.ne.s32.totalorder %s361, %s363
    %p370 = scmp.eq.s32.totalorder %s82, 1
    %p371 = por %p369, %p370
    %p372 = scmp.ne.s32.totalorder %s363, %s364
    %p373 = scmp.eq.s32.totalorder %s82, 0
    %p374 = por %p372, %p373
    %p375 = scmp.ne.s32.totalorder %s363, %s364
    %p376 = scmp.eq.s32.totalorder %s83, 1
    %p377 = por %p375, %p376
    %p379 = scmp.ne.s32.totalorder %s364, %s378
    %p380 = scmp.eq.s32.totalorder %s83, 0
    %p381 = por %p379, %p380
    %s383 = sadd.s32 %s382, 1
    %p386 = scmp.eq.s32.totalorder %s77, 1
    %p387 = scmp.ne.s32.totalorder %s382, %s384
    %p388 = scmp.eq.s32.totalorder %s77, 0
    %p389 = por %p387, %p388
    %p390 = scmp.ne.s32.totalorder %s382, %s384
    %p391 = scmp.eq.s32.totalorder %s82, 1
    %p392 = por %p390, %p391
    %p393 = scmp.ne.s32.totalorder %s384, %s385
    %p394 = scmp.eq.s32.totalorder %s82, 0
    %p395 = por %p393, %p394
    %p396 = scmp.ne.s32.totalorder %s384, %s385
    %p397 = scmp.eq.s32.totalorder %s83, 1
    %p398 = por %p396, %p397
    %p400 = scmp.ne.s32.totalorder %s385, %s399
    %p401 = scmp.eq.s32.totalorder %s83, 0
    %p402 = por %p400, %p401
    %s404 = sadd.s32 %s403, 1
    %p407 = scmp.eq.s32.totalorder %s77, 1
    %p408 = scmp.ne.s32.totalorder %s403, %s405
    %p409 = scmp.eq.s32.totalorder %s77, 0
    %p410 = por %p408, %p409
    %p411 = scmp.ne.s32.totalorder %s403, %s405
    %p412 = scmp.eq.s32.totalorder %s82, 1
    %p413 = por %p411, %p412
    %p414 = scmp.ne.s32.totalorder %s405, %s406
    %p415 = scmp.eq.s32.totalorder %s82, 0
    %p416 = por %p414, %p415
    %p417 = scmp.ne.s32.totalorder %s405, %s406
    %p418 = scmp.eq.s32.totalorder %s83, 1
    %p419 = por %p417, %p418
    %p421 = scmp.ne.s32.totalorder %s406, %s420
    %p422 = scmp.eq.s32.totalorder %s83, 0
    %p423 = por %p421, %p422
    %s425 = sadd.s32 %s424, 1
    %p428 = scmp.eq.s32.totalorder %s77, 1
    %p429 = scmp.ne.s32.totalorder %s424, %s426
    %p430 = scmp.eq.s32.totalorder %s77, 0
    %p431 = por %p429, %p430
    %p432 = scmp.ne.s32.totalorder %s424, %s426
    %p433 = scmp.eq.s32.totalorder %s82, 1
    %p434 = por %p432, %p433
    %p435 = scmp.ne.s32.totalorder %s426, %s427
    %p436 = scmp.eq.s32.totalorder %s82, 0
    %p437 = por %p435, %p436
    %p438 = scmp.ne.s32.totalorder %s426, %s427
    %p439 = scmp.eq.s32.totalorder %s83, 1
    %p440 = por %p438, %p439
    %p442 = scmp.ne.s32.totalorder %s427, %s441
    %p443 = scmp.eq.s32.totalorder %s83, 0
    %p444 = por %p442, %p443
    %s446 = sadd.s32 %s445, 1
    %p449 = scmp.eq.s32.totalorder %s77, 1
    %p450 = scmp.ne.s32.totalorder %s445, %s447
    %p451 = scmp.eq.s32.totalorder %s77, 0
    %p452 = por %p450, %p451
    %p453 = scmp.ne.s32.totalorder %s445, %s447
    %p454 = scmp.eq.s32.totalorder %s82, 1
    %p455 = por %p453, %p454
    %p456 = scmp.ne.s32.totalorder %s447, %s448
    %p457 = scmp.eq.s32.totalorder %s82, 0
    %p458 = por %p456, %p457
    %p459 = scmp.ne.s32.totalorder %s447, %s448
    %p460 = scmp.eq.s32.totalorder %s83, 1
    %p461 = por %p459, %p460
    %p463 = scmp.ne.s32.totalorder %s448, %s462
    %p464 = scmp.eq.s32.totalorder %s83, 0
    %p465 = por %p463, %p464
    %s467 = sadd.s32 %s466, 1
    %p470 = scmp.eq.s32.totalorder %s77, 1
    %p471 = scmp.ne.s32.totalorder %s466, %s468
    %p472 = scmp.eq.s32.totalorder %s77, 0
    %p473 = por %p471, %p472
    %p474 = scmp.ne.s32.totalorder %s466, %s468
    %p475 = scmp.eq.s32.totalorder %s82, 1
    %p476 = por %p474, %p475
    %p477 = scmp.ne.s32.totalorder %s468, %s469
    %p478 = scmp.eq.s32.totalorder %s82, 0
    %p479 = por %p477, %p478
    %p480 = scmp.ne.s32.totalorder %s468, %s469
    %p481 = scmp.eq.s32.totalorder %s83, 1
    %p482 = por %p480, %p481
    %p484 = scmp.ne.s32.totalorder %s469, %s483
    %p485 = scmp.eq.s32.totalorder %s83, 0
    %p486 = por %p484, %p485
    %s488 = sadd.s32 %s487, 1
    %p491 = scmp.eq.s32.totalorder %s77, 1
    %p492 = scmp.ne.s32.totalorder %s487, %s489
    %p493 = scmp.eq.s32.totalorder %s77, 0
    %p494 = por %p492, %p493
    %p495 = scmp.ne.s32.totalorder %s487, %s489
    %p496 = scmp.eq.s32.totalorder %s82, 1
    %p497 = por %p495, %p496
    %p498 = scmp.ne.s32.totalorder %s489, %s490
    %p499 = scmp.eq.s32.totalorder %s82, 0
    %p500 = por %p498, %p499
    %p501 = scmp.ne.s32.totalorder %s489, %s490
    %p502 = scmp.eq.s32.totalorder %s83, 1
    %p503 = por %p501, %p502
    %p505 = scmp.ne.s32.totalorder %s490, %s504
    %p506 = scmp.eq.s32.totalorder %s83, 0
    %p507 = por %p505, %p506
    %s509 = sadd.s32 %s508, 1
    %p512 = scmp.eq.s32.totalorder %s77, 1
    %p513 = scmp.ne.s32.totalorder %s508, %s510
    %p514 = scmp.eq.s32.totalorder %s77, 0
    %p515 = por %p513, %p514
    %p516 = scmp.ne.s32.totalorder %s508, %s510
    %p517 = scmp.eq.s32.totalorder %s82, 1
    %p518 = por %p516, %p517
    %p519 = scmp.ne.s32.totalorder %s510, %s511
    %p520 = scmp.eq.s32.totalorder %s82, 0
    %p521 = por %p519, %p520
    %p522 = scmp.ne.s32.totalorder %s510, %s511
    %p523 = scmp.eq.s32.totalorder %s83, 1
    %p524 = por %p522, %p523
    %p526 = scmp.ne.s32.totalorder %s511, %s525
    %p527 = scmp.eq.s32.totalorder %s83, 0
    %p528 = por %p526, %p527
    %s530 = sadd.s32 %s529, 1
    %p533 = scmp.eq.s32.totalorder %s77, 1
    %p534 = scmp.ne.s32.totalorder %s529, %s531
    %p535 = scmp.eq.s32.totalorder %s77, 0
    %p536 = por %p534, %p535
    %p537 = scmp.ne.s32.totalorder %s529, %s531
    %p538 = scmp.eq.s32.totalorder %s82, 1
    %p539 = por %p537, %p538
    %p540 = scmp.ne.s32.totalorder %s531, %s532
    %p541 = scmp.eq.s32.totalorder %s82, 0
    %p542 = por %p540, %p541
    %p543 = scmp.ne.s32.totalorder %s531, %s532
    %p544 = scmp.eq.s32.totalorder %s83, 1
    %p545 = por %p543, %p544
    %p547 = scmp.ne.s32.totalorder %s532, %s546
    %p548 = scmp.eq.s32.totalorder %s83, 0
    %p549 = por %p547, %p548
    %s551 = sadd.s32 %s550, 1
    %p554 = scmp.eq.s32.totalorder %s77, 1
    %p555 = scmp.ne.s32.totalorder %s550, %s552
    %p556 = scmp.eq.s32.totalorder %s77, 0
    %p557 = por %p555, %p556
    %p558 = scmp.ne.s32.totalorder %s550, %s552
    %p559 = scmp.eq.s32.totalorder %s82, 1
    %p560 = por %p558, %p559
    %p561 = scmp.ne.s32.totalorder %s552, %s553
    %p562 = scmp.eq.s32.totalorder %s82, 0
    %p563 = por %p561, %p562
    %p564 = scmp.ne.s32.totalorder %s552, %s553
    %p565 = scmp.eq.s32.totalorder %s83, 1
    %p566 = por %p564, %p565
    %p568 = scmp.ne.s32.totalorder %s553, %s567
    %p569 = scmp.eq.s32.totalorder %s83, 0
    %p570 = por %p568, %p569
    %s572 = sadd.s32 %s571, 1
    %p575 = scmp.eq.s32.totalorder %s77, 1
    %p576 = scmp.ne.s32.totalorder %s571, %s573
    %p577 = scmp.eq.s32.totalorder %s77, 0
    %p578 = por %p576, %p577
    %p579 = scmp.ne.s32.totalorder %s571, %s573
    %p580 = scmp.eq.s32.totalorder %s82, 1
    %p581 = por %p579, %p580
    %p582 = scmp.ne.s32.totalorder %s573, %s574
    %p583 = scmp.eq.s32.totalorder %s82, 0
    %p584 = por %p582, %p583
    %p585 = scmp.ne.s32.totalorder %s573, %s574
    %p586 = scmp.eq.s32.totalorder %s83, 1
    %p587 = por %p585, %p586
    %p589 = scmp.ne.s32.totalorder %s574, %s588
    %p590 = scmp.eq.s32.totalorder %s83, 0
    %p591 = por %p589, %p590
    %s593 = sadd.s32 %s592, 1
    %p596 = scmp.eq.s32.totalorder %s77, 1
    %p597 = scmp.ne.s32.totalorder %s592, %s594
    %p598 = scmp.eq.s32.totalorder %s77, 0
    %p599 = por %p597, %p598
    %p600 = scmp.ne.s32.totalorder %s592, %s594
    %p601 = scmp.eq.s32.totalorder %s82, 1
    %p602 = por %p600, %p601
    %p603 = scmp.ne.s32.totalorder %s594, %s595
    %p604 = scmp.eq.s32.totalorder %s82, 0
    %p605 = por %p603, %p604
    %p606 = scmp.ne.s32.totalorder %s594, %s595
    %p607 = scmp.eq.s32.totalorder %s83, 1
    %p608 = por %p606, %p607
    %p610 = scmp.ne.s32.totalorder %s595, %s609
    %p611 = scmp.eq.s32.totalorder %s83, 0
    %p612 = por %p610, %p611
    %s614 = sadd.s32 %s613, 1
    %p617 = scmp.eq.s32.totalorder %s77, 1
    %p618 = scmp.ne.s32.totalorder %s613, %s615
    %p619 = scmp.eq.s32.totalorder %s77, 0
    %p620 = por %p618, %p619
    %p621 = scmp.ne.s32.totalorder %s613, %s615
    %p622 = scmp.eq.s32.totalorder %s82, 1
    %p623 = por %p621, %p622
    %p624 = scmp.ne.s32.totalorder %s615, %s616
    %p625 = scmp.eq.s32.totalorder %s82, 0
    %p626 = por %p624, %p625
    %p627 = scmp.ne.s32.totalorder %s615, %s616
    %p628 = scmp.eq.s32.totalorder %s83, 1
    %p629 = por %p627, %p628
    %p631 = scmp.ne.s32.totalorder %s616, %s630
    %p632 = scmp.eq.s32.totalorder %s83, 0
    %p633 = por %p631, %p632
    %s635 = sadd.s32 %s634, 1
    %p638 = scmp.eq.s32.totalorder %s77, 1
    %p639 = scmp.ne.s32.totalorder %s634, %s636
    %p640 = scmp.eq.s32.totalorder %s77, 0
    %p641 = por %p639, %p640
    %p642 = scmp.ne.s32.totalorder %s634, %s636
    %p643 = scmp.eq.s32.totalorder %s82, 1
    %p644 = por %p642, %p643
    %p645 = scmp.ne.s32.totalorder %s636, %s637
    %p646 = scmp.eq.s32.totalorder %s82, 0
    %p647 = por %p645, %p646
    %p648 = scmp.ne.s32.totalorder %s636, %s637
    %p649 = scmp.eq.s32.totalorder %s83, 1
    %p650 = por %p648, %p649
    %p652 = scmp.ne.s32.totalorder %s637, %s651
    %p653 = scmp.eq.s32.totalorder %s83, 0
    %p654 = por %p652, %p653
    %s656 = sadd.s32 %s655, 1
    %p659 = scmp.eq.s32.totalorder %s77, 1
    %p660 = scmp.ne.s32.totalorder %s655, %s657
    %p661 = scmp.eq.s32.totalorder %s77, 0
    %p662 = por %p660, %p661
    %p663 = scmp.ne.s32.totalorder %s655, %s657
    %p664 = scmp.eq.s32.totalorder %s82, 1
    %p665 = por %p663, %p664
    %p666 = scmp.ne.s32.totalorder %s657, %s658
    %p667 = scmp.eq.s32.totalorder %s82, 0
    %p668 = por %p666, %p667
    %p669 = scmp.ne.s32.totalorder %s657, %s658
    %p670 = scmp.eq.s32.totalorder %s83, 1
    %p671 = por %p669, %p670
    %p673 = scmp.ne.s32.totalorder %s658, %s672
    %p674 = scmp.eq.s32.totalorder %s83, 0
    %p675 = por %p673, %p674
    %s677 = sadd.s32 %s676, 1
    %p680 = scmp.eq.s32.totalorder %s77, 1
    %p681 = scmp.ne.s32.totalorder %s676, %s678
    %p682 = scmp.eq.s32.totalorder %s77, 0
    %p683 = por %p681, %p682
    %p684 = scmp.ne.s32.totalorder %s676, %s678
    %p685 = scmp.eq.s32.totalorder %s82, 1
    %p686 = por %p684, %p685
    %p687 = scmp.ne.s32.totalorder %s678, %s679
    %p688 = scmp.eq.s32.totalorder %s82, 0
    %p689 = por %p687, %p688
    %p690 = scmp.ne.s32.totalorder %s678, %s679
    %p691 = scmp.eq.s32.totalorder %s83, 1
    %p692 = por %p690, %p691
    %p694 = scmp.ne.s32.totalorder %s679, %s693
    %p695 = scmp.eq.s32.totalorder %s83, 0
    %p696 = por %p694, %p695
    %s698 = sadd.s32 %s697, 1
    %p701 = scmp.eq.s32.totalorder %s77, 1
    %p702 = scmp.ne.s32.totalorder %s697, %s699
    %p703 = scmp.eq.s32.totalorder %s77, 0
    %p704 = por %p702, %p703
    %p705 = scmp.ne.s32.totalorder %s697, %s699
    %p706 = scmp.eq.s32.totalorder %s82, 1
    %p707 = por %p705, %p706
    %p708 = scmp.ne.s32.totalorder %s699, %s700
    %p709 = scmp.eq.s32.totalorder %s82, 0
    %p710 = por %p708, %p709
    %p711 = scmp.ne.s32.totalorder %s699, %s700
    %p712 = scmp.eq.s32.totalorder %s83, 1
    %p713 = por %p711, %p712
    %p715 = scmp.ne.s32.totalorder %s700, %s714
    %p716 = scmp.eq.s32.totalorder %s83, 0
    %p717 = por %p715, %p716
    %s719 = sadd.s32 %s718, 1
    %p722 = scmp.eq.s32.totalorder %s77, 1
    %p723 = scmp.ne.s32.totalorder %s718, %s720
    %p724 = scmp.eq.s32.totalorder %s77, 0
    %p725 = por %p723, %p724
    %p726 = scmp.ne.s32.totalorder %s718, %s720
    %p727 = scmp.eq.s32.totalorder %s82, 1
    %p728 = por %p726, %p727
    %p729 = scmp.ne.s32.totalorder %s720, %s721
    %p730 = scmp.eq.s32.totalorder %s82, 0
    %p731 = por %p729, %p730
    %p732 = scmp.ne.s32.totalorder %s720, %s721
    %p733 = scmp.eq.s32.totalorder %s83, 1
    %p734 = por %p732, %p733
    %p736 = scmp.ne.s32.totalorder %s721, %s735
    %p737 = scmp.eq.s32.totalorder %s83, 0
    %p738 = por %p736, %p737
    %s740 = sadd.s32 %s739, 1
    %p743 = scmp.eq.s32.totalorder %s77, 1
    %p744 = scmp.ne.s32.totalorder %s739, %s741
    %p745 = scmp.eq.s32.totalorder %s77, 0
    %p746 = por %p744, %p745
    %p747 = scmp.ne.s32.totalorder %s739, %s741
    %p748 = scmp.eq.s32.totalorder %s82, 1
    %p749 = por %p747, %p748
    %p750 = scmp.ne.s32.totalorder %s741, %s742
    %p751 = scmp.eq.s32.totalorder %s82, 0
    %p752 = por %p750, %p751
    %p753 = scmp.ne.s32.totalorder %s741, %s742
    %p754 = scmp.eq.s32.totalorder %s83, 1
    %p755 = por %p753, %p754
    %p757 = scmp.ne.s32.totalorder %s742, %s756
    %p758 = scmp.eq.s32.totalorder %s83, 0
    %p759 = por %p757, %p758
    %s761 = sadd.s32 %s760, 1
    %p764 = scmp.eq.s32.totalorder %s77, 1
    %p765 = scmp.ne.s32.totalorder %s760, %s762
    %p766 = scmp.eq.s32.totalorder %s77, 0
    %p767 = por %p765, %p766
    %p768 = scmp.ne.s32.totalorder %s760, %s762
    %p769 = scmp.eq.s32.totalorder %s82, 1
    %p770 = por %p768, %p769
    %p771 = scmp.ne.s32.totalorder %s762, %s763
    %p772 = scmp.eq.s32.totalorder %s82, 0
    %p773 = por %p771, %p772
    %p774 = scmp.ne.s32.totalorder %s762, %s763
    %p775 = scmp.eq.s32.totalorder %s83, 1
    %p776 = por %p774, %p775
    %p778 = scmp.ne.s32.totalorder %s763, %s777
    %p779 = scmp.eq.s32.totalorder %s83, 0
    %p780 = por %p778, %p779
    %s782 = sadd.s32 %s781, 1
    %p785 = scmp.eq.s32.totalorder %s77, 1
    %p786 = scmp.ne.s32.totalorder %s781, %s783
    %p787 = scmp.eq.s32.totalorder %s77, 0
    %p788 = por %p786, %p787
    %p789 = scmp.ne.s32.totalorder %s781, %s783
    %p790 = scmp.eq.s32.totalorder %s82, 1
    %p791 = por %p789, %p790
    %p792 = scmp.ne.s32.totalorder %s783, %s784
    %p793 = scmp.eq.s32.totalorder %s82, 0
    %p794 = por %p792, %p793
    %p795 = scmp.ne.s32.totalorder %s783, %s784
    %p796 = scmp.eq.s32.totalorder %s83, 1
    %p797 = por %p795, %p796
    %p799 = scmp.ne.s32.totalorder %s784, %s798
    %p800 = scmp.eq.s32.totalorder %s83, 0
    %p801 = por %p799, %p800
    %s803 = sadd.s32 %s802, 1
    %p806 = scmp.eq.s32.totalorder %s77, 1
    %p807 = scmp.ne.s32.totalorder %s802, %s804
    %p808 = scmp.eq.s32.totalorder %s77, 0
    %p809 = por %p807, %p808
    %p810 = scmp.ne.s32.totalorder %s802, %s804
    %p811 = scmp.eq.s32.totalorder %s82, 1
    %p812 = por %p810, %p811
    %p813 = scmp.ne.s32.totalorder %s804, %s805
    %p814 = scmp.eq.s32.totalorder %s82, 0
    %p815 = por %p813, %p814
    %p816 = scmp.ne.s32.totalorder %s804, %s805
    %p817 = scmp.eq.s32.totalorder %s83, 1
    %p818 = por %p816, %p817
    %p820 = scmp.ne.s32.totalorder %s805, %s819
    %p821 = scmp.eq.s32.totalorder %s83, 0
    %p822 = por %p820, %p821
    %s824 = sadd.s32 %s823, 1
    %p827 = scmp.eq.s32.totalorder %s77, 1
    %p828 = scmp.ne.s32.totalorder %s823, %s825
    %p829 = scmp.eq.s32.totalorder %s77, 0
    %p830 = por %p828, %p829
    %p831 = scmp.ne.s32.totalorder %s823, %s825
    %p832 = scmp.eq.s32.totalorder %s82, 1
    %p833 = por %p831, %p832
    %p834 = scmp.ne.s32.totalorder %s825, %s826
    %p835 = scmp.eq.s32.totalorder %s82, 0
    %p836 = por %p834, %p835
    %p837 = scmp.ne.s32.totalorder %s825, %s826
    %p838 = scmp.eq.s32.totalorder %s83, 1
    %p839 = por %p837, %p838
    %p841 = scmp.ne.s32.totalorder %s826, %s840
    %p842 = scmp.eq.s32.totalorder %s83, 0
    %p843 = por %p841, %p842
    %s845 = sadd.s32 %s844, 1
    %p848 = scmp.eq.s32.totalorder %s77, 1
    %p849 = scmp.ne.s32.totalorder %s844, %s846
    %p850 = scmp.eq.s32.totalorder %s77, 0
    %p851 = por %p849, %p850
    %p852 = scmp.ne.s32.totalorder %s844, %s846
    %p853 = scmp.eq.s32.totalorder %s82, 1
    %p854 = por %p852, %p853
    %p855 = scmp.ne.s32.totalorder %s846, %s847
    %p856 = scmp.eq.s32.totalorder %s82, 0
    %p857 = por %p855, %p856
    %p858 = scmp.ne.s32.totalorder %s846, %s847
    %p859 = scmp.eq.s32.totalorder %s83, 1
    %p860 = por %p858, %p859
    %p862 = scmp.ne.s32.totalorder %s847, %s861
    %p863 = scmp.eq.s32.totalorder %s83, 0
    %p864 = por %p862, %p863
    %s865 = ssub.s32 %s77, %s84
    %p866 = scmp.eq.s32.totalorder %s865, 0
    %s868 = sadd.s32 %s867, 1
    %s869 = scalar_select %p866, %s867, %s868
    %p872 = pneg %p866
    %p873 = scmp.eq.s32.totalorder %s77, 1
    %p874 = por %p872, %p873
    %p875 = scmp.ne.s32.totalorder %s867, %s870
    %p876 = scmp.eq.s32.totalorder %s77, 0
    %p877 = por %p875, %p876
    %p878 = scmp.ne.s32.totalorder %s867, %s870
    %p879 = scmp.eq.s32.totalorder %s82, 1
    %p880 = por %p878, %p879
    %p881 = scmp.ne.s32.totalorder %s870, %s871
    %p882 = scmp.eq.s32.totalorder %s82, 0
    %p883 = por %p881, %p882
    %p884 = scmp.ne.s32.totalorder %s870, %s871
    %p885 = scmp.eq.s32.totalorder %s83, 1
    %p886 = por %p884, %p885
    %p888 = scmp.ne.s32.totalorder %s871, %s887
    %p889 = scmp.eq.s32.totalorder %s83, 0
    %p890 = por %p888, %p889
    %p891 = scmp.le.s32.totalorder 1, %s77
    %p892 = scmp.lt.s32.totalorder %s77, 3
    %p893 = pnand %p891, %p892
    %p894 = pneg %p893
    // Predicated region
    $region9: #{rcnn_head_forward.3} parent=5 // pred_check
      _
    $region10: #{rcnn_head_forward.3} parent=5 // pred_check_branch
      %896 = sbr.rel (%p893) target = $region12
    $region11: #{rcnn_head_forward.3} parent=5 // pred_region
      %s897 = ssub.s32 %s77, 1
      // Predicated region
      $region13: #{rcnn_head_forward.3} parent=11 // pred_check
        %p898 = pneg %p332
      $region14: #{rcnn_head_forward.3} parent=11 // pred_check_branch
        %900 = sbr.rel (%p898) target = $region16
      $region15: #{rcnn_head_forward.3} parent=11 // pred_region
        _
      $region16: #{rcnn_head_forward.3} parent=11 // pred_fallthru
        _
      // Predicated region
      $region17: #{rcnn_head_forward.3} parent=11 // pred_check
        %p901 = pneg %p353
      $region18: #{rcnn_head_forward.3} parent=11 // pred_check_branch
        %903 = sbr.rel (%p901) target = $region20
      $region19: #{rcnn_head_forward.3} parent=11 // pred_region
        _
      $region20: #{rcnn_head_forward.3} parent=11 // pred_fallthru
        _
      // Predicated region
      $region21: #{rcnn_head_forward.3} parent=11 // pred_check
        %p904 = pneg %p374
      $region22: #{rcnn_head_forward.3} parent=11 // pred_check_branch
        %906 = sbr.rel (%p904) target = $region24
      $region23: #{rcnn_head_forward.3} parent=11 // pred_region
        _
      $region24: #{rcnn_head_forward.3} parent=11 // pred_fallthru
        _
      // Predicated region
      $region25: #{rcnn_head_forward.3} parent=11 // pred_check
        %p907 = pneg %p395
      $region26: #{rcnn_head_forward.3} parent=11 // pred_check_branch
        %909 = sbr.rel (%p907) target = $region28
      $region27: #{rcnn_head_forward.3} parent=11 // pred_region
        _
      $region28: #{rcnn_head_forward.3} parent=11 // pred_fallthru
        _
      // Predicated region
      $region29: #{rcnn_head_forward.3} parent=11 // pred_check
        %p910 = pneg %p416
      $region30: #{rcnn_head_forward.3} parent=11 // pred_check_branch
        %912 = sbr.rel (%p910) target = $region32
      $region31: #{rcnn_head_forward.3} parent=11 // pred_region
        _
      $region32: #{rcnn_head_forward.3} parent=11 // pred_fallthru
        _
      // Predicated region
      $region33: #{rcnn_head_forward.3} parent=11 // pred_check
        %p913 = pneg %p437
      $region34: #{rcnn_head_forward.3} parent=11 // pred_check_branch
        %915 = sbr.rel (%p913) target = $region36
      $region35: #{rcnn_head_forward.3} parent=11 // pred_region
        _
      $region36: #{rcnn_head_forward.3} parent=11 // pred_fallthru
        _
      // Predicated region
      $region37: #{rcnn_head_forward.3} parent=11 // pred_check
        %p916 = pneg %p458
      $region38: #{rcnn_head_forward.3} parent=11 // pred_check_branch
        %918 = sbr.rel (%p916) target = $region40
      $region39: #{rcnn_head_forward.3} parent=11 // pred_region
        _
      $region40: #{rcnn_head_forward.3} parent=11 // pred_fallthru
        _
      // Predicated region
      $region41: #{rcnn_head_forward.3} parent=11 // pred_check
        %p919 = pneg %p479
      $region42: #{rcnn_head_forward.3} parent=11 // pred_check_branch
        %921 = sbr.rel (%p919) target = $region44
      $region43: #{rcnn_head_forward.3} parent=11 // pred_region
        _
      $region44: #{rcnn_head_forward.3} parent=11 // pred_fallthru
        _
      // Predicated region
      $region45: #{rcnn_head_forward.3} parent=11 // pred_check
        %p922 = pneg %p500
      $region46: #{rcnn_head_forward.3} parent=11 // pred_check_branch
        %924 = sbr.rel (%p922) target = $region48
      $region47: #{rcnn_head_forward.3} parent=11 // pred_region
        _
      $region48: #{rcnn_head_forward.3} parent=11 // pred_fallthru
        _
      // Predicated region
      $region49: #{rcnn_head_forward.3} parent=11 // pred_check
        %p925 = pneg %p521
      $region50: #{rcnn_head_forward.3} parent=11 // pred_check_branch
        %927 = sbr.rel (%p925) target = $region52
      $region51: #{rcnn_head_forward.3} parent=11 // pred_region
        _
      $region52: #{rcnn_head_forward.3} parent=11 // pred_fallthru
        _
      // Predicated region
      $region53: #{rcnn_head_forward.3} parent=11 // pred_check
        %p928 = pneg %p542
      $region54: #{rcnn_head_forward.3} parent=11 // pred_check_branch
        %930 = sbr.rel (%p928) target = $region56
      $region55: #{rcnn_head_forward.3} parent=11 // pred_region
        _
      $region56: #{rcnn_head_forward.3} parent=11 // pred_fallthru
        _
      // Predicated region
      $region57: #{rcnn_head_forward.3} parent=11 // pred_check
        %p931 = pneg %p563
      $region58: #{rcnn_head_forward.3} parent=11 // pred_check_branch
        %933 = sbr.rel (%p931) target = $region60
      $region59: #{rcnn_head_forward.3} parent=11 // pred_region
        _
      $region60: #{rcnn_head_forward.3} parent=11 // pred_fallthru
        _
      // Predicated region
      $region61: #{rcnn_head_forward.3} parent=11 // pred_check
        %p934 = pneg %p584
      $region62: #{rcnn_head_forward.3} parent=11 // pred_check_branch
        %936 = sbr.rel (%p934) target = $region64
      $region63: #{rcnn_head_forward.3} parent=11 // pred_region
        _
      $region64: #{rcnn_head_forward.3} parent=11 // pred_fallthru
        _
      // Predicated region
      $region65: #{rcnn_head_forward.3} parent=11 // pred_check
        %p937 = pneg %p605
      $region66: #{rcnn_head_forward.3} parent=11 // pred_check_branch
        %939 = sbr.rel (%p937) target = $region68
      $region67: #{rcnn_head_forward.3} parent=11 // pred_region
        _
      $region68: #{rcnn_head_forward.3} parent=11 // pred_fallthru
        _
      // Predicated region
      $region69: #{rcnn_head_forward.3} parent=11 // pred_check
        %p940 = pneg %p626
      $region70: #{rcnn_head_forward.3} parent=11 // pred_check_branch
        %942 = sbr.rel (%p940) target = $region72
      $region71: #{rcnn_head_forward.3} parent=11 // pred_region
        _
      $region72: #{rcnn_head_forward.3} parent=11 // pred_fallthru
        _
      // Predicated region
      $region73: #{rcnn_head_forward.3} parent=11 // pred_check
        %p943 = pneg %p647
      $region74: #{rcnn_head_forward.3} parent=11 // pred_check_branch
        %945 = sbr.rel (%p943) target = $region76
      $region75: #{rcnn_head_forward.3} parent=11 // pred_region
        _
      $region76: #{rcnn_head_forward.3} parent=11 // pred_fallthru
        _
      // Predicated region
      $region77: #{rcnn_head_forward.3} parent=11 // pred_check
        %p946 = pneg %p668
      $region78: #{rcnn_head_forward.3} parent=11 // pred_check_branch
        %948 = sbr.rel (%p946) target = $region80
      $region79: #{rcnn_head_forward.3} parent=11 // pred_region
        _
      $region80: #{rcnn_head_forward.3} parent=11 // pred_fallthru
        _
      // Predicated region
      $region81: #{rcnn_head_forward.3} parent=11 // pred_check
        %p949 = pneg %p689
      $region82: #{rcnn_head_forward.3} parent=11 // pred_check_branch
        %951 = sbr.rel (%p949) target = $region84
      $region83: #{rcnn_head_forward.3} parent=11 // pred_region
        _
      $region84: #{rcnn_head_forward.3} parent=11 // pred_fallthru
        _
      // Predicated region
      $region85: #{rcnn_head_forward.3} parent=11 // pred_check
        %p952 = pneg %p710
      $region86: #{rcnn_head_forward.3} parent=11 // pred_check_branch
        %954 = sbr.rel (%p952) target = $region88
      $region87: #{rcnn_head_forward.3} parent=11 // pred_region
        _
      $region88: #{rcnn_head_forward.3} parent=11 // pred_fallthru
        _
      // Predicated region
      $region89: #{rcnn_head_forward.3} parent=11 // pred_check
        %p955 = pneg %p731
      $region90: #{rcnn_head_forward.3} parent=11 // pred_check_branch
        %957 = sbr.rel (%p955) target = $region92
      $region91: #{rcnn_head_forward.3} parent=11 // pred_region
        _
      $region92: #{rcnn_head_forward.3} parent=11 // pred_fallthru
        _
      // Predicated region
      $region93: #{rcnn_head_forward.3} parent=11 // pred_check
        %p958 = pneg %p752
      $region94: #{rcnn_head_forward.3} parent=11 // pred_check_branch
        %960 = sbr.rel (%p958) target = $region96
      $region95: #{rcnn_head_forward.3} parent=11 // pred_region
        _
      $region96: #{rcnn_head_forward.3} parent=11 // pred_fallthru
        _
      // Predicated region
      $region97: #{rcnn_head_forward.3} parent=11 // pred_check
        %p961 = pneg %p773
      $region98: #{rcnn_head_forward.3} parent=11 // pred_check_branch
        %963 = sbr.rel (%p961) target = $region100
      $region99: #{rcnn_head_forward.3} parent=11 // pred_region
        _
      $region100: #{rcnn_head_forward.3} parent=11 // pred_fallthru
        _
      // Predicated region
      $region101: #{rcnn_head_forward.3} parent=11 // pred_check
        %p964 = pneg %p794
      $region102: #{rcnn_head_forward.3} parent=11 // pred_check_branch
        %966 = sbr.rel (%p964) target = $region104
      $region103: #{rcnn_head_forward.3} parent=11 // pred_region
        _
      $region104: #{rcnn_head_forward.3} parent=11 // pred_fallthru
        _
      // Predicated region
      $region105: #{rcnn_head_forward.3} parent=11 // pred_check
        %p967 = pneg %p815
      $region106: #{rcnn_head_forward.3} parent=11 // pred_check_branch
        %969 = sbr.rel (%p967) target = $region108
      $region107: #{rcnn_head_forward.3} parent=11 // pred_region
        _
      $region108: #{rcnn_head_forward.3} parent=11 // pred_fallthru
        _
      // Predicated region
      $region109: #{rcnn_head_forward.3} parent=11 // pred_check
        %p970 = pneg %p836
      $region110: #{rcnn_head_forward.3} parent=11 // pred_check_branch
        %972 = sbr.rel (%p970) target = $region112
      $region111: #{rcnn_head_forward.3} parent=11 // pred_region
        _
      $region112: #{rcnn_head_forward.3} parent=11 // pred_fallthru
        _
      // Predicated region
      $region113: #{rcnn_head_forward.3} parent=11 // pred_check
        %p973 = pneg %p857
      $region114: #{rcnn_head_forward.3} parent=11 // pred_check_branch
        %975 = sbr.rel (%p973) target = $region116
      $region115: #{rcnn_head_forward.3} parent=11 // pred_region
        _
      $region116: #{rcnn_head_forward.3} parent=11 // pred_fallthru
        _
    $region12: #{rcnn_head_forward.3} parent=5 // pred_fallthru
      _
    %p976 = scmp.lt.s32.totalorder %s77, 2
    // Predicated region
    $region117: #{rcnn_head_forward.3} parent=5 // pred_check
      %p977 = pneg %p976
    $region118: #{rcnn_head_forward.3} parent=5 // pred_check_branch
      %979 = sbr.rel (%p977) target = $region120
    $region119: #{rcnn_head_forward.3} parent=5 // pred_region
      // Predicated region
      $region121: #{rcnn_head_forward.3} parent=119 // pred_check
        %p980 = pneg %p97
      $region122: #{rcnn_head_forward.3} parent=119 // pred_check_branch
        %982 = sbr.rel (%p980) target = $region124
      $region123: #{rcnn_head_forward.3} parent=119 // pred_region
        %p983 = scmp.lt.s32.totalorder %s77, 1
        %s984 = scalar_select %p983, %s77, 1
        %s985 = smul.addr %s984, 8
        %s986 = scalar_lea.vmem %s1, %s985
      $region124: #{rcnn_head_forward.3} parent=119 // pred_fallthru
        _
      // Predicated region
      $region125: #{rcnn_head_forward.3} parent=119 // pred_check
        %p987 = pneg %p123
      $region126: #{rcnn_head_forward.3} parent=119 // pred_check_branch
        %989 = sbr.rel (%p987) target = $region128
      $region127: #{rcnn_head_forward.3} parent=119 // pred_region
        %p990 = scmp.lt.s32.totalorder %s77, 1
        %s991 = scalar_select %p990, %s77, 1
        %s992 = smul.addr %s991, 8
        %s993 = scalar_lea.vmem %s3, %s992
      $region128: #{rcnn_head_forward.3} parent=119 // pred_fallthru
        _
      // Predicated region
      $region129: #{rcnn_head_forward.3} parent=119 // pred_check
        %p994 = pneg %p149
      $region130: #{rcnn_head_forward.3} parent=119 // pred_check_branch
        %996 = sbr.rel (%p994) target = $region132
      $region131: #{rcnn_head_forward.3} parent=119 // pred_region
        %p997 = scmp.lt.s32.totalorder %s77, 1
        %s998 = scalar_select %p997, %s77, 1
        %s999 = smul.addr %s998, 8
        %s1000 = smul.addr %s999, 4
        %s1001 = scalar_lea.vmem %s5, %s1000
      $region132: #{rcnn_head_forward.3} parent=119 // pred_fallthru
        _
      // Predicated region
      $region133: #{rcnn_head_forward.3} parent=119 // pred_check
        %p1002 = pneg %p175
      $region134: #{rcnn_head_forward.3} parent=119 // pred_check_branch
        %1004 = sbr.rel (%p1002) target = $region136
      $region135: #{rcnn_head_forward.3} parent=119 // pred_region
        %p1005 = scmp.lt.s32.totalorder %s77, 1
        %s1006 = scalar_select %p1005, %s77, 1
        %s1007 = smul.addr %s1006, 64
        %s1008 = smul.addr %s1007, 8
        %s1009 = scalar_lea.vmem %s7, %s1008
      $region136: #{rcnn_head_forward.3} parent=119 // pred_fallthru
        _
      // Predicated region
      $region137: #{rcnn_head_forward.3} parent=119 // pred_check
        %p1010 = pneg %p201
      $region138: #{rcnn_head_forward.3} parent=119 // pred_check_branch
        %1012 = sbr.rel (%p1010) target = $region140
      $region139: #{rcnn_head_forward.3} parent=119 // pred_region
        %p1013 = scmp.lt.s32.totalorder %s77, 1
        %s1014 = scalar_select %p1013, %s77, 1
        %s1015 = smul.addr %s1014, 16
        %s1016 = smul.addr %s1015, 8
        %s1017 = scalar_lea.vmem %s9, %s1016
      $region140: #{rcnn_head_forward.3} parent=119 // pred_fallthru
        _
      // Predicated region
      $region141: #{rcnn_head_forward.3} parent=119 // pred_check
        %p1018 = pneg %p227
      $region142: #{rcnn_head_forward.3} parent=119 // pred_check_branch
        %1020 = sbr.rel (%p1018) target = $region144
      $region143: #{rcnn_head_forward.3} parent=119 // pred_region
        %p1021 = scmp.lt.s32.totalorder %s77, 1
        %s1022 = scalar_select %p1021, %s77, 1
        %s1023 = smul.addr %s1022, 8
        %s1024 = scalar_lea.vmem %s11, %s1023
      $region144: #{rcnn_head_forward.3} parent=119 // pred_fallthru
        _
      // Predicated region
      $region145: #{rcnn_head_forward.3} parent=119 // pred_check
        %p1025 = pneg %p253
      $region146: #{rcnn_head_forward.3} parent=119 // pred_check_branch
        %1027 = sbr.rel (%p1025) target = $region148
      $region147: #{rcnn_head_forward.3} parent=119 // pred_region
        %p1028 = scmp.lt.s32.totalorder %s77, 1
        %s1029 = scalar_select %p1028, %s77, 1
        %s1030 = smul.addr %s1029, 8
        %s1031 = scalar_lea.vmem %s13, %s1030
      $region148: #{rcnn_head_forward.3} parent=119 // pred_fallthru
        _
      // Predicated region
      $region149: #{rcnn_head_forward.3} parent=119 // pred_check
        %p1032 = pneg %p279
      $region150: #{rcnn_head_forward.3} parent=119 // pred_check_branch
        %1034 = sbr.rel (%p1032) target = $region152
      $region151: #{rcnn_head_forward.3} parent=119 // pred_region
        %p1035 = scmp.lt.s32.totalorder %s77, 1
        %s1036 = scalar_select %p1035, %s77, 1
        %s1037 = smul.addr %s1036, 8
        %s1038 = scalar_lea.vmem %s15, %s1037
      $region152: #{rcnn_head_forward.3} parent=119 // pred_fallthru
        _
      // Predicated region
      $region153: #{rcnn_head_forward.3} parent=119 // pred_check
        %p1039 = pneg %p305
      $region154: #{rcnn_head_forward.3} parent=119 // pred_check_branch
        %1041 = sbr.rel (%p1039) target = $region156
      $region155: #{rcnn_head_forward.3} parent=119 // pred_region
        %p1042 = scmp.lt.s32.totalorder %s77, 1
        %s1043 = scalar_select %p1042, %s77, 1
        %s1044 = smul.addr %s1043, 8
        %s1045 = scalar_lea.vmem %s17, %s1044
      $region156: #{rcnn_head_forward.3} parent=119 // pred_fallthru
        _
    $region120: #{rcnn_head_forward.3} parent=5 // pred_fallthru
      _
    %p1046 = scmp.le.s32.totalorder 1, %s77
    %p1047 = scmp.lt.s32.totalorder %s77, 3
    %p1048 = pnand %p1046, %p1047
    %p1049 = pneg %p1048
    // Predicated region
    $region157: #{rcnn_head_forward.3} parent=5 // pred_check
      _
    $region158: #{rcnn_head_forward.3} parent=5 // pred_check_branch
      %1051 = sbr.rel (%p1048) target = $region160
    $region159: #{rcnn_head_forward.3} parent=5 // pred_region
      %s1052 = ssub.s32 %s77, 1
      %p1053 = scmp.lt.s32.totalorder %s82, 1
      %s1054 = scalar_select %p1053, %s82, 1
      %s1055 = smul.addr %s1054, 8
      %s1056 = scalar_lea.vmem %s1, %s1055
      %p1057 = pneg %p103
      %p1058 = pneg %p100
      %p1059 = scmp.lt.s32.totalorder %s82, 1
      %s1060 = scalar_select %p1059, %s82, 1
      %s1061 = smul.addr %s1060, 8
      %s1062 = scalar_lea.vmem %s3, %s1061
      %p1063 = pneg %p129
      %p1064 = pneg %p126
      %p1065 = scmp.lt.s32.totalorder %s82, 1
      %s1066 = scalar_select %p1065, %s82, 1
      %s1067 = smul.addr %s1066, 8
      %s1068 = smul.addr %s1067, 4
      %s1069 = scalar_lea.vmem %s5, %s1068
      %p1070 = pneg %p155
      %p1071 = pneg %p152
      %p1072 = scmp.lt.s32.totalorder %s82, 1
      %s1073 = scalar_select %p1072, %s82, 1
      %s1074 = smul.addr %s1073, 64
      %s1075 = smul.addr %s1074, 8
      %s1076 = scalar_lea.vmem %s7, %s1075
      %p1077 = pneg %p181
      %p1078 = pneg %p178
      %p1079 = scmp.lt.s32.totalorder %s82, 1
      %s1080 = scalar_select %p1079, %s82, 1
      %s1081 = smul.addr %s1080, 16
      %s1082 = smul.addr %s1081, 8
      %s1083 = scalar_lea.vmem %s9, %s1082
      %p1084 = pneg %p207
      %p1085 = pneg %p204
      %p1086 = scmp.lt.s32.totalorder %s82, 1
      %s1087 = scalar_select %p1086, %s82, 1
      %s1088 = smul.addr %s1087, 8
      %s1089 = scalar_lea.vmem %s11, %s1088
      %p1090 = pneg %p233
      %p1091 = pneg %p230
      %p1092 = scmp.lt.s32.totalorder %s82, 1
      %s1093 = scalar_select %p1092, %s82, 1
      %s1094 = smul.addr %s1093, 8
      %s1095 = scalar_lea.vmem %s13, %s1094
      %p1096 = pneg %p259
      %p1097 = pneg %p256
      %p1098 = scmp.lt.s32.totalorder %s82, 1
      %s1099 = scalar_select %p1098, %s82, 1
      %s1100 = smul.addr %s1099, 8
      %s1101 = scalar_lea.vmem %s15, %s1100
      %p1102 = pneg %p285
      %p1103 = pneg %p282
      %p1104 = scmp.lt.s32.totalorder %s82, 1
      %s1105 = scalar_select %p1104, %s82, 1
      %s1106 = smul.addr %s1105, 8
      %s1107 = scalar_lea.vmem %s17, %s1106
      %p1108 = pneg %p311
      %p1109 = pneg %p308
      %p1110 = pneg %p332
      %p1111 = pneg %p329
      %p1112 = pneg %p353
      %p1113 = pneg %p350
      %p1114 = pneg %p374
      %p1115 = pneg %p371
      %p1116 = pneg %p395
      %p1117 = pneg %p392
      %p1118 = pneg %p416
      %p1119 = pneg %p413
      %p1120 = pneg %p437
      %p1121 = pneg %p434
      %p1122 = pneg %p458
      %p1123 = pneg %p455
      %p1124 = pneg %p479
      %p1125 = pneg %p476
      %p1126 = pneg %p500
      %p1127 = pneg %p497
      %p1128 = pneg %p521
      %p1129 = pneg %p518
      %p1130 = pneg %p542
      %p1131 = pneg %p539
      %p1132 = pneg %p563
      %p1133 = pneg %p560
      %p1134 = pneg %p584
      %p1135 = pneg %p581
      %p1136 = pneg %p605
      %p1137 = pneg %p602
      %p1138 = pneg %p626
      %p1139 = pneg %p623
      %p1140 = pneg %p647
      %p1141 = pneg %p644
      %p1142 = pneg %p668
      %p1143 = pneg %p665
      %p1144 = pneg %p689
      %p1145 = pneg %p686
      %p1146 = pneg %p710
      %p1147 = pneg %p707
      %p1148 = pneg %p731
      %p1149 = pneg %p728
      %p1150 = pneg %p752
      %p1151 = pneg %p749
      %p1152 = pneg %p773
      %p1153 = pneg %p770
      %p1154 = pneg %p794
      %p1155 = pneg %p791
      %p1156 = pneg %p815
      %p1157 = pneg %p812
      %p1158 = pneg %p836
      %p1159 = pneg %p833
      %p1160 = pneg %p857
      %p1161 = pneg %p854
      %p1162 = pneg %p883
      %p1163 = pneg %p880
      %p1164 = scmp.lt.s32.totalorder %s82, 1
      %s1165 = scalar_select %p1164, %s82, 1
      %s1166 = smul.addr %s1165, 8
      %s1167 = scalar_lea.vmem %s71, %s1166
      %p1168 = scmp.lt.s32.totalorder %s82, 1
      %s1169 = scalar_select %p1168, %s82, 1
      %s1170 = smul.addr %s1169, 8
      %s1171 = scalar_lea.vmem %s1, %s1170
      %p1172 = scmp.lt.s32.totalorder %s82, 1
      %s1173 = scalar_select %p1172, %s82, 1
      %s1174 = smul.addr %s1173, 8
      %s1175 = scalar_lea.vmem %s3, %s1174
      %p1176 = scmp.lt.s32.totalorder %s82, 1
      %s1177 = scalar_select %p1176, %s82, 1
      %s1178 = smul.addr %s1177, 8
      %s1179 = smul.addr %s1178, 4
      %s1180 = scalar_lea.vmem %s5, %s1179
      %p1181 = scmp.lt.s32.totalorder %s82, 1
      %s1182 = scalar_select %p1181, %s82, 1
      %s1183 = smul.addr %s1182, 64
      %s1184 = smul.addr %s1183, 8
      %s1185 = scalar_lea.vmem %s7, %s1184
      %p1186 = scmp.lt.s32.totalorder %s82, 1
      %s1187 = scalar_select %p1186, %s82, 1
      %s1188 = smul.addr %s1187, 16
      %s1189 = smul.addr %s1188, 8
      %s1190 = scalar_lea.vmem %s9, %s1189
      %p1191 = scmp.lt.s32.totalorder %s82, 1
      %s1192 = scalar_select %p1191, %s82, 1
      %s1193 = smul.addr %s1192, 8
      %s1194 = scalar_lea.vmem %s11, %s1193
      %p1195 = scmp.lt.s32.totalorder %s82, 1
      %s1196 = scalar_select %p1195, %s82, 1
      %s1197 = smul.addr %s1196, 8
      %s1198 = scalar_lea.vmem %s13, %s1197
      %p1199 = scmp.lt.s32.totalorder %s82, 1
      %s1200 = scalar_select %p1199, %s82, 1
      %s1201 = smul.addr %s1200, 8
      %s1202 = scalar_lea.vmem %s15, %s1201
      %p1203 = scmp.lt.s32.totalorder %s82, 1
      %s1204 = scalar_select %p1203, %s82, 1
      %s1205 = smul.addr %s1204, 8
      %s1206 = scalar_lea.vmem %s17, %s1205
      %p1207 = scmp.lt.s32.totalorder %s82, 1
      %s1208 = scalar_select %p1207, %s82, 1
      %s1209 = smul.addr %s1208, 8
      %s1210 = scalar_lea.vmem %s71, %s1209
      %v1211 = vld [vmem:[%s1171] sm:$0xff]
      %v1212 = vld [vmem:[%s1202] sm:$0xff]
      %v1213 = vld [vmem:[%s1180] sm:$0xf]
      %v1214 = vld [vmem:[%s1180 + $0x4] sm:$0xf]
      %v1215 = vld [vmem:[%s1180 + $0x8] sm:$0xf]
      %v1216 = vld [vmem:[%s1180 + $0xc] sm:$0xf]
      %v1217 = vld [vmem:[%s1180 + $0x10] sm:$0xf]
      %v1218 = vld [vmem:[%s1180 + $0x14] sm:$0xf]
      %v1219 = vld [vmem:[%s1180 + $0x18] sm:$0xf]
      %v1220 = vld [vmem:[%s1180 + $0x1c] sm:$0xf]
      %v1221 = vld [vmem:[%s1185] sm:$0xff]
      %v1222 = vld [vmem:[%s1185 + $0x8] sm:$0xff]
      %v1223 = vld [vmem:[%s1185 + $0x10] sm:$0xff]
      %v1224 = vld [vmem:[%s1185 + $0x18] sm:$0xff]
      %v1225 = vld [vmem:[%s1185 + $0x20] sm:$0xff]
      %v1226 = vld [vmem:[%s1185 + $0x28] sm:$0xff]
      %v1227 = vld [vmem:[%s1185 + $0x30] sm:$0xff]
      %v1228 = vld [vmem:[%s1185 + $0x38] sm:$0xff]
      %v1229 = vld [vmem:[%s1185 + $0x40] sm:$0xff]
      %v1230 = vld [vmem:[%s1185 + $0x48] sm:$0xff]
      %v1231 = vld [vmem:[%s1185 + $0x50] sm:$0xff]
      %v1232 = vld [vmem:[%s1185 + $0x58] sm:$0xff]
      %v1233 = vld [vmem:[%s1185 + $0x60] sm:$0xff]
      %v1234 = vld [vmem:[%s1185 + $0x68] sm:$0xff]
      %v1235 = vld [vmem:[%s1185 + $0x70] sm:$0xff]
      %v1236 = vld [vmem:[%s1185 + $0x78] sm:$0xff]
      %v1237 = vld [vmem:[%s1185 + $0x80] sm:$0xff]
      %v1238 = vld [vmem:[%s1185 + $0x88] sm:$0xff]
      %v1239 = vld [vmem:[%s1185 + $0x90] sm:$0xff]
      %v1240 = vld [vmem:[%s1185 + $0x98] sm:$0xff]
      %v1241 = vld [vmem:[%s1185 + $0xa0] sm:$0xff]
      %v1242 = vld [vmem:[%s1185 + $0xa8] sm:$0xff]
      %v1243 = vld [vmem:[%s1185 + $0xb0] sm:$0xff]
      %v1244 = vld [vmem:[%s1185 + $0xb8] sm:$0xff]
      %v1245 = vld [vmem:[%s1185 + $0xc0] sm:$0xff]
      %v1246 = vld [vmem:[%s1185 + $0xc8] sm:$0xff]
      %v1247 = vld [vmem:[%s1185 + $0xd0] sm:$0xff]
      %v1248 = vld [vmem:[%s1185 + $0xd8] sm:$0xff]
      %v1249 = vld [vmem:[%s1185 + $0xe0] sm:$0xff]
      %v1250 = vld [vmem:[%s1185 + $0xe8] sm:$0xff]
      %v1251 = vld [vmem:[%s1185 + $0xf0] sm:$0xff]
      %v1252 = vld [vmem:[%s1185 + $0xf8] sm:$0xff]
      %v1253 = vld [vmem:[%s1185 + $0x100] sm:$0xff]
      %v1254 = vld [vmem:[%s1185 + $0x108] sm:$0xff]
      %v1255 = vld [vmem:[%s1185 + $0x110] sm:$0xff]
      %v1256 = vld [vmem:[%s1185 + $0x118] sm:$0xff]
      %v1257 = vld [vmem:[%s1185 + $0x120] sm:$0xff]
      %v1258 = vld [vmem:[%s1185 + $0x128] sm:$0xff]
      %v1259 = vld [vmem:[%s1185 + $0x130] sm:$0xff]
      %v1260 = vld [vmem:[%s1185 + $0x138] sm:$0xff]
      %v1261 = vld [vmem:[%s1185 + $0x140] sm:$0xff]
      %v1262 = vld [vmem:[%s1185 + $0x148] sm:$0xff]
      %v1263 = vld [vmem:[%s1185 + $0x150] sm:$0xff]
      %v1264 = vld [vmem:[%s1185 + $0x158] sm:$0xff]
      %v1265 = vld [vmem:[%s1185 + $0x160] sm:$0xff]
      %v1266 = vld [vmem:[%s1185 + $0x168] sm:$0xff]
      %v1267 = vld [vmem:[%s1185 + $0x170] sm:$0xff]
      %v1268 = vld [vmem:[%s1185 + $0x178] sm:$0xff]
      %v1269 = vld [vmem:[%s1185 + $0x180] sm:$0xff]
      %v1270 = vld [vmem:[%s1185 + $0x188] sm:$0xff]
      %v1271 = vld [vmem:[%s1185 + $0x190] sm:$0xff]
      %v1272 = vld [vmem:[%s1185 + $0x198] sm:$0xff]
      %v1273 = vld [vmem:[%s1185 + $0x1a0] sm:$0xff]
      %v1274 = vld [vmem:[%s1185 + $0x1a8] sm:$0xff]
      %v1275 = vld [vmem:[%s1185 + $0x1b0] sm:$0xff]
      %v1276 = vld [vmem:[%s1185 + $0x1b8] sm:$0xff]
      %v1277 = vld [vmem:[%s1185 + $0x1c0] sm:$0xff]
      %v1278 = vld [vmem:[%s1185 + $0x1c8] sm:$0xff]
      %v1279 = vld [vmem:[%s1185 + $0x1d0] sm:$0xff]
      %v1280 = vld [vmem:[%s1185 + $0x1d8] sm:$0xff]
      %v1281 = vld [vmem:[%s1185 + $0x1e0] sm:$0xff]
      %v1282 = vld [vmem:[%s1185 + $0x1e8] sm:$0xff]
      %v1283 = vld [vmem:[%s1185 + $0x1f0] sm:$0xff]
      %v1284 = vld [vmem:[%s1185 + $0x1f8] sm:$0xff]
      %vm1285 = vcmask 523264
      %v1287 = vsel %vm1285, %v1213, 0
      %1289 = vmatprep.subr.mxu0 0.0
      %1290 = vmatpush1.msra.mxu0 %v1221
      %1291 = vmatprep.subr.mxu0 0.0
      %1292 = vmatpush1.msra.mxu0 %v1222
      %1293 = vmatprep.subr.mxu0 0.0
      %1294 = vmatpush1.msra.mxu0 %v1223
      %1295 = vmatprep.subr.mxu0 0.0
      %1296 = vmatpush1.msra.mxu0 %v1224
      %1297 = vmatprep.subr.mxu0 0.0
      %1298 = vmatpush1.msra.mxu0 %v1225
      %1299 = vmatprep.subr.mxu0 0.0
      %1300 = vmatpush1.msra.mxu0 %v1226
      %1301 = vmatprep.subr.mxu0 0.0
      %1302 = vmatpush1.msra.mxu0 %v1227
      %1303 = vmatprep.subr.mxu0 0.0
      %1304 = vmatpush1.msra.mxu0 %v1228
      %1305 = vmatprep.subr.mxu0 0.0
      %1306 = vmatpush1.msra.mxu0 0.0
      %1307 = vmatprep.subr.mxu0 0.0
      %1308 = vmatpush1.msra.mxu0 0.0
      %1309 = vmatprep.subr.mxu0 0.0
      %1310 = vmatpush1.msra.mxu0 0.0
      %1311 = vmatprep.subr.mxu0 0.0
      %1312 = vmatpush1.msra.mxu0 0.0
      %1313 = vmatprep.subr.mxu0 0.0
      %1314 = vmatpush1.msra.mxu0 0.0
      %1315 = vmatprep.subr.mxu0 0.0
      %1316 = vmatpush1.msra.mxu0 0.0
      %1317 = vmatprep.subr.mxu0 0.0
      %1318 = vmatpush1.msra.mxu0 0.0
      %1319 = vmatprep.subr.mxu0 0.0
      %1320 = vmatpush1.msra.mxu0 0.0
      %1321 = vmatprep.subr.mxu0 0.0
      %1322 = vmatpush1.msra.mxu0 0.0
      %1323 = vmatprep.subr.mxu0 0.0
      %1324 = vmatpush1.msra.mxu0 0.0
      %1325 = vmatprep.subr.mxu0 0.0
      %1326 = vmatpush1.msra.mxu0 0.0
      %1327 = vmatprep.subr.mxu0 0.0
      %1328 = vmatpush1.msra.mxu0 0.0
      %1329 = vmatprep.subr.mxu0 0.0
      %1330 = vmatpush1.msra.mxu0 0.0
      %1331 = vmatprep.subr.mxu0 0.0
      %1332 = vmatpush1.msra.mxu0 0.0
      %1333 = vmatprep.subr.mxu0 0.0
      %1334 = vmatpush1.msra.mxu0 0.0
      %1335 = vmatprep.subr.mxu0 0.0
      %1336 = vmatpush1.msra.mxu0 0.0
      %1337 = vmatprep.subr.mxu0 0.0
      %1338 = vmatpush1.msra.mxu0 0.0
      %1339 = vmatprep.subr.mxu0 0.0
      %1340 = vmatpush1.msra.mxu0 0.0
      %1341 = vmatprep.subr.mxu0 0.0
      %1342 = vmatpush1.msra.mxu0 0.0
      %1343 = vmatprep.subr.mxu0 0.0
      %1344 = vmatpush1.msra.mxu0 0.0
      %1345 = vmatprep.subr.mxu0 0.0
      %1346 = vmatpush1.msra.mxu0 0.0
      %1347 = vmatprep.subr.mxu0 0.0
      %1348 = vmatpush1.msra.mxu0 0.0
      %1349 = vmatprep.subr.mxu0 0.0
      %1350 = vmatpush1.msra.mxu0 0.0
      %1351 = vmatprep.subr.mxu0 0.0
      %1352 = vmatpush1.msra.mxu0 0.0
      %1353 = vmatprep.mubr.f32.mxu0 0.0
      %1354 = vmatmul.mubr.f32.gmra.mrb[0].mxu0 %v1287
      %v1355 = vpop.f32.mrb[0].mxu0
      %v1356 = vadd.f32 0.0, %v1355
      %v1357 = vpop.f32.mrb[0].mxu0
      %1358 = vdwg.mxu0
      %v1360 = vsel %vm1285, %v1214, 0
      %1362 = vmatprep.subr.mxu0 0.0
      %1363 = vmatpush1.msra.mxu0 %v1229
      %1364 = vmatprep.subr.mxu0 0.0
      %1365 = vmatpush1.msra.mxu0 %v1230
      %1366 = vmatprep.subr.mxu0 0.0
      %1367 = vmatpush1.msra.mxu0 %v1231
      %1368 = vmatprep.subr.mxu0 0.0
      %1369 = vmatpush1.msra.mxu0 %v1232
      %1370 = vmatprep.subr.mxu0 0.0
      %1371 = vmatpush1.msra.mxu0 %v1233
      %1372 = vmatprep.subr.mxu0 0.0
      %1373 = vmatpush1.msra.mxu0 %v1234
      %1374 = vmatprep.subr.mxu0 0.0
      %1375 = vmatpush1.msra.mxu0 %v1235
      %1376 = vmatprep.subr.mxu0 0.0
      %1377 = vmatpush1.msra.mxu0 %v1236
      %1378 = vmatprep.subr.mxu0 0.0
      %1379 = vmatpush1.msra.mxu0 0.0
      %1380 = vmatprep.subr.mxu0 0.0
      %1381 = vmatpush1.msra.mxu0 0.0
      %1382 = vmatprep.subr.mxu0 0.0
      %1383 = vmatpush1.msra.mxu0 0.0
      %1384 = vmatprep.subr.mxu0 0.0
      %1385 = vmatpush1.msra.mxu0 0.0
      %1386 = vmatprep.subr.mxu0 0.0
      %1387 = vmatpush1.msra.mxu0 0.0
      %1388 = vmatprep.subr.mxu0 0.0
      %1389 = vmatpush1.msra.mxu0 0.0
      %1390 = vmatprep.subr.mxu0 0.0
      %1391 = vmatpush1.msra.mxu0 0.0
      %1392 = vmatprep.subr.mxu0 0.0
      %1393 = vmatpush1.msra.mxu0 0.0
      %1394 = vmatprep.subr.mxu0 0.0
      %1395 = vmatpush1.msra.mxu0 0.0
      %1396 = vmatprep.subr.mxu0 0.0
      %1397 = vmatpush1.msra.mxu0 0.0
      %1398 = vmatprep.subr.mxu0 0.0
      %1399 = vmatpush1.msra.mxu0 0.0
      %1400 = vmatprep.subr.mxu0 0.0
      %1401 = vmatpush1.msra.mxu0 0.0
      %1402 = vmatprep.subr.mxu0 0.0
      %1403 = vmatpush1.msra.mxu0 0.0
      %1404 = vmatprep.subr.mxu0 0.0
      %1405 = vmatpush1.msra.mxu0 0.0
      %1406 = vmatprep.subr.mxu0 0.0
      %1407 = vmatpush1.msra.mxu0 0.0
      %1408 = vmatprep.subr.mxu0 0.0
      %1409 = vmatpush1.msra.mxu0 0.0
      %1410 = vmatprep.subr.mxu0 0.0
      %1411 = vmatpush1.msra.mxu0 0.0
      %1412 = vmatprep.subr.mxu0 0.0
      %1413 = vmatpush1.msra.mxu0 0.0
      %1414 = vmatprep.subr.mxu0 0.0
      %1415 = vmatpush1.msra.mxu0 0.0
      %1416 = vmatprep.subr.mxu0 0.0
      %1417 = vmatpush1.msra.mxu0 0.0
      %1418 = vmatprep.subr.mxu0 0.0
      %1419 = vmatpush1.msra.mxu0 0.0
      %1420 = vmatprep.subr.mxu0 0.0
      %1421 = vmatpush1.msra.mxu0 0.0
      %1422 = vmatprep.subr.mxu0 0.0
      %1423 = vmatpush1.msra.mxu0 0.0
      %1424 = vmatprep.subr.mxu0 0.0
      %1425 = vmatpush1.msra.mxu0 0.0
      %1426 = vmatprep.mubr.f32.mxu0 0.0
      %1427 = vmatmul.mubr.f32.gmra.mrb[0].mxu0 %v1360
      %v1428 = vpop.f32.mrb[0].mxu0
      %v1429 = vadd.f32 0.0, %v1428
      %v1430 = vpop.f32.mrb[0].mxu0
      %1431 = vdwg.mxu0
      %v1433 = vsel %vm1285, %v1215, 0
      %1435 = vmatprep.subr.mxu0 0.0
      %1436 = vmatpush1.msra.mxu0 %v1237
      %1437 = vmatprep.subr.mxu0 0.0
      %1438 = vmatpush1.msra.mxu0 %v1238
      %1439 = vmatprep.subr.mxu0 0.0
      %1440 = vmatpush1.msra.mxu0 %v1239
      %1441 = vmatprep.subr.mxu0 0.0
      %1442 = vmatpush1.msra.mxu0 %v1240
      %1443 = vmatprep.subr.mxu0 0.0
      %1444 = vmatpush1.msra.mxu0 %v1241
      %1445 = vmatprep.subr.mxu0 0.0
      %1446 = vmatpush1.msra.mxu0 %v1242
      %1447 = vmatprep.subr.mxu0 0.0
      %1448 = vmatpush1.msra.mxu0 %v1243
      %1449 = vmatprep.subr.mxu0 0.0
      %1450 = vmatpush1.msra.mxu0 %v1244
      %1451 = vmatprep.subr.mxu0 0.0
      %1452 = vmatpush1.msra.mxu0 0.0
      %1453 = vmatprep.subr.mxu0 0.0
      %1454 = vmatpush1.msra.mxu0 0.0
      %1455 = vmatprep.subr.mxu0 0.0
      %1456 = vmatpush1.msra.mxu0 0.0
      %1457 = vmatprep.subr.mxu0 0.0
      %1458 = vmatpush1.msra.mxu0 0.0
      %1459 = vmatprep.subr.mxu0 0.0
      %1460 = vmatpush1.msra.mxu0 0.0
      %1461 = vmatprep.subr.mxu0 0.0
      %1462 = vmatpush1.msra.mxu0 0.0
      %1463 = vmatprep.subr.mxu0 0.0
      %1464 = vmatpush1.msra.mxu0 0.0
      %1465 = vmatprep.subr.mxu0 0.0
      %1466 = vmatpush1.msra.mxu0 0.0
      %1467 = vmatprep.subr.mxu0 0.0
      %1468 = vmatpush1.msra.mxu0 0.0
      %1469 = vmatprep.subr.mxu0 0.0
      %1470 = vmatpush1.msra.mxu0 0.0
      %1471 = vmatprep.subr.mxu0 0.0
      %1472 = vmatpush1.msra.mxu0 0.0
      %1473 = vmatprep.subr.mxu0 0.0
      %1474 = vmatpush1.msra.mxu0 0.0
      %1475 = vmatprep.subr.mxu0 0.0
      %1476 = vmatpush1.msra.mxu0 0.0
      %1477 = vmatprep.subr.mxu0 0.0
      %1478 = vmatpush1.msra.mxu0 0.0
      %1479 = vmatprep.subr.mxu0 0.0
      %1480 = vmatpush1.msra.mxu0 0.0
      %1481 = vmatprep.subr.mxu0 0.0
      %1482 = vmatpush1.msra.mxu0 0.0
      %1483 = vmatprep.subr.mxu0 0.0
      %1484 = vmatpush1.msra.mxu0 0.0
      %1485 = vmatprep.subr.mxu0 0.0
      %1486 = vmatpush1.msra.mxu0 0.0
      %1487 = vmatprep.subr.mxu0 0.0
      %1488 = vmatpush1.msra.mxu0 0.0
      %1489 = vmatprep.subr.mxu0 0.0
      %1490 = vmatpush1.msra.mxu0 0.0
      %1491 = vmatprep.subr.mxu0 0.0
      %1492 = vmatpush1.msra.mxu0 0.0
      %1493 = vmatprep.subr.mxu0 0.0
      %1494 = vmatpush1.msra.mxu0 0.0
      %1495 = vmatprep.subr.mxu0 0.0
      %1496 = vmatpush1.msra.mxu0 0.0
      %1497 = vmatprep.subr.mxu0 0.0
      %1498 = vmatpush1.msra.mxu0 0.0
      %1499 = vmatprep.mubr.f32.mxu0 0.0
      %1500 = vmatmul.mubr.f32.gmra.mrb[0].mxu0 %v1433
      %v1501 = vpop.f32.mrb[0].mxu0
      %v1502 = vadd.f32 0.0, %v1501
      %v1503 = vpop.f32.mrb[0].mxu0
      %1504 = vdwg.mxu0
      %v1506 = vsel %vm1285, %v1216, 0
      %1508 = vmatprep.subr.mxu0 0.0
      %1509 = vmatpush1.msra.mxu0 %v1245
      %1510 = vmatprep.subr.mxu0 0.0
      %1511 = vmatpush1.msra.mxu0 %v1246
      %1512 = vmatprep.subr.mxu0 0.0
      %1513 = vmatpush1.msra.mxu0 %v1247
      %1514 = vmatprep.subr.mxu0 0.0
      %1515 = vmatpush1.msra.mxu0 %v1248
      %1516 = vmatprep.subr.mxu0 0.0
      %1517 = vmatpush1.msra.mxu0 %v1249
      %1518 = vmatprep.subr.mxu0 0.0
      %1519 = vmatpush1.msra.mxu0 %v1250
      %1520 = vmatprep.subr.mxu0 0.0
      %1521 = vmatpush1.msra.mxu0 %v1251
      %1522 = vmatprep.subr.mxu0 0.0
      %1523 = vmatpush1.msra.mxu0 %v1252
      %1524 = vmatprep.subr.mxu0 0.0
      %1525 = vmatpush1.msra.mxu0 0.0
      %1526 = vmatprep.subr.mxu0 0.0
      %1527 = vmatpush1.msra.mxu0 0.0
      %1528 = vmatprep.subr.mxu0 0.0
      %1529 = vmatpush1.msra.mxu0 0.0
      %1530 = vmatprep.subr.mxu0 0.0
      %1531 = vmatpush1.msra.mxu0 0.0
      %1532 = vmatprep.subr.mxu0 0.0
      %1533 = vmatpush1.msra.mxu0 0.0
      %1534 = vmatprep.subr.mxu0 0.0
      %1535 = vmatpush1.msra.mxu0 0.0
      %1536 = vmatprep.subr.mxu0 0.0
      %1537 = vmatpush1.msra.mxu0 0.0
      %1538 = vmatprep.subr.mxu0 0.0
      %1539 = vmatpush1.msra.mxu0 0.0
      %1540 = vmatprep.subr.mxu0 0.0
      %1541 = vmatpush1.msra.mxu0 0.0
      %1542 = vmatprep.subr.mxu0 0.0
      %1543 = vmatpush1.msra.mxu0 0.0
      %1544 = vmatprep.subr.mxu0 0.0
      %1545 = vmatpush1.msra.mxu0 0.0
      %1546 = vmatprep.subr.mxu0 0.0
      %1547 = vmatpush1.msra.mxu0 0.0
      %1548 = vmatprep.subr.mxu0 0.0
      %1549 = vmatpush1.msra.mxu0 0.0
      %1550 = vmatprep.subr.mxu0 0.0
      %1551 = vmatpush1.msra.mxu0 0.0
      %1552 = vmatprep.subr.mxu0 0.0
      %1553 = vmatpush1.msra.mxu0 0.0
      %1554 = vmatprep.subr.mxu0 0.0
      %1555 = vmatpush1.msra.mxu0 0.0
      %1556 = vmatprep.subr.mxu0 0.0
      %1557 = vmatpush1.msra.mxu0 0.0
      %1558 = vmatprep.subr.mxu0 0.0
      %1559 = vmatpush1.msra.mxu0 0.0
      %1560 = vmatprep.subr.mxu0 0.0
      %1561 = vmatpush1.msra.mxu0 0.0
      %1562 = vmatprep.subr.mxu0 0.0
      %1563 = vmatpush1.msra.mxu0 0.0
      %1564 = vmatprep.subr.mxu0 0.0
      %1565 = vmatpush1.msra.mxu0 0.0
      %1566 = vmatprep.subr.mxu0 0.0
      %1567 = vmatpush1.msra.mxu0 0.0
      %1568 = vmatprep.subr.mxu0 0.0
      %1569 = vmatpush1.msra.mxu0 0.0
      %1570 = vmatprep.subr.mxu0 0.0
      %1571 = vmatpush1.msra.mxu0 0.0
      %1572 = vmatprep.mubr.f32.mxu0 0.0
      %1573 = vmatmul.mubr.f32.gmra.mrb[0].mxu0 %v1506
      %v1574 = vpop.f32.mrb[0].mxu0
      %v1575 = vadd.f32 0.0, %v1574
      %v1576 = vpop.f32.mrb[0].mxu0
      %1577 = vdwg.mxu0
      %v1579 = vsel %vm1285, %v1217, 0
      %1581 = vmatprep.subr.mxu0 0.0
      %1582 = vmatpush1.msra.mxu0 %v1253
      %1583 = vmatprep.subr.mxu0 0.0
      %1584 = vmatpush1.msra.mxu0 %v1254
      %1585 = vmatprep.subr.mxu0 0.0
      %1586 = vmatpush1.msra.mxu0 %v1255
      %1587 = vmatprep.subr.mxu0 0.0
      %1588 = vmatpush1.msra.mxu0 %v1256
      %1589 = vmatprep.subr.mxu0 0.0
      %1590 = vmatpush1.msra.mxu0 %v1257
      %1591 = vmatprep.subr.mxu0 0.0
      %1592 = vmatpush1.msra.mxu0 %v1258
      %1593 = vmatprep.subr.mxu0 0.0
      %1594 = vmatpush1.msra.mxu0 %v1259
      %1595 = vmatprep.subr.mxu0 0.0
      %1596 = vmatpush1.msra.mxu0 %v1260
      %1597 = vmatprep.subr.mxu0 0.0
      %1598 = vmatpush1.msra.mxu0 0.0
      %1599 = vmatprep.subr.mxu0 0.0
      %1600 = vmatpush1.msra.mxu0 0.0
      %1601 = vmatprep.subr.mxu0 0.0
      %1602 = vmatpush1.msra.mxu0 0.0
      %1603 = vmatprep.subr.mxu0 0.0
      %1604 = vmatpush1.msra.mxu0 0.0
      %1605 = vmatprep.subr.mxu0 0.0
      %1606 = vmatpush1.msra.mxu0 0.0
      %1607 = vmatprep.subr.mxu0 0.0
      %1608 = vmatpush1.msra.mxu0 0.0
      %1609 = vmatprep.subr.mxu0 0.0
      %1610 = vmatpush1.msra.mxu0 0.0
      %1611 = vmatprep.subr.mxu0 0.0
      %1612 = vmatpush1.msra.mxu0 0.0
      %1613 = vmatprep.subr.mxu0 0.0
      %1614 = vmatpush1.msra.mxu0 0.0
      %1615 = vmatprep.subr.mxu0 0.0
      %1616 = vmatpush1.msra.mxu0 0.0
      %1617 = vmatprep.subr.mxu0 0.0
      %1618 = vmatpush1.msra.mxu0 0.0
      %1619 = vmatprep.subr.mxu0 0.0
      %1620 = vmatpush1.msra.mxu0 0.0
      %1621 = vmatprep.subr.mxu0 0.0
      %1622 = vmatpush1.msra.mxu0 0.0
      %1623 = vmatprep.subr.mxu0 0.0
      %1624 = vmatpush1.msra.mxu0 0.0
      %1625 = vmatprep.subr.mxu0 0.0
      %1626 = vmatpush1.msra.mxu0 0.0
      %1627 = vmatprep.subr.mxu0 0.0
      %1628 = vmatpush1.msra.mxu0 0.0
      %1629 = vmatprep.subr.mxu0 0.0
      %1630 = vmatpush1.msra.mxu0 0.0
      %1631 = vmatprep.subr.mxu0 0.0
      %1632 = vmatpush1.msra.mxu0 0.0
      %1633 = vmatprep.subr.mxu0 0.0
      %1634 = vmatpush1.msra.mxu0 0.0
      %1635 = vmatprep.subr.mxu0 0.0
      %1636 = vmatpush1.msra.mxu0 0.0
      %1637 = vmatprep.subr.mxu0 0.0
      %1638 = vmatpush1.msra.mxu0 0.0
      %1639 = vmatprep.subr.mxu0 0.0
      %1640 = vmatpush1.msra.mxu0 0.0
      %1641 = vmatprep.subr.mxu0 0.0
      %1642 = vmatpush1.msra.mxu0 0.0
      %1643 = vmatprep.subr.mxu0 0.0
      %1644 = vmatpush1.msra.mxu0 0.0
      %1645 = vmatprep.mubr.f32.mxu0 0.0
      %1646 = vmatmul.mubr.f32.gmra.mrb[0].mxu0 %v1579
      %v1647 = vpop.f32.mrb[0].mxu0
      %v1648 = vadd.f32 0.0, %v1647
      %v1649 = vpop.f32.mrb[0].mxu0
      %1650 = vdwg.mxu0
      %v1652 = vsel %vm1285, %v1218, 0
      %1654 = vmatprep.subr.mxu0 0.0
      %1655 = vmatpush1.msra.mxu0 %v1261
      %1656 = vmatprep.subr.mxu0 0.0
      %1657 = vmatpush1.msra.mxu0 %v1262
      %1658 = vmatprep.subr.mxu0 0.0
      %1659 = vmatpush1.msra.mxu0 %v1263
      %1660 = vmatprep.subr.mxu0 0.0
      %1661 = vmatpush1.msra.mxu0 %v1264
      %1662 = vmatprep.subr.mxu0 0.0
      %1663 = vmatpush1.msra.mxu0 %v1265
      %1664 = vmatprep.subr.mxu0 0.0
      %1665 = vmatpush1.msra.mxu0 %v1266
      %1666 = vmatprep.subr.mxu0 0.0
      %1667 = vmatpush1.msra.mxu0 %v1267
      %1668 = vmatprep.subr.mxu0 0.0
      %1669 = vmatpush1.msra.mxu0 %v1268
      %1670 = vmatprep.subr.mxu0 0.0
      %1671 = vmatpush1.msra.mxu0 0.0
      %1672 = vmatprep.subr.mxu0 0.0
      %1673 = vmatpush1.msra.mxu0 0.0
      %1674 = vmatprep.subr.mxu0 0.0
      %1675 = vmatpush1.msra.mxu0 0.0
      %1676 = vmatprep.subr.mxu0 0.0
      %1677 = vmatpush1.msra.mxu0 0.0
      %1678 = vmatprep.subr.mxu0 0.0
      %1679 = vmatpush1.msra.mxu0 0.0
      %1680 = vmatprep.subr.mxu0 0.0
      %1681 = vmatpush1.msra.mxu0 0.0
      %1682 = vmatprep.subr.mxu0 0.0
      %1683 = vmatpush1.msra.mxu0 0.0
      %1684 = vmatprep.subr.mxu0 0.0
      %1685 = vmatpush1.msra.mxu0 0.0
      %1686 = vmatprep.subr.mxu0 0.0
      %1687 = vmatpush1.msra.mxu0 0.0
      %1688 = vmatprep.subr.mxu0 0.0
      %1689 = vmatpush1.msra.mxu0 0.0
      %1690 = vmatprep.subr.mxu0 0.0
      %1691 = vmatpush1.msra.mxu0 0.0
      %1692 = vmatprep.subr.mxu0 0.0
      %1693 = vmatpush1.msra.mxu0 0.0
      %1694 = vmatprep.subr.mxu0 0.0
      %1695 = vmatpush1.msra.mxu0 0.0
      %1696 = vmatprep.subr.mxu0 0.0
      %1697 = vmatpush1.msra.mxu0 0.0
      %1698 = vmatprep.subr.mxu0 0.0
      %1699 = vmatpush1.msra.mxu0 0.0
      %1700 = vmatprep.subr.mxu0 0.0
      %1701 = vmatpush1.msra.mxu0 0.0
      %1702 = vmatprep.subr.mxu0 0.0
      %1703 = vmatpush1.msra.mxu0 0.0
      %1704 = vmatprep.subr.mxu0 0.0
      %1705 = vmatpush1.msra.mxu0 0.0
      %1706 = vmatprep.subr.mxu0 0.0
      %1707 = vmatpush1.msra.mxu0 0.0
      %1708 = vmatprep.subr.mxu0 0.0
      %1709 = vmatpush1.msra.mxu0 0.0
      %1710 = vmatprep.subr.mxu0 0.0
      %1711 = vmatpush1.msra.mxu0 0.0
      %1712 = vmatprep.subr.mxu0 0.0
      %1713 = vmatpush1.msra.mxu0 0.0
      %1714 = vmatprep.subr.mxu0 0.0
      %1715 = vmatpush1.msra.mxu0 0.0
      %1716 = vmatprep.subr.mxu0 0.0
      %1717 = vmatpush1.msra.mxu0 0.0
      %1718 = vmatprep.mubr.f32.mxu0 0.0
      %1719 = vmatmul.mubr.f32.gmra.mrb[0].mxu0 %v1652
      %v1720 = vpop.f32.mrb[0].mxu0
      %v1721 = vadd.f32 0.0, %v1720
      %v1722 = vpop.f32.mrb[0].mxu0
      %1723 = vdwg.mxu0
      %v1725 = vsel %vm1285, %v1219, 0
      %1727 = vmatprep.subr.mxu0 0.0
      %1728 = vmatpush1.msra.mxu0 %v1269
      %1729 = vmatprep.subr.mxu0 0.0
      %1730 = vmatpush1.msra.mxu0 %v1270
      %1731 = vmatprep.subr.mxu0 0.0
      %1732 = vmatpush1.msra.mxu0 %v1271
      %1733 = vmatprep.subr.mxu0 0.0
      %1734 = vmatpush1.msra.mxu0 %v1272
      %1735 = vmatprep.subr.mxu0 0.0
      %1736 = vmatpush1.msra.mxu0 %v1273
      %1737 = vmatprep.subr.mxu0 0.0
      %1738 = vmatpush1.msra.mxu0 %v1274
      %1739 = vmatprep.subr.mxu0 0.0
      %1740 = vmatpush1.msra.mxu0 %v1275
      %1741 = vmatprep.subr.mxu0 0.0
      %1742 = vmatpush1.msra.mxu0 %v1276
      %1743 = vmatprep.subr.mxu0 0.0
      %1744 = vmatpush1.msra.mxu0 0.0
      %1745 = vmatprep.subr.mxu0 0.0
      %1746 = vmatpush1.msra.mxu0 0.0
      %1747 = vmatprep.subr.mxu0 0.0
      %1748 = vmatpush1.msra.mxu0 0.0
      %1749 = vmatprep.subr.mxu0 0.0
      %1750 = vmatpush1.msra.mxu0 0.0
      %1751 = vmatprep.subr.mxu0 0.0
      %1752 = vmatpush1.msra.mxu0 0.0
      %1753 = vmatprep.subr.mxu0 0.0
      %1754 = vmatpush1.msra.mxu0 0.0
      %1755 = vmatprep.subr.mxu0 0.0
      %1756 = vmatpush1.msra.mxu0 0.0
      %1757 = vmatprep.subr.mxu0 0.0
      %1758 = vmatpush1.msra.mxu0 0.0
      %1759 = vmatprep.subr.mxu0 0.0
      %1760 = vmatpush1.msra.mxu0 0.0
      %1761 = vmatprep.subr.mxu0 0.0
      %1762 = vmatpush1.msra.mxu0 0.0
      %1763 = vmatprep.subr.mxu0 0.0
      %1764 = vmatpush1.msra.mxu0 0.0
      %1765 = vmatprep.subr.mxu0 0.0
      %1766 = vmatpush1.msra.mxu0 0.0
      %1767 = vmatprep.subr.mxu0 0.0
      %1768 = vmatpush1.msra.mxu0 0.0
      %1769 = vmatprep.subr.mxu0 0.0
      %1770 = vmatpush1.msra.mxu0 0.0
      %1771 = vmatprep.subr.mxu0 0.0
      %1772 = vmatpush1.msra.mxu0 0.0
      %1773 = vmatprep.subr.mxu0 0.0
      %1774 = vmatpush1.msra.mxu0 0.0
      %1775 = vmatprep.subr.mxu0 0.0
      %1776 = vmatpush1.msra.mxu0 0.0
      %1777 = vmatprep.subr.mxu0 0.0
      %1778 = vmatpush1.msra.mxu0 0.0
      %1779 = vmatprep.subr.mxu0 0.0
      %1780 = vmatpush1.msra.mxu0 0.0
      %1781 = vmatprep.subr.mxu0 0.0
      %1782 = vmatpush1.msra.mxu0 0.0
      %1783 = vmatprep.subr.mxu0 0.0
      %1784 = vmatpush1.msra.mxu0 0.0
      %1785 = vmatprep.subr.mxu0 0.0
      %1786 = vmatpush1.msra.mxu0 0.0
      %1787 = vmatprep.subr.mxu0 0.0
      %1788 = vmatpush1.msra.mxu0 0.0
      %1789 = vmatprep.subr.mxu0 0.0
      %1790 = vmatpush1.msra.mxu0 0.0
      %1791 = vmatprep.mubr.f32.mxu0 0.0
      %1792 = vmatmul.mubr.f32.gmra.mrb[0].mxu0 %v1725
      %v1793 = vpop.f32.mrb[0].mxu0
      %v1794 = vadd.f32 0.0, %v1793
      %v1795 = vpop.f32.mrb[0].mxu0
      %1796 = vdwg.mxu0
      %v1798 = vsel %vm1285, %v1220, 0
      %1800 = vmatprep.subr.mxu0 0.0
      %1801 = vmatpush1.msra.mxu0 %v1277
      %1802 = vmatprep.subr.mxu0 0.0
      %1803 = vmatpush1.msra.mxu0 %v1278
      %1804 = vmatprep.subr.mxu0 0.0
      %1805 = vmatpush1.msra.mxu0 %v1279
      %1806 = vmatprep.subr.mxu0 0.0
      %1807 = vmatpush1.msra.mxu0 %v1280
      %1808 = vmatprep.subr.mxu0 0.0
      %1809 = vmatpush1.msra.mxu0 %v1281
      %1810 = vmatprep.subr.mxu0 0.0
      %1811 = vmatpush1.msra.mxu0 %v1282
      %1812 = vmatprep.subr.mxu0 0.0
      %1813 = vmatpush1.msra.mxu0 %v1283
      %1814 = vmatprep.subr.mxu0 0.0
      %1815 = vmatpush1.msra.mxu0 %v1284
      %1816 = vmatprep.subr.mxu0 0.0
      %1817 = vmatpush1.msra.mxu0 0.0
      %1818 = vmatprep.subr.mxu0 0.0
      %1819 = vmatpush1.msra.mxu0 0.0
      %1820 = vmatprep.subr.mxu0 0.0
      %1821 = vmatpush1.msra.mxu0 0.0
      %1822 = vmatprep.subr.mxu0 0.0
      %1823 = vmatpush1.msra.mxu0 0.0
      %1824 = vmatprep.subr.mxu0 0.0
      %1825 = vmatpush1.msra.mxu0 0.0
      %1826 = vmatprep.subr.mxu0 0.0
      %1827 = vmatpush1.msra.mxu0 0.0
      %1828 = vmatprep.subr.mxu0 0.0
      %1829 = vmatpush1.msra.mxu0 0.0
      %1830 = vmatprep.subr.mxu0 0.0
      %1831 = vmatpush1.msra.mxu0 0.0
      %1832 = vmatprep.subr.mxu0 0.0
      %1833 = vmatpush1.msra.mxu0 0.0
      %1834 = vmatprep.subr.mxu0 0.0
      %1835 = vmatpush1.msra.mxu0 0.0
      %1836 = vmatprep.subr.mxu0 0.0
      %1837 = vmatpush1.msra.mxu0 0.0
      %1838 = vmatprep.subr.mxu0 0.0
      %1839 = vmatpush1.msra.mxu0 0.0
      %1840 = vmatprep.subr.mxu0 0.0
      %1841 = vmatpush1.msra.mxu0 0.0
      %1842 = vmatprep.subr.mxu0 0.0
      %1843 = vmatpush1.msra.mxu0 0.0
      %1844 = vmatprep.subr.mxu0 0.0
      %1845 = vmatpush1.msra.mxu0 0.0
      %1846 = vmatprep.subr.mxu0 0.0
      %1847 = vmatpush1.msra.mxu0 0.0
      %1848 = vmatprep.subr.mxu0 0.0
      %1849 = vmatpush1.msra.mxu0 0.0
      %1850 = vmatprep.subr.mxu0 0.0
      %1851 = vmatpush1.msra.mxu0 0.0
      %1852 = vmatprep.subr.mxu0 0.0
      %1853 = vmatpush1.msra.mxu0 0.0
      %1854 = vmatprep.subr.mxu0 0.0
      %1855 = vmatpush1.msra.mxu0 0.0
      %1856 = vmatprep.subr.mxu0 0.0
      %1857 = vmatpush1.msra.mxu0 0.0
      %1858 = vmatprep.subr.mxu0 0.0
      %1859 = vmatpush1.msra.mxu0 0.0
      %1860 = vmatprep.subr.mxu0 0.0
      %1861 = vmatpush1.msra.mxu0 0.0
      %1862 = vmatprep.subr.mxu0 0.0
      %1863 = vmatpush1.msra.mxu0 0.0
      %1864 = vmatprep.mubr.f32.mxu0 0.0
      %1865 = vmatmul.mubr.f32.gmra.mrb[0].mxu0 %v1798
      %v1866 = vpop.f32.mrb[0].mxu0
      %v1867 = vadd.f32 0.0, %v1866
      %v1868 = vpop.f32.mrb[0].mxu0
      %1869 = vdwg.mxu0
      %v1870 = vld [vmem:[%s19] sm:$0x1]
      %v1871 = vld [vmem:[%s21] sm:$0x1]
      %vm1872 = vcmask 125952
      %v1873 = vsel %vm1872, %v1356, 0.0
      %1874 = vadd.xlane.f32.xlu0 %v1873
      %v1875 = vpop.xlane.xlu0 %1874
      %v1876 = vsel %vm1872, %v1429, 0.0
      %1877 = vadd.xlane.f32.xlu0 %v1876
      %v1878 = vpop.xlane.xlu0 %1877
      %v1879 = vsel %vm1872, %v1502, 0.0
      %1880 = vadd.xlane.f32.xlu0 %v1879
      %v1881 = vpop.xlane.xlu0 %1880
      %v1882 = vsel %vm1872, %v1575, 0.0
      %1883 = vadd.xlane.f32.xlu0 %v1882
      %v1884 = vpop.xlane.xlu0 %1883
      %v1885 = vsel %vm1872, %v1648, 0.0
      %1886 = vadd.xlane.f32.xlu0 %v1885
      %v1887 = vpop.xlane.xlu0 %1886
      %v1888 = vsel %vm1872, %v1721, 0.0
      %1889 = vadd.xlane.f32.xlu0 %v1888
      %v1890 = vpop.xlane.xlu0 %1889
      %v1891 = vsel %vm1872, %v1794, 0.0
      %1892 = vadd.xlane.f32.xlu0 %v1891
      %v1893 = vpop.xlane.xlu0 %1892
      %v1894 = vsel %vm1872, %v1867, 0.0
      %1895 = vadd.xlane.f32.xlu0 %v1894
      %v1896 = vpop.xlane.xlu0 %1895
      %v1897 = vrcp.pop 16.0
      %v1898 = vmul.f32 %v1875, %v1897
      %v1899 = vmul.f32 %v1878, %v1897
      %v1900 = vmul.f32 %v1881, %v1897
      %v1901 = vmul.f32 %v1884, %v1897
      %v1902 = vmul.f32 %v1887, %v1897
      %v1903 = vmul.f32 %v1890, %v1897
      %v1904 = vmul.f32 %v1893, %v1897
      %v1905 = vmul.f32 %v1896, %v1897
      %v1906 = vsub.f32 %v1356, %v1898
      %v1907 = vsub.f32 %v1429, %v1899
      %v1908 = vsub.f32 %v1502, %v1900
      %v1909 = vsub.f32 %v1575, %v1901
      %v1910 = vsub.f32 %v1648, %v1902
      %v1911 = vsub.f32 %v1721, %v1903
      %v1912 = vsub.f32 %v1794, %v1904
      %v1913 = vsub.f32 %v1867, %v1905
      %v1914 = vmul.f32 %v1906, %v1906
      %v1915 = vmul.f32 %v1907, %v1907
      %v1916 = vmul.f32 %v1908, %v1908
      %v1917 = vmul.f32 %v1909, %v1909
      %v1918 = vmul.f32 %v1910, %v1910
      %v1919 = vmul.f32 %v1911, %v1911
      %v1920 = vmul.f32 %v1912, %v1912
      %v1921 = vmul.f32 %v1913, %v1913
      %v1922 = vsel %vm1872, %v1914, 0.0
      %1923 = vadd.xlane.f32.xlu0 %v1922
      %v1924 = vpop.xlane.xlu0 %1923
      %v1925 = vsel %vm1872, %v1915, 0.0
      %1926 = vadd.xlane.f32.xlu0 %v1925
      %v1927 = vpop.xlane.xlu0 %1926
      %v1928 = vsel %vm1872, %v1916, 0.0
      %1929 = vadd.xlane.f32.xlu0 %v1928
      %v1930 = vpop.xlane.xlu0 %1929
      %v1931 = vsel %vm1872, %v1917, 0.0
      %1932 = vadd.xlane.f32.xlu0 %v1931
      %v1933 = vpop.xlane.xlu0 %1932
      %v1934 = vsel %vm1872, %v1918, 0.0
      %1935 = vadd.xlane.f32.xlu0 %v1934
      %v1936 = vpop.xlane.xlu0 %1935
      %v1937 = vsel %vm1872, %v1919, 0.0
      %1938 = vadd.xlane.f32.xlu0 %v1937
      %v1939 = vpop.xlane.xlu0 %1938
      %v1940 = vsel %vm1872, %v1920, 0.0
      %1941 = vadd.xlane.f32.xlu0 %v1940
      %v1942 = vpop.xlane.xlu0 %1941
      %v1943 = vsel %vm1872, %v1921, 0.0
      %1944 = vadd.xlane.f32.xlu0 %v1943
      %v1945 = vpop.xlane.xlu0 %1944
      %v1946 = vmul.f32 %v1924, %v1897
      %v1947 = vmul.f32 %v1927, %v1897
      %v1948 = vmul.f32 %v1930, %v1897
      %v1949 = vmul.f32 %v1933, %v1897
      %v1950 = vmul.f32 %v1936, %v1897
      %v1951 = vmul.f32 %v1939, %v1897
      %v1952 = vmul.f32 %v1942, %v1897
      %v1953 = vmul.f32 %v1945, %v1897
      %v1954 = vadd.f32 %v1946, 1e-05
      %v1955 = vadd.f32 %v1947, 1e-05
      %v1956 = vadd.f32 %v1948, 1e-05
      %v1957 = vadd.f32 %v1949, 1e-05
      %v1958 = vadd.f32 %v1950, 1e-05
      %v1959 = vadd.f32 %v1951, 1e-05
      %v1960 = vadd.f32 %v1952, 1e-05
      %v1961 = vadd.f32 %v1953, 1e-05
      %v1962 = vrsqrt.pop %v1954
      %v1963 = vrsqrt.pop %v1955
      %v1964 = vrsqrt.pop %v1956
      %v1965 = vrsqrt.pop %v1957
      %v1966 = vrsqrt.pop %v1958
      %v1967 = vrsqrt.pop %v1959
      %v1968 = vrsqrt.pop %v1960
      %v1969 = vrsqrt.pop %v1961
      %v1970 = vmul.f32 %v1906, %v1962
      %v1971 = vmul.f32 %v1907, %v1963
      %v1972 = vmul.f32 %v1908, %v1964
      %v1973 = vmul.f32 %v1909, %v1965
      %v1974 = vmul.f32 %v1910, %v1966
      %v1975 = vmul.f32 %v1911, %v1967
      %v1976 = vmul.f32 %v1912, %v1968
      %v1977 = vmul.f32 %v1913, %v1969
      %v1979 = vlaneseq
      %v1980 = vshrl.u32 %v1979, 7
      %v1981 = vsub.s32 0, %v1980
      %v1982 = vrot.slane %v1870, %v1981
      %v1984 = vmul.f32 %v1970, %v1982
      %v1985 = vmul.f32 %v1971, %v1982
      %v1986 = vmul.f32 %v1972, %v1982
      %v1987 = vmul.f32 %v1973, %v1982
      %v1988 = vmul.f32 %v1974, %v1982
      %v1989 = vmul.f32 %v1975, %v1982
      %v1990 = vmul.f32 %v1976, %v1982
      %v1991 = vmul.f32 %v1977, %v1982
      %v1993 = vlaneseq
      %v1994 = vshrl.u32 %v1993, 7
      %v1995 = vsub.s32 0, %v1994
      %v1996 = vrot.slane %v1871, %v1995
      %v1998 = vadd.f32 %v1984, %v1996
      %v1999 = vadd.f32 %v1985, %v1996
      %v2000 = vadd.f32 %v1986, %v1996
      %v2001 = vadd.f32 %v1987, %v1996
      %v2002 = vadd.f32 %v1988, %v1996
      %v2003 = vadd.f32 %v1989, %v1996
      %v2004 = vadd.f32 %v1990, %v1996
      %v2005 = vadd.f32 %v1991, %v1996
      %v2006 = vmax.f32 %v1998, 0.0
      %v2007 = vmax.f32 %v1999, 0.0
      %v2008 = vmax.f32 %v2000, 0.0
      %v2009 = vmax.f32 %v2001, 0.0
      %v2010 = vmax.f32 %v2002, 0.0
      %v2011 = vmax.f32 %v2003, 0.0
      %v2012 = vmax.f32 %v2004, 0.0
      %v2013 = vmax.f32 %v2005, 0.0
      %v2014 = vld [vmem:[%s1190] sm:$0xff]
      %v2015 = vld [vmem:[%s1190 + $0x8] sm:$0xff]
      %v2016 = vld [vmem:[%s1190 + $0x10] sm:$0xff]
      %v2017 = vld [vmem:[%s1190 + $0x18] sm:$0xff]
      %v2018 = vld [vmem:[%s1190 + $0x20] sm:$0xff]
      %v2019 = vld [vmem:[%s1190 + $0x28] sm:$0xff]
      %v2020 = vld [vmem:[%s1190 + $0x30] sm:$0xff]
      %v2021 = vld [vmem:[%s1190 + $0x38] sm:$0xff]
      %v2022 = vld [vmem:[%s1190 + $0x40] sm:$0xff]
      %v2023 = vld [vmem:[%s1190 + $0x48] sm:$0xff]
      %v2024 = vld [vmem:[%s1190 + $0x50] sm:$0xff]
      %v2025 = vld [vmem:[%s1190 + $0x58] sm:$0xff]
      %v2026 = vld [vmem:[%s1190 + $0x60] sm:$0xff]
      %v2027 = vld [vmem:[%s1190 + $0x68] sm:$0xff]
      %v2028 = vld [vmem:[%s1190 + $0x70] sm:$0xff]
      %v2029 = vld [vmem:[%s1190 + $0x78] sm:$0xff]
      %vm2030 = vcmask 130048
      %v2032 = vsel %vm2030, %v2006, 0
      %2034 = vmatprep.subr.mxu0 0.0
      %2035 = vmatpush1.msra.mxu0 %v2014
      %2036 = vmatprep.subr.mxu0 0.0
      %2037 = vmatpush1.msra.mxu0 %v2015
      %2038 = vmatprep.subr.mxu0 0.0
      %2039 = vmatpush1.msra.mxu0 0.0
      %2040 = vmatprep.subr.mxu0 0.0
      %2041 = vmatpush1.msra.mxu0 0.0
      %2042 = vmatprep.subr.mxu0 0.0
      %2043 = vmatpush1.msra.mxu0 0.0
      %2044 = vmatprep.subr.mxu0 0.0
      %2045 = vmatpush1.msra.mxu0 0.0
      %2046 = vmatprep.subr.mxu0 0.0
      %2047 = vmatpush1.msra.mxu0 0.0
      %2048 = vmatprep.subr.mxu0 0.0
      %2049 = vmatpush1.msra.mxu0 0.0
      %2050 = vmatprep.subr.mxu0 0.0
      %2051 = vmatpush1.msra.mxu0 0.0
      %2052 = vmatprep.subr.mxu0 0.0
      %2053 = vmatpush1.msra.mxu0 0.0
      %2054 = vmatprep.subr.mxu0 0.0
      %2055 = vmatpush1.msra.mxu0 0.0
      %2056 = vmatprep.subr.mxu0 0.0
      %2057 = vmatpush1.msra.mxu0 0.0
      %2058 = vmatprep.subr.mxu0 0.0
      %2059 = vmatpush1.msra.mxu0 0.0
      %2060 = vmatprep.subr.mxu0 0.0
      %2061 = vmatpush1.msra.mxu0 0.0
      %2062 = vmatprep.subr.mxu0 0.0
      %2063 = vmatpush1.msra.mxu0 0.0
      %2064 = vmatprep.subr.mxu0 0.0
      %2065 = vmatpush1.msra.mxu0 0.0
      %2066 = vmatprep.subr.mxu0 0.0
      %2067 = vmatpush1.msra.mxu0 0.0
      %2068 = vmatprep.subr.mxu0 0.0
      %2069 = vmatpush1.msra.mxu0 0.0
      %2070 = vmatprep.subr.mxu0 0.0
      %2071 = vmatpush1.msra.mxu0 0.0
      %2072 = vmatprep.subr.mxu0 0.0
      %2073 = vmatpush1.msra.mxu0 0.0
      %2074 = vmatprep.subr.mxu0 0.0
      %2075 = vmatpush1.msra.mxu0 0.0
      %2076 = vmatprep.subr.mxu0 0.0
      %2077 = vmatpush1.msra.mxu0 0.0
      %2078 = vmatprep.subr.mxu0 0.0
      %2079 = vmatpush1.msra.mxu0 0.0
      %2080 = vmatprep.subr.mxu0 0.0
      %2081 = vmatpush1.msra.mxu0 0.0
      %2082 = vmatprep.subr.mxu0 0.0
      %2083 = vmatpush1.msra.mxu0 0.0
      %2084 = vmatprep.subr.mxu0 0.0
      %2085 = vmatpush1.msra.mxu0 0.0
      %2086 = vmatprep.subr.mxu0 0.0
      %2087 = vmatpush1.msra.mxu0 0.0
      %2088 = vmatprep.subr.mxu0 0.0
      %2089 = vmatpush1.msra.mxu0 0.0
      %2090 = vmatprep.subr.mxu0 0.0
      %2091 = vmatpush1.msra.mxu0 0.0
      %2092 = vmatprep.subr.mxu0 0.0
      %2093 = vmatpush1.msra.mxu0 0.0
      %2094 = vmatprep.subr.mxu0 0.0
      %2095 = vmatpush1.msra.mxu0 0.0
      %2096 = vmatprep.subr.mxu0 0.0
      %2097 = vmatpush1.msra.mxu0 0.0
      %2098 = vmatprep.mubr.f32.mxu0 0.0
      %2099 = vmatmul.mubr.f32.gmra.mrb[0].mxu0 %v2032
      %v2100 = vpop.f32.mrb[0].mxu0
      %v2101 = vadd.f32 0.0, %v2100
      %v2102 = vpop.f32.mrb[0].mxu0
      %2103 = vdwg.mxu0
      %v2105 = vsel %vm2030, %v2007, 0
      %2107 = vmatprep.subr.mxu0 0.0
      %2108 = vmatpush1.msra.mxu0 %v2016
      %2109 = vmatprep.subr.mxu0 0.0
      %2110 = vmatpush1.msra.mxu0 %v2017
      %2111 = vmatprep.subr.mxu0 0.0
      %2112 = vmatpush1.msra.mxu0 0.0
      %2113 = vmatprep.subr.mxu0 0.0
      %2114 = vmatpush1.msra.mxu0 0.0
      %2115 = vmatprep.subr.mxu0 0.0
      %2116 = vmatpush1.msra.mxu0 0.0
      %2117 = vmatprep.subr.mxu0 0.0
      %2118 = vmatpush1.msra.mxu0 0.0
      %2119 = vmatprep.subr.mxu0 0.0
      %2120 = vmatpush1.msra.mxu0 0.0
      %2121 = vmatprep.subr.mxu0 0.0
      %2122 = vmatpush1.msra.mxu0 0.0
      %2123 = vmatprep.subr.mxu0 0.0
      %2124 = vmatpush1.msra.mxu0 0.0
      %2125 = vmatprep.subr.mxu0 0.0
      %2126 = vmatpush1.msra.mxu0 0.0
      %2127 = vmatprep.subr.mxu0 0.0
      %2128 = vmatpush1.msra.mxu0 0.0
      %2129 = vmatprep.subr.mxu0 0.0
      %2130 = vmatpush1.msra.mxu0 0.0
      %2131 = vmatprep.subr.mxu0 0.0
      %2132 = vmatpush1.msra.mxu0 0.0
      %2133 = vmatprep.subr.mxu0 0.0
      %2134 = vmatpush1.msra.mxu0 0.0
      %2135 = vmatprep.subr.mxu0 0.0
      %2136 = vmatpush1.msra.mxu0 0.0
      %2137 = vmatprep.subr.mxu0 0.0
      %2138 = vmatpush1.msra.mxu0 0.0
      %2139 = vmatprep.subr.mxu0 0.0
      %2140 = vmatpush1.msra.mxu0 0.0
      %2141 = vmatprep.subr.mxu0 0.0
      %2142 = vmatpush1.msra.mxu0 0.0
      %2143 = vmatprep.subr.mxu0 0.0
      %2144 = vmatpush1.msra.mxu0 0.0
      %2145 = vmatprep.subr.mxu0 0.0
      %2146 = vmatpush1.msra.mxu0 0.0
      %2147 = vmatprep.subr.mxu0 0.0
      %2148 = vmatpush1.msra.mxu0 0.0
      %2149 = vmatprep.subr.mxu0 0.0
      %2150 = vmatpush1.msra.mxu0 0.0
      %2151 = vmatprep.subr.mxu0 0.0
      %2152 = vmatpush1.msra.mxu0 0.0
      %2153 = vmatprep.subr.mxu0 0.0
      %2154 = vmatpush1.msra.mxu0 0.0
      %2155 = vmatprep.subr.mxu0 0.0
      %2156 = vmatpush1.msra.mxu0 0.0
      %2157 = vmatprep.subr.mxu0 0.0
      %2158 = vmatpush1.msra.mxu0 0.0
      %2159 = vmatprep.subr.mxu0 0.0
      %2160 = vmatpush1.msra.mxu0 0.0
      %2161 = vmatprep.subr.mxu0 0.0
      %2162 = vmatpush1.msra.mxu0 0.0
      %2163 = vmatprep.subr.mxu0 0.0
      %2164 = vmatpush1.msra.mxu0 0.0
      %2165 = vmatprep.subr.mxu0 0.0
      %2166 = vmatpush1.msra.mxu0 0.0
      %2167 = vmatprep.subr.mxu0 0.0
      %2168 = vmatpush1.msra.mxu0 0.0
      %2169 = vmatprep.subr.mxu0 0.0
      %2170 = vmatpush1.msra.mxu0 0.0
      %2171 = vmatprep.mubr.f32.mxu0 0.0
      %2172 = vmatmul.mubr.f32.gmra.mrb[0].mxu0 %v2105
      %v2173 = vpop.f32.mrb[0].mxu0
      %v2174 = vadd.f32 0.0, %v2173
      %v2175 = vpop.f32.mrb[0].mxu0
      %2176 = vdwg.mxu0
      %v2178 = vsel %vm2030, %v2008, 0
      %2180 = vmatprep.subr.mxu0 0.0
      %2181 = vmatpush1.msra.mxu0 %v2018
      %2182 = vmatprep.subr.mxu0 0.0
      %2183 = vmatpush1.msra.mxu0 %v2019
      %2184 = vmatprep.subr.mxu0 0.0
      %2185 = vmatpush1.msra.mxu0 0.0
      %2186 = vmatprep.subr.mxu0 0.0
      %2187 = vmatpush1.msra.mxu0 0.0
      %2188 = vmatprep.subr.mxu0 0.0
      %2189 = vmatpush1.msra.mxu0 0.0
      %2190 = vmatprep.subr.mxu0 0.0
      %2191 = vmatpush1.msra.mxu0 0.0
      %2192 = vmatprep.subr.mxu0 0.0
      %2193 = vmatpush1.msra.mxu0 0.0
      %2194 = vmatprep.subr.mxu0 0.0
      %2195 = vmatpush1.msra.mxu0 0.0
      %2196 = vmatprep.subr.mxu0 0.0
      %2197 = vmatpush1.msra.mxu0 0.0
      %2198 = vmatprep.subr.mxu0 0.0
      %2199 = vmatpush1.msra.mxu0 0.0
      %2200 = vmatprep.subr.mxu0 0.0
      %2201 = vmatpush1.msra.mxu0 0.0
      %2202 = vmatprep.subr.mxu0 0.0
      %2203 = vmatpush1.msra.mxu0 0.0
      %2204 = vmatprep.subr.mxu0 0.0
      %2205 = vmatpush1.msra.mxu0 0.0
      %2206 = vmatprep.subr.mxu0 0.0
      %2207 = vmatpush1.msra.mxu0 0.0
      %2208 = vmatprep.subr.mxu0 0.0
      %2209 = vmatpush1.msra.mxu0 0.0
      %2210 = vmatprep.subr.mxu0 0.0
      %2211 = vmatpush1.msra.mxu0 0.0
      %2212 = vmatprep.subr.mxu0 0.0
      %2213 = vmatpush1.msra.mxu0 0.0
      %2214 = vmatprep.subr.mxu0 0.0
      %2215 = vmatpush1.msra.mxu0 0.0
      %2216 = vmatprep.subr.mxu0 0.0
      %2217 = vmatpush1.msra.mxu0 0.0
      %2218 = vmatprep.subr.mxu0 0.0
      %2219 = vmatpush1.msra.mxu0 0.0
      %2220 = vmatprep.subr.mxu0 0.0
      %2221 = vmatpush1.msra.mxu0 0.0
      %2222 = vmatprep.subr.mxu0 0.0
      %2223 = vmatpush1.msra.mxu0 0.0
      %2224 = vmatprep.subr.mxu0 0.0
      %2225 = vmatpush1.msra.mxu0 0.0
      %2226 = vmatprep.subr.mxu0 0.0
      %2227 = vmatpush1.msra.mxu0 0.0
      %2228 = vmatprep.subr.mxu0 0.0
      %2229 = vmatpush1.msra.mxu0 0.0
      %2230 = vmatprep.subr.mxu0 0.0
      %2231 = vmatpush1.msra.mxu0 0.0
      %2232 = vmatprep.subr.mxu0 0.0
      %2233 = vmatpush1.msra.mxu0 0.0
      %2234 = vmatprep.subr.mxu0 0.0
      %2235 = vmatpush1.msra.mxu0 0.0
      %2236 = vmatprep.subr.mxu0 0.0
      %2237 = vmatpush1.msra.mxu0 0.0
      %2238 = vmatprep.subr.mxu0 0.0
      %2239 = vmatpush1.msra.mxu0 0.0
      %2240 = vmatprep.subr.mxu0 0.0
      %2241 = vmatpush1.msra.mxu0 0.0
      %2242 = vmatprep.subr.mxu0 0.0
      %2243 = vmatpush1.msra.mxu0 0.0
      %2244 = vmatprep.mubr.f32.mxu0 0.0
      %2245 = vmatmul.mubr.f32.gmra.mrb[0].mxu0 %v2178
      %v2246 = vpop.f32.mrb[0].mxu0
      %v2247 = vadd.f32 0.0, %v2246
      %v2248 = vpop.f32.mrb[0].mxu0
      %2249 = vdwg.mxu0
      %v2251 = vsel %vm2030, %v2009, 0
      %2253 = vmatprep.subr.mxu0 0.0
      %2254 = vmatpush1.msra.mxu0 %v2020
      %2255 = vmatprep.subr.mxu0 0.0
      %2256 = vmatpush1.msra.mxu0 %v2021
      %2257 = vmatprep.subr.mxu0 0.0
      %2258 = vmatpush1.msra.mxu0 0.0
      %2259 = vmatprep.subr.mxu0 0.0
      %2260 = vmatpush1.msra.mxu0 0.0
      %2261 = vmatprep.subr.mxu0 0.0
      %2262 = vmatpush1.msra.mxu0 0.0
      %2263 = vmatprep.subr.mxu0 0.0
      %2264 = vmatpush1.msra.mxu0 0.0
      %2265 = vmatprep.subr.mxu0 0.0
      %2266 = vmatpush1.msra.mxu0 0.0
      %2267 = vmatprep.subr.mxu0 0.0
      %2268 = vmatpush1.msra.mxu0 0.0
      %2269 = vmatprep.subr.mxu0 0.0
      %2270 = vmatpush1.msra.mxu0 0.0
      %2271 = vmatprep.subr.mxu0 0.0
      %2272 = vmatpush1.msra.mxu0 0.0
      %2273 = vmatprep.subr.mxu0 0.0
      %2274 = vmatpush1.msra.mxu0 0.0
      %2275 = vmatprep.subr.mxu0 0.0
      %2276 = vmatpush1.msra.mxu0 0.0
      %2277 = vmatprep.subr.mxu0 0.0
      %2278 = vmatpush1.msra.mxu0 0.0
      %2279 = vmatprep.subr.mxu0 0.0
      %2280 = vmatpush1.msra.mxu0 0.0
      %2281 = vmatprep.subr.mxu0 0.0
      %2282 = vmatpush1.msra.mxu0 0.0
      %2283 = vmatprep.subr.mxu0 0.0
      %2284 = vmatpush1.msra.mxu0 0.0
      %2285 = vmatprep.subr.mxu0 0.0
      %2286 = vmatpush1.msra.mxu0 0.0
      %2287 = vmatprep.subr.mxu0 0.0
      %2288 = vmatpush1.msra.mxu0 0.0
      %2289 = vmatprep.subr.mxu0 0.0
      %2290 = vmatpush1.msra.mxu0 0.0
      %2291 = vmatprep.subr.mxu0 0.0
      %2292 = vmatpush1.msra.mxu0 0.0
      %2293 = vmatprep.subr.mxu0 0.0
      %2294 = vmatpush1.msra.mxu0 0.0
      %2295 = vmatprep.subr.mxu0 0.0
      %2296 = vmatpush1.msra.mxu0 0.0
      %2297 = vmatprep.subr.mxu0 0.0
      %2298 = vmatpush1.msra.mxu0 0.0
      %2299 = vmatprep.subr.mxu0 0.0
      %2300 = vmatpush1.msra.mxu0 0.0
      %2301 = vmatprep.subr.mxu0 0.0
      %2302 = vmatpush1.msra.mxu0 0.0
      %2303 = vmatprep.subr.mxu0 0.0
      %2304 = vmatpush1.msra.mxu0 0.0
      %2305 = vmatprep.subr.mxu0 0.0
      %2306 = vmatpush1.msra.mxu0 0.0
      %2307 = vmatprep.subr.mxu0 0.0
      %2308 = vmatpush1.msra.mxu0 0.0
      %2309 = vmatprep.subr.mxu0 0.0
      %2310 = vmatpush1.msra.mxu0 0.0
      %2311 = vmatprep.subr.mxu0 0.0
      %2312 = vmatpush1.msra.mxu0 0.0
      %2313 = vmatprep.subr.mxu0 0.0
      %2314 = vmatpush1.msra.mxu0 0.0
      %2315 = vmatprep.subr.mxu0 0.0
      %2316 = vmatpush1.msra.mxu0 0.0
      %2317 = vmatprep.mubr.f32.mxu0 0.0
      %2318 = vmatmul.mubr.f32.gmra.mrb[0].mxu0 %v2251
      %v2319 = vpop.f32.mrb[0].mxu0
      %v2320 = vadd.f32 0.0, %v2319
      %v2321 = vpop.f32.mrb[0].mxu0
      %2322 = vdwg.mxu0
      %v2324 = vsel %vm2030, %v2010, 0
      %2326 = vmatprep.subr.mxu0 0.0
      %2327 = vmatpush1.msra.mxu0 %v2022
      %2328 = vmatprep.subr.mxu0 0.0
      %2329 = vmatpush1.msra.mxu0 %v2023
      %2330 = vmatprep.subr.mxu0 0.0
      %2331 = vmatpush1.msra.mxu0 0.0
      %2332 = vmatprep.subr.mxu0 0.0
      %2333 = vmatpush1.msra.mxu0 0.0
      %2334 = vmatprep.subr.mxu0 0.0
      %2335 = vmatpush1.msra.mxu0 0.0
      %2336 = vmatprep.subr.mxu0 0.0
      %2337 = vmatpush1.msra.mxu0 0.0
      %2338 = vmatprep.subr.mxu0 0.0
      %2339 = vmatpush1.msra.mxu0 0.0
      %2340 = vmatprep.subr.mxu0 0.0
      %2341 = vmatpush1.msra.mxu0 0.0
      %2342 = vmatprep.subr.mxu0 0.0
      %2343 = vmatpush1.msra.mxu0 0.0
      %2344 = vmatprep.subr.mxu0 0.0
      %2345 = vmatpush1.msra.mxu0 0.0
      %2346 = vmatprep.subr.mxu0 0.0
      %2347 = vmatpush1.msra.mxu0 0.0
      %2348 = vmatprep.subr.mxu0 0.0
      %2349 = vmatpush1.msra.mxu0 0.0
      %2350 = vmatprep.subr.mxu0 0.0
      %2351 = vmatpush1.msra.mxu0 0.0
      %2352 = vmatprep.subr.mxu0 0.0
      %2353 = vmatpush1.msra.mxu0 0.0
      %2354 = vmatprep.subr.mxu0 0.0
      %2355 = vmatpush1.msra.mxu0 0.0
      %2356 = vmatprep.subr.mxu0 0.0
      %2357 = vmatpush1.msra.mxu0 0.0
      %2358 = vmatprep.subr.mxu0 0.0
      %2359 = vmatpush1.msra.mxu0 0.0
      %2360 = vmatprep.subr.mxu0 0.0
      %2361 = vmatpush1.msra.mxu0 0.0
      %2362 = vmatprep.subr.mxu0 0.0
      %2363 = vmatpush1.msra.mxu0 0.0
      %2364 = vmatprep.subr.mxu0 0.0
      %2365 = vmatpush1.msra.mxu0 0.0
      %2366 = vmatprep.subr.mxu0 0.0
      %2367 = vmatpush1.msra.mxu0 0.0
      %2368 = vmatprep.subr.mxu0 0.0
      %2369 = vmatpush1.msra.mxu0 0.0
      %2370 = vmatprep.subr.mxu0 0.0
      %2371 = vmatpush1.msra.mxu0 0.0
      %2372 = vmatprep.subr.mxu0 0.0
      %2373 = vmatpush1.msra.mxu0 0.0
      %2374 = vmatprep.subr.mxu0 0.0
      %2375 = vmatpush1.msra.mxu0 0.0
      %2376 = vmatprep.subr.mxu0 0.0
      %2377 = vmatpush1.msra.mxu0 0.0
      %2378 = vmatprep.subr.mxu0 0.0
      %2379 = vmatpush1.msra.mxu0 0.0
      %2380 = vmatprep.subr.mxu0 0.0
      %2381 = vmatpush1.msra.mxu0 0.0
      %2382 = vmatprep.subr.mxu0 0.0
      %2383 = vmatpush1.msra.mxu0 0.0
      %2384 = vmatprep.subr.mxu0 0.0
      %2385 = vmatpush1.msra.mxu0 0.0
      %2386 = vmatprep.subr.mxu0 0.0
      %2387 = vmatpush1.msra.mxu0 0.0
      %2388 = vmatprep.subr.mxu0 0.0
      %2389 = vmatpush1.msra.mxu0 0.0
      %2390 = vmatprep.mubr.f32.mxu0 0.0
      %2391 = vmatmul.mubr.f32.gmra.mrb[0].mxu0 %v2324
      %v2392 = vpop.f32.mrb[0].mxu0
      %v2393 = vadd.f32 0.0, %v2392
      %v2394 = vpop.f32.mrb[0].mxu0
      %2395 = vdwg.mxu0
      %v2397 = vsel %vm2030, %v2011, 0
      %2399 = vmatprep.subr.mxu0 0.0
      %2400 = vmatpush1.msra.mxu0 %v2024
      %2401 = vmatprep.subr.mxu0 0.0
      %2402 = vmatpush1.msra.mxu0 %v2025
      %2403 = vmatprep.subr.mxu0 0.0
      %2404 = vmatpush1.msra.mxu0 0.0
      %2405 = vmatprep.subr.mxu0 0.0
      %2406 = vmatpush1.msra.mxu0 0.0
      %2407 = vmatprep.subr.mxu0 0.0
      %2408 = vmatpush1.msra.mxu0 0.0
      %2409 = vmatprep.subr.mxu0 0.0
      %2410 = vmatpush1.msra.mxu0 0.0
      %2411 = vmatprep.subr.mxu0 0.0
      %2412 = vmatpush1.msra.mxu0 0.0
      %2413 = vmatprep.subr.mxu0 0.0
      %2414 = vmatpush1.msra.mxu0 0.0
      %2415 = vmatprep.subr.mxu0 0.0
      %2416 = vmatpush1.msra.mxu0 0.0
      %2417 = vmatprep.subr.mxu0 0.0
      %2418 = vmatpush1.msra.mxu0 0.0
      %2419 = vmatprep.subr.mxu0 0.0
      %2420 = vmatpush1.msra.mxu0 0.0
      %2421 = vmatprep.subr.mxu0 0.0
      %2422 = vmatpush1.msra.mxu0 0.0
      %2423 = vmatprep.subr.mxu0 0.0
      %2424 = vmatpush1.msra.mxu0 0.0
      %2425 = vmatprep.subr.mxu0 0.0
      %2426 = vmatpush1.msra.mxu0 0.0
      %2427 = vmatprep.subr.mxu0 0.0
      %2428 = vmatpush1.msra.mxu0 0.0
      %2429 = vmatprep.subr.mxu0 0.0
      %2430 = vmatpush1.msra.mxu0 0.0
      %2431 = vmatprep.subr.mxu0 0.0
      %2432 = vmatpush1.msra.mxu0 0.0
      %2433 = vmatprep.subr.mxu0 0.0
      %2434 = vmatpush1.msra.mxu0 0.0
      %2435 = vmatprep.subr.mxu0 0.0
      %2436 = vmatpush1.msra.mxu0 0.0
      %2437 = vmatprep.subr.mxu0 0.0
      %2438 = vmatpush1.msra.mxu0 0.0
      %2439 = vmatprep.subr.mxu0 0.0
      %2440 = vmatpush1.msra.mxu0 0.0
      %2441 = vmatprep.subr.mxu0 0.0
      %2442 = vmatpush1.msra.mxu0 0.0
      %2443 = vmatprep.subr.mxu0 0.0
      %2444 = vmatpush1.msra.mxu0 0.0
      %2445 = vmatprep.subr.mxu0 0.0
      %2446 = vmatpush1.msra.mxu0 0.0
      %2447 = vmatprep.subr.mxu0 0.0
      %2448 = vmatpush1.msra.mxu0 0.0
      %2449 = vmatprep.subr.mxu0 0.0
      %2450 = vmatpush1.msra.mxu0 0.0
      %2451 = vmatprep.subr.mxu0 0.0
      %2452 = vmatpush1.msra.mxu0 0.0
      %2453 = vmatprep.subr.mxu0 0.0
      %2454 = vmatpush1.msra.mxu0 0.0
      %2455 = vmatprep.subr.mxu0 0.0
      %2456 = vmatpush1.msra.mxu0 0.0
      %2457 = vmatprep.subr.mxu0 0.0
      %2458 = vmatpush1.msra.mxu0 0.0
      %2459 = vmatprep.subr.mxu0 0.0
      %2460 = vmatpush1.msra.mxu0 0.0
      %2461 = vmatprep.subr.mxu0 0.0
      %2462 = vmatpush1.msra.mxu0 0.0
      %2463 = vmatprep.mubr.f32.mxu0 0.0
      %2464 = vmatmul.mubr.f32.gmra.mrb[0].mxu0 %v2397
      %v2465 = vpop.f32.mrb[0].mxu0
      %v2466 = vadd.f32 0.0, %v2465
      %v2467 = vpop.f32.mrb[0].mxu0
      %2468 = vdwg.mxu0
      %v2470 = vsel %vm2030, %v2012, 0
      %2472 = vmatprep.subr.mxu0 0.0
      %2473 = vmatpush1.msra.mxu0 %v2026
      %2474 = vmatprep.subr.mxu0 0.0
      %2475 = vmatpush1.msra.mxu0 %v2027
      %2476 = vmatprep.subr.mxu0 0.0
      %2477 = vmatpush1.msra.mxu0 0.0
      %2478 = vmatprep.subr.mxu0 0.0
      %2479 = vmatpush1.msra.mxu0 0.0
      %2480 = vmatprep.subr.mxu0 0.0
      %2481 = vmatpush1.msra.mxu0 0.0
      %2482 = vmatprep.subr.mxu0 0.0
      %2483 = vmatpush1.msra.mxu0 0.0
      %2484 = vmatprep.subr.mxu0 0.0
      %2485 = vmatpush1.msra.mxu0 0.0
      %2486 = vmatprep.subr.mxu0 0.0
      %2487 = vmatpush1.msra.mxu0 0.0
      %2488 = vmatprep.subr.mxu0 0.0
      %2489 = vmatpush1.msra.mxu0 0.0
      %2490 = vmatprep.subr.mxu0 0.0
      %2491 = vmatpush1.msra.mxu0 0.0
      %2492 = vmatprep.subr.mxu0 0.0
      %2493 = vmatpush1.msra.mxu0 0.0
      %2494 = vmatprep.subr.mxu0 0.0
      %2495 = vmatpush1.msra.mxu0 0.0
      %2496 = vmatprep.subr.mxu0 0.0
      %2497 = vmatpush1.msra.mxu0 0.0
      %2498 = vmatprep.subr.mxu0 0.0
      %2499 = vmatpush1.msra.mxu0 0.0
      %2500 = vmatprep.subr.mxu0 0.0
      %2501 = vmatpush1.msra.mxu0 0.0
      %2502 = vmatprep.subr.mxu0 0.0
      %2503 = vmatpush1.msra.mxu0 0.0
      %2504 = vmatprep.subr.mxu0 0.0
      %2505 = vmatpush1.msra.mxu0 0.0
      %2506 = vmatprep.subr.mxu0 0.0
      %2507 = vmatpush1.msra.mxu0 0.0
      %2508 = vmatprep.subr.mxu0 0.0
      %2509 = vmatpush1.msra.mxu0 0.0
      %2510 = vmatprep.subr.mxu0 0.0
      %2511 = vmatpush1.msra.mxu0 0.0
      %2512 = vmatprep.subr.mxu0 0.0
      %2513 = vmatpush1.msra.mxu0 0.0
      %2514 = vmatprep.subr.mxu0 0.0
      %2515 = vmatpush1.msra.mxu0 0.0
      %2516 = vmatprep.subr.mxu0 0.0
      %2517 = vmatpush1.msra.mxu0 0.0
      %2518 = vmatprep.subr.mxu0 0.0
      %2519 = vmatpush1.msra.mxu0 0.0
      %2520 = vmatprep.subr.mxu0 0.0
      %2521 = vmatpush1.msra.mxu0 0.0
      %2522 = vmatprep.subr.mxu0 0.0
      %2523 = vmatpush1.msra.mxu0 0.0
      %2524 = vmatprep.subr.mxu0 0.0
      %2525 = vmatpush1.msra.mxu0 0.0
      %2526 = vmatprep.subr.mxu0 0.0
      %2527 = vmatpush1.msra.mxu0 0.0
      %2528 = vmatprep.subr.mxu0 0.0
      %2529 = vmatpush1.msra.mxu0 0.0
      %2530 = vmatprep.subr.mxu0 0.0
      %2531 = vmatpush1.msra.mxu0 0.0
      %2532 = vmatprep.subr.mxu0 0.0
      %2533 = vmatpush1.msra.mxu0 0.0
      %2534 = vmatprep.subr.mxu0 0.0
      %2535 = vmatpush1.msra.mxu0 0.0
      %2536 = vmatprep.mubr.f32.mxu0 0.0
      %2537 = vmatmul.mubr.f32.gmra.mrb[0].mxu0 %v2470
      %v2538 = vpop.f32.mrb[0].mxu0
      %v2539 = vadd.f32 0.0, %v2538
      %v2540 = vpop.f32.mrb[0].mxu0
      %2541 = vdwg.mxu0
      %v2543 = vsel %vm2030, %v2013, 0
      %2545 = vmatprep.subr.mxu0 0.0
      %2546 = vmatpush1.msra.mxu0 %v2028
      %2547 = vmatprep.subr.mxu0 0.0
      %2548 = vmatpush1.msra.mxu0 %v2029
      %2549 = vmatprep.subr.mxu0 0.0
      %2550 = vmatpush1.msra.mxu0 0.0
      %2551 = vmatprep.subr.mxu0 0.0
      %2552 = vmatpush1.msra.mxu0 0.0
      %2553 = vmatprep.subr.mxu0 0.0
      %2554 = vmatpush1.msra.mxu0 0.0
      %2555 = vmatprep.subr.mxu0 0.0
      %2556 = vmatpush1.msra.mxu0 0.0
      %2557 = vmatprep.subr.mxu0 0.0
      %2558 = vmatpush1.msra.mxu0 0.0
      %2559 = vmatprep.subr.mxu0 0.0
      %2560 = vmatpush1.msra.mxu0 0.0
      %2561 = vmatprep.subr.mxu0 0.0
      %2562 = vmatpush1.msra.mxu0 0.0
      %2563 = vmatprep.subr.mxu0 0.0
      %2564 = vmatpush1.msra.mxu0 0.0
      %2565 = vmatprep.subr.mxu0 0.0
      %2566 = vmatpush1.msra.mxu0 0.0
      %2567 = vmatprep.subr.mxu0 0.0
      %2568 = vmatpush1.msra.mxu0 0.0
      %2569 = vmatprep.subr.mxu0 0.0
      %2570 = vmatpush1.msra.mxu0 0.0
      %2571 = vmatprep.subr.mxu0 0.0
      %2572 = vmatpush1.msra.mxu0 0.0
      %2573 = vmatprep.subr.mxu0 0.0
      %2574 = vmatpush1.msra.mxu0 0.0
      %2575 = vmatprep.subr.mxu0 0.0
      %2576 = vmatpush1.msra.mxu0 0.0
      %2577 = vmatprep.subr.mxu0 0.0
      %2578 = vmatpush1.msra.mxu0 0.0
      %2579 = vmatprep.subr.mxu0 0.0
      %2580 = vmatpush1.msra.mxu0 0.0
      %2581 = vmatprep.subr.mxu0 0.0
      %2582 = vmatpush1.msra.mxu0 0.0
      %2583 = vmatprep.subr.mxu0 0.0
      %2584 = vmatpush1.msra.mxu0 0.0
      %2585 = vmatprep.subr.mxu0 0.0
      %2586 = vmatpush1.msra.mxu0 0.0
      %2587 = vmatprep.subr.mxu0 0.0
      %2588 = vmatpush1.msra.mxu0 0.0
      %2589 = vmatprep.subr.mxu0 0.0
      %2590 = vmatpush1.msra.mxu0 0.0
      %2591 = vmatprep.subr.mxu0 0.0
      %2592 = vmatpush1.msra.mxu0 0.0
      %2593 = vmatprep.subr.mxu0 0.0
      %2594 = vmatpush1.msra.mxu0 0.0
      %2595 = vmatprep.subr.mxu0 0.0
      %2596 = vmatpush1.msra.mxu0 0.0
      %2597 = vmatprep.subr.mxu0 0.0
      %2598 = vmatpush1.msra.mxu0 0.0
      %2599 = vmatprep.subr.mxu0 0.0
      %2600 = vmatpush1.msra.mxu0 0.0
      %2601 = vmatprep.subr.mxu0 0.0
      %2602 = vmatpush1.msra.mxu0 0.0
      %2603 = vmatprep.subr.mxu0 0.0
      %2604 = vmatpush1.msra.mxu0 0.0
      %2605 = vmatprep.subr.mxu0 0.0
      %2606 = vmatpush1.msra.mxu0 0.0
      %2607 = vmatprep.subr.mxu0 0.0
      %2608 = vmatpush1.msra.mxu0 0.0
      %2609 = vmatprep.mubr.f32.mxu0 0.0
      %2610 = vmatmul.mubr.f32.gmra.mrb[0].mxu0 %v2543
      %v2611 = vpop.f32.mrb[0].mxu0
      %v2612 = vadd.f32 0.0, %v2611
      %v2613 = vpop.f32.mrb[0].mxu0
      %2614 = vdwg.mxu0
      %v2615 = vld [vmem:[%s23] sm:$0x1]
      %v2616 = vld [vmem:[%s25] sm:$0x1]
      %vm2617 = vcmask 519168
      %v2618 = vsel %vm2617, %v2101, 0.0
      %2619 = vadd.xlane.f32.xlu0 %v2618
      %v2620 = vpop.xlane.xlu0 %2619
      %v2621 = vsel %vm2617, %v2174, 0.0
      %2622 = vadd.xlane.f32.xlu0 %v2621
      %v2623 = vpop.xlane.xlu0 %2622
      %v2624 = vsel %vm2617, %v2247, 0.0
      %2625 = vadd.xlane.f32.xlu0 %v2624
      %v2626 = vpop.xlane.xlu0 %2625
      %v2627 = vsel %vm2617, %v2320, 0.0
      %2628 = vadd.xlane.f32.xlu0 %v2627
      %v2629 = vpop.xlane.xlu0 %2628
      %v2630 = vsel %vm2617, %v2393, 0.0
      %2631 = vadd.xlane.f32.xlu0 %v2630
      %v2632 = vpop.xlane.xlu0 %2631
      %v2633 = vsel %vm2617, %v2466, 0.0
      %2634 = vadd.xlane.f32.xlu0 %v2633
      %v2635 = vpop.xlane.xlu0 %2634
      %v2636 = vsel %vm2617, %v2539, 0.0
      %2637 = vadd.xlane.f32.xlu0 %v2636
      %v2638 = vpop.xlane.xlu0 %2637
      %v2639 = vsel %vm2617, %v2612, 0.0
      %2640 = vadd.xlane.f32.xlu0 %v2639
      %v2641 = vpop.xlane.xlu0 %2640
      %v2642 = vrcp.pop 64.0
      %v2643 = vmul.f32 %v2620, %v2642
      %v2644 = vmul.f32 %v2623, %v2642
      %v2645 = vmul.f32 %v2626, %v2642
      %v2646 = vmul.f32 %v2629, %v2642
      %v2647 = vmul.f32 %v2632, %v2642
      %v2648 = vmul.f32 %v2635, %v2642
      %v2649 = vmul.f32 %v2638, %v2642
      %v2650 = vmul.f32 %v2641, %v2642
      %v2651 = vsub.f32 %v2101, %v2643
      %v2652 = vsub.f32 %v2174, %v2644
      %v2653 = vsub.f32 %v2247, %v2645
      %v2654 = vsub.f32 %v2320, %v2646
      %v2655 = vsub.f32 %v2393, %v2647
      %v2656 = vsub.f32 %v2466, %v2648
      %v2657 = vsub.f32 %v2539, %v2649
      %v2658 = vsub.f32 %v2612, %v2650
      %v2659 = vmul.f32 %v2651, %v2651
      %v2660 = vmul.f32 %v2652, %v2652
      %v2661 = vmul.f32 %v2653, %v2653
      %v2662 = vmul.f32 %v2654, %v2654
      %v2663 = vmul.f32 %v2655, %v2655
      %v2664 = vmul.f32 %v2656, %v2656
      %v2665 = vmul.f32 %v2657, %v2657
      %v2666 = vmul.f32 %v2658, %v2658
      %v2667 = vsel %vm2617, %v2659, 0.0
      %2668 = vadd.xlane.f32.xlu0 %v2667
      %v2669 = vpop.xlane.xlu0 %2668
      %v2670 = vsel %vm2617, %v2660, 0.0
      %2671 = vadd.xlane.f32.xlu0 %v2670
      %v2672 = vpop.xlane.xlu0 %2671
      %v2673 = vsel %vm2617, %v2661, 0.0
      %2674 = vadd.xlane.f32.xlu0 %v2673
      %v2675 = vpop.xlane.xlu0 %2674
      %v2676 = vsel %vm2617, %v2662, 0.0
      %2677 = vadd.xlane.f32.xlu0 %v2676
      %v2678 = vpop.xlane.xlu0 %2677
      %v2679 = vsel %vm2617, %v2663, 0.0
      %2680 = vadd.xlane.f32.xlu0 %v2679
      %v2681 = vpop.xlane.xlu0 %2680
      %v2682 = vsel %vm2617, %v2664, 0.0
      %2683 = vadd.xlane.f32.xlu0 %v2682
      %v2684 = vpop.xlane.xlu0 %2683
      %v2685 = vsel %vm2617, %v2665, 0.0
      %2686 = vadd.xlane.f32.xlu0 %v2685
      %v2687 = vpop.xlane.xlu0 %2686
      %v2688 = vsel %vm2617, %v2666, 0.0
      %2689 = vadd.xlane.f32.xlu0 %v2688
      %v2690 = vpop.xlane.xlu0 %2689
      %v2691 = vmul.f32 %v2669, %v2642
      %v2692 = vmul.f32 %v2672, %v2642
      %v2693 = vmul.f32 %v2675, %v2642
      %v2694 = vmul.f32 %v2678, %v2642
      %v2695 = vmul.f32 %v2681, %v2642
      %v2696 = vmul.f32 %v2684, %v2642
      %v2697 = vmul.f32 %v2687, %v2642
      %v2698 = vmul.f32 %v2690, %v2642
      %v2699 = vadd.f32 %v2691, 1e-05
      %v2700 = vadd.f32 %v2692, 1e-05
      %v2701 = vadd.f32 %v2693, 1e-05
      %v2702 = vadd.f32 %v2694, 1e-05
      %v2703 = vadd.f32 %v2695, 1e-05
      %v2704 = vadd.f32 %v2696, 1e-05
      %v2705 = vadd.f32 %v2697, 1e-05
      %v2706 = vadd.f32 %v2698, 1e-05
      %v2707 = vrsqrt.pop %v2699
      %v2708 = vrsqrt.pop %v2700
      %v2709 = vrsqrt.pop %v2701
      %v2710 = vrsqrt.pop %v2702
      %v2711 = vrsqrt.pop %v2703
      %v2712 = vrsqrt.pop %v2704
      %v2713 = vrsqrt.pop %v2705
      %v2714 = vrsqrt.pop %v2706
      %v2715 = vmul.f32 %v2651, %v2707
      %v2716 = vmul.f32 %v2652, %v2708
      %v2717 = vmul.f32 %v2653, %v2709
      %v2718 = vmul.f32 %v2654, %v2710
      %v2719 = vmul.f32 %v2655, %v2711
      %v2720 = vmul.f32 %v2656, %v2712
      %v2721 = vmul.f32 %v2657, %v2713
      %v2722 = vmul.f32 %v2658, %v2714
      %v2724 = vlaneseq
      %v2725 = vshrl.u32 %v2724, 7
      %v2726 = vsub.s32 0, %v2725
      %v2727 = vrot.slane %v2615, %v2726
      %v2729 = vmul.f32 %v2715, %v2727
      %v2730 = vmul.f32 %v2716, %v2727
      %v2731 = vmul.f32 %v2717, %v2727
      %v2732 = vmul.f32 %v2718, %v2727
      %v2733 = vmul.f32 %v2719, %v2727
      %v2734 = vmul.f32 %v2720, %v2727
      %v2735 = vmul.f32 %v2721, %v2727
      %v2736 = vmul.f32 %v2722, %v2727
      %v2738 = vlaneseq
      %v2739 = vshrl.u32 %v2738, 7
      %v2740 = vsub.s32 0, %v2739
      %v2741 = vrot.slane %v2616, %v2740
      %v2743 = vadd.f32 %v2729, %v2741
      %v2744 = vadd.f32 %v2730, %v2741
      %v2745 = vadd.f32 %v2731, %v2741
      %v2746 = vadd.f32 %v2732, %v2741
      %v2747 = vadd.f32 %v2733, %v2741
      %v2748 = vadd.f32 %v2734, %v2741
      %v2749 = vadd.f32 %v2735, %v2741
      %v2750 = vadd.f32 %v2736, %v2741
      %v2751 = vmax.f32 %v2743, 0.0
      %v2752 = vmax.f32 %v2744, 0.0
      %v2753 = vmax.f32 %v2745, 0.0
      %v2754 = vmax.f32 %v2746, 0.0
      %v2755 = vmax.f32 %v2747, 0.0
      %v2756 = vmax.f32 %v2748, 0.0
      %v2757 = vmax.f32 %v2749, 0.0
      %v2758 = vmax.f32 %v2750, 0.0
      %2759 = vst.msk [vmem:[#allocation2] sm:$0xf] %vm2617, %v2751
      %2760 = vst.msk [vmem:[#allocation2 + $0x4] sm:$0xf] %vm2617, %v2752
      %2761 = vst.msk [vmem:[#allocation2 + $0x8] sm:$0xf] %vm2617, %v2753
      %2762 = vst.msk [vmem:[#allocation2 + $0xc] sm:$0xf] %vm2617, %v2754
      %2763 = vst.msk [vmem:[#allocation2 + $0x10] sm:$0xf] %vm2617, %v2755
      %2764 = vst.msk [vmem:[#allocation2 + $0x14] sm:$0xf] %vm2617, %v2756
      %2765 = vst.msk [vmem:[#allocation2 + $0x18] sm:$0xf] %vm2617, %v2757
      %2766 = vst.msk [vmem:[#allocation2 + $0x1c] sm:$0xf] %vm2617, %v2758
      %v2767 = vld [vmem:[#allocation2] sm:$0x1]
      %v2768 = vld [vmem:[#allocation2 + $0x4] sm:$0x1]
      %v2769 = vld [vmem:[#allocation2 + $0x8] sm:$0x1]
      %v2770 = vld [vmem:[#allocation2 + $0xc] sm:$0x1]
      %v2771 = vld [vmem:[#allocation2 + $0x10] sm:$0x1]
      %v2772 = vld [vmem:[#allocation2 + $0x14] sm:$0x1]
      %v2773 = vld [vmem:[#allocation2 + $0x18] sm:$0x1]
      %v2774 = vld [vmem:[#allocation2 + $0x1c] sm:$0x1]
      %v2775 = vld [vmem:[%s27] sm:$0xff]
      %v2776 = vld [vmem:[%s27 + $0x8] sm:$0xff]
      %v2777 = vld [vmem:[%s27 + $0x10] sm:$0xff]
      %v2778 = vld [vmem:[%s27 + $0x18] sm:$0xff]
      %v2779 = vld [vmem:[%s27 + $0x20] sm:$0xff]
      %v2780 = vld [vmem:[%s27 + $0x28] sm:$0xff]
      %v2781 = vld [vmem:[%s27 + $0x30] sm:$0xff]
      %v2782 = vld [vmem:[%s27 + $0x38] sm:$0xff]
      %v2783 = vld [vmem:[#allocation2 + $0x1] sm:$0x1]
      %v2784 = vld [vmem:[#allocation2 + $0x5] sm:$0x1]
      %v2785 = vld [vmem:[#allocation2 + $0x9] sm:$0x1]
      %v2786 = vld [vmem:[#allocation2 + $0xd] sm:$0x1]
      %v2787 = vld [vmem:[#allocation2 + $0x11] sm:$0x1]
      %v2788 = vld [vmem:[#allocation2 + $0x15] sm:$0x1]
      %v2789 = vld [vmem:[#allocation2 + $0x19] sm:$0x1]
      %v2790 = vld [vmem:[#allocation2 + $0x1d] sm:$0x1]
      %v2791 = vld [vmem:[%s27 + $0x40] sm:$0xff]
      %v2792 = vld [vmem:[%s27 + $0x48] sm:$0xff]
      %v2793 = vld [vmem:[%s27 + $0x50] sm:$0xff]
      %v2794 = vld [vmem:[%s27 + $0x58] sm:$0xff]
      %v2795 = vld [vmem:[%s27 + $0x60] sm:$0xff]
      %v2796 = vld [vmem:[%s27 + $0x68] sm:$0xff]
      %v2797 = vld [vmem:[%s27 + $0x70] sm:$0xff]
      %v2798 = vld [vmem:[%s27 + $0x78] sm:$0xff]
      %v2807 = vrot.slane %v2784, 7
      %vm2808 = vcmask 1041409
      %v2809 = vsel %vm2808, %v2807, %v2783
      %v2810 = vrot.slane %v2785, 6
      %vm2811 = vcmask 1042434
      %v2812 = vsel %vm2811, %v2810, %v2809
      %v2813 = vrot.slane %v2786, 5
      %vm2814 = vcmask 1043459
      %v2815 = vsel %vm2814, %v2813, %v2812
      %v2816 = vrot.slane %v2787, 4
      %vm2817 = vcmask 1044484
      %v2818 = vsel %vm2817, %v2816, %v2815
      %v2819 = vrot.slane %v2788, 3
      %vm2820 = vcmask 1045509
      %v2821 = vsel %vm2820, %v2819, %v2818
      %v2822 = vrot.slane %v2789, 2
      %vm2823 = vcmask 1046534
      %v2824 = vsel %vm2823, %v2822, %v2821
      %v2825 = vrot.slane %v2790, 1
      %vm2826 = vcmask 1047559
      %v2827 = vsel %vm2826, %v2825, %v2824
      %v2828 = vsel %vm1285, %v2827, 0
      %2830 = vmatprep.subr.mxu0 0.0
      %2831 = vmatpush1.msra.mxu0 %v2791
      %2832 = vmatprep.subr.mxu0 0.0
      %2833 = vmatpush1.msra.mxu0 %v2792
      %2834 = vmatprep.subr.mxu0 0.0
      %2835 = vmatpush1.msra.mxu0 %v2793
      %2836 = vmatprep.subr.mxu0 0.0
      %2837 = vmatpush1.msra.mxu0 %v2794
      %2838 = vmatprep.subr.mxu0 0.0
      %2839 = vmatpush1.msra.mxu0 %v2795
      %2840 = vmatprep.subr.mxu0 0.0
      %2841 = vmatpush1.msra.mxu0 %v2796
      %2842 = vmatprep.subr.mxu0 0.0
      %2843 = vmatpush1.msra.mxu0 %v2797
      %2844 = vmatprep.subr.mxu0 0.0
      %2845 = vmatpush1.msra.mxu0 %v2798
      %2846 = vmatprep.subr.mxu0 0.0
      %2847 = vmatpush1.msra.mxu0 0.0
      %2848 = vmatprep.subr.mxu0 0.0
      %2849 = vmatpush1.msra.mxu0 0.0
      %2850 = vmatprep.subr.mxu0 0.0
      %2851 = vmatpush1.msra.mxu0 0.0
      %2852 = vmatprep.subr.mxu0 0.0
      %2853 = vmatpush1.msra.mxu0 0.0
      %2854 = vmatprep.subr.mxu0 0.0
      %2855 = vmatpush1.msra.mxu0 0.0
      %2856 = vmatprep.subr.mxu0 0.0
      %2857 = vmatpush1.msra.mxu0 0.0
      %2858 = vmatprep.subr.mxu0 0.0
      %2859 = vmatpush1.msra.mxu0 0.0
      %2860 = vmatprep.subr.mxu0 0.0
      %2861 = vmatpush1.msra.mxu0 0.0
      %2862 = vmatprep.subr.mxu0 0.0
      %2863 = vmatpush1.msra.mxu0 0.0
      %2864 = vmatprep.subr.mxu0 0.0
      %2865 = vmatpush1.msra.mxu0 0.0
      %2866 = vmatprep.subr.mxu0 0.0
      %2867 = vmatpush1.msra.mxu0 0.0
      %2868 = vmatprep.subr.mxu0 0.0
      %2869 = vmatpush1.msra.mxu0 0.0
      %2870 = vmatprep.subr.mxu0 0.0
      %2871 = vmatpush1.msra.mxu0 0.0
      %2872 = vmatprep.subr.mxu0 0.0
      %2873 = vmatpush1.msra.mxu0 0.0
      %2874 = vmatprep.subr.mxu0 0.0
      %2875 = vmatpush1.msra.mxu0 0.0
      %2876 = vmatprep.subr.mxu0 0.0
      %2877 = vmatpush1.msra.mxu0 0.0
      %2878 = vmatprep.subr.mxu0 0.0
      %2879 = vmatpush1.msra.mxu0 0.0
      %2880 = vmatprep.subr.mxu0 0.0
      %2881 = vmatpush1.msra.mxu0 0.0
      %2882 = vmatprep.subr.mxu0 0.0
      %2883 = vmatpush1.msra.mxu0 0.0
      %2884 = vmatprep.subr.mxu0 0.0
      %2885 = vmatpush1.msra.mxu0 0.0
      %2886 = vmatprep.subr.mxu0 0.0
      %2887 = vmatpush1.msra.mxu0 0.0
      %2888 = vmatprep.subr.mxu0 0.0
      %2889 = vmatpush1.msra.mxu0 0.0
      %2890 = vmatprep.subr.mxu0 0.0
      %2891 = vmatpush1.msra.mxu0 0.0
      %2892 = vmatprep.subr.mxu0 0.0
      %2893 = vmatpush1.msra.mxu0 0.0
      %2894 = vmatprep.mubr.f32.mxu0 0.0
      %2895 = vmatmul.mubr.f32.gmra.mrb[0].mxu0 %v2828
      %v2896 = vpop.f32.mrb[0].mxu0
      %v2897 = vadd.f32 0.0, %v2896
      %v2898 = vpop.f32.mrb[0].mxu0
      %2899 = vdwg.mxu0
      %v2908 = vrot.slane %v2768, 7
      %v2909 = vsel %vm2808, %v2908, %v2767
      %v2910 = vrot.slane %v2769, 6
      %v2911 = vsel %vm2811, %v2910, %v2909
      %v2912 = vrot.slane %v2770, 5
      %v2913 = vsel %vm2814, %v2912, %v2911
      %v2914 = vrot.slane %v2771, 4
      %v2915 = vsel %vm2817, %v2914, %v2913
      %v2916 = vrot.slane %v2772, 3
      %v2917 = vsel %vm2820, %v2916, %v2915
      %v2918 = vrot.slane %v2773, 2
      %v2919 = vsel %vm2823, %v2918, %v2917
      %v2920 = vrot.slane %v2774, 1
      %v2921 = vsel %vm2826, %v2920, %v2919
      %v2922 = vsel %vm1285, %v2921, 0
      %2924 = vmatprep.subr.mxu0 0.0
      %2925 = vmatpush1.msra.mxu0 %v2775
      %2926 = vmatprep.subr.mxu0 0.0
      %2927 = vmatpush1.msra.mxu0 %v2776
      %2928 = vmatprep.subr.mxu0 0.0
      %2929 = vmatpush1.msra.mxu0 %v2777
      %2930 = vmatprep.subr.mxu0 0.0
      %2931 = vmatpush1.msra.mxu0 %v2778
      %2932 = vmatprep.subr.mxu0 0.0
      %2933 = vmatpush1.msra.mxu0 %v2779
      %2934 = vmatprep.subr.mxu0 0.0
      %2935 = vmatpush1.msra.mxu0 %v2780
      %2936 = vmatprep.subr.mxu0 0.0
      %2937 = vmatpush1.msra.mxu0 %v2781
      %2938 = vmatprep.subr.mxu0 0.0
      %2939 = vmatpush1.msra.mxu0 %v2782
      %2940 = vmatprep.subr.mxu0 0.0
      %2941 = vmatpush1.msra.mxu0 0.0
      %2942 = vmatprep.subr.mxu0 0.0
      %2943 = vmatpush1.msra.mxu0 0.0
      %2944 = vmatprep.subr.mxu0 0.0
      %2945 = vmatpush1.msra.mxu0 0.0
      %2946 = vmatprep.subr.mxu0 0.0
      %2947 = vmatpush1.msra.mxu0 0.0
      %2948 = vmatprep.subr.mxu0 0.0
      %2949 = vmatpush1.msra.mxu0 0.0
      %2950 = vmatprep.subr.mxu0 0.0
      %2951 = vmatpush1.msra.mxu0 0.0
      %2952 = vmatprep.subr.mxu0 0.0
      %2953 = vmatpush1.msra.mxu0 0.0
      %2954 = vmatprep.subr.mxu0 0.0
      %2955 = vmatpush1.msra.mxu0 0.0
      %2956 = vmatprep.subr.mxu0 0.0
      %2957 = vmatpush1.msra.mxu0 0.0
      %2958 = vmatprep.subr.mxu0 0.0
      %2959 = vmatpush1.msra.mxu0 0.0
      %2960 = vmatprep.subr.mxu0 0.0
      %2961 = vmatpush1.msra.mxu0 0.0
      %2962 = vmatprep.subr.mxu0 0.0
      %2963 = vmatpush1.msra.mxu0 0.0
      %2964 = vmatprep.subr.mxu0 0.0
      %2965 = vmatpush1.msra.mxu0 0.0
      %2966 = vmatprep.subr.mxu0 0.0
      %2967 = vmatpush1.msra.mxu0 0.0
      %2968 = vmatprep.subr.mxu0 0.0
      %2969 = vmatpush1.msra.mxu0 0.0
      %2970 = vmatprep.subr.mxu0 0.0
      %2971 = vmatpush1.msra.mxu0 0.0
      %2972 = vmatprep.subr.mxu0 0.0
      %2973 = vmatpush1.msra.mxu0 0.0
      %2974 = vmatprep.subr.mxu0 0.0
      %2975 = vmatpush1.msra.mxu0 0.0
      %2976 = vmatprep.subr.mxu0 0.0
      %2977 = vmatpush1.msra.mxu0 0.0
      %2978 = vmatprep.subr.mxu0 0.0
      %2979 = vmatpush1.msra.mxu0 0.0
      %2980 = vmatprep.subr.mxu0 0.0
      %2981 = vmatpush1.msra.mxu0 0.0
      %2982 = vmatprep.subr.mxu0 0.0
      %2983 = vmatpush1.msra.mxu0 0.0
      %2984 = vmatprep.subr.mxu0 0.0
      %2985 = vmatpush1.msra.mxu0 0.0
      %2986 = vmatprep.subr.mxu0 0.0
      %2987 = vmatpush1.msra.mxu0 0.0
      %2988 = vmatprep.mubr.f32.mxu0 0.0
      %2989 = vmatmul.mubr.f32.gmra.mrb[0].mxu0 %v2922
      %v2990 = vpop.f32.mrb[0].mxu0
      %v2991 = vadd.f32 %v2897, %v2990
      %v2992 = vpop.f32.mrb[0].mxu0
      %2993 = vdwg.mxu0
      %v2994 = vld [vmem:[#allocation2 + $0x2] sm:$0x1]
      %v2995 = vld [vmem:[#allocation2 + $0x6] sm:$0x1]
      %v2996 = vld [vmem:[#allocation2 + $0xa] sm:$0x1]
      %v2997 = vld [vmem:[#allocation2 + $0xe] sm:$0x1]
      %v2998 = vld [vmem:[#allocation2 + $0x12] sm:$0x1]
      %v2999 = vld [vmem:[#allocation2 + $0x16] sm:$0x1]
      %v3000 = vld [vmem:[#allocation2 + $0x1a] sm:$0x1]
      %v3001 = vld [vmem:[#allocation2 + $0x1e] sm:$0x1]
      %v3002 = vld [vmem:[%s27 + $0x80] sm:$0xff]
      %v3003 = vld [vmem:[%s27 + $0x88] sm:$0xff]
      %v3004 = vld [vmem:[%s27 + $0x90] sm:$0xff]
      %v3005 = vld [vmem:[%s27 + $0x98] sm:$0xff]
      %v3006 = vld [vmem:[%s27 + $0xa0] sm:$0xff]
      %v3007 = vld [vmem:[%s27 + $0xa8] sm:$0xff]
      %v3008 = vld [vmem:[%s27 + $0xb0] sm:$0xff]
      %v3009 = vld [vmem:[%s27 + $0xb8] sm:$0xff]
      %v3018 = vrot.slane %v2995, 7
      %v3019 = vsel %vm2808, %v3018, %v2994
      %v3020 = vrot.slane %v2996, 6
      %v3021 = vsel %vm2811, %v3020, %v3019
      %v3022 = vrot.slane %v2997, 5
      %v3023 = vsel %vm2814, %v3022, %v3021
      %v3024 = vrot.slane %v2998, 4
      %v3025 = vsel %vm2817, %v3024, %v3023
      %v3026 = vrot.slane %v2999, 3
      %v3027 = vsel %vm2820, %v3026, %v3025
      %v3028 = vrot.slane %v3000, 2
      %v3029 = vsel %vm2823, %v3028, %v3027
      %v3030 = vrot.slane %v3001, 1
      %v3031 = vsel %vm2826, %v3030, %v3029
      %v3032 = vsel %vm1285, %v3031, 0
      %3034 = vmatprep.subr.mxu0 0.0
      %3035 = vmatpush1.msra.mxu0 %v3002
      %3036 = vmatprep.subr.mxu0 0.0
      %3037 = vmatpush1.msra.mxu0 %v3003
      %3038 = vmatprep.subr.mxu0 0.0
      %3039 = vmatpush1.msra.mxu0 %v3004
      %3040 = vmatprep.subr.mxu0 0.0
      %3041 = vmatpush1.msra.mxu0 %v3005
      %3042 = vmatprep.subr.mxu0 0.0
      %3043 = vmatpush1.msra.mxu0 %v3006
      %3044 = vmatprep.subr.mxu0 0.0
      %3045 = vmatpush1.msra.mxu0 %v3007
      %3046 = vmatprep.subr.mxu0 0.0
      %3047 = vmatpush1.msra.mxu0 %v3008
      %3048 = vmatprep.subr.mxu0 0.0
      %3049 = vmatpush1.msra.mxu0 %v3009
      %3050 = vmatprep.subr.mxu0 0.0
      %3051 = vmatpush1.msra.mxu0 0.0
      %3052 = vmatprep.subr.mxu0 0.0
      %3053 = vmatpush1.msra.mxu0 0.0
      %3054 = vmatprep.subr.mxu0 0.0
      %3055 = vmatpush1.msra.mxu0 0.0
      %3056 = vmatprep.subr.mxu0 0.0
      %3057 = vmatpush1.msra.mxu0 0.0
      %3058 = vmatprep.subr.mxu0 0.0
      %3059 = vmatpush1.msra.mxu0 0.0
      %3060 = vmatprep.subr.mxu0 0.0
      %3061 = vmatpush1.msra.mxu0 0.0
      %3062 = vmatprep.subr.mxu0 0.0
      %3063 = vmatpush1.msra.mxu0 0.0
      %3064 = vmatprep.subr.mxu0 0.0
      %3065 = vmatpush1.msra.mxu0 0.0
      %3066 = vmatprep.subr.mxu0 0.0
      %3067 = vmatpush1.msra.mxu0 0.0
      %3068 = vmatprep.subr.mxu0 0.0
      %3069 = vmatpush1.msra.mxu0 0.0
      %3070 = vmatprep.subr.mxu0 0.0
      %3071 = vmatpush1.msra.mxu0 0.0
      %3072 = vmatprep.subr.mxu0 0.0
      %3073 = vmatpush1.msra.mxu0 0.0
      %3074 = vmatprep.subr.mxu0 0.0
      %3075 = vmatpush1.msra.mxu0 0.0
      %3076 = vmatprep.subr.mxu0 0.0
      %3077 = vmatpush1.msra.mxu0 0.0
      %3078 = vmatprep.subr.mxu0 0.0
      %3079 = vmatpush1.msra.mxu0 0.0
      %3080 = vmatprep.subr.mxu0 0.0
      %3081 = vmatpush1.msra.mxu0 0.0
      %3082 = vmatprep.subr.mxu0 0.0
      %3083 = vmatpush1.msra.mxu0 0.0
      %3084 = vmatprep.subr.mxu0 0.0
      %3085 = vmatpush1.msra.mxu0 0.0
      %3086 = vmatprep.subr.mxu0 0.0
      %3087 = vmatpush1.msra.mxu0 0.0
      %3088 = vmatprep.subr.mxu0 0.0
      %3089 = vmatpush1.msra.mxu0 0.0
      %3090 = vmatprep.subr.mxu0 0.0
      %3091 = vmatpush1.msra.mxu0 0.0
      %3092 = vmatprep.subr.mxu0 0.0
      %3093 = vmatpush1.msra.mxu0 0.0
      %3094 = vmatprep.subr.mxu0 0.0
      %3095 = vmatpush1.msra.mxu0 0.0
      %3096 = vmatprep.subr.mxu0 0.0
      %3097 = vmatpush1.msra.mxu0 0.0
      %3098 = vmatprep.mubr.f32.mxu0 0.0
      %3099 = vmatmul.mubr.f32.gmra.mrb[0].mxu0 %v3032
      %v3100 = vpop.f32.mrb[0].mxu0
      %v3101 = vadd.f32 0.0, %v3100
      %v3102 = vpop.f32.mrb[0].mxu0
      %3103 = vdwg.mxu0
      %v3104 = vadd.f32 %v2991, %v3101
      %v3105 = vld [vmem:[#allocation2 + $0x3] sm:$0x1]
      %v3106 = vld [vmem:[#allocation2 + $0x7] sm:$0x1]
      %v3107 = vld [vmem:[#allocation2 + $0xb] sm:$0x1]
      %v3108 = vld [vmem:[#allocation2 + $0xf] sm:$0x1]
      %v3109 = vld [vmem:[#allocation2 + $0x13] sm:$0x1]
      %v3110 = vld [vmem:[#allocation2 + $0x17] sm:$0x1]
      %v3111 = vld [vmem:[#allocation2 + $0x1b] sm:$0x1]
      %v3112 = vld [vmem:[#allocation2 + $0x1f] sm:$0x1]
      %v3113 = vld [vmem:[%s27 + $0xc0] sm:$0xff]
      %v3114 = vld [vmem:[%s27 + $0xc8] sm:$0xff]
      %v3115 = vld [vmem:[%s27 + $0xd0] sm:$0xff]
      %v3116 = vld [vmem:[%s27 + $0xd8] sm:$0xff]
      %v3117 = vld [vmem:[%s27 + $0xe0] sm:$0xff]
      %v3118 = vld [vmem:[%s27 + $0xe8] sm:$0xff]
      %v3119 = vld [vmem:[%s27 + $0xf0] sm:$0xff]
      %v3120 = vld [vmem:[%s27 + $0xf8] sm:$0xff]
      %v3129 = vrot.slane %v3106, 7
      %v3130 = vsel %vm2808, %v3129, %v3105
      %v3131 = vrot.slane %v3107, 6
      %v3132 = vsel %vm2811, %v3131, %v3130
      %v3133 = vrot.slane %v3108, 5
      %v3134 = vsel %vm2814, %v3133, %v3132
      %v3135 = vrot.slane %v3109, 4
      %v3136 = vsel %vm2817, %v3135, %v3134
      %v3137 = vrot.slane %v3110, 3
      %v3138 = vsel %vm2820, %v3137, %v3136
      %v3139 = vrot.slane %v3111, 2
      %v3140 = vsel %vm2823, %v3139, %v3138
      %v3141 = vrot.slane %v3112, 1
      %v3142 = vsel %vm2826, %v3141, %v3140
      %v3143 = vsel %vm1285, %v3142, 0
      %3145 = vmatprep.subr.mxu0 0.0
      %3146 = vmatpush1.msra.mxu0 %v3113
      %3147 = vmatprep.subr.mxu0 0.0
      %3148 = vmatpush1.msra.mxu0 %v3114
      %3149 = vmatprep.subr.mxu0 0.0
      %3150 = vmatpush1.msra.mxu0 %v3115
      %3151 = vmatprep.subr.mxu0 0.0
      %3152 = vmatpush1.msra.mxu0 %v3116
      %3153 = vmatprep.subr.mxu0 0.0
      %3154 = vmatpush1.msra.mxu0 %v3117
      %3155 = vmatprep.subr.mxu0 0.0
      %3156 = vmatpush1.msra.mxu0 %v3118
      %3157 = vmatprep.subr.mxu0 0.0
      %3158 = vmatpush1.msra.mxu0 %v3119
      %3159 = vmatprep.subr.mxu0 0.0
      %3160 = vmatpush1.msra.mxu0 %v3120
      %3161 = vmatprep.subr.mxu0 0.0
      %3162 = vmatpush1.msra.mxu0 0.0
      %3163 = vmatprep.subr.mxu0 0.0
      %3164 = vmatpush1.msra.mxu0 0.0
      %3165 = vmatprep.subr.mxu0 0.0
      %3166 = vmatpush1.msra.mxu0 0.0
      %3167 = vmatprep.subr.mxu0 0.0
      %3168 = vmatpush1.msra.mxu0 0.0
      %3169 = vmatprep.subr.mxu0 0.0
      %3170 = vmatpush1.msra.mxu0 0.0
      %3171 = vmatprep.subr.mxu0 0.0
      %3172 = vmatpush1.msra.mxu0 0.0
      %3173 = vmatprep.subr.mxu0 0.0
      %3174 = vmatpush1.msra.mxu0 0.0
      %3175 = vmatprep.subr.mxu0 0.0
      %3176 = vmatpush1.msra.mxu0 0.0
      %3177 = vmatprep.subr.mxu0 0.0
      %3178 = vmatpush1.msra.mxu0 0.0
      %3179 = vmatprep.subr.mxu0 0.0
      %3180 = vmatpush1.msra.mxu0 0.0
      %3181 = vmatprep.subr.mxu0 0.0
      %3182 = vmatpush1.msra.mxu0 0.0
      %3183 = vmatprep.subr.mxu0 0.0
      %3184 = vmatpush1.msra.mxu0 0.0
      %3185 = vmatprep.subr.mxu0 0.0
      %3186 = vmatpush1.msra.mxu0 0.0
      %3187 = vmatprep.subr.mxu0 0.0
      %3188 = vmatpush1.msra.mxu0 0.0
      %3189 = vmatprep.subr.mxu0 0.0
      %3190 = vmatpush1.msra.mxu0 0.0
      %3191 = vmatprep.subr.mxu0 0.0
      %3192 = vmatpush1.msra.mxu0 0.0
      %3193 = vmatprep.subr.mxu0 0.0
      %3194 = vmatpush1.msra.mxu0 0.0
      %3195 = vmatprep.subr.mxu0 0.0
      %3196 = vmatpush1.msra.mxu0 0.0
      %3197 = vmatprep.subr.mxu0 0.0
      %3198 = vmatpush1.msra.mxu0 0.0
      %3199 = vmatprep.subr.mxu0 0.0
      %3200 = vmatpush1.msra.mxu0 0.0
      %3201 = vmatprep.subr.mxu0 0.0
      %3202 = vmatpush1.msra.mxu0 0.0
      %3203 = vmatprep.subr.mxu0 0.0
      %3204 = vmatpush1.msra.mxu0 0.0
      %3205 = vmatprep.subr.mxu0 0.0
      %3206 = vmatpush1.msra.mxu0 0.0
      %3207 = vmatprep.subr.mxu0 0.0
      %3208 = vmatpush1.msra.mxu0 0.0
      %3209 = vmatprep.mubr.f32.mxu0 0.0
      %3210 = vmatmul.mubr.f32.gmra.mrb[0].mxu0 %v3143
      %v3211 = vpop.f32.mrb[0].mxu0
      %v3212 = vadd.f32 0.0, %v3211
      %v3213 = vpop.f32.mrb[0].mxu0
      %3214 = vdwg.mxu0
      %v3215 = vadd.f32 %v3104, %v3212
      %v3216 = vld [vmem:[%s29] sm:$0x1]
      %v3218 = vlaneseq
      %v3219 = vshrl.u32 %v3218, 7
      %v3220 = vsub.s32 0, %v3219
      %v3221 = vrot.slane %v3216, %v3220
      %v3223 = vadd.f32 %v3215, %v3221
      %v3224 = vld [vmem:[%s31] sm:$0x1]
      %v3225 = vld [vmem:[%s33] sm:$0x1]
      %v3226 = vsel %vm1285, %v3223, 0.0
      %3227 = vadd.xlane.f32.xlu0 %v3226
      %v3228 = vpop.xlane.xlu0 %3227
      %v3229 = vmul.f32 %v3228, %v2642
      %v3230 = vsub.f32 %v3223, %v3229
      %v3231 = vmul.f32 %v3230, %v3230
      %v3232 = vsel %vm1285, %v3231, 0.0
      %3233 = vadd.xlane.f32.xlu0 %v3232
      %v3234 = vpop.xlane.xlu0 %3233
      %v3235 = vmul.f32 %v3234, %v2642
      %v3236 = vadd.f32 %v3235, 1e-05
      %v3237 = vrsqrt.pop %v3236
      %v3238 = vmul.f32 %v3230, %v3237
      %v3240 = vlaneseq
      %v3241 = vshrl.u32 %v3240, 7
      %v3242 = vsub.s32 0, %v3241
      %v3243 = vrot.slane %v3224, %v3242
      %v3245 = vmul.f32 %v3238, %v3243
      %v3247 = vlaneseq
      %v3248 = vshrl.u32 %v3247, 7
      %v3249 = vsub.s32 0, %v3248
      %v3250 = vrot.slane %v3225, %v3249
      %v3252 = vadd.f32 %v3245, %v3250
      %v3253 = vmax.f32 %v3252, 0.0
      %3255 = vset.pattern.permute.xlu0 0
      %3256 = vperm.xlu0 %3255, %v1212
      %v3257 = vpop.permute.xlu0 %3256
      %v3259 = vmul.f32 %v3253, %v3257
      %v3260 = vadd.f32 %v1211, %v3259
      %v3261 = vld [vmem:[%s35] sm:$0x1]
      %v3262 = vld [vmem:[%s37] sm:$0x1]
      %v3263 = vsel %vm1285, %v3260, 0.0
      %3264 = vadd.xlane.f32.xlu0 %v3263
      %v3265 = vpop.xlane.xlu0 %3264
      %v3266 = vmul.f32 %v3265, %v2642
      %v3267 = vsub.f32 %v3260, %v3266
      %v3268 = vmul.f32 %v3267, %v3267
      %v3269 = vsel %vm1285, %v3268, 0.0
      %3270 = vadd.xlane.f32.xlu0 %v3269
      %v3271 = vpop.xlane.xlu0 %3270
      %v3272 = vmul.f32 %v3271, %v2642
      %v3273 = vadd.f32 %v3272, 1e-05
      %v3274 = vrsqrt.pop %v3273
      %v3275 = vmul.f32 %v3267, %v3274
      %v3277 = vlaneseq
      %v3278 = vshrl.u32 %v3277, 7
      %v3279 = vsub.s32 0, %v3278
      %v3280 = vrot.slane %v3261, %v3279
      %v3282 = vmul.f32 %v3275, %v3280
      %v3284 = vlaneseq
      %v3285 = vshrl.u32 %v3284, 7
      %v3286 = vsub.s32 0, %v3285
      %v3287 = vrot.slane %v3262, %v3286
      %v3289 = vadd.f32 %v3282, %v3287
      %v3290 = vld [vmem:[%s39] sm:$0xff]
      %v3291 = vld [vmem:[%s39 + $0x8] sm:$0xff]
      %v3292 = vld [vmem:[%s39 + $0x10] sm:$0xff]
      %v3293 = vld [vmem:[%s39 + $0x18] sm:$0xff]
      %v3294 = vld [vmem:[%s39 + $0x20] sm:$0xff]
      %v3295 = vld [vmem:[%s39 + $0x28] sm:$0xff]
      %v3296 = vld [vmem:[%s39 + $0x30] sm:$0xff]
      %v3297 = vld [vmem:[%s39 + $0x38] sm:$0xff]
      %v3298 = vld [vmem:[%s41] sm:$0x1]
      %v3300 = vlaneseq
      %v3301 = vshrl.u32 %v3300, 7
      %v3302 = vsub.s32 0, %v3301
      %v3303 = vrot.slane %v3298, %v3302
      %v3306 = vsel %vm1285, %v3289, 0
      %3308 = vmatprep.subr.mxu0 0.0
      %3309 = vmatpush1.msra.mxu0 %v3290
      %3310 = vmatprep.subr.mxu0 0.0
      %3311 = vmatpush1.msra.mxu0 %v3291
      %3312 = vmatprep.subr.mxu0 0.0
      %3313 = vmatpush1.msra.mxu0 %v3292
      %3314 = vmatprep.subr.mxu0 0.0
      %3315 = vmatpush1.msra.mxu0 %v3293
      %3316 = vmatprep.subr.mxu0 0.0
      %3317 = vmatpush1.msra.mxu0 %v3294
      %3318 = vmatprep.subr.mxu0 0.0
      %3319 = vmatpush1.msra.mxu0 %v3295
      %3320 = vmatprep.subr.mxu0 0.0
      %3321 = vmatpush1.msra.mxu0 %v3296
      %3322 = vmatprep.subr.mxu0 0.0
      %3323 = vmatpush1.msra.mxu0 %v3297
      %3324 = vmatprep.subr.mxu0 0.0
      %3325 = vmatpush1.msra.mxu0 0.0
      %3326 = vmatprep.subr.mxu0 0.0
      %3327 = vmatpush1.msra.mxu0 0.0
      %3328 = vmatprep.subr.mxu0 0.0
      %3329 = vmatpush1.msra.mxu0 0.0
      %3330 = vmatprep.subr.mxu0 0.0
      %3331 = vmatpush1.msra.mxu0 0.0
      %3332 = vmatprep.subr.mxu0 0.0
      %3333 = vmatpush1.msra.mxu0 0.0
      %3334 = vmatprep.subr.mxu0 0.0
      %3335 = vmatpush1.msra.mxu0 0.0
      %3336 = vmatprep.subr.mxu0 0.0
      %3337 = vmatpush1.msra.mxu0 0.0
      %3338 = vmatprep.subr.mxu0 0.0
      %3339 = vmatpush1.msra.mxu0 0.0
      %3340 = vmatprep.subr.mxu0 0.0
      %3341 = vmatpush1.msra.mxu0 0.0
      %3342 = vmatprep.subr.mxu0 0.0
      %3343 = vmatpush1.msra.mxu0 0.0
      %3344 = vmatprep.subr.mxu0 0.0
      %3345 = vmatpush1.msra.mxu0 0.0
      %3346 = vmatprep.subr.mxu0 0.0
      %3347 = vmatpush1.msra.mxu0 0.0
      %3348 = vmatprep.subr.mxu0 0.0
      %3349 = vmatpush1.msra.mxu0 0.0
      %3350 = vmatprep.subr.mxu0 0.0
      %3351 = vmatpush1.msra.mxu0 0.0
      %3352 = vmatprep.subr.mxu0 0.0
      %3353 = vmatpush1.msra.mxu0 0.0
      %3354 = vmatprep.subr.mxu0 0.0
      %3355 = vmatpush1.msra.mxu0 0.0
      %3356 = vmatprep.subr.mxu0 0.0
      %3357 = vmatpush1.msra.mxu0 0.0
      %3358 = vmatprep.subr.mxu0 0.0
      %3359 = vmatpush1.msra.mxu0 0.0
      %3360 = vmatprep.subr.mxu0 0.0
      %3361 = vmatpush1.msra.mxu0 0.0
      %3362 = vmatprep.subr.mxu0 0.0
      %3363 = vmatpush1.msra.mxu0 0.0
      %3364 = vmatprep.subr.mxu0 0.0
      %3365 = vmatpush1.msra.mxu0 0.0
      %3366 = vmatprep.subr.mxu0 0.0
      %3367 = vmatpush1.msra.mxu0 0.0
      %3368 = vmatprep.subr.mxu0 0.0
      %3369 = vmatpush1.msra.mxu0 0.0
      %3370 = vmatprep.subr.mxu0 0.0
      %3371 = vmatpush1.msra.mxu0 0.0
      %3372 = vmatprep.mubr.f32.mxu0 0.0
      %3373 = vmatmul.mubr.f32.gmra.mrb[0].mxu0 %v3306
      %v3374 = vpop.f32.mrb[0].mxu0
      %v3375 = vadd.f32 %v3303, %v3374
      %v3376 = vpop.f32.mrb[0].mxu0
      %3377 = vdwg.mxu0
      %v3378 = vmax.f32 %v3375, 0.0
      %v3379 = vld [vmem:[%s43] sm:$0xff]
      %v3380 = vld [vmem:[%s43 + $0x8] sm:$0xff]
      %v3381 = vld [vmem:[%s43 + $0x10] sm:$0xff]
      %v3382 = vld [vmem:[%s43 + $0x18] sm:$0xff]
      %v3383 = vld [vmem:[%s43 + $0x20] sm:$0xff]
      %v3384 = vld [vmem:[%s43 + $0x28] sm:$0xff]
      %v3385 = vld [vmem:[%s43 + $0x30] sm:$0xff]
      %v3386 = vld [vmem:[%s43 + $0x38] sm:$0xff]
      %v3387 = vld [vmem:[%s43 + $0x40] sm:$0xff]
      %v3388 = vld [vmem:[%s43 + $0x48] sm:$0xff]
      %v3389 = vld [vmem:[%s43 + $0x50] sm:$0xff]
      %v3390 = vld [vmem:[%s43 + $0x58] sm:$0xff]
      %v3391 = vld [vmem:[%s43 + $0x60] sm:$0xff]
      %v3392 = vld [vmem:[%s43 + $0x68] sm:$0xff]
      %v3393 = vld [vmem:[%s43 + $0x70] sm:$0xff]
      %v3394 = vld [vmem:[%s43 + $0x78] sm:$0xff]
      %v3395 = vld [vmem:[%s45] sm:$0x1]
      %v3397 = vlaneseq
      %v3398 = vshrl.u32 %v3397, 7
      %v3399 = vsub.s32 0, %v3398
      %v3400 = vrot.slane %v3395, %v3399
      %3402 = vmatprep.subr.mxu0 0.0
      %3403 = vmatpush1.msra.mxu0 %v3379
      %3404 = vmatprep.subr.mxu0 0.0
      %3405 = vmatpush1.msra.mxu0 %v3380
      %3406 = vmatprep.subr.mxu0 0.0
      %3407 = vmatpush1.msra.mxu0 %v3381
      %3408 = vmatprep.subr.mxu0 0.0
      %3409 = vmatpush1.msra.mxu0 %v3382
      %3410 = vmatprep.subr.mxu0 0.0
      %3411 = vmatpush1.msra.mxu0 %v3383
      %3412 = vmatprep.subr.mxu0 0.0
      %3413 = vmatpush1.msra.mxu0 %v3384
      %3414 = vmatprep.subr.mxu0 0.0
      %3415 = vmatpush1.msra.mxu0 %v3385
      %3416 = vmatprep.subr.mxu0 0.0
      %3417 = vmatpush1.msra.mxu0 %v3386
      %3418 = vmatprep.subr.mxu0 0.0
      %3419 = vmatpush1.msra.mxu0 %v3387
      %3420 = vmatprep.subr.mxu0 0.0
      %3421 = vmatpush1.msra.mxu0 %v3388
      %3422 = vmatprep.subr.mxu0 0.0
      %3423 = vmatpush1.msra.mxu0 %v3389
      %3424 = vmatprep.subr.mxu0 0.0
      %3425 = vmatpush1.msra.mxu0 %v3390
      %3426 = vmatprep.subr.mxu0 0.0
      %3427 = vmatpush1.msra.mxu0 %v3391
      %3428 = vmatprep.subr.mxu0 0.0
      %3429 = vmatpush1.msra.mxu0 %v3392
      %3430 = vmatprep.subr.mxu0 0.0
      %3431 = vmatpush1.msra.mxu0 %v3393
      %3432 = vmatprep.subr.mxu0 0.0
      %3433 = vmatpush1.msra.mxu0 %v3394
      %3434 = vmatprep.subr.mxu0 0.0
      %3435 = vmatpush1.msra.mxu0 0.0
      %3436 = vmatprep.subr.mxu0 0.0
      %3437 = vmatpush1.msra.mxu0 0.0
      %3438 = vmatprep.subr.mxu0 0.0
      %3439 = vmatpush1.msra.mxu0 0.0
      %3440 = vmatprep.subr.mxu0 0.0
      %3441 = vmatpush1.msra.mxu0 0.0
      %3442 = vmatprep.subr.mxu0 0.0
      %3443 = vmatpush1.msra.mxu0 0.0
      %3444 = vmatprep.subr.mxu0 0.0
      %3445 = vmatpush1.msra.mxu0 0.0
      %3446 = vmatprep.subr.mxu0 0.0
      %3447 = vmatpush1.msra.mxu0 0.0
      %3448 = vmatprep.subr.mxu0 0.0
      %3449 = vmatpush1.msra.mxu0 0.0
      %3450 = vmatprep.subr.mxu0 0.0
      %3451 = vmatpush1.msra.mxu0 0.0
      %3452 = vmatprep.subr.mxu0 0.0
      %3453 = vmatpush1.msra.mxu0 0.0
      %3454 = vmatprep.subr.mxu0 0.0
      %3455 = vmatpush1.msra.mxu0 0.0
      %3456 = vmatprep.subr.mxu0 0.0
      %3457 = vmatpush1.msra.mxu0 0.0
      %3458 = vmatprep.subr.mxu0 0.0
      %3459 = vmatpush1.msra.mxu0 0.0
      %3460 = vmatprep.subr.mxu0 0.0
      %3461 = vmatpush1.msra.mxu0 0.0
      %3462 = vmatprep.subr.mxu0 0.0
      %3463 = vmatpush1.msra.mxu0 0.0
      %3464 = vmatprep.subr.mxu0 0.0
      %3465 = vmatpush1.msra.mxu0 0.0
      %3466 = vmatprep.mubr.f32.mxu0 0.0
      %3467 = vmatmul.mubr.f32.gmra.mrb[0].mxu0 %v3378
      %v3468 = vpop.f32.mrb[0].mxu0
      %v3469 = vadd.f32 %v3400, %v3468
      %v3470 = vpop.f32.mrb[0].mxu0
      %3471 = vdwg.mxu0
      %v3472 = vadd.f32 %v3289, %v3469
      %v3473 = vld [vmem:[%s47] sm:$0x1]
      %v3474 = vld [vmem:[%s49] sm:$0x1]
      %v3475 = vsel %vm1285, %v3472, 0.0
      %3476 = vadd.xlane.f32.xlu0 %v3475
      %v3477 = vpop.xlane.xlu0 %3476
      %v3478 = vmul.f32 %v3477, %v2642
      %v3479 = vsub.f32 %v3472, %v3478
      %v3480 = vmul.f32 %v3479, %v3479
      %v3481 = vsel %vm1285, %v3480, 0.0
      %3482 = vadd.xlane.f32.xlu0 %v3481
      %v3483 = vpop.xlane.xlu0 %3482
      %v3484 = vmul.f32 %v3483, %v2642
      %v3485 = vadd.f32 %v3484, 1e-05
      %v3486 = vrsqrt.pop %v3485
      %v3487 = vmul.f32 %v3479, %v3486
      %v3489 = vlaneseq
      %v3490 = vshrl.u32 %v3489, 7
      %v3491 = vsub.s32 0, %v3490
      %v3492 = vrot.slane %v3473, %v3491
      %v3494 = vmul.f32 %v3487, %v3492
      %v3496 = vlaneseq
      %v3497 = vshrl.u32 %v3496, 7
      %v3498 = vsub.s32 0, %v3497
      %v3499 = vrot.slane %v3474, %v3498
      %v3501 = vadd.f32 %v3494, %v3499
      %v3502 = vld [vmem:[%s51] sm:$0xff]
      %v3503 = vld [vmem:[%s51 + $0x8] sm:$0xff]
      %v3504 = vld [vmem:[%s51 + $0x10] sm:$0xff]
      %v3505 = vld [vmem:[%s51 + $0x18] sm:$0xff]
      %v3506 = vld [vmem:[%s51 + $0x20] sm:$0xff]
      %v3507 = vld [vmem:[%s51 + $0x28] sm:$0xff]
      %v3508 = vld [vmem:[%s51 + $0x30] sm:$0xff]
      %v3509 = vld [vmem:[%s51 + $0x38] sm:$0xff]
      %v3511 = vsel %vm1285, %v3501, 0
      %3513 = vmatprep.subr.mxu0 0.0
      %3514 = vmatpush1.msra.mxu0 %v3502
      %3515 = vmatprep.subr.mxu0 0.0
      %3516 = vmatpush1.msra.mxu0 %v3503
      %3517 = vmatprep.subr.mxu0 0.0
      %3518 = vmatpush1.msra.mxu0 %v3504
      %3519 = vmatprep.subr.mxu0 0.0
      %3520 = vmatpush1.msra.mxu0 %v3505
      %3521 = vmatprep.subr.mxu0 0.0
      %3522 = vmatpush1.msra.mxu0 %v3506
      %3523 = vmatprep.subr.mxu0 0.0
      %3524 = vmatpush1.msra.mxu0 %v3507
      %3525 = vmatprep.subr.mxu0 0.0
      %3526 = vmatpush1.msra.mxu0 %v3508
      %3527 = vmatprep.subr.mxu0 0.0
      %3528 = vmatpush1.msra.mxu0 %v3509
      %3529 = vmatprep.subr.mxu0 0.0
      %3530 = vmatpush1.msra.mxu0 0.0
      %3531 = vmatprep.subr.mxu0 0.0
      %3532 = vmatpush1.msra.mxu0 0.0
      %3533 = vmatprep.subr.mxu0 0.0
      %3534 = vmatpush1.msra.mxu0 0.0
      %3535 = vmatprep.subr.mxu0 0.0
      %3536 = vmatpush1.msra.mxu0 0.0
      %3537 = vmatprep.subr.mxu0 0.0
      %3538 = vmatpush1.msra.mxu0 0.0
      %3539 = vmatprep.subr.mxu0 0.0
      %3540 = vmatpush1.msra.mxu0 0.0
      %3541 = vmatprep.subr.mxu0 0.0
      %3542 = vmatpush1.msra.mxu0 0.0
      %3543 = vmatprep.subr.mxu0 0.0
      %3544 = vmatpush1.msra.mxu0 0.0
      %3545 = vmatprep.subr.mxu0 0.0
      %3546 = vmatpush1.msra.mxu0 0.0
      %3547 = vmatprep.subr.mxu0 0.0
      %3548 = vmatpush1.msra.mxu0 0.0
      %3549 = vmatprep.subr.mxu0 0.0
      %3550 = vmatpush1.msra.mxu0 0.0
      %3551 = vmatprep.subr.mxu0 0.0
      %3552 = vmatpush1.msra.mxu0 0.0
      %3553 = vmatprep.subr.mxu0 0.0
      %3554 = vmatpush1.msra.mxu0 0.0
      %3555 = vmatprep.subr.mxu0 0.0
      %3556 = vmatpush1.msra.mxu0 0.0
      %3557 = vmatprep.subr.mxu0 0.0
      %3558 = vmatpush1.msra.mxu0 0.0
      %3559 = vmatprep.subr.mxu0 0.0
      %3560 = vmatpush1.msra.mxu0 0.0
      %3561 = vmatprep.subr.mxu0 0.0
      %3562 = vmatpush1.msra.mxu0 0.0
      %3563 = vmatprep.subr.mxu0 0.0
      %3564 = vmatpush1.msra.mxu0 0.0
      %3565 = vmatprep.subr.mxu0 0.0
      %3566 = vmatpush1.msra.mxu0 0.0
      %3567 = vmatprep.subr.mxu0 0.0
      %3568 = vmatpush1.msra.mxu0 0.0
      %3569 = vmatprep.subr.mxu0 0.0
      %3570 = vmatpush1.msra.mxu0 0.0
      %3571 = vmatprep.subr.mxu0 0.0
      %3572 = vmatpush1.msra.mxu0 0.0
      %3573 = vmatprep.subr.mxu0 0.0
      %3574 = vmatpush1.msra.mxu0 0.0
      %3575 = vmatprep.subr.mxu0 0.0
      %3576 = vmatpush1.msra.mxu0 0.0
      %3577 = vmatprep.mubr.f32.mxu0 0.0
      %3578 = vmatmul.mubr.f32.gmra.mrb[0].mxu0 %v3511
      %v3579 = vpop.f32.mrb[0].mxu0
      %v3580 = vadd.f32 0.0, %v3579
      %v3581 = vpop.f32.mrb[0].mxu0
      %3582 = vdwg.mxu0
      %v3583 = vld [vmem:[%s53] sm:$0x1]
      %v3584 = vld [vmem:[%s55] sm:$0x1]
      %v3585 = vsel %vm1285, %v3580, 0.0
      %3586 = vadd.xlane.f32.xlu0 %v3585
      %v3587 = vpop.xlane.xlu0 %3586
      %v3588 = vmul.f32 %v3587, %v2642
      %v3589 = vsub.f32 %v3580, %v3588
      %v3590 = vmul.f32 %v3589, %v3589
      %v3591 = vsel %vm1285, %v3590, 0.0
      %3592 = vadd.xlane.f32.xlu0 %v3591
      %v3593 = vpop.xlane.xlu0 %3592
      %v3594 = vmul.f32 %v3593, %v2642
      %v3595 = vadd.f32 %v3594, 1e-05
      %v3596 = vrsqrt.pop %v3595
      %v3597 = vmul.f32 %v3589, %v3596
      %v3599 = vlaneseq
      %v3600 = vshrl.u32 %v3599, 7
      %v3601 = vsub.s32 0, %v3600
      %v3602 = vrot.slane %v3583, %v3601
      %v3604 = vmul.f32 %v3597, %v3602
      %v3606 = vlaneseq
      %v3607 = vshrl.u32 %v3606, 7
      %v3608 = vsub.s32 0, %v3607
      %v3609 = vrot.slane %v3584, %v3608
      %v3611 = vadd.f32 %v3604, %v3609
      %v3612 = vmax.f32 %v3611, 0.0
      %v3613 = vld [vmem:[%s57] sm:$0xff]
      %v3614 = vld [vmem:[%s57 + $0x8] sm:$0xff]
      %v3615 = vld [vmem:[%s57 + $0x10] sm:$0xff]
      %v3616 = vld [vmem:[%s57 + $0x18] sm:$0xff]
      %v3617 = vld [vmem:[%s57 + $0x20] sm:$0xff]
      %v3618 = vld [vmem:[%s57 + $0x28] sm:$0xff]
      %v3619 = vld [vmem:[%s57 + $0x30] sm:$0xff]
      %v3620 = vld [vmem:[%s57 + $0x38] sm:$0xff]
      %3621 = vmatprep.subr.mxu0 0.0
      %3622 = vmatpush1.msra.mxu0 %v3613
      %3623 = vmatprep.subr.mxu0 0.0
      %3624 = vmatpush1.msra.mxu0 %v3614
      %3625 = vmatprep.subr.mxu0 0.0
      %3626 = vmatpush1.msra.mxu0 %v3615
      %3627 = vmatprep.subr.mxu0 0.0
      %3628 = vmatpush1.msra.mxu0 %v3616
      %3629 = vmatprep.subr.mxu0 0.0
      %3630 = vmatpush1.msra.mxu0 %v3617
      %3631 = vmatprep.subr.mxu0 0.0
      %3632 = vmatpush1.msra.mxu0 %v3618
      %3633 = vmatprep.subr.mxu0 0.0
      %3634 = vmatpush1.msra.mxu0 %v3619
      %3635 = vmatprep.subr.mxu0 0.0
      %3636 = vmatpush1.msra.mxu0 %v3620
      %3637 = vmatprep.subr.mxu0 0.0
      %3638 = vmatpush1.msra.mxu0 0.0
      %3639 = vmatprep.subr.mxu0 0.0
      %3640 = vmatpush1.msra.mxu0 0.0
      %3641 = vmatprep.subr.mxu0 0.0
      %3642 = vmatpush1.msra.mxu0 0.0
      %3643 = vmatprep.subr.mxu0 0.0
      %3644 = vmatpush1.msra.mxu0 0.0
      %3645 = vmatprep.subr.mxu0 0.0
      %3646 = vmatpush1.msra.mxu0 0.0
      %3647 = vmatprep.subr.mxu0 0.0
      %3648 = vmatpush1.msra.mxu0 0.0
      %3649 = vmatprep.subr.mxu0 0.0
      %3650 = vmatpush1.msra.mxu0 0.0
      %3651 = vmatprep.subr.mxu0 0.0
      %3652 = vmatpush1.msra.mxu0 0.0
      %3653 = vmatprep.subr.mxu0 0.0
      %3654 = vmatpush1.msra.mxu0 0.0
      %3655 = vmatprep.subr.mxu0 0.0
      %3656 = vmatpush1.msra.mxu0 0.0
      %3657 = vmatprep.subr.mxu0 0.0
      %3658 = vmatpush1.msra.mxu0 0.0
      %3659 = vmatprep.subr.mxu0 0.0
      %3660 = vmatpush1.msra.mxu0 0.0
      %3661 = vmatprep.subr.mxu0 0.0
      %3662 = vmatpush1.msra.mxu0 0.0
      %3663 = vmatprep.subr.mxu0 0.0
      %3664 = vmatpush1.msra.mxu0 0.0
      %3665 = vmatprep.subr.mxu0 0.0
      %3666 = vmatpush1.msra.mxu0 0.0
      %3667 = vmatprep.subr.mxu0 0.0
      %3668 = vmatpush1.msra.mxu0 0.0
      %3669 = vmatprep.subr.mxu0 0.0
      %3670 = vmatpush1.msra.mxu0 0.0
      %3671 = vmatprep.subr.mxu0 0.0
      %3672 = vmatpush1.msra.mxu0 0.0
      %3673 = vmatprep.subr.mxu0 0.0
      %3674 = vmatpush1.msra.mxu0 0.0
      %3675 = vmatprep.subr.mxu0 0.0
      %3676 = vmatpush1.msra.mxu0 0.0
      %3677 = vmatprep.subr.mxu0 0.0
      %3678 = vmatpush1.msra.mxu0 0.0
      %3679 = vmatprep.subr.mxu0 0.0
      %3680 = vmatpush1.msra.mxu0 0.0
      %3681 = vmatprep.subr.mxu0 0.0
      %3682 = vmatpush1.msra.mxu0 0.0
      %3683 = vmatprep.subr.mxu0 0.0
      %3684 = vmatpush1.msra.mxu0 0.0
      %3685 = vmatprep.mubr.f32.mxu0 0.0
      %3686 = vmatmul.mubr.f32.gmra.mrb[0].mxu0 %v3511
      %v3687 = vpop.f32.mrb[0].mxu0
      %v3688 = vadd.f32 0.0, %v3687
      %v3689 = vpop.f32.mrb[0].mxu0
      %3690 = vdwg.mxu0
      %v3691 = vld [vmem:[%s59] sm:$0x1]
      %v3692 = vld [vmem:[%s61] sm:$0x1]
      %v3693 = vsel %vm1285, %v3688, 0.0
      %3694 = vadd.xlane.f32.xlu0 %v3693
      %v3695 = vpop.xlane.xlu0 %3694
      %v3696 = vmul.f32 %v3695, %v2642
      %v3697 = vsub.f32 %v3688, %v3696
      %v3698 = vmul.f32 %v3697, %v3697
      %v3699 = vsel %vm1285, %v3698, 0.0
      %3700 = vadd.xlane.f32.xlu0 %v3699
      %v3701 = vpop.xlane.xlu0 %3700
      %v3702 = vmul.f32 %v3701, %v2642
      %v3703 = vadd.f32 %v3702, 1e-05
      %v3704 = vrsqrt.pop %v3703
      %v3705 = vmul.f32 %v3697, %v3704
      %v3707 = vlaneseq
      %v3708 = vshrl.u32 %v3707, 7
      %v3709 = vsub.s32 0, %v3708
      %v3710 = vrot.slane %v3691, %v3709
      %v3712 = vmul.f32 %v3705, %v3710
      %v3714 = vlaneseq
      %v3715 = vshrl.u32 %v3714, 7
      %v3716 = vsub.s32 0, %v3715
      %v3717 = vrot.slane %v3692, %v3716
      %v3719 = vadd.f32 %v3712, %v3717
      %v3720 = vmax.f32 %v3719, 0.0
      %v3721 = vld [vmem:[%s63] sm:$0xff]
      %v3722 = vld [vmem:[%s63 + $0x8] sm:$0xff]
      %v3723 = vld [vmem:[%s63 + $0x10] sm:$0xff]
      %v3724 = vld [vmem:[%s63 + $0x18] sm:$0xff]
      %v3725 = vld [vmem:[%s63 + $0x20] sm:$0xff]
      %v3726 = vld [vmem:[%s63 + $0x28] sm:$0xff]
      %v3727 = vld [vmem:[%s63 + $0x30] sm:$0xff]
      %v3728 = vld [vmem:[%s63 + $0x38] sm:$0xff]
      %v3729 = vld [vmem:[%s65] sm:$0x1]
      %v3731 = vlaneseq
      %v3732 = vshrl.u32 %v3731, 7
      %v3733 = vsub.s32 0, %v3732
      %v3734 = vrot.slane %v3729, %v3733
      %v3737 = vsel %vm1285, %v3612, 0
      %3739 = vmatprep.subr.mxu0 0.0
      %3740 = vmatpush1.msra.mxu0 %v3721
      %3741 = vmatprep.subr.mxu0 0.0
      %3742 = vmatpush1.msra.mxu0 %v3722
      %3743 = vmatprep.subr.mxu0 0.0
      %3744 = vmatpush1.msra.mxu0 %v3723
      %3745 = vmatprep.subr.mxu0 0.0
      %3746 = vmatpush1.msra.mxu0 %v3724
      %3747 = vmatprep.subr.mxu0 0.0
      %3748 = vmatpush1.msra.mxu0 %v3725
      %3749 = vmatprep.subr.mxu0 0.0
      %3750 = vmatpush1.msra.mxu0 %v3726
      %3751 = vmatprep.subr.mxu0 0.0
      %3752 = vmatpush1.msra.mxu0 %v3727
      %3753 = vmatprep.subr.mxu0 0.0
      %3754 = vmatpush1.msra.mxu0 %v3728
      %3755 = vmatprep.subr.mxu0 0.0
      %3756 = vmatpush1.msra.mxu0 0.0
      %3757 = vmatprep.subr.mxu0 0.0
      %3758 = vmatpush1.msra.mxu0 0.0
      %3759 = vmatprep.subr.mxu0 0.0
      %3760 = vmatpush1.msra.mxu0 0.0
      %3761 = vmatprep.subr.mxu0 0.0
      %3762 = vmatpush1.msra.mxu0 0.0
      %3763 = vmatprep.subr.mxu0 0.0
      %3764 = vmatpush1.msra.mxu0 0.0
      %3765 = vmatprep.subr.mxu0 0.0
      %3766 = vmatpush1.msra.mxu0 0.0
      %3767 = vmatprep.subr.mxu0 0.0
      %3768 = vmatpush1.msra.mxu0 0.0
      %3769 = vmatprep.subr.mxu0 0.0
      %3770 = vmatpush1.msra.mxu0 0.0
      %3771 = vmatprep.subr.mxu0 0.0
      %3772 = vmatpush1.msra.mxu0 0.0
      %3773 = vmatprep.subr.mxu0 0.0
      %3774 = vmatpush1.msra.mxu0 0.0
      %3775 = vmatprep.subr.mxu0 0.0
      %3776 = vmatpush1.msra.mxu0 0.0
      %3777 = vmatprep.subr.mxu0 0.0
      %3778 = vmatpush1.msra.mxu0 0.0
      %3779 = vmatprep.subr.mxu0 0.0
      %3780 = vmatpush1.msra.mxu0 0.0
      %3781 = vmatprep.subr.mxu0 0.0
      %3782 = vmatpush1.msra.mxu0 0.0
      %3783 = vmatprep.subr.mxu0 0.0
      %3784 = vmatpush1.msra.mxu0 0.0
      %3785 = vmatprep.subr.mxu0 0.0
      %3786 = vmatpush1.msra.mxu0 0.0
      %3787 = vmatprep.subr.mxu0 0.0
      %3788 = vmatpush1.msra.mxu0 0.0
      %3789 = vmatprep.subr.mxu0 0.0
      %3790 = vmatpush1.msra.mxu0 0.0
      %3791 = vmatprep.subr.mxu0 0.0
      %3792 = vmatpush1.msra.mxu0 0.0
      %3793 = vmatprep.subr.mxu0 0.0
      %3794 = vmatpush1.msra.mxu0 0.0
      %3795 = vmatprep.subr.mxu0 0.0
      %3796 = vmatpush1.msra.mxu0 0.0
      %3797 = vmatprep.subr.mxu0 0.0
      %3798 = vmatpush1.msra.mxu0 0.0
      %3799 = vmatprep.subr.mxu0 0.0
      %3800 = vmatpush1.msra.mxu0 0.0
      %3801 = vmatprep.subr.mxu0 0.0
      %3802 = vmatpush1.msra.mxu0 0.0
      %3803 = vmatprep.mubr.f32.mxu0 0.0
      %3804 = vmatmul.mubr.f32.gmra.mrb[0].mxu0 %v3737
      %v3805 = vpop.f32.mrb[0].mxu0
      %v3806 = vadd.f32 %v3734, %v3805
      %v3807 = vpop.f32.mrb[0].mxu0
      %3808 = vdwg.mxu0
      %v3809 = vld [vmem:[%s67] sm:$0xff]
      %v3810 = vld [vmem:[%s67 + $0x8] sm:$0xff]
      %v3811 = vld [vmem:[%s67 + $0x10] sm:$0xff]
      %v3812 = vld [vmem:[%s67 + $0x18] sm:$0xff]
      %v3813 = vld [vmem:[%s67 + $0x20] sm:$0xff]
      %v3814 = vld [vmem:[%s67 + $0x28] sm:$0xff]
      %v3815 = vld [vmem:[%s67 + $0x30] sm:$0xff]
      %v3816 = vld [vmem:[%s67 + $0x38] sm:$0xff]
      %v3817 = vld [vmem:[%s69] sm:$0x1]
      %v3819 = vlaneseq
      %v3820 = vshrl.u32 %v3819, 7
      %v3821 = vsub.s32 0, %v3820
      %v3822 = vrot.slane %v3817, %v3821
      %v3825 = vsel %vm1285, %v3720, 0
      %3827 = vmatprep.subr.mxu0 0.0
      %3828 = vmatpush1.msra.mxu0 %v3809
      %3829 = vmatprep.subr.mxu0 0.0
      %3830 = vmatpush1.msra.mxu0 %v3810
      %3831 = vmatprep.subr.mxu0 0.0
      %3832 = vmatpush1.msra.mxu0 %v3811
      %3833 = vmatprep.subr.mxu0 0.0
      %3834 = vmatpush1.msra.mxu0 %v3812
      %3835 = vmatprep.subr.mxu0 0.0
      %3836 = vmatpush1.msra.mxu0 %v3813
      %3837 = vmatprep.subr.mxu0 0.0
      %3838 = vmatpush1.msra.mxu0 %v3814
      %3839 = vmatprep.subr.mxu0 0.0
      %3840 = vmatpush1.msra.mxu0 %v3815
      %3841 = vmatprep.subr.mxu0 0.0
      %3842 = vmatpush1.msra.mxu0 %v3816
      %3843 = vmatprep.subr.mxu0 0.0
      %3844 = vmatpush1.msra.mxu0 0.0
      %3845 = vmatprep.subr.mxu0 0.0
      %3846 = vmatpush1.msra.mxu0 0.0
      %3847 = vmatprep.subr.mxu0 0.0
      %3848 = vmatpush1.msra.mxu0 0.0
      %3849 = vmatprep.subr.mxu0 0.0
      %3850 = vmatpush1.msra.mxu0 0.0
      %3851 = vmatprep.subr.mxu0 0.0
      %3852 = vmatpush1.msra.mxu0 0.0
      %3853 = vmatprep.subr.mxu0 0.0
      %3854 = vmatpush1.msra.mxu0 0.0
      %3855 = vmatprep.subr.mxu0 0.0
      %3856 = vmatpush1.msra.mxu0 0.0
      %3857 = vmatprep.subr.mxu0 0.0
      %3858 = vmatpush1.msra.mxu0 0.0
      %3859 = vmatprep.subr.mxu0 0.0
      %3860 = vmatpush1.msra.mxu0 0.0
      %3861 = vmatprep.subr.mxu0 0.0
      %3862 = vmatpush1.msra.mxu0 0.0
      %3863 = vmatprep.subr.mxu0 0.0
      %3864 = vmatpush1.msra.mxu0 0.0
      %3865 = vmatprep.subr.mxu0 0.0
      %3866 = vmatpush1.msra.mxu0 0.0
      %3867 = vmatprep.subr.mxu0 0.0
      %3868 = vmatpush1.msra.mxu0 0.0
      %3869 = vmatprep.subr.mxu0 0.0
      %3870 = vmatpush1.msra.mxu0 0.0
      %3871 = vmatprep.subr.mxu0 0.0
      %3872 = vmatpush1.msra.mxu0 0.0
      %3873 = vmatprep.subr.mxu0 0.0
      %3874 = vmatpush1.msra.mxu0 0.0
      %3875 = vmatprep.subr.mxu0 0.0
      %3876 = vmatpush1.msra.mxu0 0.0
      %3877 = vmatprep.subr.mxu0 0.0
      %3878 = vmatpush1.msra.mxu0 0.0
      %3879 = vmatprep.subr.mxu0 0.0
      %3880 = vmatpush1.msra.mxu0 0.0
      %3881 = vmatprep.subr.mxu0 0.0
      %3882 = vmatpush1.msra.mxu0 0.0
      %3883 = vmatprep.subr.mxu0 0.0
      %3884 = vmatpush1.msra.mxu0 0.0
      %3885 = vmatprep.subr.mxu0 0.0
      %3886 = vmatpush1.msra.mxu0 0.0
      %3887 = vmatprep.subr.mxu0 0.0
      %3888 = vmatpush1.msra.mxu0 0.0
      %3889 = vmatprep.subr.mxu0 0.0
      %3890 = vmatpush1.msra.mxu0 0.0
      %3891 = vmatprep.mubr.f32.mxu0 0.0
      %3892 = vmatmul.mubr.f32.gmra.mrb[0].mxu0 %v3825
      %v3893 = vpop.f32.mrb[0].mxu0
      %v3894 = vadd.f32 %v3822, %v3893
      %v3895 = vpop.f32.mrb[0].mxu0
      %3896 = vdwg.mxu0
      %v3897 = vld [vmem:[%s1198] sm:$0xff]
      %3899 = vrot.lane.b32.xlu0 %v3897, 2
      %v3900 = vpop.permute.xlu0 %3899
      %v3902 = vsub.f32 %v3897, %v3900
      %v3903 = vmul.f32 %v3902, 0.5
      %3905 = vrot.lane.b32.xlu0 %v3903, 126
      %v3906 = vpop.permute.xlu0 %3905
      %v3908 = vadd.f32 %v3897, %v3906
      %v3909 = vmul.f32 %v3894, 0.5
      %v3910 = vmin.f32 %v3894, 8.740336
      %3912 = vrot.lane.b32.xlu0 %v3902, 126
      %v3913 = vpop.permute.xlu0 %3912
      %v3915 = vmul.f32 %v3909, %v3913
      %v3916 = vadd.f32 %v3915, %v3908
      %v3917 = vmul.f32 %v3910, 1.442695
      %v3918 = vpow.pop %v3917
      %v3919 = vmul.f32 %v3918, %v3902
      %v3920 = vmul.f32 %v3919, 0.5
      %3922 = vrot.lane.b32.xlu0 %v3920, 126
      %v3923 = vpop.permute.xlu0 %3922
      %v3925 = vsub.f32 %v3916, %v3923
      %v3926 = vadd.f32 %v3916, %v3923
      %v3927 = vld [vmem:[%s1206] sm:$0xff]
      %v3928 = vadd.f32 %v1212, %v3927
      %v3929 = vsub.f32 1.0, %v3928
      %v3930 = vld [vmem:[%s1194] sm:$0xff]
      %3932 = vset.pattern.permute.xlu0 0
      %3933 = vperm.xlu0 %3932, %v3929
      %v3934 = vpop.permute.xlu0 %3933
      %v3936 = vmul.f32 %v3930, %v3934
      %3938 = vset.pattern.permute.xlu0 0
      %3939 = vperm.xlu0 %3938, %v3928
      %v3940 = vpop.permute.xlu0 %3939
      %v3942 = vmul.f32 %v3806, %v3940
      %v3943 = vadd.f32 %v3936, %v3942
      %vm3944 = vcmask 80896
      %3945 = vst.msk [vmem:[%s1210] sm:$0xff] %vm3944, %v3943
      %v3946 = vmul.f32 %v3897, %v3929
      %v3947 = vmul.f32 %v3925, %v3928
      %v3948 = vadd.f32 %v3946, %v3947
      %3950 = vrot.lane.b32.xlu0 %v3948, 10
      %v3951 = vpop.permute.xlu0 %3950
      %vm3953 = vcmask 89168
      %3954 = vst.msk [vmem:[%s1210] sm:$0xff] %vm3953, %v3951
      %3955 = vrot.lane.b32.xlu0 %v3929, 1
      %v3956 = vpop.permute.xlu0 %3955
      %v3958 = vmul.f32 %v3897, %v3956
      %3959 = vrot.lane.b32.xlu0 %v3928, 1
      %v3960 = vpop.permute.xlu0 %3959
      %v3962 = vmul.f32 %v3925, %v3960
      %v3963 = vadd.f32 %v3958, %v3962
      %3965 = vrot.lane.b32.xlu0 %v3963, 10
      %v3966 = vpop.permute.xlu0 %3965
      %vm3968 = vcmask 97368
      %3969 = vst.msk [vmem:[%s1210] sm:$0xff] %vm3968, %v3966
      %3970 = vrot.lane.b32.xlu0 %v3929, 2
      %v3971 = vpop.permute.xlu0 %3970
      %v3973 = vmul.f32 %v3897, %v3971
      %v3974 = vmul.f32 %v3926, %v3928
      %3976 = vrot.lane.b32.xlu0 %v3974, 2
      %v3977 = vpop.permute.xlu0 %3976
      %v3979 = vadd.f32 %v3973, %v3977
      %3981 = vrot.lane.b32.xlu0 %v3979, 10
      %v3982 = vpop.permute.xlu0 %3981
      %vm3984 = vcmask 105568
      %3985 = vst.msk [vmem:[%s1210] sm:$0xff] %vm3984, %v3982
      %3986 = vrot.lane.b32.xlu0 %v3929, 3
      %v3987 = vpop.permute.xlu0 %3986
      %v3989 = vmul.f32 %v3897, %v3987
      %v3990 = vmul.f32 %v3926, %v3960
      %3992 = vrot.lane.b32.xlu0 %v3990, 2
      %v3993 = vpop.permute.xlu0 %3992
      %v3995 = vadd.f32 %v3989, %v3993
      %3997 = vrot.lane.b32.xlu0 %v3995, 10
      %v3998 = vpop.permute.xlu0 %3997
      %vm4000 = vcmask 113768
      %4001 = vst.msk [vmem:[%s1210] sm:$0xff] %vm4000, %v3998
      %v4002 = vld [vmem:[%s1175] sm:$0xff]
      %v4003 = vmul.f32 %v4002, %v3934
      %v4004 = vmul.f32 %v3501, %v3940
      %v4005 = vadd.f32 %v4003, %v4004
      %4007 = vrot.lane.b32.xlu0 %v4005, 14
      %v4008 = vpop.permute.xlu0 %4007
      %vm4010 = vcmask 638064
      %4011 = vst.msk [vmem:[%s1210] sm:$0xff] %vm4010, %v4008
      %vm4012 = vcmask 1048176
      %4013 = vst.msk [vmem:[%s1210] sm:$0xff] %vm4012, 0.0
      %p4014 = scmp.lt.s32.totalorder %s82, 1
      %s4015 = scalar_select %p4014, %s82, 1
      %s4016 = smul.addr %s4015, 8
      %s4017 = scalar_lea.vmem %s71, %s4016
      // Predicated region
      $region161: #{rcnn_head_forward.3} parent=159 // pred_check
        %p4018 = pneg %p880
      $region162: #{rcnn_head_forward.3} parent=159 // pred_check_branch
        %4020 = sbr.rel (%p4018) target = $region164
      $region163: #{rcnn_head_forward.3} parent=159 // pred_region
        _
      $region164: #{rcnn_head_forward.3} parent=159 // pred_fallthru
        _
    $region160: #{rcnn_head_forward.3} parent=5 // pred_fallthru
      _
    %p4021 = scmp.le.s32.totalorder 2, %s77
    // Predicated region
    $region165: #{rcnn_head_forward.3} parent=5 // pred_check
      %p4022 = pneg %p4021
    $region166: #{rcnn_head_forward.3} parent=5 // pred_check_branch
      %4024 = sbr.rel (%p4022) target = $region168
    $region167: #{rcnn_head_forward.3} parent=5 // pred_region
      %s4025 = ssub.s32 %s77, 2
      // Predicated region
      $region169: #{rcnn_head_forward.3} parent=167 // pred_check
        %p4026 = pneg %p886
      $region170: #{rcnn_head_forward.3} parent=167 // pred_check_branch
        %4028 = sbr.rel (%p4026) target = $region172
      $region171: #{rcnn_head_forward.3} parent=167 // pred_region
        %p4029 = scmp.lt.s32.totalorder %s83, 1
        %s4030 = scalar_select %p4029, %s83, 1
        %s4031 = smul.addr %s4030, 8
        %s4032 = scalar_lea.vmem %s71, %s4031
      $region172: #{rcnn_head_forward.3} parent=167 // pred_fallthru
        _
    $region168: #{rcnn_head_forward.3} parent=5 // pred_fallthru
      _
  $region6: #{rcnn_head_forward.3} parent=0 // loop_footer
    %s81 = sadd.s32 1, %s77
  $region7: #{rcnn_head_forward.3} parent=0 // loop_footer_branch
    %76 = sbr.rel target = $region3
  $region8: #{rcnn_head_forward.3} parent=0 // loop_exit
    _

</llo_original>
